<compile_context>
chip_gen: v5e
topology: v5e:2x2
jax: 0.10.0
libtpu: 0.0.40
codegen_flags: <defaults>
</compile_context>

<pallas_src>
import functools

import jax
import jax.numpy as jnp
from jax.experimental import pallas as pl
from jax.experimental.pallas import tpu as pltpu

# Plain Python float (NOT a jnp array) so it is not captured as a traced const.
NEG_INF = -9e15

_VMEM_LIMIT = 32 * 1024 * 1024  # safe on v5e/v6e/v7x; buffers here are tiny
_LANE = 128


def _round_up(n, m):
    return ((n + m - 1) // m) * m


def _choose_tq(n):
    # >= 2 query blocks keeps both v7x TensorCores busy ("parallel" axis);
    # 256 feeds the 2x256^2 MXU on v6e/v7x. Fall back to 128 (v5e-friendly)
    # or the whole dim.
    if n % 256 == 0 and n // 256 >= 2:
        return 256
    if n % 128 == 0:
        return 128
    return n


# ----------------------------------------------------------------------------
# Fused GraphConvolution layer:
#   s   = x @ W                         (computed in-kernel, W resident)
#   out = row_softmax(mask(s_q @ s.T)) @ s + b, then relu / log_softmax
# ----------------------------------------------------------------------------
def _layer_kernel(x_q_ref, x_full_ref, w_ref, adj_ref, b_ref, out_ref,
                  *, finalize, nvalid):
    w = w_ref[...]                                            # [Fin, F] bf16

    # Support tiles: MXU bf16 inputs, f32 accumulation, bf16 for downstream MXU.
    s_q = jnp.dot(x_q_ref[...], w,
                  preferred_element_type=jnp.float32).astype(jnp.bfloat16)
    s_kv = jnp.dot(x_full_ref[...], w,
                   preferred_element_type=jnp.float32).astype(jnp.bfloat16)

    # scores = s_q @ s_kv.T without a transpose: contract last dims of both.
    scores = jax.lax.dot_general(
        s_q, s_kv,
        dimension_numbers=(((1,), (1,)), ((), ())),
        preferred_element_type=jnp.float32,
    )                                                          # [TQ, N] f32
    scores = jnp.where(adj_ref[...] != 0, scores, NEG_INF)

    # Plain (single-pass) masked softmax per query tile; exp in bf16 — the
    # inner loop is EUP-bound on v6e/v7x and bf16 ~doubles exp throughput.
    mx = jnp.max(scores, axis=1, keepdims=True)
    p = jnp.exp((scores - mx).astype(jnp.bfloat16))            # [TQ, N] bf16
    l = jnp.sum(p.astype(jnp.float32), axis=1, keepdims=True)  # [TQ, 1] f32

    acc = jnp.dot(p, s_kv, preferred_element_type=jnp.float32)  # [TQ, F] f32

    if finalize == "relu":
        out = acc * pl.reciprocal(l, approx=True) + b_ref[...]
        out_ref[...] = jnp.maximum(out, 0.0).astype(out_ref.dtype)
    else:  # "log_softmax" over the first `nvalid` (real) columns
        out = acc / l + b_ref[...]          # exact divide: scale error would
        cols = jax.lax.broadcasted_iota(jnp.int32, out.shape, 1)
        logits = jnp.where(cols < nvalid, out, NEG_INF)
        m2 = jnp.max(logits, axis=1, keepdims=True)
        z = logits - m2
        lse = jnp.log(jnp.sum(jnp.exp(z), axis=1, keepdims=True))
        out_ref[...] = (z - lse).astype(out_ref.dtype)


def _gc_layer(x_bf16, adj_i8, w_bf16, b_f32, *, finalize, nvalid, out_dtype):
    n, fin = x_bf16.shape
    f = w_bf16.shape[1]
    tq = _choose_tq(n)
    steps = n // tq
    out_bytes = jnp.dtype(out_dtype).itemsize

    cost = pl.CostEstimate(
        flops=(2 * n * fin * f                 # s_q tiles
               + steps * 2 * n * fin * f       # s_kv recompute per query block
               + 2 * n * n * f                 # scores
               + 2 * n * n * f),               # aggregation
        transcendentals=n * n + n * f,         # softmax exps (+ finalize)
        bytes_accessed=(2 * n * fin * 2        # x tiles + resident x
                        + fin * f * 2          # W (resident, once)
                        + n * n                # adj int8
                        + n * f * out_bytes),  # output
    )
    kern = functools.partial(_layer_kernel, finalize=finalize, nvalid=nvalid)
    return pl.pallas_call(
        kern,
        out_shape=jax.ShapeDtypeStruct((n, f), out_dtype),
        grid=(steps,),
        in_specs=[
            pl.BlockSpec((tq, fin), lambda i: (i, 0)),   # x query-row tile
            pl.BlockSpec((n, fin), lambda i: (0, 0)),    # x resident (kv)
            pl.BlockSpec((fin, f), lambda i: (0, 0)),    # W resident
            pl.BlockSpec((tq, n), lambda i: (i, 0)),     # adj row-block (int8)
            pl.BlockSpec((1, f), lambda i: (0, 0)),      # bias
        ],
        out_specs=pl.BlockSpec((tq, f), lambda i: (i, 0)),
        compiler_params=pltpu.CompilerParams(
            dimension_semantics=("parallel",),
            vmem_limit_bytes=_VMEM_LIMIT,
        ),
        cost_estimate=cost,
    )(x_bf16, x_bf16, w_bf16, adj_i8, b_f32)


# ----------------------------------------------------------------------------
# Full GAT forward (eval mode)
# ----------------------------------------------------------------------------
def gat_forward(x, adj, w1, b1, w2, b2):
    n, fin = x.shape
    nhid = w1.shape[1]
    nclass = w2.shape[1]

    fin_p = _round_up(fin, _LANE)
    nhid_p = _round_up(nhid, _LANE)
    ncls_p = _round_up(nclass, _LANE)

    # Lane-dense zero padding of all feature dims; bf16 MXU inputs.
    x_p = jnp.pad(x, ((0, 0), (0, fin_p - fin))).astype(jnp.bfloat16)
    w1_p = jnp.pad(w1, ((0, fin_p - fin), (0, nhid_p - nhid))).astype(jnp.bfloat16)
    b1_p = jnp.pad(b1.reshape(1, -1), ((0, 0), (0, nhid_p - nhid))).astype(jnp.float32)
    w2_p = jnp.pad(w2, ((0, nhid_p - nhid), (0, ncls_p - nclass))).astype(jnp.bfloat16)
    b2_p = jnp.pad(b2.reshape(1, -1), ((0, 0), (0, ncls_p - nclass))).astype(jnp.float32)
    adj_i8 = (adj > 0).astype(jnp.int8)            # 4x fewer DMA bytes, reused twice

    # Layer 1: fused support + masked softmax aggregation + relu (dropout = id)
    h1 = _gc_layer(x_p, adj_i8, w1_p, b1_p, finalize="relu",
                   nvalid=nhid, out_dtype=jnp.bfloat16)        # [N, nhid_p] bf16

    # Layer 2: fused support + masked softmax aggregation + log_softmax
    out_p = _gc_layer(h1, adj_i8, w2_p, b2_p, finalize="log_softmax",
                      nvalid=nclass, out_dtype=jnp.float32)    # [N, ncls_p] f32

    return out_p[:, :nclass]


# ----------------------------------------------------------------------------
# Reference + init
# ----------------------------------------------------------------------------
def gat_reference(x, adj, w1, b1, w2, b2):
    def layer(h, w, b):
        s = h @ w
        scores = jnp.where(adj > 0, s @ s.T, NEG_INF)
        attn = jax.nn.softmax(scores, axis=1)
        return attn @ s + b
    h1 = jax.nn.relu(layer(x, w1, b1))
    logits = layer(h1, w2, b2)
    return jax.nn.log_softmax(logits, axis=1)


def init_gcn_params(key, in_features, out_features):
    # matches GraphConvolution.reset_parameters: U(-stdv, stdv), stdv=1/sqrt(out)
    stdv = 1.0 / (out_features ** 0.5)
    kw, kb = jax.random.split(key)
    w = jax.random.uniform(kw, (in_features, out_features), jnp.float32,
                           minval=-stdv, maxval=stdv)
    b = jax.random.uniform(kb, (out_features,), jnp.float32,
                           minval=-stdv, maxval=stdv)
    return w, b


if __name__ == "__main__":
    N, in_features, nhid, nclass = 512, 32, 32, 8

    key = jax.random.PRNGKey(0)
    kx, kadj, k1, k2 = jax.random.split(key, 4)

    x = jax.random.normal(kx, (N, in_features), jnp.float32)

    # random sparse adjacency with self-loops (avoids empty rows)
    adj = (jax.random.uniform(kadj, (N, N)) < 0.05).astype(jnp.float32)
    adj = jnp.maximum(adj, jnp.eye(N, dtype=jnp.float32))

    w1, b1 = init_gcn_params(k1, in_features, nhid)
    w2, b2 = init_gcn_params(k2, nhid, nclass)

    fwd = jax.jit(gat_forward)
    out = jax.block_until_ready(fwd(x, adj, w1, b1, w2, b2))

    assert out.shape == (N, nclass) and out.dtype == jnp.float32
    assert bool(jnp.all(jnp.isfinite(out)))
    # rows are valid log-probabilities
    row_lse = jax.scipy.special.logsumexp(out, axis=1)
    assert float(jnp.max(jnp.abs(row_lse))) < 1e-3
    # loose check vs f32 reference (bf16 MXU + bf16 exp tolerance)
    ref = gat_reference(x, adj, w1, b1, w2, b2)
    err = float(jnp.max(jnp.abs(out - ref)))
    assert err < 0.5, f"max abs diff vs reference too large: {err}"

    print("KERNEL_OK")
</pallas_src>

<mosaic_0001>
module attributes {stable_mosaic.version = 11 : i64} {
  func.func @_layer_kernel(%arg0: i32, %arg1: memref<256x128xbf16, #tpu.memory_space<vmem>>, %arg2: memref<512x128xbf16, #tpu.memory_space<vmem>>, %arg3: memref<128x128xbf16, #tpu.memory_space<vmem>>, %arg4: memref<256x512xi8, #tpu.memory_space<vmem>>, %arg5: memref<1x128xf32, #tpu.memory_space<vmem>>, %arg6: memref<256x128xbf16, #tpu.memory_space<vmem>>) attributes {dimension_semantics = [#tpu.dimension_semantics<parallel>], iteration_bounds = array<i64: 2>, scalar_prefetch = 0 : i64, scratch_operands = 0 : i64, tpu.core_type = #tpu.core_type<tc>, window_params = [{transform_indices = @transform_0, window_bounds = array<i64: 256, 128>}, {pipeline_mode = #tpu.pipeline_mode<synchronous>, transform_indices = @transform_1, window_bounds = array<i64: 512, 128>}, {pipeline_mode = #tpu.pipeline_mode<synchronous>, transform_indices = @transform_2, window_bounds = array<i64: 128, 128>}, {transform_indices = @transform_3, window_bounds = array<i64: 256, 512>}, {pipeline_mode = #tpu.pipeline_mode<synchronous>, transform_indices = @transform_4, window_bounds = array<i64: 1, 128>}, {transform_indices = @transform_5, window_bounds = array<i64: 256, 128>}]} {
    %c0 = arith.constant 0 : index
    %c0_0 = arith.constant 0 : index
    %0 = vector.load %arg3[%c0, %c0_0] : memref<128x128xbf16, #tpu.memory_space<vmem>>, vector<128x128xbf16>
    %c0_1 = arith.constant 0 : index
    %c0_2 = arith.constant 0 : index
    %1 = vector.load %arg1[%c0_1, %c0_2] : memref<256x128xbf16, #tpu.memory_space<vmem>>, vector<256x128xbf16>
    %cst = arith.constant dense<0.000000e+00> : vector<256x128xf32>
    %2 = tpu.matmul %1, %0, %cst {dimension_numbers = #tpu.dot_dimension_numbers<[1], [0], [0], [1], [0, 0, 1, 1], [], []>} : vector<256x128xbf16>, vector<128x128xbf16>, vector<256x128xf32> -> vector<256x128xf32>
    %3 = arith.truncf %2 : vector<256x128xf32> to vector<256x128xbf16>
    %c0_3 = arith.constant 0 : index
    %c0_4 = arith.constant 0 : index
    %4 = vector.load %arg2[%c0_3, %c0_4] : memref<512x128xbf16, #tpu.memory_space<vmem>>, vector<512x128xbf16>
    %cst_5 = arith.constant dense<0.000000e+00> : vector<512x128xf32>
    %5 = tpu.matmul %4, %0, %cst_5 {dimension_numbers = #tpu.dot_dimension_numbers<[1], [0], [0], [1], [0, 0, 1, 1], [], []>} : vector<512x128xbf16>, vector<128x128xbf16>, vector<512x128xf32> -> vector<512x128xf32>
    %6 = arith.truncf %5 : vector<512x128xf32> to vector<512x128xbf16>
    %cst_6 = arith.constant dense<0.000000e+00> : vector<256x512xf32>
    %7 = tpu.matmul %3, %6, %cst_6 {dimension_numbers = #tpu.dot_dimension_numbers<[1], [1], [0], [0], [0, 0, 1, 0], [], []>} : vector<256x128xbf16>, vector<512x128xbf16>, vector<256x512xf32> -> vector<256x512xf32>
    %c0_7 = arith.constant 0 : index
    %c0_8 = arith.constant 0 : index
    %8 = vector.load %arg4[%c0_7, %c0_8] : memref<256x512xi8, #tpu.memory_space<vmem>>, vector<256x512xi8>
    %c0_i8 = arith.constant 0 : i8
    %9 = vector.broadcast %c0_i8 : i8 to vector<256x512xi8>
    %10 = arith.cmpi ne, %8, %9 : vector<256x512xi8>
    %cst_9 = arith.constant -9.000000e+15 : f32
    %11 = vector.broadcast %cst_9 : f32 to vector<256x512xf32>
    %12 = arith.select %10, %7, %11 : vector<256x512xi1>, vector<256x512xf32>
    %cst_10 = arith.constant dense<0xFF800000> : vector<256xf32>
    %13 = vector.multi_reduction <maximumf>, %12, %cst_10 [1] : vector<256x512xf32> to vector<256xf32>
    %14 = vector.shape_cast %13 : vector<256xf32> to vector<256x1xf32>
    %15 = vector.broadcast %14 : vector<256x1xf32> to vector<256x512xf32>
    %16 = arith.subf %12, %15 : vector<256x512xf32>
    %17 = arith.truncf %16 : vector<256x512xf32> to vector<256x512xbf16>
    %18 = math.exp %17 : vector<256x512xbf16>
    %19 = arith.extf %18 : vector<256x512xbf16> to vector<256x512xf32>
    %cst_11 = arith.constant dense<0.000000e+00> : vector<256xf32>
    %20 = vector.multi_reduction <add>, %19, %cst_11 [1] : vector<256x512xf32> to vector<256xf32>
    %21 = vector.shape_cast %20 : vector<256xf32> to vector<256x1xf32>
    %cst_12 = arith.constant dense<0.000000e+00> : vector<256x128xf32>
    %22 = tpu.matmul %18, %6, %cst_12 {dimension_numbers = #tpu.dot_dimension_numbers<[1], [0], [0], [1], [0, 0, 1, 1], [], []>} : vector<256x512xbf16>, vector<512x128xbf16>, vector<256x128xf32> -> vector<256x128xf32>
    %23 = tpu.reciprocal %21 {approx = true} : vector<256x1xf32> -> vector<256x1xf32>
    %24 = vector.broadcast %23 : vector<256x1xf32> to vector<256x128xf32>
    %25 = arith.mulf %22, %24 : vector<256x128xf32>
    %c0_13 = arith.constant 0 : index
    %c0_14 = arith.constant 0 : index
    %26 = vector.load %arg5[%c0_13, %c0_14] : memref<1x128xf32, #tpu.memory_space<vmem>>, vector<1x128xf32>
    %27 = vector.broadcast %26 : vector<1x128xf32> to vector<256x128xf32>
    %28 = arith.addf %25, %27 : vector<256x128xf32>
    %cst_15 = arith.constant 0.000000e+00 : f32
    %29 = vector.broadcast %cst_15 : f32 to vector<256x128xf32>
    %30 = arith.maximumf %28, %29 : vector<256x128xf32>
    %31 = arith.truncf %30 : vector<256x128xf32> to vector<256x128xbf16>
    %c0_16 = arith.constant 0 : index
    %c0_17 = arith.constant 0 : index
    %32 = vector.load %arg6[%c0_16, %c0_17] : memref<256x128xbf16, #tpu.memory_space<vmem>>, vector<256x128xbf16>
    tpu.vector_store %arg6[%c0_16, %c0_17], %31 {strides = array<i32>} : memref<256x128xbf16, #tpu.memory_space<vmem>>, vector<256x128xbf16>,
    return
  }
  func.func @transform_0(%arg0: i32) -> (i32, i32) {
    %c0_i32 = arith.constant 0 : i32
    %c0_i32_0 = arith.constant 0 : i32
    return %arg0, %c0_i32 : i32, i32
  }
  func.func @transform_1(%arg0: i32) -> (i32, i32) {
    %c0_i32 = arith.constant 0 : i32
    %c0_i32_0 = arith.constant 0 : i32
    %c0_i32_1 = arith.constant 0 : i32
    return %c0_i32, %c0_i32_0 : i32, i32
  }
  func.func @transform_2(%arg0: i32) -> (i32, i32) {
    %c0_i32 = arith.constant 0 : i32
    %c0_i32_0 = arith.constant 0 : i32
    %c0_i32_1 = arith.constant 0 : i32
    return %c0_i32, %c0_i32_0 : i32, i32
  }
  func.func @transform_3(%arg0: i32) -> (i32, i32) {
    %c0_i32 = arith.constant 0 : i32
    %c0_i32_0 = arith.constant 0 : i32
    return %arg0, %c0_i32 : i32, i32
  }
  func.func @transform_4(%arg0: i32) -> (i32, i32) {
    %c0_i32 = arith.constant 0 : i32
    %c0_i32_0 = arith.constant 0 : i32
    %c0_i32_1 = arith.constant 0 : i32
    return %c0_i32, %c0_i32_0 : i32, i32
  }
  func.func @transform_5(%arg0: i32) -> (i32, i32) {
    %c0_i32 = arith.constant 0 : i32
    %c0_i32_0 = arith.constant 0 : i32
    return %arg0, %c0_i32 : i32, i32
  }
}

module attributes {stable_mosaic.version = 11 : i64} {
  func.func @_layer_kernel(%arg0: i32, %arg1: memref<256x128xbf16, #tpu.memory_space<vmem>>, %arg2: memref<512x128xbf16, #tpu.memory_space<vmem>>, %arg3: memref<128x128xbf16, #tpu.memory_space<vmem>>, %arg4: memref<256x512xi8, #tpu.memory_space<vmem>>, %arg5: memref<1x128xf32, #tpu.memory_space<vmem>>, %arg6: memref<256x128xf32, #tpu.memory_space<vmem>>) attributes {dimension_semantics = [#tpu.dimension_semantics<parallel>], iteration_bounds = array<i64: 2>, scalar_prefetch = 0 : i64, scratch_operands = 0 : i64, tpu.core_type = #tpu.core_type<tc>, window_params = [{transform_indices = @transform_0, window_bounds = array<i64: 256, 128>}, {pipeline_mode = #tpu.pipeline_mode<synchronous>, transform_indices = @transform_1, window_bounds = array<i64: 512, 128>}, {pipeline_mode = #tpu.pipeline_mode<synchronous>, transform_indices = @transform_2, window_bounds = array<i64: 128, 128>}, {transform_indices = @transform_3, window_bounds = array<i64: 256, 512>}, {pipeline_mode = #tpu.pipeline_mode<synchronous>, transform_indices = @transform_4, window_bounds = array<i64: 1, 128>}, {transform_indices = @transform_5, window_bounds = array<i64: 256, 128>}]} {
    %c0 = arith.constant 0 : index
    %c0_0 = arith.constant 0 : index
    %0 = vector.load %arg3[%c0, %c0_0] : memref<128x128xbf16, #tpu.memory_space<vmem>>, vector<128x128xbf16>
    %c0_1 = arith.constant 0 : index
    %c0_2 = arith.constant 0 : index
    %1 = vector.load %arg1[%c0_1, %c0_2] : memref<256x128xbf16, #tpu.memory_space<vmem>>, vector<256x128xbf16>
    %cst = arith.constant dense<0.000000e+00> : vector<256x128xf32>
    %2 = tpu.matmul %1, %0, %cst {dimension_numbers = #tpu.dot_dimension_numbers<[1], [0], [0], [1], [0, 0, 1, 1], [], []>} : vector<256x128xbf16>, vector<128x128xbf16>, vector<256x128xf32> -> vector<256x128xf32>
    %3 = arith.truncf %2 : vector<256x128xf32> to vector<256x128xbf16>
    %c0_3 = arith.constant 0 : index
    %c0_4 = arith.constant 0 : index
    %4 = vector.load %arg2[%c0_3, %c0_4] : memref<512x128xbf16, #tpu.memory_space<vmem>>, vector<512x128xbf16>
    %cst_5 = arith.constant dense<0.000000e+00> : vector<512x128xf32>
    %5 = tpu.matmul %4, %0, %cst_5 {dimension_numbers = #tpu.dot_dimension_numbers<[1], [0], [0], [1], [0, 0, 1, 1], [], []>} : vector<512x128xbf16>, vector<128x128xbf16>, vector<512x128xf32> -> vector<512x128xf32>
    %6 = arith.truncf %5 : vector<512x128xf32> to vector<512x128xbf16>
    %cst_6 = arith.constant dense<0.000000e+00> : vector<256x512xf32>
    %7 = tpu.matmul %3, %6, %cst_6 {dimension_numbers = #tpu.dot_dimension_numbers<[1], [1], [0], [0], [0, 0, 1, 0], [], []>} : vector<256x128xbf16>, vector<512x128xbf16>, vector<256x512xf32> -> vector<256x512xf32>
    %c0_7 = arith.constant 0 : index
    %c0_8 = arith.constant 0 : index
    %8 = vector.load %arg4[%c0_7, %c0_8] : memref<256x512xi8, #tpu.memory_space<vmem>>, vector<256x512xi8>
    %c0_i8 = arith.constant 0 : i8
    %9 = vector.broadcast %c0_i8 : i8 to vector<256x512xi8>
    %10 = arith.cmpi ne, %8, %9 : vector<256x512xi8>
    %cst_9 = arith.constant -9.000000e+15 : f32
    %11 = vector.broadcast %cst_9 : f32 to vector<256x512xf32>
    %12 = arith.select %10, %7, %11 : vector<256x512xi1>, vector<256x512xf32>
    %cst_10 = arith.constant dense<0xFF800000> : vector<256xf32>
    %13 = vector.multi_reduction <maximumf>, %12, %cst_10 [1] : vector<256x512xf32> to vector<256xf32>
    %14 = vector.shape_cast %13 : vector<256xf32> to vector<256x1xf32>
    %15 = vector.broadcast %14 : vector<256x1xf32> to vector<256x512xf32>
    %16 = arith.subf %12, %15 : vector<256x512xf32>
    %17 = arith.truncf %16 : vector<256x512xf32> to vector<256x512xbf16>
    %18 = math.exp %17 : vector<256x512xbf16>
    %19 = arith.extf %18 : vector<256x512xbf16> to vector<256x512xf32>
    %cst_11 = arith.constant dense<0.000000e+00> : vector<256xf32>
    %20 = vector.multi_reduction <add>, %19, %cst_11 [1] : vector<256x512xf32> to vector<256xf32>
    %21 = vector.shape_cast %20 : vector<256xf32> to vector<256x1xf32>
    %cst_12 = arith.constant dense<0.000000e+00> : vector<256x128xf32>
    %22 = tpu.matmul %18, %6, %cst_12 {dimension_numbers = #tpu.dot_dimension_numbers<[1], [0], [0], [1], [0, 0, 1, 1], [], []>} : vector<256x512xbf16>, vector<512x128xbf16>, vector<256x128xf32> -> vector<256x128xf32>
    %23 = vector.broadcast %21 : vector<256x1xf32> to vector<256x128xf32>
    %24 = arith.divf %22, %23 : vector<256x128xf32>
    %c0_13 = arith.constant 0 : index
    %c0_14 = arith.constant 0 : index
    %25 = vector.load %arg5[%c0_13, %c0_14] : memref<1x128xf32, #tpu.memory_space<vmem>>, vector<1x128xf32>
    %26 = vector.broadcast %25 : vector<1x128xf32> to vector<256x128xf32>
    %27 = arith.addf %24, %26 : vector<256x128xf32>
    %28 = tpu.iota {dimensions = array<i32: 1>} : vector<256x128xi32>
    %c8_i32 = arith.constant 8 : i32
    %29 = vector.broadcast %c8_i32 : i32 to vector<256x128xi32>
    %30 = arith.cmpi slt, %28, %29 : vector<256x128xi32>
    %cst_15 = arith.constant -9.000000e+15 : f32
    %31 = vector.broadcast %cst_15 : f32 to vector<256x128xf32>
    %32 = arith.select %30, %27, %31 : vector<256x128xi1>, vector<256x128xf32>
    %cst_16 = arith.constant dense<0xFF800000> : vector<256xf32>
    %33 = vector.multi_reduction <maximumf>, %32, %cst_16 [1] : vector<256x128xf32> to vector<256xf32>
    %34 = vector.shape_cast %33 : vector<256xf32> to vector<256x1xf32>
    %35 = vector.broadcast %34 : vector<256x1xf32> to vector<256x128xf32>
    %36 = arith.subf %32, %35 : vector<256x128xf32>
    %37 = math.exp %36 : vector<256x128xf32>
    %cst_17 = arith.constant dense<0.000000e+00> : vector<256xf32>
    %38 = vector.multi_reduction <add>, %37, %cst_17 [1] : vector<256x128xf32> to vector<256xf32>
    %39 = vector.shape_cast %38 : vector<256xf32> to vector<256x1xf32>
    %40 = math.log %39 : vector<256x1xf32>
    %41 = vector.broadcast %40 : vector<256x1xf32> to vector<256x128xf32>
    %42 = arith.subf %36, %41 : vector<256x128xf32>
    %c0_18 = arith.constant 0 : index
    %c0_19 = arith.constant 0 : index
    %43 = vector.load %arg6[%c0_18, %c0_19] : memref<256x128xf32, #tpu.memory_space<vmem>>, vector<256x128xf32>
    tpu.vector_store %arg6[%c0_18, %c0_19], %42 {strides = array<i32>} : memref<256x128xf32, #tpu.memory_space<vmem>>, vector<256x128xf32>,
    return
  }
  func.func @transform_0(%arg0: i32) -> (i32, i32) {
    %c0_i32 = arith.constant 0 : i32
    %c0_i32_0 = arith.constant 0 : i32
    return %arg0, %c0_i32 : i32, i32
  }
  func.func @transform_1(%arg0: i32) -> (i32, i32) {
    %c0_i32 = arith.constant 0 : i32
    %c0_i32_0 = arith.constant 0 : i32
    %c0_i32_1 = arith.constant 0 : i32
    return %c0_i32, %c0_i32_0 : i32, i32
  }
  func.func @transform_2(%arg0: i32) -> (i32, i32) {
    %c0_i32 = arith.constant 0 : i32
    %c0_i32_0 = arith.constant 0 : i32
    %c0_i32_1 = arith.constant 0 : i32
    return %c0_i32, %c0_i32_0 : i32, i32
  }
  func.func @transform_3(%arg0: i32) -> (i32, i32) {
    %c0_i32 = arith.constant 0 : i32
    %c0_i32_0 = arith.constant 0 : i32
    return %arg0, %c0_i32 : i32, i32
  }
  func.func @transform_4(%arg0: i32) -> (i32, i32) {
    %c0_i32 = arith.constant 0 : i32
    %c0_i32_0 = arith.constant 0 : i32
    %c0_i32_1 = arith.constant 0 : i32
    return %c0_i32, %c0_i32_0 : i32, i32
  }
  func.func @transform_5(%arg0: i32) -> (i32, i32) {
    %c0_i32 = arith.constant 0 : i32
    %c0_i32_0 = arith.constant 0 : i32
    return %arg0, %c0_i32 : i32, i32
  }
}

</mosaic_0001>

<llo_original>
// kernel: gat_forward.2
$region0: #{gat_forward.2}
  #allocation0 [shape = 'u32[]', space=smem, size = 0x4, offset = 0x4, fixed_abs, tag = 'smem constant byte address 0x4 - core index']
  #allocation1 [shape = 'u32[72,128]{1,0:T(1,128)}', space=vmem, size = 0x9000, scoped, tag = 'internal scratch']
  %s0 = inlined_call_operand.vmem [shape: bf16[512,128], index: 0, kind: input, shape index: {}, may-alias: {0,1}]
  %s1 = inlined_call_operand.vmem [shape: bf16[512,128], index: 1, kind: input, shape index: {}, may-alias: {0,1}]
  %s2 = inlined_call_operand.vmem [shape: bf16[128,128], index: 2, kind: input, shape index: {}]
  %s3 = inlined_call_operand.vmem [shape: s8[512,512], index: 3, kind: input, shape index: {}]
  %s4 = inlined_call_operand.vmem [shape: f32[1,128], index: 4, kind: input, shape index: {}]
  %s5 = inlined_call_operand.vmem [shape: bf16[512,128], index: 5, kind: output, shape index: {}]
  %s6 = sld [smem:[#allocation0]]
  $region53: #{gat_forward.2} parent=0
    _
  %s8 = ssub.s32 1, %s6
  %s9 = scalar_select 0, %s8, %s6
  loop: start=0, step=1, limit=4
  $region2: #{gat_forward.2} parent=0 // loop_pre_header
    _
  $region3: #{gat_forward.2} parent=0 // loop_header
    %s11 = sphi 0, %s15
    %p12 = scmp.ge.s32.totalorder %s11, 4
    %s21 = sphi 0, %s23
    %s24 = sphi 0, %s21
    %s25 = sphi 0, %s24
    %s41 = sphi 0, %s25
    %s45 = sphi 0, %s45
    %s47 = sphi 0, %s45
    %s48 = sphi 0, %s47
    %s62 = sphi 0, %s48
    %s66 = sphi 0, %s66
    %s68 = sphi 0, %s66
    %s69 = sphi 0, %s68
    %s83 = sphi 0, %s69
    %s89 = sphi 0, %s91
    %s92 = sphi 0, %s89
    %s93 = sphi 0, %s92
    %s109 = sphi 0, %s93
    %s113 = sphi 0, %s113
    %s115 = sphi 0, %s113
    %s116 = sphi 0, %s115
    %s130 = sphi 0, %s116
    %s136 = sphi 0, %s138
    %s139 = sphi 0, %s136
    %s140 = sphi 0, %s139
    %s156 = sphi 0, %s140
  $region4: #{gat_forward.2} parent=0 // loop_header_branch
    %14 = sbr.rel (%p12) target = $region8
  $region5: #{gat_forward.2} parent=0 // loop_body
    %s16 = ssub.s32 %s11, 1
    %s17 = ssub.s32 %s11, 2
    %s18 = sadd.s32 %s11, 1
    %s19 = ssub.s32 %s11, %s18
    %p20 = scmp.eq.s32.totalorder %s19, 0
    %s22 = sadd.s32 %s21, 1
    %s23 = scalar_select %p20, %s21, %s22
    %p26 = pneg %p20
    %p27 = scmp.eq.s32.totalorder %s11, 1
    %p28 = por %p26, %p27
    %p29 = scmp.ne.s32.totalorder %s21, %s24
    %p30 = scmp.eq.s32.totalorder %s11, 0
    %p31 = por %p29, %p30
    %p32 = scmp.ne.s32.totalorder %s21, %s24
    %p33 = scmp.eq.s32.totalorder %s16, 1
    %p34 = por %p32, %p33
    %p35 = scmp.ne.s32.totalorder %s24, %s25
    %p36 = scmp.eq.s32.totalorder %s16, 0
    %p37 = por %p35, %p36
    %p38 = scmp.ne.s32.totalorder %s24, %s25
    %p39 = scmp.eq.s32.totalorder %s17, 1
    %p40 = por %p38, %p39
    %p42 = scmp.ne.s32.totalorder %s25, %s41
    %p43 = scmp.eq.s32.totalorder %s17, 0
    %p44 = por %p42, %p43
    %s46 = sadd.s32 %s45, 1
    %p49 = scmp.eq.s32.totalorder %s11, 1
    %p50 = scmp.ne.s32.totalorder %s45, %s47
    %p51 = scmp.eq.s32.totalorder %s11, 0
    %p52 = por %p50, %p51
    %p53 = scmp.ne.s32.totalorder %s45, %s47
    %p54 = scmp.eq.s32.totalorder %s16, 1
    %p55 = por %p53, %p54
    %p56 = scmp.ne.s32.totalorder %s47, %s48
    %p57 = scmp.eq.s32.totalorder %s16, 0
    %p58 = por %p56, %p57
    %p59 = scmp.ne.s32.totalorder %s47, %s48
    %p60 = scmp.eq.s32.totalorder %s17, 1
    %p61 = por %p59, %p60
    %p63 = scmp.ne.s32.totalorder %s48, %s62
    %p64 = scmp.eq.s32.totalorder %s17, 0
    %p65 = por %p63, %p64
    %s67 = sadd.s32 %s66, 1
    %p70 = scmp.eq.s32.totalorder %s11, 1
    %p71 = scmp.ne.s32.totalorder %s66, %s68
    %p72 = scmp.eq.s32.totalorder %s11, 0
    %p73 = por %p71, %p72
    %p74 = scmp.ne.s32.totalorder %s66, %s68
    %p75 = scmp.eq.s32.totalorder %s16, 1
    %p76 = por %p74, %p75
    %p77 = scmp.ne.s32.totalorder %s68, %s69
    %p78 = scmp.eq.s32.totalorder %s16, 0
    %p79 = por %p77, %p78
    %p80 = scmp.ne.s32.totalorder %s68, %s69
    %p81 = scmp.eq.s32.totalorder %s17, 1
    %p82 = por %p80, %p81
    %p84 = scmp.ne.s32.totalorder %s69, %s83
    %p85 = scmp.eq.s32.totalorder %s17, 0
    %p86 = por %p84, %p85
    %s87 = ssub.s32 %s11, %s18
    %p88 = scmp.eq.s32.totalorder %s87, 0
    %s90 = sadd.s32 %s89, 1
    %s91 = scalar_select %p88, %s89, %s90
    %p94 = pneg %p88
    %p95 = scmp.eq.s32.totalorder %s11, 1
    %p96 = por %p94, %p95
    %p97 = scmp.ne.s32.totalorder %s89, %s92
    %p98 = scmp.eq.s32.totalorder %s11, 0
    %p99 = por %p97, %p98
    %p100 = scmp.ne.s32.totalorder %s89, %s92
    %p101 = scmp.eq.s32.totalorder %s16, 1
    %p102 = por %p100, %p101
    %p103 = scmp.ne.s32.totalorder %s92, %s93
    %p104 = scmp.eq.s32.totalorder %s16, 0
    %p105 = por %p103, %p104
    %p106 = scmp.ne.s32.totalorder %s92, %s93
    %p107 = scmp.eq.s32.totalorder %s17, 1
    %p108 = por %p106, %p107
    %p110 = scmp.ne.s32.totalorder %s93, %s109
    %p111 = scmp.eq.s32.totalorder %s17, 0
    %p112 = por %p110, %p111
    %s114 = sadd.s32 %s113, 1
    %p117 = scmp.eq.s32.totalorder %s11, 1
    %p118 = scmp.ne.s32.totalorder %s113, %s115
    %p119 = scmp.eq.s32.totalorder %s11, 0
    %p120 = por %p118, %p119
    %p121 = scmp.ne.s32.totalorder %s113, %s115
    %p122 = scmp.eq.s32.totalorder %s16, 1
    %p123 = por %p121, %p122
    %p124 = scmp.ne.s32.totalorder %s115, %s116
    %p125 = scmp.eq.s32.totalorder %s16, 0
    %p126 = por %p124, %p125
    %p127 = scmp.ne.s32.totalorder %s115, %s116
    %p128 = scmp.eq.s32.totalorder %s17, 1
    %p129 = por %p127, %p128
    %p131 = scmp.ne.s32.totalorder %s116, %s130
    %p132 = scmp.eq.s32.totalorder %s17, 0
    %p133 = por %p131, %p132
    %s134 = ssub.s32 %s11, %s18
    %p135 = scmp.eq.s32.totalorder %s134, 0
    %s137 = sadd.s32 %s136, 1
    %s138 = scalar_select %p135, %s136, %s137
    %p141 = pneg %p135
    %p142 = scmp.eq.s32.totalorder %s11, 1
    %p143 = por %p141, %p142
    %p144 = scmp.ne.s32.totalorder %s136, %s139
    %p145 = scmp.eq.s32.totalorder %s11, 0
    %p146 = por %p144, %p145
    %p147 = scmp.ne.s32.totalorder %s136, %s139
    %p148 = scmp.eq.s32.totalorder %s16, 1
    %p149 = por %p147, %p148
    %p150 = scmp.ne.s32.totalorder %s139, %s140
    %p151 = scmp.eq.s32.totalorder %s16, 0
    %p152 = por %p150, %p151
    %p153 = scmp.ne.s32.totalorder %s139, %s140
    %p154 = scmp.eq.s32.totalorder %s17, 1
    %p155 = por %p153, %p154
    %p157 = scmp.ne.s32.totalorder %s140, %s156
    %p158 = scmp.eq.s32.totalorder %s17, 0
    %p159 = por %p157, %p158
    %p160 = scmp.le.s32.totalorder 1, %s11
    %p161 = scmp.lt.s32.totalorder %s11, 3
    %p162 = pnand %p160, %p161
    %p163 = pneg %p162
    // Predicated region
    $region9: #{gat_forward.2} parent=5 // pred_check
      _
    $region10: #{gat_forward.2} parent=5 // pred_check_branch
      %165 = sbr.rel (%p162) target = $region12
    $region11: #{gat_forward.2} parent=5 // pred_region
      %s166 = ssub.s32 %s11, 1
      // Predicated region
      $region13: #{gat_forward.2} parent=11 // pred_check
        %p167 = pneg %p58
      $region14: #{gat_forward.2} parent=11 // pred_check_branch
        %169 = sbr.rel (%p167) target = $region16
      $region15: #{gat_forward.2} parent=11 // pred_region
        _
      $region16: #{gat_forward.2} parent=11 // pred_fallthru
        _
      // Predicated region
      $region17: #{gat_forward.2} parent=11 // pred_check
        %p170 = pneg %p79
      $region18: #{gat_forward.2} parent=11 // pred_check_branch
        %172 = sbr.rel (%p170) target = $region20
      $region19: #{gat_forward.2} parent=11 // pred_region
        _
      $region20: #{gat_forward.2} parent=11 // pred_fallthru
        _
      // Predicated region
      $region21: #{gat_forward.2} parent=11 // pred_check
        %p173 = pneg %p126
      $region22: #{gat_forward.2} parent=11 // pred_check_branch
        %175 = sbr.rel (%p173) target = $region24
      $region23: #{gat_forward.2} parent=11 // pred_region
        _
      $region24: #{gat_forward.2} parent=11 // pred_fallthru
        _
    $region12: #{gat_forward.2} parent=5 // pred_fallthru
      _
    %p176 = scmp.lt.s32.totalorder %s11, 2
    // Predicated region
    $region25: #{gat_forward.2} parent=5 // pred_check
      %p177 = pneg %p176
    $region26: #{gat_forward.2} parent=5 // pred_check_branch
      %179 = sbr.rel (%p177) target = $region28
    $region27: #{gat_forward.2} parent=5 // pred_region
      // Predicated region
      $region29: #{gat_forward.2} parent=27 // pred_check
        %p180 = pneg %p31
      $region30: #{gat_forward.2} parent=27 // pred_check_branch
        %182 = sbr.rel (%p180) target = $region32
      $region31: #{gat_forward.2} parent=27 // pred_region
        %s183 = smul.u32 32, %s11
        %p184 = scmp.lt.s32.totalorder %s183, 63
        %s185 = scalar_select %p184, %s183, 63
        %s186 = smul.addr %s185, 4
        %s187 = scalar_lea.vmem %s0, %s186
        %s188 = smul.u32 32, %s11
      $region32: #{gat_forward.2} parent=27 // pred_fallthru
        _
      // Predicated region
      $region33: #{gat_forward.2} parent=27 // pred_check
        %p189 = pneg %p99
      $region34: #{gat_forward.2} parent=27 // pred_check_branch
        %191 = sbr.rel (%p189) target = $region36
      $region35: #{gat_forward.2} parent=27 // pred_region
        %s192 = smul.u32 8, %s11
        %p193 = scmp.lt.s32.totalorder %s192, 15
        %s194 = scalar_select %p193, %s192, 15
        %s195 = smul.addr %s194, 4
        %s196 = smul.addr %s195, 8
        %s197 = scalar_lea.vmem %s3, %s196
        %s198 = smul.u32 8, %s11
      $region36: #{gat_forward.2} parent=27 // pred_fallthru
        _
    $region28: #{gat_forward.2} parent=5 // pred_fallthru
      _
    %p199 = scmp.le.s32.totalorder 1, %s11
    %p200 = scmp.lt.s32.totalorder %s11, 3
    %p201 = pnand %p199, %p200
    %p202 = pneg %p201
    // Predicated region
    $region37: #{gat_forward.2} parent=5 // pred_check
      _
    $region38: #{gat_forward.2} parent=5 // pred_check_branch
      %204 = sbr.rel (%p201) target = $region40
    $region39: #{gat_forward.2} parent=5 // pred_region
      %s205 = ssub.s32 %s11, 1
      %s206 = smul.u32 32, %s16
      %p207 = scmp.lt.s32.totalorder %s206, 63
      %s208 = scalar_select %p207, %s206, 63
      %s209 = smul.addr %s208, 4
      %s210 = scalar_lea.vmem %s0, %s209
      %p211 = pneg %p37
      %p212 = pneg %p34
      %p213 = pneg %p58
      %p214 = pneg %p55
      %p215 = pneg %p79
      %p216 = pneg %p76
      %s217 = smul.u32 8, %s16
      %p218 = scmp.lt.s32.totalorder %s217, 15
      %s219 = scalar_select %p218, %s217, 15
      %s220 = smul.addr %s219, 4
      %s221 = smul.addr %s220, 8
      %s222 = scalar_lea.vmem %s3, %s221
      %p223 = pneg %p105
      %p224 = pneg %p102
      %p225 = pneg %p126
      %p226 = pneg %p123
      %p227 = pneg %p152
      %p228 = pneg %p149
      %s229 = smul.u32 32, %s16
      %p230 = scmp.lt.s32.totalorder %s229, 63
      %s231 = scalar_select %p230, %s229, 63
      %s232 = smul.addr %s231, 4
      %s233 = scalar_lea.vmem %s5, %s232
      %s234 = smul.u32 32, %s16
      %p235 = scmp.lt.s32.totalorder %s234, 63
      %s236 = scalar_select %p235, %s234, 63
      %s237 = smul.addr %s236, 4
      %s238 = scalar_lea.vmem %s0, %s237
      %s239 = smul.u32 32, %s16
      %s240 = smul.u32 8, %s16
      %p241 = scmp.lt.s32.totalorder %s240, 15
      %s242 = scalar_select %p241, %s240, 15
      %s243 = smul.addr %s242, 4
      %s244 = smul.addr %s243, 8
      %s245 = scalar_lea.vmem %s3, %s244
      %s246 = smul.u32 8, %s16
      %s247 = smul.u32 32, %s16
      %p248 = scmp.lt.s32.totalorder %s247, 63
      %s249 = scalar_select %p248, %s247, 63
      %s250 = smul.addr %s249, 4
      %s251 = scalar_lea.vmem %s5, %s250
      %s252 = smul.u32 32, %s16
      %v255 = vld [vmem:[%s2] sm:$0xf]
      %v256 = vld [vmem:[%s2 + $0x4] sm:$0xf]
      %v257 = vld [vmem:[%s2 + $0x8] sm:$0xf]
      %v258 = vld [vmem:[%s2 + $0xc] sm:$0xf]
      %v259 = vld [vmem:[%s2 + $0x10] sm:$0xf]
      %v260 = vld [vmem:[%s2 + $0x14] sm:$0xf]
      %v261 = vld [vmem:[%s2 + $0x18] sm:$0xf]
      %v262 = vld [vmem:[%s2 + $0x1c] sm:$0xf]
      %v263 = vld [vmem:[%s2 + $0x20] sm:$0xf]
      %v264 = vld [vmem:[%s2 + $0x24] sm:$0xf]
      %v265 = vld [vmem:[%s2 + $0x28] sm:$0xf]
      %v266 = vld [vmem:[%s2 + $0x2c] sm:$0xf]
      %v267 = vld [vmem:[%s2 + $0x30] sm:$0xf]
      %v268 = vld [vmem:[%s2 + $0x34] sm:$0xf]
      %v269 = vld [vmem:[%s2 + $0x38] sm:$0xf]
      %v270 = vld [vmem:[%s2 + $0x3c] sm:$0xf]
      %v271 = vld [vmem:[%s238] sm:$0xf]
      %v272 = vld [vmem:[%s238 + $0x4] sm:$0xf]
      %v273 = vld [vmem:[%s238 + $0x8] sm:$0xf]
      %v274 = vld [vmem:[%s238 + $0xc] sm:$0xf]
      %v275 = vld [vmem:[%s238 + $0x10] sm:$0xf]
      %v276 = vld [vmem:[%s238 + $0x14] sm:$0xf]
      %v277 = vld [vmem:[%s238 + $0x18] sm:$0xf]
      %v278 = vld [vmem:[%s238 + $0x1c] sm:$0xf]
      %v279 = vld [vmem:[%s238 + $0x20] sm:$0xf]
      %v280 = vld [vmem:[%s238 + $0x24] sm:$0xf]
      %v281 = vld [vmem:[%s238 + $0x28] sm:$0xf]
      %v282 = vld [vmem:[%s238 + $0x2c] sm:$0xf]
      %v283 = vld [vmem:[%s238 + $0x30] sm:$0xf]
      %v284 = vld [vmem:[%s238 + $0x34] sm:$0xf]
      %v285 = vld [vmem:[%s238 + $0x38] sm:$0xf]
      %v286 = vld [vmem:[%s238 + $0x3c] sm:$0xf]
      %v287 = vld [vmem:[%s238 + $0x40] sm:$0xf]
      %v288 = vld [vmem:[%s238 + $0x44] sm:$0xf]
      %v289 = vld [vmem:[%s238 + $0x48] sm:$0xf]
      %v290 = vld [vmem:[%s238 + $0x4c] sm:$0xf]
      %v291 = vld [vmem:[%s238 + $0x50] sm:$0xf]
      %v292 = vld [vmem:[%s238 + $0x54] sm:$0xf]
      %v293 = vld [vmem:[%s238 + $0x58] sm:$0xf]
      %v294 = vld [vmem:[%s238 + $0x5c] sm:$0xf]
      %v295 = vld [vmem:[%s238 + $0x60] sm:$0xf]
      %v296 = vld [vmem:[%s238 + $0x64] sm:$0xf]
      %v297 = vld [vmem:[%s238 + $0x68] sm:$0xf]
      %v298 = vld [vmem:[%s238 + $0x6c] sm:$0xf]
      %v299 = vld [vmem:[%s238 + $0x70] sm:$0xf]
      %v300 = vld [vmem:[%s238 + $0x74] sm:$0xf]
      %v301 = vld [vmem:[%s238 + $0x78] sm:$0xf]
      %v302 = vld [vmem:[%s238 + $0x7c] sm:$0xf]
      %v335 = vunpack.c.l.b16 %v271
      %v336 = vunpack.c.l.b16 %v272
      %v337 = vunpack.c.l.b16 %v273
      %v338 = vunpack.c.l.b16 %v274
      %v339 = vunpack.c.l.b16 %v275
      %v340 = vunpack.c.l.b16 %v276
      %v341 = vunpack.c.l.b16 %v277
      %v342 = vunpack.c.l.b16 %v278
      %v343 = vunpack.c.l.b16 %v279
      %v344 = vunpack.c.l.b16 %v280
      %v345 = vunpack.c.l.b16 %v281
      %v346 = vunpack.c.l.b16 %v282
      %v347 = vunpack.c.l.b16 %v283
      %v348 = vunpack.c.l.b16 %v284
      %v349 = vunpack.c.l.b16 %v285
      %v350 = vunpack.c.l.b16 %v286
      %v351 = vunpack.c.l.b16 %v287
      %v352 = vunpack.c.l.b16 %v288
      %v353 = vunpack.c.l.b16 %v289
      %v354 = vunpack.c.l.b16 %v290
      %v355 = vunpack.c.l.b16 %v291
      %v356 = vunpack.c.l.b16 %v292
      %v357 = vunpack.c.l.b16 %v293
      %v358 = vunpack.c.l.b16 %v294
      %v359 = vunpack.c.l.b16 %v295
      %v360 = vunpack.c.l.b16 %v296
      %v361 = vunpack.c.l.b16 %v297
      %v362 = vunpack.c.l.b16 %v298
      %v363 = vunpack.c.l.b16 %v299
      %v364 = vunpack.c.l.b16 %v300
      %v365 = vunpack.c.l.b16 %v301
      %v366 = vunpack.c.l.b16 %v302
      %v367 = vpack.c.b16 %v336, %v335
      %v368 = vpack.c.b16 %v338, %v337
      %v369 = vpack.c.b16 %v340, %v339
      %v370 = vpack.c.b16 %v342, %v341
      %v371 = vpack.c.b16 %v344, %v343
      %v372 = vpack.c.b16 %v346, %v345
      %v373 = vpack.c.b16 %v348, %v347
      %v374 = vpack.c.b16 %v350, %v349
      %v375 = vpack.c.b16 %v352, %v351
      %v376 = vpack.c.b16 %v354, %v353
      %v377 = vpack.c.b16 %v356, %v355
      %v378 = vpack.c.b16 %v358, %v357
      %v379 = vpack.c.b16 %v360, %v359
      %v380 = vpack.c.b16 %v362, %v361
      %v381 = vpack.c.b16 %v364, %v363
      %v382 = vpack.c.b16 %v366, %v365
      %v415 = vunpack.c.l.b16 %v255
      %v416 = vunpack.c.l.b16 %v256
      %v417 = vunpack.c.l.b16 %v257
      %v418 = vunpack.c.l.b16 %v258
      %v419 = vunpack.c.l.b16 %v259
      %v420 = vunpack.c.l.b16 %v260
      %v421 = vunpack.c.l.b16 %v261
      %v422 = vunpack.c.l.b16 %v262
      %v423 = vunpack.c.l.b16 %v263
      %v424 = vunpack.c.l.b16 %v264
      %v425 = vunpack.c.l.b16 %v265
      %v426 = vunpack.c.l.b16 %v266
      %v427 = vunpack.c.l.b16 %v267
      %v428 = vunpack.c.l.b16 %v268
      %v429 = vunpack.c.l.b16 %v269
      %v430 = vunpack.c.l.b16 %v270
      %v431 = vpack.c.b16 %v416, %v415
      %v432 = vpack.c.b16 %v418, %v417
      %v433 = vpack.c.b16 %v420, %v419
      %v434 = vpack.c.b16 %v422, %v421
      %v435 = vpack.c.b16 %v424, %v423
      %v436 = vpack.c.b16 %v426, %v425
      %v437 = vpack.c.b16 %v428, %v427
      %v438 = vpack.c.b16 %v430, %v429
      %447 = vmatpush.bf16.msra.mxu0 %v438
      %448 = vmatpush.bf16.msra.mxu0 %v437
      %449 = vmatpush.bf16.msra.mxu0 %v436
      %450 = vmatpush.bf16.msra.mxu0 %v435
      %451 = vmatpush.bf16.msra.mxu0 %v434
      %452 = vmatpush.bf16.msra.mxu0 %v433
      %453 = vmatpush.bf16.msra.mxu0 %v432
      %454 = vmatpush.bf16.msra.mxu0 %v431
      %455 = vmatmul.bf16.gmra.mxu0 %v367
      %v456 = vpop.f32.mrf.mxu0
      %v457 = vadd.f32 0.0, %v456
      %v458 = vpop.f32.mrf.mxu0
      %v459 = vadd.f32 0.0, %v458
      %460 = vmatmul.bf16.gmra.mxu0 %v368
      %v461 = vpop.f32.mrf.mxu0
      %v462 = vadd.f32 0.0, %v461
      %v463 = vpop.f32.mrf.mxu0
      %v464 = vadd.f32 0.0, %v463
      %465 = vmatmul.bf16.gmra.mxu0 %v369
      %v466 = vpop.f32.mrf.mxu0
      %v467 = vadd.f32 0.0, %v466
      %v468 = vpop.f32.mrf.mxu0
      %v469 = vadd.f32 0.0, %v468
      %470 = vmatmul.bf16.gmra.mxu0 %v370
      %v471 = vpop.f32.mrf.mxu0
      %v472 = vadd.f32 0.0, %v471
      %v473 = vpop.f32.mrf.mxu0
      %v474 = vadd.f32 0.0, %v473
      %475 = vmatmul.bf16.gmra.mxu0 %v371
      %v476 = vpop.f32.mrf.mxu0
      %v477 = vadd.f32 0.0, %v476
      %v478 = vpop.f32.mrf.mxu0
      %v479 = vadd.f32 0.0, %v478
      %480 = vmatmul.bf16.gmra.mxu0 %v372
      %v481 = vpop.f32.mrf.mxu0
      %v482 = vadd.f32 0.0, %v481
      %v483 = vpop.f32.mrf.mxu0
      %v484 = vadd.f32 0.0, %v483
      %485 = vmatmul.bf16.gmra.mxu0 %v373
      %v486 = vpop.f32.mrf.mxu0
      %v487 = vadd.f32 0.0, %v486
      %v488 = vpop.f32.mrf.mxu0
      %v489 = vadd.f32 0.0, %v488
      %490 = vmatmul.bf16.gmra.mxu0 %v374
      %v491 = vpop.f32.mrf.mxu0
      %v492 = vadd.f32 0.0, %v491
      %v493 = vpop.f32.mrf.mxu0
      %v494 = vadd.f32 0.0, %v493
      %495 = vmatmul.bf16.gmra.mxu0 %v375
      %v496 = vpop.f32.mrf.mxu0
      %v497 = vadd.f32 0.0, %v496
      %v498 = vpop.f32.mrf.mxu0
      %v499 = vadd.f32 0.0, %v498
      %500 = vmatmul.bf16.gmra.mxu0 %v376
      %v501 = vpop.f32.mrf.mxu0
      %v502 = vadd.f32 0.0, %v501
      %v503 = vpop.f32.mrf.mxu0
      %v504 = vadd.f32 0.0, %v503
      %505 = vmatmul.bf16.gmra.mxu0 %v377
      %v506 = vpop.f32.mrf.mxu0
      %v507 = vadd.f32 0.0, %v506
      %v508 = vpop.f32.mrf.mxu0
      %v509 = vadd.f32 0.0, %v508
      %510 = vmatmul.bf16.gmra.mxu0 %v378
      %v511 = vpop.f32.mrf.mxu0
      %v512 = vadd.f32 0.0, %v511
      %v513 = vpop.f32.mrf.mxu0
      %v514 = vadd.f32 0.0, %v513
      %515 = vmatmul.bf16.gmra.mxu0 %v379
      %v516 = vpop.f32.mrf.mxu0
      %v517 = vadd.f32 0.0, %v516
      %v518 = vpop.f32.mrf.mxu0
      %v519 = vadd.f32 0.0, %v518
      %520 = vmatmul.bf16.gmra.mxu0 %v380
      %v521 = vpop.f32.mrf.mxu0
      %v522 = vadd.f32 0.0, %v521
      %v523 = vpop.f32.mrf.mxu0
      %v524 = vadd.f32 0.0, %v523
      %525 = vmatmul.bf16.gmra.mxu0 %v381
      %v526 = vpop.f32.mrf.mxu0
      %v527 = vadd.f32 0.0, %v526
      %v528 = vpop.f32.mrf.mxu0
      %v529 = vadd.f32 0.0, %v528
      %530 = vmatmul.bf16.gmra.mxu0 %v382
      %v531 = vpop.f32.mrf.mxu0
      %v532 = vadd.f32 0.0, %v531
      %v533 = vpop.f32.mrf.mxu0
      %v534 = vadd.f32 0.0, %v533
      %535 = vdwg.mxu0
      %v536 = vpack.c.bf16 %v459, %v457
      %v537 = vpack.c.bf16 %v464, %v462
      %v538 = vpack.c.bf16 %v469, %v467
      %v539 = vpack.c.bf16 %v474, %v472
      %v540 = vpack.c.bf16 %v479, %v477
      %v541 = vpack.c.bf16 %v484, %v482
      %v542 = vpack.c.bf16 %v489, %v487
      %v543 = vpack.c.bf16 %v494, %v492
      %v544 = vpack.c.bf16 %v499, %v497
      %v545 = vpack.c.bf16 %v504, %v502
      %v546 = vpack.c.bf16 %v509, %v507
      %v547 = vpack.c.bf16 %v514, %v512
      %v548 = vpack.c.bf16 %v519, %v517
      %v549 = vpack.c.bf16 %v524, %v522
      %v550 = vpack.c.bf16 %v529, %v527
      %v551 = vpack.c.bf16 %v534, %v532
      %v552 = vld [vmem:[%s1] sm:$0xf]
      %v553 = vld [vmem:[%s1 + $0x4] sm:$0xf]
      %v554 = vld [vmem:[%s1 + $0x8] sm:$0xf]
      %v555 = vld [vmem:[%s1 + $0xc] sm:$0xf]
      %v556 = vld [vmem:[%s1 + $0x10] sm:$0xf]
      %v557 = vld [vmem:[%s1 + $0x14] sm:$0xf]
      %v558 = vld [vmem:[%s1 + $0x18] sm:$0xf]
      %v559 = vld [vmem:[%s1 + $0x1c] sm:$0xf]
      %v560 = vld [vmem:[%s1 + $0x20] sm:$0xf]
      %v561 = vld [vmem:[%s1 + $0x24] sm:$0xf]
      %v562 = vld [vmem:[%s1 + $0x28] sm:$0xf]
      %v563 = vld [vmem:[%s1 + $0x2c] sm:$0xf]
      %v564 = vld [vmem:[%s1 + $0x30] sm:$0xf]
      %v565 = vld [vmem:[%s1 + $0x34] sm:$0xf]
      %v566 = vld [vmem:[%s1 + $0x38] sm:$0xf]
      %v567 = vld [vmem:[%s1 + $0x3c] sm:$0xf]
      %v568 = vld [vmem:[%s1 + $0x40] sm:$0xf]
      %v569 = vld [vmem:[%s1 + $0x44] sm:$0xf]
      %v570 = vld [vmem:[%s1 + $0x48] sm:$0xf]
      %v571 = vld [vmem:[%s1 + $0x4c] sm:$0xf]
      %v572 = vld [vmem:[%s1 + $0x50] sm:$0xf]
      %v573 = vld [vmem:[%s1 + $0x54] sm:$0xf]
      %v574 = vld [vmem:[%s1 + $0x58] sm:$0xf]
      %v575 = vld [vmem:[%s1 + $0x5c] sm:$0xf]
      %v576 = vld [vmem:[%s1 + $0x60] sm:$0xf]
      %v577 = vld [vmem:[%s1 + $0x64] sm:$0xf]
      %v578 = vld [vmem:[%s1 + $0x68] sm:$0xf]
      %v579 = vld [vmem:[%s1 + $0x6c] sm:$0xf]
      %v580 = vld [vmem:[%s1 + $0x70] sm:$0xf]
      %v581 = vld [vmem:[%s1 + $0x74] sm:$0xf]
      %v582 = vld [vmem:[%s1 + $0x78] sm:$0xf]
      %v583 = vld [vmem:[%s1 + $0x7c] sm:$0xf]
      %v584 = vld [vmem:[%s1 + $0x80] sm:$0xf]
      %v585 = vld [vmem:[%s1 + $0x84] sm:$0xf]
      %v586 = vld [vmem:[%s1 + $0x88] sm:$0xf]
      %v587 = vld [vmem:[%s1 + $0x8c] sm:$0xf]
      %v588 = vld [vmem:[%s1 + $0x90] sm:$0xf]
      %v589 = vld [vmem:[%s1 + $0x94] sm:$0xf]
      %v590 = vld [vmem:[%s1 + $0x98] sm:$0xf]
      %v591 = vld [vmem:[%s1 + $0x9c] sm:$0xf]
      %v592 = vld [vmem:[%s1 + $0xa0] sm:$0xf]
      %v593 = vld [vmem:[%s1 + $0xa4] sm:$0xf]
      %v594 = vld [vmem:[%s1 + $0xa8] sm:$0xf]
      %v595 = vld [vmem:[%s1 + $0xac] sm:$0xf]
      %v596 = vld [vmem:[%s1 + $0xb0] sm:$0xf]
      %v597 = vld [vmem:[%s1 + $0xb4] sm:$0xf]
      %v598 = vld [vmem:[%s1 + $0xb8] sm:$0xf]
      %v599 = vld [vmem:[%s1 + $0xbc] sm:$0xf]
      %v600 = vld [vmem:[%s1 + $0xc0] sm:$0xf]
      %v601 = vld [vmem:[%s1 + $0xc4] sm:$0xf]
      %v602 = vld [vmem:[%s1 + $0xc8] sm:$0xf]
      %v603 = vld [vmem:[%s1 + $0xcc] sm:$0xf]
      %v604 = vld [vmem:[%s1 + $0xd0] sm:$0xf]
      %v605 = vld [vmem:[%s1 + $0xd4] sm:$0xf]
      %v606 = vld [vmem:[%s1 + $0xd8] sm:$0xf]
      %v607 = vld [vmem:[%s1 + $0xdc] sm:$0xf]
      %v608 = vld [vmem:[%s1 + $0xe0] sm:$0xf]
      %v609 = vld [vmem:[%s1 + $0xe4] sm:$0xf]
      %v610 = vld [vmem:[%s1 + $0xe8] sm:$0xf]
      %v611 = vld [vmem:[%s1 + $0xec] sm:$0xf]
      %v612 = vld [vmem:[%s1 + $0xf0] sm:$0xf]
      %v613 = vld [vmem:[%s1 + $0xf4] sm:$0xf]
      %v614 = vld [vmem:[%s1 + $0xf8] sm:$0xf]
      %v615 = vld [vmem:[%s1 + $0xfc] sm:$0xf]
      %v680 = vunpack.c.l.b16 %v552
      %v681 = vunpack.c.l.b16 %v553
      %v682 = vunpack.c.l.b16 %v554
      %v683 = vunpack.c.l.b16 %v555
      %v684 = vunpack.c.l.b16 %v556
      %v685 = vunpack.c.l.b16 %v557
      %v686 = vunpack.c.l.b16 %v558
      %v687 = vunpack.c.l.b16 %v559
      %v688 = vunpack.c.l.b16 %v560
      %v689 = vunpack.c.l.b16 %v561
      %v690 = vunpack.c.l.b16 %v562
      %v691 = vunpack.c.l.b16 %v563
      %v692 = vunpack.c.l.b16 %v564
      %v693 = vunpack.c.l.b16 %v565
      %v694 = vunpack.c.l.b16 %v566
      %v695 = vunpack.c.l.b16 %v567
      %v696 = vunpack.c.l.b16 %v568
      %v697 = vunpack.c.l.b16 %v569
      %v698 = vunpack.c.l.b16 %v570
      %v699 = vunpack.c.l.b16 %v571
      %v700 = vunpack.c.l.b16 %v572
      %v701 = vunpack.c.l.b16 %v573
      %v702 = vunpack.c.l.b16 %v574
      %v703 = vunpack.c.l.b16 %v575
      %v704 = vunpack.c.l.b16 %v576
      %v705 = vunpack.c.l.b16 %v577
      %v706 = vunpack.c.l.b16 %v578
      %v707 = vunpack.c.l.b16 %v579
      %v708 = vunpack.c.l.b16 %v580
      %v709 = vunpack.c.l.b16 %v581
      %v710 = vunpack.c.l.b16 %v582
      %v711 = vunpack.c.l.b16 %v583
      %v712 = vunpack.c.l.b16 %v584
      %v713 = vunpack.c.l.b16 %v585
      %v714 = vunpack.c.l.b16 %v586
      %v715 = vunpack.c.l.b16 %v587
      %v716 = vunpack.c.l.b16 %v588
      %v717 = vunpack.c.l.b16 %v589
      %v718 = vunpack.c.l.b16 %v590
      %v719 = vunpack.c.l.b16 %v591
      %v720 = vunpack.c.l.b16 %v592
      %v721 = vunpack.c.l.b16 %v593
      %v722 = vunpack.c.l.b16 %v594
      %v723 = vunpack.c.l.b16 %v595
      %v724 = vunpack.c.l.b16 %v596
      %v725 = vunpack.c.l.b16 %v597
      %v726 = vunpack.c.l.b16 %v598
      %v727 = vunpack.c.l.b16 %v599
      %v728 = vunpack.c.l.b16 %v600
      %v729 = vunpack.c.l.b16 %v601
      %v730 = vunpack.c.l.b16 %v602
      %v731 = vunpack.c.l.b16 %v603
      %v732 = vunpack.c.l.b16 %v604
      %v733 = vunpack.c.l.b16 %v605
      %v734 = vunpack.c.l.b16 %v606
      %v735 = vunpack.c.l.b16 %v607
      %v736 = vunpack.c.l.b16 %v608
      %v737 = vunpack.c.l.b16 %v609
      %v738 = vunpack.c.l.b16 %v610
      %v739 = vunpack.c.l.b16 %v611
      %v740 = vunpack.c.l.b16 %v612
      %v741 = vunpack.c.l.b16 %v613
      %v742 = vunpack.c.l.b16 %v614
      %v743 = vunpack.c.l.b16 %v615
      %v744 = vpack.c.b16 %v681, %v680
      %v745 = vpack.c.b16 %v683, %v682
      %v746 = vpack.c.b16 %v685, %v684
      %v747 = vpack.c.b16 %v687, %v686
      %v748 = vpack.c.b16 %v689, %v688
      %v749 = vpack.c.b16 %v691, %v690
      %v750 = vpack.c.b16 %v693, %v692
      %v751 = vpack.c.b16 %v695, %v694
      %v752 = vpack.c.b16 %v697, %v696
      %v753 = vpack.c.b16 %v699, %v698
      %v754 = vpack.c.b16 %v701, %v700
      %v755 = vpack.c.b16 %v703, %v702
      %v756 = vpack.c.b16 %v705, %v704
      %v757 = vpack.c.b16 %v707, %v706
      %v758 = vpack.c.b16 %v709, %v708
      %v759 = vpack.c.b16 %v711, %v710
      %v760 = vpack.c.b16 %v713, %v712
      %v761 = vpack.c.b16 %v715, %v714
      %v762 = vpack.c.b16 %v717, %v716
      %v763 = vpack.c.b16 %v719, %v718
      %v764 = vpack.c.b16 %v721, %v720
      %v765 = vpack.c.b16 %v723, %v722
      %v766 = vpack.c.b16 %v725, %v724
      %v767 = vpack.c.b16 %v727, %v726
      %v768 = vpack.c.b16 %v729, %v728
      %v769 = vpack.c.b16 %v731, %v730
      %v770 = vpack.c.b16 %v733, %v732
      %v771 = vpack.c.b16 %v735, %v734
      %v772 = vpack.c.b16 %v737, %v736
      %v773 = vpack.c.b16 %v739, %v738
      %v774 = vpack.c.b16 %v741, %v740
      %v775 = vpack.c.b16 %v743, %v742
      %808 = vmatpush.bf16.msra.mxu0 %v438
      %809 = vmatpush.bf16.msra.mxu0 %v437
      %810 = vmatpush.bf16.msra.mxu0 %v436
      %811 = vmatpush.bf16.msra.mxu0 %v435
      %812 = vmatpush.bf16.msra.mxu0 %v434
      %813 = vmatpush.bf16.msra.mxu0 %v433
      %814 = vmatpush.bf16.msra.mxu0 %v432
      %815 = vmatpush.bf16.msra.mxu0 %v431
      %816 = vmatmul.bf16.gmra.mxu0 %v744
      %v817 = vpop.f32.mrf.mxu0
      %v818 = vadd.f32 0.0, %v817
      %v819 = vpop.f32.mrf.mxu0
      %v820 = vadd.f32 0.0, %v819
      %821 = vmatmul.bf16.gmra.mxu0 %v745
      %v822 = vpop.f32.mrf.mxu0
      %v823 = vadd.f32 0.0, %v822
      %v824 = vpop.f32.mrf.mxu0
      %v825 = vadd.f32 0.0, %v824
      %826 = vmatmul.bf16.gmra.mxu0 %v746
      %v827 = vpop.f32.mrf.mxu0
      %v828 = vadd.f32 0.0, %v827
      %v829 = vpop.f32.mrf.mxu0
      %v830 = vadd.f32 0.0, %v829
      %831 = vmatmul.bf16.gmra.mxu0 %v747
      %v832 = vpop.f32.mrf.mxu0
      %v833 = vadd.f32 0.0, %v832
      %v834 = vpop.f32.mrf.mxu0
      %v835 = vadd.f32 0.0, %v834
      %836 = vmatmul.bf16.gmra.mxu0 %v748
      %v837 = vpop.f32.mrf.mxu0
      %v838 = vadd.f32 0.0, %v837
      %v839 = vpop.f32.mrf.mxu0
      %v840 = vadd.f32 0.0, %v839
      %841 = vmatmul.bf16.gmra.mxu0 %v749
      %v842 = vpop.f32.mrf.mxu0
      %v843 = vadd.f32 0.0, %v842
      %v844 = vpop.f32.mrf.mxu0
      %v845 = vadd.f32 0.0, %v844
      %846 = vmatmul.bf16.gmra.mxu0 %v750
      %v847 = vpop.f32.mrf.mxu0
      %v848 = vadd.f32 0.0, %v847
      %v849 = vpop.f32.mrf.mxu0
      %v850 = vadd.f32 0.0, %v849
      %851 = vmatmul.bf16.gmra.mxu0 %v751
      %v852 = vpop.f32.mrf.mxu0
      %v853 = vadd.f32 0.0, %v852
      %v854 = vpop.f32.mrf.mxu0
      %v855 = vadd.f32 0.0, %v854
      %856 = vmatmul.bf16.gmra.mxu0 %v752
      %v857 = vpop.f32.mrf.mxu0
      %v858 = vadd.f32 0.0, %v857
      %v859 = vpop.f32.mrf.mxu0
      %v860 = vadd.f32 0.0, %v859
      %861 = vmatmul.bf16.gmra.mxu0 %v753
      %v862 = vpop.f32.mrf.mxu0
      %v863 = vadd.f32 0.0, %v862
      %v864 = vpop.f32.mrf.mxu0
      %v865 = vadd.f32 0.0, %v864
      %866 = vmatmul.bf16.gmra.mxu0 %v754
      %v867 = vpop.f32.mrf.mxu0
      %v868 = vadd.f32 0.0, %v867
      %v869 = vpop.f32.mrf.mxu0
      %v870 = vadd.f32 0.0, %v869
      %871 = vmatmul.bf16.gmra.mxu0 %v755
      %v872 = vpop.f32.mrf.mxu0
      %v873 = vadd.f32 0.0, %v872
      %v874 = vpop.f32.mrf.mxu0
      %v875 = vadd.f32 0.0, %v874
      %876 = vmatmul.bf16.gmra.mxu0 %v756
      %v877 = vpop.f32.mrf.mxu0
      %v878 = vadd.f32 0.0, %v877
      %v879 = vpop.f32.mrf.mxu0
      %v880 = vadd.f32 0.0, %v879
      %881 = vmatmul.bf16.gmra.mxu0 %v757
      %v882 = vpop.f32.mrf.mxu0
      %v883 = vadd.f32 0.0, %v882
      %v884 = vpop.f32.mrf.mxu0
      %v885 = vadd.f32 0.0, %v884
      %886 = vmatmul.bf16.gmra.mxu0 %v758
      %v887 = vpop.f32.mrf.mxu0
      %v888 = vadd.f32 0.0, %v887
      %v889 = vpop.f32.mrf.mxu0
      %v890 = vadd.f32 0.0, %v889
      %891 = vmatmul.bf16.gmra.mxu0 %v759
      %v892 = vpop.f32.mrf.mxu0
      %v893 = vadd.f32 0.0, %v892
      %v894 = vpop.f32.mrf.mxu0
      %v895 = vadd.f32 0.0, %v894
      %896 = vmatmul.bf16.gmra.mxu0 %v760
      %v897 = vpop.f32.mrf.mxu0
      %v898 = vadd.f32 0.0, %v897
      %v899 = vpop.f32.mrf.mxu0
      %v900 = vadd.f32 0.0, %v899
      %901 = vmatmul.bf16.gmra.mxu0 %v761
      %v902 = vpop.f32.mrf.mxu0
      %v903 = vadd.f32 0.0, %v902
      %v904 = vpop.f32.mrf.mxu0
      %v905 = vadd.f32 0.0, %v904
      %906 = vmatmul.bf16.gmra.mxu0 %v762
      %v907 = vpop.f32.mrf.mxu0
      %v908 = vadd.f32 0.0, %v907
      %v909 = vpop.f32.mrf.mxu0
      %v910 = vadd.f32 0.0, %v909
      %911 = vmatmul.bf16.gmra.mxu0 %v763
      %v912 = vpop.f32.mrf.mxu0
      %v913 = vadd.f32 0.0, %v912
      %v914 = vpop.f32.mrf.mxu0
      %v915 = vadd.f32 0.0, %v914
      %916 = vmatmul.bf16.gmra.mxu0 %v764
      %v917 = vpop.f32.mrf.mxu0
      %v918 = vadd.f32 0.0, %v917
      %v919 = vpop.f32.mrf.mxu0
      %v920 = vadd.f32 0.0, %v919
      %921 = vmatmul.bf16.gmra.mxu0 %v765
      %v922 = vpop.f32.mrf.mxu0
      %v923 = vadd.f32 0.0, %v922
      %v924 = vpop.f32.mrf.mxu0
      %v925 = vadd.f32 0.0, %v924
      %926 = vmatmul.bf16.gmra.mxu0 %v766
      %v927 = vpop.f32.mrf.mxu0
      %v928 = vadd.f32 0.0, %v927
      %v929 = vpop.f32.mrf.mxu0
      %v930 = vadd.f32 0.0, %v929
      %931 = vmatmul.bf16.gmra.mxu0 %v767
      %v932 = vpop.f32.mrf.mxu0
      %v933 = vadd.f32 0.0, %v932
      %v934 = vpop.f32.mrf.mxu0
      %v935 = vadd.f32 0.0, %v934
      %936 = vmatmul.bf16.gmra.mxu0 %v768
      %v937 = vpop.f32.mrf.mxu0
      %v938 = vadd.f32 0.0, %v937
      %v939 = vpop.f32.mrf.mxu0
      %v940 = vadd.f32 0.0, %v939
      %941 = vmatmul.bf16.gmra.mxu0 %v769
      %v942 = vpop.f32.mrf.mxu0
      %v943 = vadd.f32 0.0, %v942
      %v944 = vpop.f32.mrf.mxu0
      %v945 = vadd.f32 0.0, %v944
      %946 = vmatmul.bf16.gmra.mxu0 %v770
      %v947 = vpop.f32.mrf.mxu0
      %v948 = vadd.f32 0.0, %v947
      %v949 = vpop.f32.mrf.mxu0
      %v950 = vadd.f32 0.0, %v949
      %951 = vmatmul.bf16.gmra.mxu0 %v771
      %v952 = vpop.f32.mrf.mxu0
      %v953 = vadd.f32 0.0, %v952
      %v954 = vpop.f32.mrf.mxu0
      %v955 = vadd.f32 0.0, %v954
      %956 = vmatmul.bf16.gmra.mxu0 %v772
      %v957 = vpop.f32.mrf.mxu0
      %v958 = vadd.f32 0.0, %v957
      %v959 = vpop.f32.mrf.mxu0
      %v960 = vadd.f32 0.0, %v959
      %961 = vmatmul.bf16.gmra.mxu0 %v773
      %v962 = vpop.f32.mrf.mxu0
      %v963 = vadd.f32 0.0, %v962
      %v964 = vpop.f32.mrf.mxu0
      %v965 = vadd.f32 0.0, %v964
      %966 = vmatmul.bf16.gmra.mxu0 %v774
      %v967 = vpop.f32.mrf.mxu0
      %v968 = vadd.f32 0.0, %v967
      %v969 = vpop.f32.mrf.mxu0
      %v970 = vadd.f32 0.0, %v969
      %971 = vmatmul.bf16.gmra.mxu0 %v775
      %v972 = vpop.f32.mrf.mxu0
      %v973 = vadd.f32 0.0, %v972
      %v974 = vpop.f32.mrf.mxu0
      %v975 = vadd.f32 0.0, %v974
      %976 = vdwg.mxu0
      %v977 = vpack.c.bf16 %v820, %v818
      %v978 = vpack.c.bf16 %v825, %v823
      %v979 = vpack.c.bf16 %v830, %v828
      %v980 = vpack.c.bf16 %v835, %v833
      %v981 = vpack.c.bf16 %v840, %v838
      %v982 = vpack.c.bf16 %v845, %v843
      %v983 = vpack.c.bf16 %v850, %v848
      %v984 = vpack.c.bf16 %v855, %v853
      %v985 = vpack.c.bf16 %v860, %v858
      %v986 = vpack.c.bf16 %v865, %v863
      %v987 = vpack.c.bf16 %v870, %v868
      %v988 = vpack.c.bf16 %v875, %v873
      %v989 = vpack.c.bf16 %v880, %v878
      %v990 = vpack.c.bf16 %v885, %v883
      %v991 = vpack.c.bf16 %v890, %v888
      %v992 = vpack.c.bf16 %v895, %v893
      %v993 = vpack.c.bf16 %v900, %v898
      %v994 = vpack.c.bf16 %v905, %v903
      %v995 = vpack.c.bf16 %v910, %v908
      %v996 = vpack.c.bf16 %v915, %v913
      %v997 = vpack.c.bf16 %v920, %v918
      %v998 = vpack.c.bf16 %v925, %v923
      %v999 = vpack.c.bf16 %v930, %v928
      %v1000 = vpack.c.bf16 %v935, %v933
      %v1001 = vpack.c.bf16 %v940, %v938
      %v1002 = vpack.c.bf16 %v945, %v943
      %v1003 = vpack.c.bf16 %v950, %v948
      %v1004 = vpack.c.bf16 %v955, %v953
      %v1005 = vpack.c.bf16 %v960, %v958
      %v1006 = vpack.c.bf16 %v965, %v963
      %v1007 = vpack.c.bf16 %v970, %v968
      %v1008 = vpack.c.bf16 %v975, %v973
      %1009 = vmatpush.bf16.xpose.msra.mxu0 %v984
      %1010 = vmatpush.bf16.xpose.msra.mxu0 %v983
      %1011 = vmatpush.bf16.xpose.msra.mxu0 %v982
      %1012 = vmatpush.bf16.xpose.msra.mxu0 %v981
      %1013 = vmatpush.bf16.xpose.msra.mxu0 %v980
      %1014 = vmatpush.bf16.xpose.msra.mxu0 %v979
      %1015 = vmatpush.bf16.xpose.msra.mxu0 %v978
      %1016 = vmatpush.bf16.xpose.msra.mxu0 %v977
      %1017 = vmatmul.bf16.gmra.mxu0 %v536
      %v1018 = vpop.f32.mrf.mxu0
      %v1019 = vadd.f32 0.0, %v1018
      %v1020 = vpop.f32.mrf.mxu0
      %v1021 = vadd.f32 0.0, %v1020
      %1022 = vmatmul.bf16.gmra.mxu0 %v537
      %v1023 = vpop.f32.mrf.mxu0
      %v1024 = vadd.f32 0.0, %v1023
      %v1025 = vpop.f32.mrf.mxu0
      %v1026 = vadd.f32 0.0, %v1025
      %1027 = vmatmul.bf16.gmra.mxu0 %v538
      %v1028 = vpop.f32.mrf.mxu0
      %v1029 = vadd.f32 0.0, %v1028
      %v1030 = vpop.f32.mrf.mxu0
      %v1031 = vadd.f32 0.0, %v1030
      %1032 = vmatmul.bf16.gmra.mxu0 %v539
      %v1033 = vpop.f32.mrf.mxu0
      %v1034 = vadd.f32 0.0, %v1033
      %v1035 = vpop.f32.mrf.mxu0
      %v1036 = vadd.f32 0.0, %v1035
      %1037 = vmatmul.bf16.gmra.mxu0 %v540
      %v1038 = vpop.f32.mrf.mxu0
      %v1039 = vadd.f32 0.0, %v1038
      %v1040 = vpop.f32.mrf.mxu0
      %v1041 = vadd.f32 0.0, %v1040
      %1042 = vmatmul.bf16.gmra.mxu0 %v541
      %v1043 = vpop.f32.mrf.mxu0
      %v1044 = vadd.f32 0.0, %v1043
      %v1045 = vpop.f32.mrf.mxu0
      %v1046 = vadd.f32 0.0, %v1045
      %1047 = vmatmul.bf16.gmra.mxu0 %v542
      %v1048 = vpop.f32.mrf.mxu0
      %v1049 = vadd.f32 0.0, %v1048
      %v1050 = vpop.f32.mrf.mxu0
      %v1051 = vadd.f32 0.0, %v1050
      %1052 = vmatmul.bf16.gmra.mxu0 %v543
      %v1053 = vpop.f32.mrf.mxu0
      %v1054 = vadd.f32 0.0, %v1053
      %v1055 = vpop.f32.mrf.mxu0
      %v1056 = vadd.f32 0.0, %v1055
      %1057 = vmatmul.bf16.gmra.mxu0 %v544
      %v1058 = vpop.f32.mrf.mxu0
      %v1059 = vadd.f32 0.0, %v1058
      %v1060 = vpop.f32.mrf.mxu0
      %v1061 = vadd.f32 0.0, %v1060
      %1062 = vmatmul.bf16.gmra.mxu0 %v545
      %v1063 = vpop.f32.mrf.mxu0
      %v1064 = vadd.f32 0.0, %v1063
      %v1065 = vpop.f32.mrf.mxu0
      %v1066 = vadd.f32 0.0, %v1065
      %1067 = vmatmul.bf16.gmra.mxu0 %v546
      %v1068 = vpop.f32.mrf.mxu0
      %v1069 = vadd.f32 0.0, %v1068
      %v1070 = vpop.f32.mrf.mxu0
      %v1071 = vadd.f32 0.0, %v1070
      %1072 = vmatmul.bf16.gmra.mxu0 %v547
      %v1073 = vpop.f32.mrf.mxu0
      %v1074 = vadd.f32 0.0, %v1073
      %v1075 = vpop.f32.mrf.mxu0
      %v1076 = vadd.f32 0.0, %v1075
      %1077 = vmatmul.bf16.gmra.mxu0 %v548
      %v1078 = vpop.f32.mrf.mxu0
      %v1079 = vadd.f32 0.0, %v1078
      %v1080 = vpop.f32.mrf.mxu0
      %v1081 = vadd.f32 0.0, %v1080
      %1082 = vmatmul.bf16.gmra.mxu0 %v549
      %v1083 = vpop.f32.mrf.mxu0
      %v1084 = vadd.f32 0.0, %v1083
      %v1085 = vpop.f32.mrf.mxu0
      %v1086 = vadd.f32 0.0, %v1085
      %1087 = vmatmul.bf16.gmra.mxu0 %v550
      %v1088 = vpop.f32.mrf.mxu0
      %v1089 = vadd.f32 0.0, %v1088
      %v1090 = vpop.f32.mrf.mxu0
      %v1091 = vadd.f32 0.0, %v1090
      %1092 = vmatmul.bf16.gmra.mxu0 %v551
      %v1093 = vpop.f32.mrf.mxu0
      %v1094 = vadd.f32 0.0, %v1093
      %v1095 = vpop.f32.mrf.mxu0
      %v1096 = vadd.f32 0.0, %v1095
      %1097 = vdwg.mxu0
      %1098 = vmatpush.bf16.xpose.msra.mxu0 %v992
      %1099 = vmatpush.bf16.xpose.msra.mxu0 %v991
      %1100 = vmatpush.bf16.xpose.msra.mxu0 %v990
      %1101 = vmatpush.bf16.xpose.msra.mxu0 %v989
      %1102 = vmatpush.bf16.xpose.msra.mxu0 %v988
      %1103 = vmatpush.bf16.xpose.msra.mxu0 %v987
      %1104 = vmatpush.bf16.xpose.msra.mxu0 %v986
      %1105 = vmatpush.bf16.xpose.msra.mxu0 %v985
      %1106 = vmatmul.bf16.gmra.mxu0 %v536
      %v1107 = vpop.f32.mrf.mxu0
      %v1108 = vadd.f32 0.0, %v1107
      %v1109 = vpop.f32.mrf.mxu0
      %v1110 = vadd.f32 0.0, %v1109
      %1111 = vmatmul.bf16.gmra.mxu0 %v537
      %v1112 = vpop.f32.mrf.mxu0
      %v1113 = vadd.f32 0.0, %v1112
      %v1114 = vpop.f32.mrf.mxu0
      %v1115 = vadd.f32 0.0, %v1114
      %1116 = vmatmul.bf16.gmra.mxu0 %v538
      %v1117 = vpop.f32.mrf.mxu0
      %v1118 = vadd.f32 0.0, %v1117
      %v1119 = vpop.f32.mrf.mxu0
      %v1120 = vadd.f32 0.0, %v1119
      %1121 = vmatmul.bf16.gmra.mxu0 %v539
      %v1122 = vpop.f32.mrf.mxu0
      %v1123 = vadd.f32 0.0, %v1122
      %v1124 = vpop.f32.mrf.mxu0
      %v1125 = vadd.f32 0.0, %v1124
      %1126 = vmatmul.bf16.gmra.mxu0 %v540
      %v1127 = vpop.f32.mrf.mxu0
      %v1128 = vadd.f32 0.0, %v1127
      %v1129 = vpop.f32.mrf.mxu0
      %v1130 = vadd.f32 0.0, %v1129
      %1131 = vmatmul.bf16.gmra.mxu0 %v541
      %v1132 = vpop.f32.mrf.mxu0
      %v1133 = vadd.f32 0.0, %v1132
      %v1134 = vpop.f32.mrf.mxu0
      %v1135 = vadd.f32 0.0, %v1134
      %1136 = vmatmul.bf16.gmra.mxu0 %v542
      %v1137 = vpop.f32.mrf.mxu0
      %v1138 = vadd.f32 0.0, %v1137
      %v1139 = vpop.f32.mrf.mxu0
      %v1140 = vadd.f32 0.0, %v1139
      %1141 = vmatmul.bf16.gmra.mxu0 %v543
      %v1142 = vpop.f32.mrf.mxu0
      %v1143 = vadd.f32 0.0, %v1142
      %v1144 = vpop.f32.mrf.mxu0
      %v1145 = vadd.f32 0.0, %v1144
      %1146 = vmatmul.bf16.gmra.mxu0 %v544
      %v1147 = vpop.f32.mrf.mxu0
      %v1148 = vadd.f32 0.0, %v1147
      %v1149 = vpop.f32.mrf.mxu0
      %v1150 = vadd.f32 0.0, %v1149
      %1151 = vmatmul.bf16.gmra.mxu0 %v545
      %v1152 = vpop.f32.mrf.mxu0
      %v1153 = vadd.f32 0.0, %v1152
      %v1154 = vpop.f32.mrf.mxu0
      %v1155 = vadd.f32 0.0, %v1154
      %1156 = vmatmul.bf16.gmra.mxu0 %v546
      %v1157 = vpop.f32.mrf.mxu0
      %v1158 = vadd.f32 0.0, %v1157
      %v1159 = vpop.f32.mrf.mxu0
      %v1160 = vadd.f32 0.0, %v1159
      %1161 = vmatmul.bf16.gmra.mxu0 %v547
      %v1162 = vpop.f32.mrf.mxu0
      %v1163 = vadd.f32 0.0, %v1162
      %v1164 = vpop.f32.mrf.mxu0
      %v1165 = vadd.f32 0.0, %v1164
      %1166 = vmatmul.bf16.gmra.mxu0 %v548
      %v1167 = vpop.f32.mrf.mxu0
      %v1168 = vadd.f32 0.0, %v1167
      %v1169 = vpop.f32.mrf.mxu0
      %v1170 = vadd.f32 0.0, %v1169
      %1171 = vmatmul.bf16.gmra.mxu0 %v549
      %v1172 = vpop.f32.mrf.mxu0
      %v1173 = vadd.f32 0.0, %v1172
      %v1174 = vpop.f32.mrf.mxu0
      %v1175 = vadd.f32 0.0, %v1174
      %1176 = vmatmul.bf16.gmra.mxu0 %v550
      %v1177 = vpop.f32.mrf.mxu0
      %v1178 = vadd.f32 0.0, %v1177
      %v1179 = vpop.f32.mrf.mxu0
      %v1180 = vadd.f32 0.0, %v1179
      %1181 = vmatmul.bf16.gmra.mxu0 %v551
      %v1182 = vpop.f32.mrf.mxu0
      %v1183 = vadd.f32 0.0, %v1182
      %v1184 = vpop.f32.mrf.mxu0
      %v1185 = vadd.f32 0.0, %v1184
      %1186 = vdwg.mxu0
      %1187 = vmatpush.bf16.xpose.msra.mxu0 %v1000
      %1188 = vmatpush.bf16.xpose.msra.mxu0 %v999
      %1189 = vmatpush.bf16.xpose.msra.mxu0 %v998
      %1190 = vmatpush.bf16.xpose.msra.mxu0 %v997
      %1191 = vmatpush.bf16.xpose.msra.mxu0 %v996
      %1192 = vmatpush.bf16.xpose.msra.mxu0 %v995
      %1193 = vmatpush.bf16.xpose.msra.mxu0 %v994
      %1194 = vmatpush.bf16.xpose.msra.mxu0 %v993
      %1195 = vmatmul.bf16.gmra.mxu0 %v536
      %v1196 = vpop.f32.mrf.mxu0
      %v1197 = vadd.f32 0.0, %v1196
      %v1198 = vpop.f32.mrf.mxu0
      %v1199 = vadd.f32 0.0, %v1198
      %1200 = vmatmul.bf16.gmra.mxu0 %v537
      %v1201 = vpop.f32.mrf.mxu0
      %v1202 = vadd.f32 0.0, %v1201
      %v1203 = vpop.f32.mrf.mxu0
      %v1204 = vadd.f32 0.0, %v1203
      %1205 = vmatmul.bf16.gmra.mxu0 %v538
      %v1206 = vpop.f32.mrf.mxu0
      %v1207 = vadd.f32 0.0, %v1206
      %v1208 = vpop.f32.mrf.mxu0
      %v1209 = vadd.f32 0.0, %v1208
      %1210 = vmatmul.bf16.gmra.mxu0 %v539
      %v1211 = vpop.f32.mrf.mxu0
      %v1212 = vadd.f32 0.0, %v1211
      %v1213 = vpop.f32.mrf.mxu0
      %v1214 = vadd.f32 0.0, %v1213
      %1215 = vmatmul.bf16.gmra.mxu0 %v540
      %v1216 = vpop.f32.mrf.mxu0
      %v1217 = vadd.f32 0.0, %v1216
      %v1218 = vpop.f32.mrf.mxu0
      %v1219 = vadd.f32 0.0, %v1218
      %1220 = vmatmul.bf16.gmra.mxu0 %v541
      %v1221 = vpop.f32.mrf.mxu0
      %v1222 = vadd.f32 0.0, %v1221
      %v1223 = vpop.f32.mrf.mxu0
      %v1224 = vadd.f32 0.0, %v1223
      %1225 = vmatmul.bf16.gmra.mxu0 %v542
      %v1226 = vpop.f32.mrf.mxu0
      %v1227 = vadd.f32 0.0, %v1226
      %v1228 = vpop.f32.mrf.mxu0
      %v1229 = vadd.f32 0.0, %v1228
      %1230 = vmatmul.bf16.gmra.mxu0 %v543
      %v1231 = vpop.f32.mrf.mxu0
      %v1232 = vadd.f32 0.0, %v1231
      %v1233 = vpop.f32.mrf.mxu0
      %v1234 = vadd.f32 0.0, %v1233
      %1235 = vmatmul.bf16.gmra.mxu0 %v544
      %v1236 = vpop.f32.mrf.mxu0
      %v1237 = vadd.f32 0.0, %v1236
      %v1238 = vpop.f32.mrf.mxu0
      %v1239 = vadd.f32 0.0, %v1238
      %1240 = vmatmul.bf16.gmra.mxu0 %v545
      %v1241 = vpop.f32.mrf.mxu0
      %v1242 = vadd.f32 0.0, %v1241
      %v1243 = vpop.f32.mrf.mxu0
      %v1244 = vadd.f32 0.0, %v1243
      %1245 = vmatmul.bf16.gmra.mxu0 %v546
      %v1246 = vpop.f32.mrf.mxu0
      %v1247 = vadd.f32 0.0, %v1246
      %v1248 = vpop.f32.mrf.mxu0
      %v1249 = vadd.f32 0.0, %v1248
      %1250 = vmatmul.bf16.gmra.mxu0 %v547
      %v1251 = vpop.f32.mrf.mxu0
      %v1252 = vadd.f32 0.0, %v1251
      %v1253 = vpop.f32.mrf.mxu0
      %v1254 = vadd.f32 0.0, %v1253
      %1255 = vmatmul.bf16.gmra.mxu0 %v548
      %v1256 = vpop.f32.mrf.mxu0
      %v1257 = vadd.f32 0.0, %v1256
      %v1258 = vpop.f32.mrf.mxu0
      %v1259 = vadd.f32 0.0, %v1258
      %1260 = vmatmul.bf16.gmra.mxu0 %v549
      %v1261 = vpop.f32.mrf.mxu0
      %v1262 = vadd.f32 0.0, %v1261
      %v1263 = vpop.f32.mrf.mxu0
      %v1264 = vadd.f32 0.0, %v1263
      %1265 = vmatmul.bf16.gmra.mxu0 %v550
      %v1266 = vpop.f32.mrf.mxu0
      %v1267 = vadd.f32 0.0, %v1266
      %v1268 = vpop.f32.mrf.mxu0
      %v1269 = vadd.f32 0.0, %v1268
      %1270 = vmatmul.bf16.gmra.mxu0 %v551
      %v1271 = vpop.f32.mrf.mxu0
      %v1272 = vadd.f32 0.0, %v1271
      %v1273 = vpop.f32.mrf.mxu0
      %v1274 = vadd.f32 0.0, %v1273
      %1275 = vdwg.mxu0
      %1276 = vmatpush.bf16.xpose.msra.mxu0 %v1008
      %1277 = vmatpush.bf16.xpose.msra.mxu0 %v1007
      %1278 = vmatpush.bf16.xpose.msra.mxu0 %v1006
      %1279 = vmatpush.bf16.xpose.msra.mxu0 %v1005
      %1280 = vmatpush.bf16.xpose.msra.mxu0 %v1004
      %1281 = vmatpush.bf16.xpose.msra.mxu0 %v1003
      %1282 = vmatpush.bf16.xpose.msra.mxu0 %v1002
      %1283 = vmatpush.bf16.xpose.msra.mxu0 %v1001
      %1284 = vmatmul.bf16.gmra.mxu0 %v536
      %v1285 = vpop.f32.mrf.mxu0
      %v1286 = vadd.f32 0.0, %v1285
      %v1287 = vpop.f32.mrf.mxu0
      %v1288 = vadd.f32 0.0, %v1287
      %1289 = vmatmul.bf16.gmra.mxu0 %v537
      %v1290 = vpop.f32.mrf.mxu0
      %v1291 = vadd.f32 0.0, %v1290
      %v1292 = vpop.f32.mrf.mxu0
      %v1293 = vadd.f32 0.0, %v1292
      %1294 = vmatmul.bf16.gmra.mxu0 %v538
      %v1295 = vpop.f32.mrf.mxu0
      %v1296 = vadd.f32 0.0, %v1295
      %v1297 = vpop.f32.mrf.mxu0
      %v1298 = vadd.f32 0.0, %v1297
      %1299 = vmatmul.bf16.gmra.mxu0 %v539
      %v1300 = vpop.f32.mrf.mxu0
      %v1301 = vadd.f32 0.0, %v1300
      %v1302 = vpop.f32.mrf.mxu0
      %v1303 = vadd.f32 0.0, %v1302
      %1304 = vmatmul.bf16.gmra.mxu0 %v540
      %v1305 = vpop.f32.mrf.mxu0
      %v1306 = vadd.f32 0.0, %v1305
      %v1307 = vpop.f32.mrf.mxu0
      %v1308 = vadd.f32 0.0, %v1307
      %1309 = vmatmul.bf16.gmra.mxu0 %v541
      %v1310 = vpop.f32.mrf.mxu0
      %v1311 = vadd.f32 0.0, %v1310
      %v1312 = vpop.f32.mrf.mxu0
      %v1313 = vadd.f32 0.0, %v1312
      %1314 = vmatmul.bf16.gmra.mxu0 %v542
      %v1315 = vpop.f32.mrf.mxu0
      %v1316 = vadd.f32 0.0, %v1315
      %v1317 = vpop.f32.mrf.mxu0
      %v1318 = vadd.f32 0.0, %v1317
      %1319 = vmatmul.bf16.gmra.mxu0 %v543
      %v1320 = vpop.f32.mrf.mxu0
      %v1321 = vadd.f32 0.0, %v1320
      %v1322 = vpop.f32.mrf.mxu0
      %v1323 = vadd.f32 0.0, %v1322
      %1324 = vmatmul.bf16.gmra.mxu0 %v544
      %v1325 = vpop.f32.mrf.mxu0
      %v1326 = vadd.f32 0.0, %v1325
      %v1327 = vpop.f32.mrf.mxu0
      %v1328 = vadd.f32 0.0, %v1327
      %1329 = vmatmul.bf16.gmra.mxu0 %v545
      %v1330 = vpop.f32.mrf.mxu0
      %v1331 = vadd.f32 0.0, %v1330
      %v1332 = vpop.f32.mrf.mxu0
      %v1333 = vadd.f32 0.0, %v1332
      %1334 = vmatmul.bf16.gmra.mxu0 %v546
      %v1335 = vpop.f32.mrf.mxu0
      %v1336 = vadd.f32 0.0, %v1335
      %v1337 = vpop.f32.mrf.mxu0
      %v1338 = vadd.f32 0.0, %v1337
      %1339 = vmatmul.bf16.gmra.mxu0 %v547
      %v1340 = vpop.f32.mrf.mxu0
      %v1341 = vadd.f32 0.0, %v1340
      %v1342 = vpop.f32.mrf.mxu0
      %v1343 = vadd.f32 0.0, %v1342
      %1344 = vmatmul.bf16.gmra.mxu0 %v548
      %v1345 = vpop.f32.mrf.mxu0
      %v1346 = vadd.f32 0.0, %v1345
      %v1347 = vpop.f32.mrf.mxu0
      %v1348 = vadd.f32 0.0, %v1347
      %1349 = vmatmul.bf16.gmra.mxu0 %v549
      %v1350 = vpop.f32.mrf.mxu0
      %v1351 = vadd.f32 0.0, %v1350
      %v1352 = vpop.f32.mrf.mxu0
      %v1353 = vadd.f32 0.0, %v1352
      %1354 = vmatmul.bf16.gmra.mxu0 %v550
      %v1355 = vpop.f32.mrf.mxu0
      %v1356 = vadd.f32 0.0, %v1355
      %v1357 = vpop.f32.mrf.mxu0
      %v1358 = vadd.f32 0.0, %v1357
      %1359 = vmatmul.bf16.gmra.mxu0 %v551
      %v1360 = vpop.f32.mrf.mxu0
      %v1361 = vadd.f32 0.0, %v1360
      %v1362 = vpop.f32.mrf.mxu0
      %v1363 = vadd.f32 0.0, %v1362
      %1364 = vdwg.mxu0
      %v1365 = vld [vmem:[%s245] sm:$0xff]
      %v1366 = vld [vmem:[%s245 + $0x8] sm:$0xff]
      %v1367 = vld [vmem:[%s245 + $0x10] sm:$0xff]
      %v1368 = vld [vmem:[%s245 + $0x18] sm:$0xff]
      %v1369 = vld [vmem:[%s245 + $0x20] sm:$0xff]
      %v1370 = vld [vmem:[%s245 + $0x28] sm:$0xff]
      %v1371 = vld [vmem:[%s245 + $0x30] sm:$0xff]
      %v1372 = vld [vmem:[%s245 + $0x38] sm:$0xff]
      %v1373 = vld [vmem:[%s245 + $0x40] sm:$0xff]
      %v1374 = vld [vmem:[%s245 + $0x48] sm:$0xff]
      %v1375 = vld [vmem:[%s245 + $0x50] sm:$0xff]
      %v1376 = vld [vmem:[%s245 + $0x58] sm:$0xff]
      %v1377 = vld [vmem:[%s245 + $0x60] sm:$0xff]
      %v1378 = vld [vmem:[%s245 + $0x68] sm:$0xff]
      %v1379 = vld [vmem:[%s245 + $0x70] sm:$0xff]
      %v1380 = vld [vmem:[%s245 + $0x78] sm:$0xff]
      %v1381 = vld [vmem:[%s245 + $0x80] sm:$0xff]
      %v1382 = vld [vmem:[%s245 + $0x88] sm:$0xff]
      %v1383 = vld [vmem:[%s245 + $0x90] sm:$0xff]
      %v1384 = vld [vmem:[%s245 + $0x98] sm:$0xff]
      %v1385 = vld [vmem:[%s245 + $0xa0] sm:$0xff]
      %v1386 = vld [vmem:[%s245 + $0xa8] sm:$0xff]
      %v1387 = vld [vmem:[%s245 + $0xb0] sm:$0xff]
      %v1388 = vld [vmem:[%s245 + $0xb8] sm:$0xff]
      %v1389 = vld [vmem:[%s245 + $0xc0] sm:$0xff]
      %v1390 = vld [vmem:[%s245 + $0xc8] sm:$0xff]
      %v1391 = vld [vmem:[%s245 + $0xd0] sm:$0xff]
      %v1392 = vld [vmem:[%s245 + $0xd8] sm:$0xff]
      %v1393 = vld [vmem:[%s245 + $0xe0] sm:$0xff]
      %v1394 = vld [vmem:[%s245 + $0xe8] sm:$0xff]
      %v1395 = vld [vmem:[%s245 + $0xf0] sm:$0xff]
      %v1396 = vld [vmem:[%s245 + $0xf8] sm:$0xff]
      %vm1397 = vnez %v1365
      %vm1398 = vnez %v1366
      %vm1399 = vnez %v1367
      %vm1400 = vnez %v1368
      %vm1401 = vnez %v1369
      %vm1402 = vnez %v1370
      %vm1403 = vnez %v1371
      %vm1404 = vnez %v1372
      %vm1405 = vnez %v1373
      %vm1406 = vnez %v1374
      %vm1407 = vnez %v1375
      %vm1408 = vnez %v1376
      %vm1409 = vnez %v1377
      %vm1410 = vnez %v1378
      %vm1411 = vnez %v1379
      %vm1412 = vnez %v1380
      %vm1413 = vnez %v1381
      %vm1414 = vnez %v1382
      %vm1415 = vnez %v1383
      %vm1416 = vnez %v1384
      %vm1417 = vnez %v1385
      %vm1418 = vnez %v1386
      %vm1419 = vnez %v1387
      %vm1420 = vnez %v1388
      %vm1421 = vnez %v1389
      %vm1422 = vnez %v1390
      %vm1423 = vnez %v1391
      %vm1424 = vnez %v1392
      %vm1425 = vnez %v1393
      %vm1426 = vnez %v1394
      %vm1427 = vnez %v1395
      %vm1428 = vnez %v1396
      %v1429 = vsel %vm1397, 16843009, 0
      %v1430 = vsel %vm1398, 16843009, 0
      %v1431 = vsel %vm1399, 16843009, 0
      %v1432 = vsel %vm1400, 16843009, 0
      %v1433 = vsel %vm1401, 16843009, 0
      %v1434 = vsel %vm1402, 16843009, 0
      %v1435 = vsel %vm1403, 16843009, 0
      %v1436 = vsel %vm1404, 16843009, 0
      %v1437 = vsel %vm1405, 16843009, 0
      %v1438 = vsel %vm1406, 16843009, 0
      %v1439 = vsel %vm1407, 16843009, 0
      %v1440 = vsel %vm1408, 16843009, 0
      %v1441 = vsel %vm1409, 16843009, 0
      %v1442 = vsel %vm1410, 16843009, 0
      %v1443 = vsel %vm1411, 16843009, 0
      %v1444 = vsel %vm1412, 16843009, 0
      %v1445 = vsel %vm1413, 16843009, 0
      %v1446 = vsel %vm1414, 16843009, 0
      %v1447 = vsel %vm1415, 16843009, 0
      %v1448 = vsel %vm1416, 16843009, 0
      %v1449 = vsel %vm1417, 16843009, 0
      %v1450 = vsel %vm1418, 16843009, 0
      %v1451 = vsel %vm1419, 16843009, 0
      %v1452 = vsel %vm1420, 16843009, 0
      %v1453 = vsel %vm1421, 16843009, 0
      %v1454 = vsel %vm1422, 16843009, 0
      %v1455 = vsel %vm1423, 16843009, 0
      %v1456 = vsel %vm1424, 16843009, 0
      %v1457 = vsel %vm1425, 16843009, 0
      %v1458 = vsel %vm1426, 16843009, 0
      %v1459 = vsel %vm1427, 16843009, 0
      %v1460 = vsel %vm1428, 16843009, 0
      %v1461 = vunpack.c.0.s8 %v1429
      %v1462 = vunpack.c.0.s8 %v1430
      %v1463 = vunpack.c.0.s8 %v1431
      %v1464 = vunpack.c.0.s8 %v1432
      %v1465 = vunpack.c.1.s8 %v1429
      %v1466 = vunpack.c.1.s8 %v1430
      %v1467 = vunpack.c.1.s8 %v1431
      %v1468 = vunpack.c.1.s8 %v1432
      %v1469 = vunpack.c.2.s8 %v1429
      %v1470 = vunpack.c.2.s8 %v1430
      %v1471 = vunpack.c.2.s8 %v1431
      %v1472 = vunpack.c.2.s8 %v1432
      %v1473 = vunpack.c.3.s8 %v1429
      %v1474 = vunpack.c.3.s8 %v1430
      %v1475 = vunpack.c.3.s8 %v1431
      %v1476 = vunpack.c.3.s8 %v1432
      %v1477 = vunpack.c.0.s8 %v1433
      %v1478 = vunpack.c.0.s8 %v1434
      %v1479 = vunpack.c.0.s8 %v1435
      %v1480 = vunpack.c.0.s8 %v1436
      %v1481 = vunpack.c.1.s8 %v1433
      %v1482 = vunpack.c.1.s8 %v1434
      %v1483 = vunpack.c.1.s8 %v1435
      %v1484 = vunpack.c.1.s8 %v1436
      %v1485 = vunpack.c.2.s8 %v1433
      %v1486 = vunpack.c.2.s8 %v1434
      %v1487 = vunpack.c.2.s8 %v1435
      %v1488 = vunpack.c.2.s8 %v1436
      %v1489 = vunpack.c.3.s8 %v1433
      %v1490 = vunpack.c.3.s8 %v1434
      %v1491 = vunpack.c.3.s8 %v1435
      %v1492 = vunpack.c.3.s8 %v1436
      %v1493 = vunpack.c.0.s8 %v1437
      %v1494 = vunpack.c.0.s8 %v1438
      %v1495 = vunpack.c.0.s8 %v1439
      %v1496 = vunpack.c.0.s8 %v1440
      %v1497 = vunpack.c.1.s8 %v1437
      %v1498 = vunpack.c.1.s8 %v1438
      %v1499 = vunpack.c.1.s8 %v1439
      %v1500 = vunpack.c.1.s8 %v1440
      %v1501 = vunpack.c.2.s8 %v1437
      %v1502 = vunpack.c.2.s8 %v1438
      %v1503 = vunpack.c.2.s8 %v1439
      %v1504 = vunpack.c.2.s8 %v1440
      %v1505 = vunpack.c.3.s8 %v1437
      %v1506 = vunpack.c.3.s8 %v1438
      %v1507 = vunpack.c.3.s8 %v1439
      %v1508 = vunpack.c.3.s8 %v1440
      %v1509 = vunpack.c.0.s8 %v1441
      %v1510 = vunpack.c.0.s8 %v1442
      %v1511 = vunpack.c.0.s8 %v1443
      %v1512 = vunpack.c.0.s8 %v1444
      %v1513 = vunpack.c.1.s8 %v1441
      %v1514 = vunpack.c.1.s8 %v1442
      %v1515 = vunpack.c.1.s8 %v1443
      %v1516 = vunpack.c.1.s8 %v1444
      %v1517 = vunpack.c.2.s8 %v1441
      %v1518 = vunpack.c.2.s8 %v1442
      %v1519 = vunpack.c.2.s8 %v1443
      %v1520 = vunpack.c.2.s8 %v1444
      %v1521 = vunpack.c.3.s8 %v1441
      %v1522 = vunpack.c.3.s8 %v1442
      %v1523 = vunpack.c.3.s8 %v1443
      %v1524 = vunpack.c.3.s8 %v1444
      %v1525 = vunpack.c.0.s8 %v1445
      %v1526 = vunpack.c.0.s8 %v1446
      %v1527 = vunpack.c.0.s8 %v1447
      %v1528 = vunpack.c.0.s8 %v1448
      %v1529 = vunpack.c.1.s8 %v1445
      %v1530 = vunpack.c.1.s8 %v1446
      %v1531 = vunpack.c.1.s8 %v1447
      %v1532 = vunpack.c.1.s8 %v1448
      %v1533 = vunpack.c.2.s8 %v1445
      %v1534 = vunpack.c.2.s8 %v1446
      %v1535 = vunpack.c.2.s8 %v1447
      %v1536 = vunpack.c.2.s8 %v1448
      %v1537 = vunpack.c.3.s8 %v1445
      %v1538 = vunpack.c.3.s8 %v1446
      %v1539 = vunpack.c.3.s8 %v1447
      %v1540 = vunpack.c.3.s8 %v1448
      %v1541 = vunpack.c.0.s8 %v1449
      %v1542 = vunpack.c.0.s8 %v1450
      %v1543 = vunpack.c.0.s8 %v1451
      %v1544 = vunpack.c.0.s8 %v1452
      %v1545 = vunpack.c.1.s8 %v1449
      %v1546 = vunpack.c.1.s8 %v1450
      %v1547 = vunpack.c.1.s8 %v1451
      %v1548 = vunpack.c.1.s8 %v1452
      %v1549 = vunpack.c.2.s8 %v1449
      %v1550 = vunpack.c.2.s8 %v1450
      %v1551 = vunpack.c.2.s8 %v1451
      %v1552 = vunpack.c.2.s8 %v1452
      %v1553 = vunpack.c.3.s8 %v1449
      %v1554 = vunpack.c.3.s8 %v1450
      %v1555 = vunpack.c.3.s8 %v1451
      %v1556 = vunpack.c.3.s8 %v1452
      %v1557 = vunpack.c.0.s8 %v1453
      %v1558 = vunpack.c.0.s8 %v1454
      %v1559 = vunpack.c.0.s8 %v1455
      %v1560 = vunpack.c.0.s8 %v1456
      %v1561 = vunpack.c.1.s8 %v1453
      %v1562 = vunpack.c.1.s8 %v1454
      %v1563 = vunpack.c.1.s8 %v1455
      %v1564 = vunpack.c.1.s8 %v1456
      %v1565 = vunpack.c.2.s8 %v1453
      %v1566 = vunpack.c.2.s8 %v1454
      %v1567 = vunpack.c.2.s8 %v1455
      %v1568 = vunpack.c.2.s8 %v1456
      %v1569 = vunpack.c.3.s8 %v1453
      %v1570 = vunpack.c.3.s8 %v1454
      %v1571 = vunpack.c.3.s8 %v1455
      %v1572 = vunpack.c.3.s8 %v1456
      %v1573 = vunpack.c.0.s8 %v1457
      %v1574 = vunpack.c.0.s8 %v1458
      %v1575 = vunpack.c.0.s8 %v1459
      %v1576 = vunpack.c.0.s8 %v1460
      %v1577 = vunpack.c.1.s8 %v1457
      %v1578 = vunpack.c.1.s8 %v1458
      %v1579 = vunpack.c.1.s8 %v1459
      %v1580 = vunpack.c.1.s8 %v1460
      %v1581 = vunpack.c.2.s8 %v1457
      %v1582 = vunpack.c.2.s8 %v1458
      %v1583 = vunpack.c.2.s8 %v1459
      %v1584 = vunpack.c.2.s8 %v1460
      %v1585 = vunpack.c.3.s8 %v1457
      %v1586 = vunpack.c.3.s8 %v1458
      %v1587 = vunpack.c.3.s8 %v1459
      %v1588 = vunpack.c.3.s8 %v1460
      %v1589 = vpack.c.b16 %v1462, %v1461
      %v1590 = vpack.c.b16 %v1464, %v1463
      %v1591 = vpack.c.b8 %v1590, %v1589
      %v1592 = vpack.c.b16 %v1466, %v1465
      %v1593 = vpack.c.b16 %v1468, %v1467
      %v1594 = vpack.c.b8 %v1593, %v1592
      %v1595 = vpack.c.b16 %v1470, %v1469
      %v1596 = vpack.c.b16 %v1472, %v1471
      %v1597 = vpack.c.b8 %v1596, %v1595
      %v1598 = vpack.c.b16 %v1474, %v1473
      %v1599 = vpack.c.b16 %v1476, %v1475
      %v1600 = vpack.c.b8 %v1599, %v1598
      %v1601 = vpack.c.b16 %v1478, %v1477
      %v1602 = vpack.c.b16 %v1480, %v1479
      %v1603 = vpack.c.b8 %v1602, %v1601
      %v1604 = vpack.c.b16 %v1482, %v1481
      %v1605 = vpack.c.b16 %v1484, %v1483
      %v1606 = vpack.c.b8 %v1605, %v1604
      %v1607 = vpack.c.b16 %v1486, %v1485
      %v1608 = vpack.c.b16 %v1488, %v1487
      %v1609 = vpack.c.b8 %v1608, %v1607
      %v1610 = vpack.c.b16 %v1490, %v1489
      %v1611 = vpack.c.b16 %v1492, %v1491
      %v1612 = vpack.c.b8 %v1611, %v1610
      %v1613 = vpack.c.b16 %v1494, %v1493
      %v1614 = vpack.c.b16 %v1496, %v1495
      %v1615 = vpack.c.b8 %v1614, %v1613
      %v1616 = vpack.c.b16 %v1498, %v1497
      %v1617 = vpack.c.b16 %v1500, %v1499
      %v1618 = vpack.c.b8 %v1617, %v1616
      %v1619 = vpack.c.b16 %v1502, %v1501
      %v1620 = vpack.c.b16 %v1504, %v1503
      %v1621 = vpack.c.b8 %v1620, %v1619
      %v1622 = vpack.c.b16 %v1506, %v1505
      %v1623 = vpack.c.b16 %v1508, %v1507
      %v1624 = vpack.c.b8 %v1623, %v1622
      %v1625 = vpack.c.b16 %v1510, %v1509
      %v1626 = vpack.c.b16 %v1512, %v1511
      %v1627 = vpack.c.b8 %v1626, %v1625
      %v1628 = vpack.c.b16 %v1514, %v1513
      %v1629 = vpack.c.b16 %v1516, %v1515
      %v1630 = vpack.c.b8 %v1629, %v1628
      %v1631 = vpack.c.b16 %v1518, %v1517
      %v1632 = vpack.c.b16 %v1520, %v1519
      %v1633 = vpack.c.b8 %v1632, %v1631
      %v1634 = vpack.c.b16 %v1522, %v1521
      %v1635 = vpack.c.b16 %v1524, %v1523
      %v1636 = vpack.c.b8 %v1635, %v1634
      %v1637 = vpack.c.b16 %v1526, %v1525
      %v1638 = vpack.c.b16 %v1528, %v1527
      %v1639 = vpack.c.b8 %v1638, %v1637
      %v1640 = vpack.c.b16 %v1530, %v1529
      %v1641 = vpack.c.b16 %v1532, %v1531
      %v1642 = vpack.c.b8 %v1641, %v1640
      %v1643 = vpack.c.b16 %v1534, %v1533
      %v1644 = vpack.c.b16 %v1536, %v1535
      %v1645 = vpack.c.b8 %v1644, %v1643
      %v1646 = vpack.c.b16 %v1538, %v1537
      %v1647 = vpack.c.b16 %v1540, %v1539
      %v1648 = vpack.c.b8 %v1647, %v1646
      %v1649 = vpack.c.b16 %v1542, %v1541
      %v1650 = vpack.c.b16 %v1544, %v1543
      %v1651 = vpack.c.b8 %v1650, %v1649
      %v1652 = vpack.c.b16 %v1546, %v1545
      %v1653 = vpack.c.b16 %v1548, %v1547
      %v1654 = vpack.c.b8 %v1653, %v1652
      %v1655 = vpack.c.b16 %v1550, %v1549
      %v1656 = vpack.c.b16 %v1552, %v1551
      %v1657 = vpack.c.b8 %v1656, %v1655
      %v1658 = vpack.c.b16 %v1554, %v1553
      %v1659 = vpack.c.b16 %v1556, %v1555
      %v1660 = vpack.c.b8 %v1659, %v1658
      %v1661 = vpack.c.b16 %v1558, %v1557
      %v1662 = vpack.c.b16 %v1560, %v1559
      %v1663 = vpack.c.b8 %v1662, %v1661
      %v1664 = vpack.c.b16 %v1562, %v1561
      %v1665 = vpack.c.b16 %v1564, %v1563
      %v1666 = vpack.c.b8 %v1665, %v1664
      %v1667 = vpack.c.b16 %v1566, %v1565
      %v1668 = vpack.c.b16 %v1568, %v1567
      %v1669 = vpack.c.b8 %v1668, %v1667
      %v1670 = vpack.c.b16 %v1570, %v1569
      %v1671 = vpack.c.b16 %v1572, %v1571
      %v1672 = vpack.c.b8 %v1671, %v1670
      %v1673 = vpack.c.b16 %v1574, %v1573
      %v1674 = vpack.c.b16 %v1576, %v1575
      %v1675 = vpack.c.b8 %v1674, %v1673
      %v1676 = vpack.c.b16 %v1578, %v1577
      %v1677 = vpack.c.b16 %v1580, %v1579
      %v1678 = vpack.c.b8 %v1677, %v1676
      %v1679 = vpack.c.b16 %v1582, %v1581
      %v1680 = vpack.c.b16 %v1584, %v1583
      %v1681 = vpack.c.b8 %v1680, %v1679
      %v1682 = vpack.c.b16 %v1586, %v1585
      %v1683 = vpack.c.b16 %v1588, %v1587
      %v1684 = vpack.c.b8 %v1683, %v1682
      %vm1685 = vnez %v1591
      %vm1686 = vnez %v1594
      %vm1687 = vnez %v1597
      %vm1688 = vnez %v1600
      %vm1689 = vnez %v1603
      %vm1690 = vnez %v1606
      %vm1691 = vnez %v1609
      %vm1692 = vnez %v1612
      %vm1693 = vnez %v1615
      %vm1694 = vnez %v1618
      %vm1695 = vnez %v1621
      %vm1696 = vnez %v1624
      %vm1697 = vnez %v1627
      %vm1698 = vnez %v1630
      %vm1699 = vnez %v1633
      %vm1700 = vnez %v1636
      %vm1701 = vnez %v1639
      %vm1702 = vnez %v1642
      %vm1703 = vnez %v1645
      %vm1704 = vnez %v1648
      %vm1705 = vnez %v1651
      %vm1706 = vnez %v1654
      %vm1707 = vnez %v1657
      %vm1708 = vnez %v1660
      %vm1709 = vnez %v1663
      %vm1710 = vnez %v1666
      %vm1711 = vnez %v1669
      %vm1712 = vnez %v1672
      %vm1713 = vnez %v1675
      %vm1714 = vnez %v1678
      %vm1715 = vnez %v1681
      %vm1716 = vnez %v1684
      %v1717 = vsel %vm1685, 16843009, 0
      %v1718 = vsel %vm1686, 16843009, 0
      %v1719 = vsel %vm1687, 16843009, 0
      %v1720 = vsel %vm1688, 16843009, 0
      %v1721 = vsel %vm1689, 16843009, 0
      %v1722 = vsel %vm1690, 16843009, 0
      %v1723 = vsel %vm1691, 16843009, 0
      %v1724 = vsel %vm1692, 16843009, 0
      %v1725 = vsel %vm1693, 16843009, 0
      %v1726 = vsel %vm1694, 16843009, 0
      %v1727 = vsel %vm1695, 16843009, 0
      %v1728 = vsel %vm1696, 16843009, 0
      %v1729 = vsel %vm1697, 16843009, 0
      %v1730 = vsel %vm1698, 16843009, 0
      %v1731 = vsel %vm1699, 16843009, 0
      %v1732 = vsel %vm1700, 16843009, 0
      %v1733 = vsel %vm1701, 16843009, 0
      %v1734 = vsel %vm1702, 16843009, 0
      %v1735 = vsel %vm1703, 16843009, 0
      %v1736 = vsel %vm1704, 16843009, 0
      %v1737 = vsel %vm1705, 16843009, 0
      %v1738 = vsel %vm1706, 16843009, 0
      %v1739 = vsel %vm1707, 16843009, 0
      %v1740 = vsel %vm1708, 16843009, 0
      %v1741 = vsel %vm1709, 16843009, 0
      %v1742 = vsel %vm1710, 16843009, 0
      %v1743 = vsel %vm1711, 16843009, 0
      %v1744 = vsel %vm1712, 16843009, 0
      %v1745 = vsel %vm1713, 16843009, 0
      %v1746 = vsel %vm1714, 16843009, 0
      %v1747 = vsel %vm1715, 16843009, 0
      %v1748 = vsel %vm1716, 16843009, 0
      %v1749 = vunpack.c.0.s8 %v1717
      %v1750 = vunpack.c.1.s8 %v1717
      %v1751 = vunpack.c.2.s8 %v1717
      %v1752 = vunpack.c.3.s8 %v1717
      %v1753 = vunpack.c.0.s8 %v1718
      %v1754 = vunpack.c.1.s8 %v1718
      %v1755 = vunpack.c.2.s8 %v1718
      %v1756 = vunpack.c.3.s8 %v1718
      %v1757 = vunpack.c.0.s8 %v1719
      %v1758 = vunpack.c.1.s8 %v1719
      %v1759 = vunpack.c.2.s8 %v1719
      %v1760 = vunpack.c.3.s8 %v1719
      %v1761 = vunpack.c.0.s8 %v1720
      %v1762 = vunpack.c.1.s8 %v1720
      %v1763 = vunpack.c.2.s8 %v1720
      %v1764 = vunpack.c.3.s8 %v1720
      %v1765 = vunpack.c.0.s8 %v1721
      %v1766 = vunpack.c.1.s8 %v1721
      %v1767 = vunpack.c.2.s8 %v1721
      %v1768 = vunpack.c.3.s8 %v1721
      %v1769 = vunpack.c.0.s8 %v1722
      %v1770 = vunpack.c.1.s8 %v1722
      %v1771 = vunpack.c.2.s8 %v1722
      %v1772 = vunpack.c.3.s8 %v1722
      %v1773 = vunpack.c.0.s8 %v1723
      %v1774 = vunpack.c.1.s8 %v1723
      %v1775 = vunpack.c.2.s8 %v1723
      %v1776 = vunpack.c.3.s8 %v1723
      %v1777 = vunpack.c.0.s8 %v1724
      %v1778 = vunpack.c.1.s8 %v1724
      %v1779 = vunpack.c.2.s8 %v1724
      %v1780 = vunpack.c.3.s8 %v1724
      %v1781 = vunpack.c.0.s8 %v1725
      %v1782 = vunpack.c.1.s8 %v1725
      %v1783 = vunpack.c.2.s8 %v1725
      %v1784 = vunpack.c.3.s8 %v1725
      %v1785 = vunpack.c.0.s8 %v1726
      %v1786 = vunpack.c.1.s8 %v1726
      %v1787 = vunpack.c.2.s8 %v1726
      %v1788 = vunpack.c.3.s8 %v1726
      %v1789 = vunpack.c.0.s8 %v1727
      %v1790 = vunpack.c.1.s8 %v1727
      %v1791 = vunpack.c.2.s8 %v1727
      %v1792 = vunpack.c.3.s8 %v1727
      %v1793 = vunpack.c.0.s8 %v1728
      %v1794 = vunpack.c.1.s8 %v1728
      %v1795 = vunpack.c.2.s8 %v1728
      %v1796 = vunpack.c.3.s8 %v1728
      %v1797 = vunpack.c.0.s8 %v1729
      %v1798 = vunpack.c.1.s8 %v1729
      %v1799 = vunpack.c.2.s8 %v1729
      %v1800 = vunpack.c.3.s8 %v1729
      %v1801 = vunpack.c.0.s8 %v1730
      %v1802 = vunpack.c.1.s8 %v1730
      %v1803 = vunpack.c.2.s8 %v1730
      %v1804 = vunpack.c.3.s8 %v1730
      %v1805 = vunpack.c.0.s8 %v1731
      %v1806 = vunpack.c.1.s8 %v1731
      %v1807 = vunpack.c.2.s8 %v1731
      %v1808 = vunpack.c.3.s8 %v1731
      %v1809 = vunpack.c.0.s8 %v1732
      %v1810 = vunpack.c.1.s8 %v1732
      %v1811 = vunpack.c.2.s8 %v1732
      %v1812 = vunpack.c.3.s8 %v1732
      %v1813 = vunpack.c.0.s8 %v1733
      %v1814 = vunpack.c.1.s8 %v1733
      %v1815 = vunpack.c.2.s8 %v1733
      %v1816 = vunpack.c.3.s8 %v1733
      %v1817 = vunpack.c.0.s8 %v1734
      %v1818 = vunpack.c.1.s8 %v1734
      %v1819 = vunpack.c.2.s8 %v1734
      %v1820 = vunpack.c.3.s8 %v1734
      %v1821 = vunpack.c.0.s8 %v1735
      %v1822 = vunpack.c.1.s8 %v1735
      %v1823 = vunpack.c.2.s8 %v1735
      %v1824 = vunpack.c.3.s8 %v1735
      %v1825 = vunpack.c.0.s8 %v1736
      %v1826 = vunpack.c.1.s8 %v1736
      %v1827 = vunpack.c.2.s8 %v1736
      %v1828 = vunpack.c.3.s8 %v1736
      %v1829 = vunpack.c.0.s8 %v1737
      %v1830 = vunpack.c.1.s8 %v1737
      %v1831 = vunpack.c.2.s8 %v1737
      %v1832 = vunpack.c.3.s8 %v1737
      %v1833 = vunpack.c.0.s8 %v1738
      %v1834 = vunpack.c.1.s8 %v1738
      %v1835 = vunpack.c.2.s8 %v1738
      %v1836 = vunpack.c.3.s8 %v1738
      %v1837 = vunpack.c.0.s8 %v1739
      %v1838 = vunpack.c.1.s8 %v1739
      %v1839 = vunpack.c.2.s8 %v1739
      %v1840 = vunpack.c.3.s8 %v1739
      %v1841 = vunpack.c.0.s8 %v1740
      %v1842 = vunpack.c.1.s8 %v1740
      %v1843 = vunpack.c.2.s8 %v1740
      %v1844 = vunpack.c.3.s8 %v1740
      %v1845 = vunpack.c.0.s8 %v1741
      %v1846 = vunpack.c.1.s8 %v1741
      %v1847 = vunpack.c.2.s8 %v1741
      %v1848 = vunpack.c.3.s8 %v1741
      %v1849 = vunpack.c.0.s8 %v1742
      %v1850 = vunpack.c.1.s8 %v1742
      %v1851 = vunpack.c.2.s8 %v1742
      %v1852 = vunpack.c.3.s8 %v1742
      %v1853 = vunpack.c.0.s8 %v1743
      %v1854 = vunpack.c.1.s8 %v1743
      %v1855 = vunpack.c.2.s8 %v1743
      %v1856 = vunpack.c.3.s8 %v1743
      %v1857 = vunpack.c.0.s8 %v1744
      %v1858 = vunpack.c.1.s8 %v1744
      %v1859 = vunpack.c.2.s8 %v1744
      %v1860 = vunpack.c.3.s8 %v1744
      %v1861 = vunpack.c.0.s8 %v1745
      %v1862 = vunpack.c.1.s8 %v1745
      %v1863 = vunpack.c.2.s8 %v1745
      %v1864 = vunpack.c.3.s8 %v1745
      %v1865 = vunpack.c.0.s8 %v1746
      %v1866 = vunpack.c.1.s8 %v1746
      %v1867 = vunpack.c.2.s8 %v1746
      %v1868 = vunpack.c.3.s8 %v1746
      %v1869 = vunpack.c.0.s8 %v1747
      %v1870 = vunpack.c.1.s8 %v1747
      %v1871 = vunpack.c.2.s8 %v1747
      %v1872 = vunpack.c.3.s8 %v1747
      %v1873 = vunpack.c.0.s8 %v1748
      %v1874 = vunpack.c.1.s8 %v1748
      %v1875 = vunpack.c.2.s8 %v1748
      %v1876 = vunpack.c.3.s8 %v1748
      %vm1877 = vcmp.ne.s32.totalorder %v1749, 0
      %vm1878 = vcmp.ne.s32.totalorder %v1750, 0
      %vm1879 = vcmp.ne.s32.totalorder %v1751, 0
      %vm1880 = vcmp.ne.s32.totalorder %v1752, 0
      %vm1881 = vcmp.ne.s32.totalorder %v1753, 0
      %vm1882 = vcmp.ne.s32.totalorder %v1754, 0
      %vm1883 = vcmp.ne.s32.totalorder %v1755, 0
      %vm1884 = vcmp.ne.s32.totalorder %v1756, 0
      %vm1885 = vcmp.ne.s32.totalorder %v1757, 0
      %vm1886 = vcmp.ne.s32.totalorder %v1758, 0
      %vm1887 = vcmp.ne.s32.totalorder %v1759, 0
      %vm1888 = vcmp.ne.s32.totalorder %v1760, 0
      %vm1889 = vcmp.ne.s32.totalorder %v1761, 0
      %vm1890 = vcmp.ne.s32.totalorder %v1762, 0
      %vm1891 = vcmp.ne.s32.totalorder %v1763, 0
      %vm1892 = vcmp.ne.s32.totalorder %v1764, 0
      %vm1893 = vcmp.ne.s32.totalorder %v1765, 0
      %vm1894 = vcmp.ne.s32.totalorder %v1766, 0
      %vm1895 = vcmp.ne.s32.totalorder %v1767, 0
      %vm1896 = vcmp.ne.s32.totalorder %v1768, 0
      %vm1897 = vcmp.ne.s32.totalorder %v1769, 0
      %vm1898 = vcmp.ne.s32.totalorder %v1770, 0
      %vm1899 = vcmp.ne.s32.totalorder %v1771, 0
      %vm1900 = vcmp.ne.s32.totalorder %v1772, 0
      %vm1901 = vcmp.ne.s32.totalorder %v1773, 0
      %vm1902 = vcmp.ne.s32.totalorder %v1774, 0
      %vm1903 = vcmp.ne.s32.totalorder %v1775, 0
      %vm1904 = vcmp.ne.s32.totalorder %v1776, 0
      %vm1905 = vcmp.ne.s32.totalorder %v1777, 0
      %vm1906 = vcmp.ne.s32.totalorder %v1778, 0
      %vm1907 = vcmp.ne.s32.totalorder %v1779, 0
      %vm1908 = vcmp.ne.s32.totalorder %v1780, 0
      %vm1909 = vcmp.ne.s32.totalorder %v1781, 0
      %vm1910 = vcmp.ne.s32.totalorder %v1782, 0
      %vm1911 = vcmp.ne.s32.totalorder %v1783, 0
      %vm1912 = vcmp.ne.s32.totalorder %v1784, 0
      %vm1913 = vcmp.ne.s32.totalorder %v1785, 0
      %vm1914 = vcmp.ne.s32.totalorder %v1786, 0
      %vm1915 = vcmp.ne.s32.totalorder %v1787, 0
      %vm1916 = vcmp.ne.s32.totalorder %v1788, 0
      %vm1917 = vcmp.ne.s32.totalorder %v1789, 0
      %vm1918 = vcmp.ne.s32.totalorder %v1790, 0
      %vm1919 = vcmp.ne.s32.totalorder %v1791, 0
      %vm1920 = vcmp.ne.s32.totalorder %v1792, 0
      %vm1921 = vcmp.ne.s32.totalorder %v1793, 0
      %vm1922 = vcmp.ne.s32.totalorder %v1794, 0
      %vm1923 = vcmp.ne.s32.totalorder %v1795, 0
      %vm1924 = vcmp.ne.s32.totalorder %v1796, 0
      %vm1925 = vcmp.ne.s32.totalorder %v1797, 0
      %vm1926 = vcmp.ne.s32.totalorder %v1798, 0
      %vm1927 = vcmp.ne.s32.totalorder %v1799, 0
      %vm1928 = vcmp.ne.s32.totalorder %v1800, 0
      %vm1929 = vcmp.ne.s32.totalorder %v1801, 0
      %vm1930 = vcmp.ne.s32.totalorder %v1802, 0
      %vm1931 = vcmp.ne.s32.totalorder %v1803, 0
      %vm1932 = vcmp.ne.s32.totalorder %v1804, 0
      %vm1933 = vcmp.ne.s32.totalorder %v1805, 0
      %vm1934 = vcmp.ne.s32.totalorder %v1806, 0
      %vm1935 = vcmp.ne.s32.totalorder %v1807, 0
      %vm1936 = vcmp.ne.s32.totalorder %v1808, 0
      %vm1937 = vcmp.ne.s32.totalorder %v1809, 0
      %vm1938 = vcmp.ne.s32.totalorder %v1810, 0
      %vm1939 = vcmp.ne.s32.totalorder %v1811, 0
      %vm1940 = vcmp.ne.s32.totalorder %v1812, 0
      %vm1941 = vcmp.ne.s32.totalorder %v1813, 0
      %vm1942 = vcmp.ne.s32.totalorder %v1814, 0
      %vm1943 = vcmp.ne.s32.totalorder %v1815, 0
      %vm1944 = vcmp.ne.s32.totalorder %v1816, 0
      %vm1945 = vcmp.ne.s32.totalorder %v1817, 0
      %vm1946 = vcmp.ne.s32.totalorder %v1818, 0
      %vm1947 = vcmp.ne.s32.totalorder %v1819, 0
      %vm1948 = vcmp.ne.s32.totalorder %v1820, 0
      %vm1949 = vcmp.ne.s32.totalorder %v1821, 0
      %vm1950 = vcmp.ne.s32.totalorder %v1822, 0
      %vm1951 = vcmp.ne.s32.totalorder %v1823, 0
      %vm1952 = vcmp.ne.s32.totalorder %v1824, 0
      %vm1953 = vcmp.ne.s32.totalorder %v1825, 0
      %vm1954 = vcmp.ne.s32.totalorder %v1826, 0
      %vm1955 = vcmp.ne.s32.totalorder %v1827, 0
      %vm1956 = vcmp.ne.s32.totalorder %v1828, 0
      %vm1957 = vcmp.ne.s32.totalorder %v1829, 0
      %vm1958 = vcmp.ne.s32.totalorder %v1830, 0
      %vm1959 = vcmp.ne.s32.totalorder %v1831, 0
      %vm1960 = vcmp.ne.s32.totalorder %v1832, 0
      %vm1961 = vcmp.ne.s32.totalorder %v1833, 0
      %vm1962 = vcmp.ne.s32.totalorder %v1834, 0
      %vm1963 = vcmp.ne.s32.totalorder %v1835, 0
      %vm1964 = vcmp.ne.s32.totalorder %v1836, 0
      %vm1965 = vcmp.ne.s32.totalorder %v1837, 0
      %vm1966 = vcmp.ne.s32.totalorder %v1838, 0
      %vm1967 = vcmp.ne.s32.totalorder %v1839, 0
      %vm1968 = vcmp.ne.s32.totalorder %v1840, 0
      %vm1969 = vcmp.ne.s32.totalorder %v1841, 0
      %vm1970 = vcmp.ne.s32.totalorder %v1842, 0
      %vm1971 = vcmp.ne.s32.totalorder %v1843, 0
      %vm1972 = vcmp.ne.s32.totalorder %v1844, 0
      %vm1973 = vcmp.ne.s32.totalorder %v1845, 0
      %vm1974 = vcmp.ne.s32.totalorder %v1846, 0
      %vm1975 = vcmp.ne.s32.totalorder %v1847, 0
      %vm1976 = vcmp.ne.s32.totalorder %v1848, 0
      %vm1977 = vcmp.ne.s32.totalorder %v1849, 0
      %vm1978 = vcmp.ne.s32.totalorder %v1850, 0
      %vm1979 = vcmp.ne.s32.totalorder %v1851, 0
      %vm1980 = vcmp.ne.s32.totalorder %v1852, 0
      %vm1981 = vcmp.ne.s32.totalorder %v1853, 0
      %vm1982 = vcmp.ne.s32.totalorder %v1854, 0
      %vm1983 = vcmp.ne.s32.totalorder %v1855, 0
      %vm1984 = vcmp.ne.s32.totalorder %v1856, 0
      %vm1985 = vcmp.ne.s32.totalorder %v1857, 0
      %vm1986 = vcmp.ne.s32.totalorder %v1858, 0
      %vm1987 = vcmp.ne.s32.totalorder %v1859, 0
      %vm1988 = vcmp.ne.s32.totalorder %v1860, 0
      %vm1989 = vcmp.ne.s32.totalorder %v1861, 0
      %vm1990 = vcmp.ne.s32.totalorder %v1862, 0
      %vm1991 = vcmp.ne.s32.totalorder %v1863, 0
      %vm1992 = vcmp.ne.s32.totalorder %v1864, 0
      %vm1993 = vcmp.ne.s32.totalorder %v1865, 0
      %vm1994 = vcmp.ne.s32.totalorder %v1866, 0
      %vm1995 = vcmp.ne.s32.totalorder %v1867, 0
      %vm1996 = vcmp.ne.s32.totalorder %v1868, 0
      %vm1997 = vcmp.ne.s32.totalorder %v1869, 0
      %vm1998 = vcmp.ne.s32.totalorder %v1870, 0
      %vm1999 = vcmp.ne.s32.totalorder %v1871, 0
      %vm2000 = vcmp.ne.s32.totalorder %v1872, 0
      %vm2001 = vcmp.ne.s32.totalorder %v1873, 0
      %vm2002 = vcmp.ne.s32.totalorder %v1874, 0
      %vm2003 = vcmp.ne.s32.totalorder %v1875, 0
      %vm2004 = vcmp.ne.s32.totalorder %v1876, 0
      %v2005 = vsel %vm1877, %v1019, -9e+15
      %v2006 = vsel %vm1878, %v1108, -9e+15
      %v2007 = vsel %vm1879, %v1197, -9e+15
      %v2008 = vsel %vm1880, %v1286, -9e+15
      %v2009 = vsel %vm1881, %v1021, -9e+15
      %v2010 = vsel %vm1882, %v1110, -9e+15
      %v2011 = vsel %vm1883, %v1199, -9e+15
      %v2012 = vsel %vm1884, %v1288, -9e+15
      %v2013 = vsel %vm1885, %v1024, -9e+15
      %v2014 = vsel %vm1886, %v1113, -9e+15
      %v2015 = vsel %vm1887, %v1202, -9e+15
      %v2016 = vsel %vm1888, %v1291, -9e+15
      %v2017 = vsel %vm1889, %v1026, -9e+15
      %v2018 = vsel %vm1890, %v1115, -9e+15
      %v2019 = vsel %vm1891, %v1204, -9e+15
      %v2020 = vsel %vm1892, %v1293, -9e+15
      %v2021 = vsel %vm1893, %v1029, -9e+15
      %v2022 = vsel %vm1894, %v1118, -9e+15
      %v2023 = vsel %vm1895, %v1207, -9e+15
      %v2024 = vsel %vm1896, %v1296, -9e+15
      %v2025 = vsel %vm1897, %v1031, -9e+15
      %v2026 = vsel %vm1898, %v1120, -9e+15
      %v2027 = vsel %vm1899, %v1209, -9e+15
      %v2028 = vsel %vm1900, %v1298, -9e+15
      %v2029 = vsel %vm1901, %v1034, -9e+15
      %v2030 = vsel %vm1902, %v1123, -9e+15
      %v2031 = vsel %vm1903, %v1212, -9e+15
      %v2032 = vsel %vm1904, %v1301, -9e+15
      %v2033 = vsel %vm1905, %v1036, -9e+15
      %v2034 = vsel %vm1906, %v1125, -9e+15
      %v2035 = vsel %vm1907, %v1214, -9e+15
      %v2036 = vsel %vm1908, %v1303, -9e+15
      %v2037 = vsel %vm1909, %v1039, -9e+15
      %v2038 = vsel %vm1910, %v1128, -9e+15
      %v2039 = vsel %vm1911, %v1217, -9e+15
      %v2040 = vsel %vm1912, %v1306, -9e+15
      %v2041 = vsel %vm1913, %v1041, -9e+15
      %v2042 = vsel %vm1914, %v1130, -9e+15
      %v2043 = vsel %vm1915, %v1219, -9e+15
      %v2044 = vsel %vm1916, %v1308, -9e+15
      %v2045 = vsel %vm1917, %v1044, -9e+15
      %v2046 = vsel %vm1918, %v1133, -9e+15
      %v2047 = vsel %vm1919, %v1222, -9e+15
      %v2048 = vsel %vm1920, %v1311, -9e+15
      %v2049 = vsel %vm1921, %v1046, -9e+15
      %v2050 = vsel %vm1922, %v1135, -9e+15
      %v2051 = vsel %vm1923, %v1224, -9e+15
      %v2052 = vsel %vm1924, %v1313, -9e+15
      %v2053 = vsel %vm1925, %v1049, -9e+15
      %v2054 = vsel %vm1926, %v1138, -9e+15
      %v2055 = vsel %vm1927, %v1227, -9e+15
      %v2056 = vsel %vm1928, %v1316, -9e+15
      %v2057 = vsel %vm1929, %v1051, -9e+15
      %v2058 = vsel %vm1930, %v1140, -9e+15
      %v2059 = vsel %vm1931, %v1229, -9e+15
      %v2060 = vsel %vm1932, %v1318, -9e+15
      %v2061 = vsel %vm1933, %v1054, -9e+15
      %v2062 = vsel %vm1934, %v1143, -9e+15
      %v2063 = vsel %vm1935, %v1232, -9e+15
      %v2064 = vsel %vm1936, %v1321, -9e+15
      %v2065 = vsel %vm1937, %v1056, -9e+15
      %v2066 = vsel %vm1938, %v1145, -9e+15
      %v2067 = vsel %vm1939, %v1234, -9e+15
      %v2068 = vsel %vm1940, %v1323, -9e+15
      %v2069 = vsel %vm1941, %v1059, -9e+15
      %v2070 = vsel %vm1942, %v1148, -9e+15
      %v2071 = vsel %vm1943, %v1237, -9e+15
      %v2072 = vsel %vm1944, %v1326, -9e+15
      %v2073 = vsel %vm1945, %v1061, -9e+15
      %v2074 = vsel %vm1946, %v1150, -9e+15
      %v2075 = vsel %vm1947, %v1239, -9e+15
      %v2076 = vsel %vm1948, %v1328, -9e+15
      %v2077 = vsel %vm1949, %v1064, -9e+15
      %v2078 = vsel %vm1950, %v1153, -9e+15
      %v2079 = vsel %vm1951, %v1242, -9e+15
      %v2080 = vsel %vm1952, %v1331, -9e+15
      %v2081 = vsel %vm1953, %v1066, -9e+15
      %v2082 = vsel %vm1954, %v1155, -9e+15
      %v2083 = vsel %vm1955, %v1244, -9e+15
      %v2084 = vsel %vm1956, %v1333, -9e+15
      %v2085 = vsel %vm1957, %v1069, -9e+15
      %v2086 = vsel %vm1958, %v1158, -9e+15
      %v2087 = vsel %vm1959, %v1247, -9e+15
      %v2088 = vsel %vm1960, %v1336, -9e+15
      %v2089 = vsel %vm1961, %v1071, -9e+15
      %v2090 = vsel %vm1962, %v1160, -9e+15
      %v2091 = vsel %vm1963, %v1249, -9e+15
      %v2092 = vsel %vm1964, %v1338, -9e+15
      %v2093 = vsel %vm1965, %v1074, -9e+15
      %v2094 = vsel %vm1966, %v1163, -9e+15
      %v2095 = vsel %vm1967, %v1252, -9e+15
      %v2096 = vsel %vm1968, %v1341, -9e+15
      %v2097 = vsel %vm1969, %v1076, -9e+15
      %v2098 = vsel %vm1970, %v1165, -9e+15
      %v2099 = vsel %vm1971, %v1254, -9e+15
      %v2100 = vsel %vm1972, %v1343, -9e+15
      %v2101 = vsel %vm1973, %v1079, -9e+15
      %v2102 = vsel %vm1974, %v1168, -9e+15
      %v2103 = vsel %vm1975, %v1257, -9e+15
      %v2104 = vsel %vm1976, %v1346, -9e+15
      %v2105 = vsel %vm1977, %v1081, -9e+15
      %v2106 = vsel %vm1978, %v1170, -9e+15
      %v2107 = vsel %vm1979, %v1259, -9e+15
      %v2108 = vsel %vm1980, %v1348, -9e+15
      %v2109 = vsel %vm1981, %v1084, -9e+15
      %v2110 = vsel %vm1982, %v1173, -9e+15
      %v2111 = vsel %vm1983, %v1262, -9e+15
      %v2112 = vsel %vm1984, %v1351, -9e+15
      %v2113 = vsel %vm1985, %v1086, -9e+15
      %v2114 = vsel %vm1986, %v1175, -9e+15
      %v2115 = vsel %vm1987, %v1264, -9e+15
      %v2116 = vsel %vm1988, %v1353, -9e+15
      %v2117 = vsel %vm1989, %v1089, -9e+15
      %v2118 = vsel %vm1990, %v1178, -9e+15
      %v2119 = vsel %vm1991, %v1267, -9e+15
      %v2120 = vsel %vm1992, %v1356, -9e+15
      %v2121 = vsel %vm1993, %v1091, -9e+15
      %v2122 = vsel %vm1994, %v1180, -9e+15
      %v2123 = vsel %vm1995, %v1269, -9e+15
      %v2124 = vsel %vm1996, %v1358, -9e+15
      %v2125 = vsel %vm1997, %v1094, -9e+15
      %v2126 = vsel %vm1998, %v1183, -9e+15
      %v2127 = vsel %vm1999, %v1272, -9e+15
      %v2128 = vsel %vm2000, %v1361, -9e+15
      %v2129 = vsel %vm2001, %v1096, -9e+15
      %v2130 = vsel %vm2002, %v1185, -9e+15
      %v2131 = vsel %vm2003, %v1274, -9e+15
      %v2132 = vsel %vm2004, %v1363, -9e+15
      %v2133 = vmax.f32 %v2005, %v2006
      %v2134 = vmax.f32 %v2133, %v2007
      %v2135 = vmax.f32 %v2134, %v2008
      %2136 = vmax.xlane.f32.xlu0 %v2135
      %v2137 = vpop.xlane.xlu0 %2136
      %v2138 = vmax.f32 %v2009, %v2010
      %v2139 = vmax.f32 %v2138, %v2011
      %v2140 = vmax.f32 %v2139, %v2012
      %2141 = vmax.xlane.f32.xlu0 %v2140
      %v2142 = vpop.xlane.xlu0 %2141
      %v2143 = vmax.f32 %v2013, %v2014
      %v2144 = vmax.f32 %v2143, %v2015
      %v2145 = vmax.f32 %v2144, %v2016
      %2146 = vmax.xlane.f32.xlu0 %v2145
      %v2147 = vpop.xlane.xlu0 %2146
      %v2148 = vmax.f32 %v2017, %v2018
      %v2149 = vmax.f32 %v2148, %v2019
      %v2150 = vmax.f32 %v2149, %v2020
      %2151 = vmax.xlane.f32.xlu0 %v2150
      %v2152 = vpop.xlane.xlu0 %2151
      %v2153 = vmax.f32 %v2021, %v2022
      %v2154 = vmax.f32 %v2153, %v2023
      %v2155 = vmax.f32 %v2154, %v2024
      %2156 = vmax.xlane.f32.xlu0 %v2155
      %v2157 = vpop.xlane.xlu0 %2156
      %v2158 = vmax.f32 %v2025, %v2026
      %v2159 = vmax.f32 %v2158, %v2027
      %v2160 = vmax.f32 %v2159, %v2028
      %2161 = vmax.xlane.f32.xlu0 %v2160
      %v2162 = vpop.xlane.xlu0 %2161
      %v2163 = vmax.f32 %v2029, %v2030
      %v2164 = vmax.f32 %v2163, %v2031
      %v2165 = vmax.f32 %v2164, %v2032
      %2166 = vmax.xlane.f32.xlu0 %v2165
      %v2167 = vpop.xlane.xlu0 %2166
      %v2168 = vmax.f32 %v2033, %v2034
      %v2169 = vmax.f32 %v2168, %v2035
      %v2170 = vmax.f32 %v2169, %v2036
      %2171 = vmax.xlane.f32.xlu0 %v2170
      %v2172 = vpop.xlane.xlu0 %2171
      %v2173 = vmax.f32 %v2037, %v2038
      %v2174 = vmax.f32 %v2173, %v2039
      %v2175 = vmax.f32 %v2174, %v2040
      %2176 = vmax.xlane.f32.xlu0 %v2175
      %v2177 = vpop.xlane.xlu0 %2176
      %v2178 = vmax.f32 %v2041, %v2042
      %v2179 = vmax.f32 %v2178, %v2043
      %v2180 = vmax.f32 %v2179, %v2044
      %2181 = vmax.xlane.f32.xlu0 %v2180
      %v2182 = vpop.xlane.xlu0 %2181
      %v2183 = vmax.f32 %v2045, %v2046
      %v2184 = vmax.f32 %v2183, %v2047
      %v2185 = vmax.f32 %v2184, %v2048
      %2186 = vmax.xlane.f32.xlu0 %v2185
      %v2187 = vpop.xlane.xlu0 %2186
      %v2188 = vmax.f32 %v2049, %v2050
      %v2189 = vmax.f32 %v2188, %v2051
      %v2190 = vmax.f32 %v2189, %v2052
      %2191 = vmax.xlane.f32.xlu0 %v2190
      %v2192 = vpop.xlane.xlu0 %2191
      %v2193 = vmax.f32 %v2053, %v2054
      %v2194 = vmax.f32 %v2193, %v2055
      %v2195 = vmax.f32 %v2194, %v2056
      %2196 = vmax.xlane.f32.xlu0 %v2195
      %v2197 = vpop.xlane.xlu0 %2196
      %v2198 = vmax.f32 %v2057, %v2058
      %v2199 = vmax.f32 %v2198, %v2059
      %v2200 = vmax.f32 %v2199, %v2060
      %2201 = vmax.xlane.f32.xlu0 %v2200
      %v2202 = vpop.xlane.xlu0 %2201
      %v2203 = vmax.f32 %v2061, %v2062
      %v2204 = vmax.f32 %v2203, %v2063
      %v2205 = vmax.f32 %v2204, %v2064
      %2206 = vmax.xlane.f32.xlu0 %v2205
      %v2207 = vpop.xlane.xlu0 %2206
      %v2208 = vmax.f32 %v2065, %v2066
      %v2209 = vmax.f32 %v2208, %v2067
      %v2210 = vmax.f32 %v2209, %v2068
      %2211 = vmax.xlane.f32.xlu0 %v2210
      %v2212 = vpop.xlane.xlu0 %2211
      %v2213 = vmax.f32 %v2069, %v2070
      %v2214 = vmax.f32 %v2213, %v2071
      %v2215 = vmax.f32 %v2214, %v2072
      %2216 = vmax.xlane.f32.xlu0 %v2215
      %v2217 = vpop.xlane.xlu0 %2216
      %v2218 = vmax.f32 %v2073, %v2074
      %v2219 = vmax.f32 %v2218, %v2075
      %v2220 = vmax.f32 %v2219, %v2076
      %2221 = vmax.xlane.f32.xlu0 %v2220
      %v2222 = vpop.xlane.xlu0 %2221
      %v2223 = vmax.f32 %v2077, %v2078
      %v2224 = vmax.f32 %v2223, %v2079
      %v2225 = vmax.f32 %v2224, %v2080
      %2226 = vmax.xlane.f32.xlu0 %v2225
      %v2227 = vpop.xlane.xlu0 %2226
      %v2228 = vmax.f32 %v2081, %v2082
      %v2229 = vmax.f32 %v2228, %v2083
      %v2230 = vmax.f32 %v2229, %v2084
      %2231 = vmax.xlane.f32.xlu0 %v2230
      %v2232 = vpop.xlane.xlu0 %2231
      %v2233 = vmax.f32 %v2085, %v2086
      %v2234 = vmax.f32 %v2233, %v2087
      %v2235 = vmax.f32 %v2234, %v2088
      %2236 = vmax.xlane.f32.xlu0 %v2235
      %v2237 = vpop.xlane.xlu0 %2236
      %v2238 = vmax.f32 %v2089, %v2090
      %v2239 = vmax.f32 %v2238, %v2091
      %v2240 = vmax.f32 %v2239, %v2092
      %2241 = vmax.xlane.f32.xlu0 %v2240
      %v2242 = vpop.xlane.xlu0 %2241
      %v2243 = vmax.f32 %v2093, %v2094
      %v2244 = vmax.f32 %v2243, %v2095
      %v2245 = vmax.f32 %v2244, %v2096
      %2246 = vmax.xlane.f32.xlu0 %v2245
      %v2247 = vpop.xlane.xlu0 %2246
      %v2248 = vmax.f32 %v2097, %v2098
      %v2249 = vmax.f32 %v2248, %v2099
      %v2250 = vmax.f32 %v2249, %v2100
      %2251 = vmax.xlane.f32.xlu0 %v2250
      %v2252 = vpop.xlane.xlu0 %2251
      %v2253 = vmax.f32 %v2101, %v2102
      %v2254 = vmax.f32 %v2253, %v2103
      %v2255 = vmax.f32 %v2254, %v2104
      %2256 = vmax.xlane.f32.xlu0 %v2255
      %v2257 = vpop.xlane.xlu0 %2256
      %v2258 = vmax.f32 %v2105, %v2106
      %v2259 = vmax.f32 %v2258, %v2107
      %v2260 = vmax.f32 %v2259, %v2108
      %2261 = vmax.xlane.f32.xlu0 %v2260
      %v2262 = vpop.xlane.xlu0 %2261
      %v2263 = vmax.f32 %v2109, %v2110
      %v2264 = vmax.f32 %v2263, %v2111
      %v2265 = vmax.f32 %v2264, %v2112
      %2266 = vmax.xlane.f32.xlu0 %v2265
      %v2267 = vpop.xlane.xlu0 %2266
      %v2268 = vmax.f32 %v2113, %v2114
      %v2269 = vmax.f32 %v2268, %v2115
      %v2270 = vmax.f32 %v2269, %v2116
      %2271 = vmax.xlane.f32.xlu0 %v2270
      %v2272 = vpop.xlane.xlu0 %2271
      %v2273 = vmax.f32 %v2117, %v2118
      %v2274 = vmax.f32 %v2273, %v2119
      %v2275 = vmax.f32 %v2274, %v2120
      %2276 = vmax.xlane.f32.xlu0 %v2275
      %v2277 = vpop.xlane.xlu0 %2276
      %v2278 = vmax.f32 %v2121, %v2122
      %v2279 = vmax.f32 %v2278, %v2123
      %v2280 = vmax.f32 %v2279, %v2124
      %2281 = vmax.xlane.f32.xlu0 %v2280
      %v2282 = vpop.xlane.xlu0 %2281
      %v2283 = vmax.f32 %v2125, %v2126
      %v2284 = vmax.f32 %v2283, %v2127
      %v2285 = vmax.f32 %v2284, %v2128
      %2286 = vmax.xlane.f32.xlu0 %v2285
      %v2287 = vpop.xlane.xlu0 %2286
      %v2288 = vmax.f32 %v2129, %v2130
      %v2289 = vmax.f32 %v2288, %v2131
      %v2290 = vmax.f32 %v2289, %v2132
      %2291 = vmax.xlane.f32.xlu0 %v2290
      %v2292 = vpop.xlane.xlu0 %2291
      %v2293 = vsub.f32 %v2005, %v2137
      %v2294 = vsub.f32 %v2006, %v2137
      %v2295 = vsub.f32 %v2007, %v2137
      %v2296 = vsub.f32 %v2008, %v2137
      %v2297 = vsub.f32 %v2009, %v2142
      %v2298 = vsub.f32 %v2010, %v2142
      %v2299 = vsub.f32 %v2011, %v2142
      %v2300 = vsub.f32 %v2012, %v2142
      %v2301 = vsub.f32 %v2013, %v2147
      %v2302 = vsub.f32 %v2014, %v2147
      %v2303 = vsub.f32 %v2015, %v2147
      %v2304 = vsub.f32 %v2016, %v2147
      %v2305 = vsub.f32 %v2017, %v2152
      %v2306 = vsub.f32 %v2018, %v2152
      %v2307 = vsub.f32 %v2019, %v2152
      %v2308 = vsub.f32 %v2020, %v2152
      %v2309 = vsub.f32 %v2021, %v2157
      %v2310 = vsub.f32 %v2022, %v2157
      %v2311 = vsub.f32 %v2023, %v2157
      %v2312 = vsub.f32 %v2024, %v2157
      %v2313 = vsub.f32 %v2025, %v2162
      %v2314 = vsub.f32 %v2026, %v2162
      %v2315 = vsub.f32 %v2027, %v2162
      %v2316 = vsub.f32 %v2028, %v2162
      %v2317 = vsub.f32 %v2029, %v2167
      %v2318 = vsub.f32 %v2030, %v2167
      %v2319 = vsub.f32 %v2031, %v2167
      %v2320 = vsub.f32 %v2032, %v2167
      %v2321 = vsub.f32 %v2033, %v2172
      %v2322 = vsub.f32 %v2034, %v2172
      %v2323 = vsub.f32 %v2035, %v2172
      %v2324 = vsub.f32 %v2036, %v2172
      %v2325 = vsub.f32 %v2037, %v2177
      %v2326 = vsub.f32 %v2038, %v2177
      %v2327 = vsub.f32 %v2039, %v2177
      %v2328 = vsub.f32 %v2040, %v2177
      %v2329 = vsub.f32 %v2041, %v2182
      %v2330 = vsub.f32 %v2042, %v2182
      %v2331 = vsub.f32 %v2043, %v2182
      %v2332 = vsub.f32 %v2044, %v2182
      %v2333 = vsub.f32 %v2045, %v2187
      %v2334 = vsub.f32 %v2046, %v2187
      %v2335 = vsub.f32 %v2047, %v2187
      %v2336 = vsub.f32 %v2048, %v2187
      %v2337 = vsub.f32 %v2049, %v2192
      %v2338 = vsub.f32 %v2050, %v2192
      %v2339 = vsub.f32 %v2051, %v2192
      %v2340 = vsub.f32 %v2052, %v2192
      %v2341 = vsub.f32 %v2053, %v2197
      %v2342 = vsub.f32 %v2054, %v2197
      %v2343 = vsub.f32 %v2055, %v2197
      %v2344 = vsub.f32 %v2056, %v2197
      %v2345 = vsub.f32 %v2057, %v2202
      %v2346 = vsub.f32 %v2058, %v2202
      %v2347 = vsub.f32 %v2059, %v2202
      %v2348 = vsub.f32 %v2060, %v2202
      %v2349 = vsub.f32 %v2061, %v2207
      %v2350 = vsub.f32 %v2062, %v2207
      %v2351 = vsub.f32 %v2063, %v2207
      %v2352 = vsub.f32 %v2064, %v2207
      %v2353 = vsub.f32 %v2065, %v2212
      %v2354 = vsub.f32 %v2066, %v2212
      %v2355 = vsub.f32 %v2067, %v2212
      %v2356 = vsub.f32 %v2068, %v2212
      %v2357 = vsub.f32 %v2069, %v2217
      %v2358 = vsub.f32 %v2070, %v2217
      %v2359 = vsub.f32 %v2071, %v2217
      %v2360 = vsub.f32 %v2072, %v2217
      %v2361 = vsub.f32 %v2073, %v2222
      %v2362 = vsub.f32 %v2074, %v2222
      %v2363 = vsub.f32 %v2075, %v2222
      %v2364 = vsub.f32 %v2076, %v2222
      %v2365 = vsub.f32 %v2077, %v2227
      %v2366 = vsub.f32 %v2078, %v2227
      %v2367 = vsub.f32 %v2079, %v2227
      %v2368 = vsub.f32 %v2080, %v2227
      %v2369 = vsub.f32 %v2081, %v2232
      %v2370 = vsub.f32 %v2082, %v2232
      %v2371 = vsub.f32 %v2083, %v2232
      %v2372 = vsub.f32 %v2084, %v2232
      %v2373 = vsub.f32 %v2085, %v2237
      %v2374 = vsub.f32 %v2086, %v2237
      %v2375 = vsub.f32 %v2087, %v2237
      %v2376 = vsub.f32 %v2088, %v2237
      %v2377 = vsub.f32 %v2089, %v2242
      %v2378 = vsub.f32 %v2090, %v2242
      %v2379 = vsub.f32 %v2091, %v2242
      %v2380 = vsub.f32 %v2092, %v2242
      %v2381 = vsub.f32 %v2093, %v2247
      %v2382 = vsub.f32 %v2094, %v2247
      %v2383 = vsub.f32 %v2095, %v2247
      %v2384 = vsub.f32 %v2096, %v2247
      %v2385 = vsub.f32 %v2097, %v2252
      %v2386 = vsub.f32 %v2098, %v2252
      %v2387 = vsub.f32 %v2099, %v2252
      %v2388 = vsub.f32 %v2100, %v2252
      %v2389 = vsub.f32 %v2101, %v2257
      %v2390 = vsub.f32 %v2102, %v2257
      %v2391 = vsub.f32 %v2103, %v2257
      %v2392 = vsub.f32 %v2104, %v2257
      %v2393 = vsub.f32 %v2105, %v2262
      %v2394 = vsub.f32 %v2106, %v2262
      %v2395 = vsub.f32 %v2107, %v2262
      %v2396 = vsub.f32 %v2108, %v2262
      %v2397 = vsub.f32 %v2109, %v2267
      %v2398 = vsub.f32 %v2110, %v2267
      %v2399 = vsub.f32 %v2111, %v2267
      %v2400 = vsub.f32 %v2112, %v2267
      %v2401 = vsub.f32 %v2113, %v2272
      %v2402 = vsub.f32 %v2114, %v2272
      %v2403 = vsub.f32 %v2115, %v2272
      %v2404 = vsub.f32 %v2116, %v2272
      %v2405 = vsub.f32 %v2117, %v2277
      %v2406 = vsub.f32 %v2118, %v2277
      %v2407 = vsub.f32 %v2119, %v2277
      %v2408 = vsub.f32 %v2120, %v2277
      %v2409 = vsub.f32 %v2121, %v2282
      %v2410 = vsub.f32 %v2122, %v2282
      %v2411 = vsub.f32 %v2123, %v2282
      %v2412 = vsub.f32 %v2124, %v2282
      %v2413 = vsub.f32 %v2125, %v2287
      %v2414 = vsub.f32 %v2126, %v2287
      %v2415 = vsub.f32 %v2127, %v2287
      %v2416 = vsub.f32 %v2128, %v2287
      %v2417 = vsub.f32 %v2129, %v2292
      %v2418 = vsub.f32 %v2130, %v2292
      %v2419 = vsub.f32 %v2131, %v2292
      %v2420 = vsub.f32 %v2132, %v2292
      %v2421 = vpack.c.bf16 %v2297, %v2293
      %v2422 = vpack.c.bf16 %v2298, %v2294
      %v2423 = vpack.c.bf16 %v2299, %v2295
      %v2424 = vpack.c.bf16 %v2300, %v2296
      %v2425 = vpack.c.bf16 %v2305, %v2301
      %v2426 = vpack.c.bf16 %v2306, %v2302
      %v2427 = vpack.c.bf16 %v2307, %v2303
      %v2428 = vpack.c.bf16 %v2308, %v2304
      %v2429 = vpack.c.bf16 %v2313, %v2309
      %v2430 = vpack.c.bf16 %v2314, %v2310
      %v2431 = vpack.c.bf16 %v2315, %v2311
      %v2432 = vpack.c.bf16 %v2316, %v2312
      %v2433 = vpack.c.bf16 %v2321, %v2317
      %v2434 = vpack.c.bf16 %v2322, %v2318
      %v2435 = vpack.c.bf16 %v2323, %v2319
      %v2436 = vpack.c.bf16 %v2324, %v2320
      %v2437 = vpack.c.bf16 %v2329, %v2325
      %v2438 = vpack.c.bf16 %v2330, %v2326
      %v2439 = vpack.c.bf16 %v2331, %v2327
      %v2440 = vpack.c.bf16 %v2332, %v2328
      %v2441 = vpack.c.bf16 %v2337, %v2333
      %v2442 = vpack.c.bf16 %v2338, %v2334
      %v2443 = vpack.c.bf16 %v2339, %v2335
      %v2444 = vpack.c.bf16 %v2340, %v2336
      %v2445 = vpack.c.bf16 %v2345, %v2341
      %v2446 = vpack.c.bf16 %v2346, %v2342
      %v2447 = vpack.c.bf16 %v2347, %v2343
      %v2448 = vpack.c.bf16 %v2348, %v2344
      %v2449 = vpack.c.bf16 %v2353, %v2349
      %v2450 = vpack.c.bf16 %v2354, %v2350
      %v2451 = vpack.c.bf16 %v2355, %v2351
      %v2452 = vpack.c.bf16 %v2356, %v2352
      %v2453 = vpack.c.bf16 %v2361, %v2357
      %v2454 = vpack.c.bf16 %v2362, %v2358
      %v2455 = vpack.c.bf16 %v2363, %v2359
      %v2456 = vpack.c.bf16 %v2364, %v2360
      %v2457 = vpack.c.bf16 %v2369, %v2365
      %v2458 = vpack.c.bf16 %v2370, %v2366
      %v2459 = vpack.c.bf16 %v2371, %v2367
      %v2460 = vpack.c.bf16 %v2372, %v2368
      %v2461 = vpack.c.bf16 %v2377, %v2373
      %v2462 = vpack.c.bf16 %v2378, %v2374
      %v2463 = vpack.c.bf16 %v2379, %v2375
      %v2464 = vpack.c.bf16 %v2380, %v2376
      %v2465 = vpack.c.bf16 %v2385, %v2381
      %v2466 = vpack.c.bf16 %v2386, %v2382
      %v2467 = vpack.c.bf16 %v2387, %v2383
      %v2468 = vpack.c.bf16 %v2388, %v2384
      %v2469 = vpack.c.bf16 %v2393, %v2389
      %v2470 = vpack.c.bf16 %v2394, %v2390
      %v2471 = vpack.c.bf16 %v2395, %v2391
      %v2472 = vpack.c.bf16 %v2396, %v2392
      %v2473 = vpack.c.bf16 %v2401, %v2397
      %v2474 = vpack.c.bf16 %v2402, %v2398
      %v2475 = vpack.c.bf16 %v2403, %v2399
      %v2476 = vpack.c.bf16 %v2404, %v2400
      %v2477 = vpack.c.bf16 %v2409, %v2405
      %v2478 = vpack.c.bf16 %v2410, %v2406
      %v2479 = vpack.c.bf16 %v2411, %v2407
      %v2480 = vpack.c.bf16 %v2412, %v2408
      %v2481 = vpack.c.bf16 %v2417, %v2413
      %v2482 = vpack.c.bf16 %v2418, %v2414
      %v2483 = vpack.c.bf16 %v2419, %v2415
      %v2484 = vpack.c.bf16 %v2420, %v2416
      %v2485 = vunpack.c.l.bf16 %v2421
      %v2486 = vunpack.c.l.bf16 %v2422
      %v2487 = vunpack.c.l.bf16 %v2423
      %v2488 = vunpack.c.l.bf16 %v2424
      %v2489 = vunpack.c.h.bf16 %v2421
      %v2490 = vunpack.c.h.bf16 %v2422
      %v2491 = vunpack.c.h.bf16 %v2423
      %v2492 = vunpack.c.h.bf16 %v2424
      %v2493 = vunpack.c.l.bf16 %v2425
      %v2494 = vunpack.c.l.bf16 %v2426
      %v2495 = vunpack.c.l.bf16 %v2427
      %v2496 = vunpack.c.l.bf16 %v2428
      %v2497 = vunpack.c.h.bf16 %v2425
      %v2498 = vunpack.c.h.bf16 %v2426
      %v2499 = vunpack.c.h.bf16 %v2427
      %v2500 = vunpack.c.h.bf16 %v2428
      %v2501 = vunpack.c.l.bf16 %v2429
      %v2502 = vunpack.c.l.bf16 %v2430
      %v2503 = vunpack.c.l.bf16 %v2431
      %v2504 = vunpack.c.l.bf16 %v2432
      %v2505 = vunpack.c.h.bf16 %v2429
      %v2506 = vunpack.c.h.bf16 %v2430
      %v2507 = vunpack.c.h.bf16 %v2431
      %v2508 = vunpack.c.h.bf16 %v2432
      %v2509 = vunpack.c.l.bf16 %v2433
      %v2510 = vunpack.c.l.bf16 %v2434
      %v2511 = vunpack.c.l.bf16 %v2435
      %v2512 = vunpack.c.l.bf16 %v2436
      %v2513 = vunpack.c.h.bf16 %v2433
      %v2514 = vunpack.c.h.bf16 %v2434
      %v2515 = vunpack.c.h.bf16 %v2435
      %v2516 = vunpack.c.h.bf16 %v2436
      %v2517 = vunpack.c.l.bf16 %v2437
      %v2518 = vunpack.c.l.bf16 %v2438
      %v2519 = vunpack.c.l.bf16 %v2439
      %v2520 = vunpack.c.l.bf16 %v2440
      %v2521 = vunpack.c.h.bf16 %v2437
      %v2522 = vunpack.c.h.bf16 %v2438
      %v2523 = vunpack.c.h.bf16 %v2439
      %v2524 = vunpack.c.h.bf16 %v2440
      %v2525 = vunpack.c.l.bf16 %v2441
      %v2526 = vunpack.c.l.bf16 %v2442
      %v2527 = vunpack.c.l.bf16 %v2443
      %v2528 = vunpack.c.l.bf16 %v2444
      %v2529 = vunpack.c.h.bf16 %v2441
      %v2530 = vunpack.c.h.bf16 %v2442
      %v2531 = vunpack.c.h.bf16 %v2443
      %v2532 = vunpack.c.h.bf16 %v2444
      %v2533 = vunpack.c.l.bf16 %v2445
      %v2534 = vunpack.c.l.bf16 %v2446
      %v2535 = vunpack.c.l.bf16 %v2447
      %v2536 = vunpack.c.l.bf16 %v2448
      %v2537 = vunpack.c.h.bf16 %v2445
      %v2538 = vunpack.c.h.bf16 %v2446
      %v2539 = vunpack.c.h.bf16 %v2447
      %v2540 = vunpack.c.h.bf16 %v2448
      %v2541 = vunpack.c.l.bf16 %v2449
      %v2542 = vunpack.c.l.bf16 %v2450
      %v2543 = vunpack.c.l.bf16 %v2451
      %v2544 = vunpack.c.l.bf16 %v2452
      %v2545 = vunpack.c.h.bf16 %v2449
      %v2546 = vunpack.c.h.bf16 %v2450
      %v2547 = vunpack.c.h.bf16 %v2451
      %v2548 = vunpack.c.h.bf16 %v2452
      %v2549 = vunpack.c.l.bf16 %v2453
      %v2550 = vunpack.c.l.bf16 %v2454
      %v2551 = vunpack.c.l.bf16 %v2455
      %v2552 = vunpack.c.l.bf16 %v2456
      %v2553 = vunpack.c.h.bf16 %v2453
      %v2554 = vunpack.c.h.bf16 %v2454
      %v2555 = vunpack.c.h.bf16 %v2455
      %v2556 = vunpack.c.h.bf16 %v2456
      %v2557 = vunpack.c.l.bf16 %v2457
      %v2558 = vunpack.c.l.bf16 %v2458
      %v2559 = vunpack.c.l.bf16 %v2459
      %v2560 = vunpack.c.l.bf16 %v2460
      %v2561 = vunpack.c.h.bf16 %v2457
      %v2562 = vunpack.c.h.bf16 %v2458
      %v2563 = vunpack.c.h.bf16 %v2459
      %v2564 = vunpack.c.h.bf16 %v2460
      %v2565 = vunpack.c.l.bf16 %v2461
      %v2566 = vunpack.c.l.bf16 %v2462
      %v2567 = vunpack.c.l.bf16 %v2463
      %v2568 = vunpack.c.l.bf16 %v2464
      %v2569 = vunpack.c.h.bf16 %v2461
      %v2570 = vunpack.c.h.bf16 %v2462
      %v2571 = vunpack.c.h.bf16 %v2463
      %v2572 = vunpack.c.h.bf16 %v2464
      %v2573 = vunpack.c.l.bf16 %v2465
      %v2574 = vunpack.c.l.bf16 %v2466
      %v2575 = vunpack.c.l.bf16 %v2467
      %v2576 = vunpack.c.l.bf16 %v2468
      %v2577 = vunpack.c.h.bf16 %v2465
      %v2578 = vunpack.c.h.bf16 %v2466
      %v2579 = vunpack.c.h.bf16 %v2467
      %v2580 = vunpack.c.h.bf16 %v2468
      %v2581 = vunpack.c.l.bf16 %v2469
      %v2582 = vunpack.c.l.bf16 %v2470
      %v2583 = vunpack.c.l.bf16 %v2471
      %v2584 = vunpack.c.l.bf16 %v2472
      %v2585 = vunpack.c.h.bf16 %v2469
      %v2586 = vunpack.c.h.bf16 %v2470
      %v2587 = vunpack.c.h.bf16 %v2471
      %v2588 = vunpack.c.h.bf16 %v2472
      %v2589 = vunpack.c.l.bf16 %v2473
      %v2590 = vunpack.c.l.bf16 %v2474
      %v2591 = vunpack.c.l.bf16 %v2475
      %v2592 = vunpack.c.l.bf16 %v2476
      %v2593 = vunpack.c.h.bf16 %v2473
      %v2594 = vunpack.c.h.bf16 %v2474
      %v2595 = vunpack.c.h.bf16 %v2475
      %v2596 = vunpack.c.h.bf16 %v2476
      %v2597 = vunpack.c.l.bf16 %v2477
      %v2598 = vunpack.c.l.bf16 %v2478
      %v2599 = vunpack.c.l.bf16 %v2479
      %v2600 = vunpack.c.l.bf16 %v2480
      %v2601 = vunpack.c.h.bf16 %v2477
      %v2602 = vunpack.c.h.bf16 %v2478
      %v2603 = vunpack.c.h.bf16 %v2479
      %v2604 = vunpack.c.h.bf16 %v2480
      %v2605 = vunpack.c.l.bf16 %v2481
      %v2606 = vunpack.c.l.bf16 %v2482
      %v2607 = vunpack.c.l.bf16 %v2483
      %v2608 = vunpack.c.l.bf16 %v2484
      %v2609 = vunpack.c.h.bf16 %v2481
      %v2610 = vunpack.c.h.bf16 %v2482
      %v2611 = vunpack.c.h.bf16 %v2483
      %v2612 = vunpack.c.h.bf16 %v2484
      %v2613 = vmul.f32 %v2485, 1.442695
      %v2614 = vpow.pop %v2613
      %v2615 = vmul.f32 %v2486, 1.442695
      %v2616 = vpow.pop %v2615
      %v2617 = vmul.f32 %v2487, 1.442695
      %v2618 = vpow.pop %v2617
      %v2619 = vmul.f32 %v2488, 1.442695
      %v2620 = vpow.pop %v2619
      %v2621 = vmul.f32 %v2489, 1.442695
      %v2622 = vpow.pop %v2621
      %v2623 = vmul.f32 %v2490, 1.442695
      %v2624 = vpow.pop %v2623
      %v2625 = vmul.f32 %v2491, 1.442695
      %v2626 = vpow.pop %v2625
      %v2627 = vmul.f32 %v2492, 1.442695
      %v2628 = vpow.pop %v2627
      %v2629 = vmul.f32 %v2493, 1.442695
      %v2630 = vpow.pop %v2629
      %v2631 = vmul.f32 %v2494, 1.442695
      %v2632 = vpow.pop %v2631
      %v2633 = vmul.f32 %v2495, 1.442695
      %v2634 = vpow.pop %v2633
      %v2635 = vmul.f32 %v2496, 1.442695
      %v2636 = vpow.pop %v2635
      %v2637 = vmul.f32 %v2497, 1.442695
      %v2638 = vpow.pop %v2637
      %v2639 = vmul.f32 %v2498, 1.442695
      %v2640 = vpow.pop %v2639
      %v2641 = vmul.f32 %v2499, 1.442695
      %v2642 = vpow.pop %v2641
      %v2643 = vmul.f32 %v2500, 1.442695
      %v2644 = vpow.pop %v2643
      %v2645 = vmul.f32 %v2501, 1.442695
      %v2646 = vpow.pop %v2645
      %v2647 = vmul.f32 %v2502, 1.442695
      %v2648 = vpow.pop %v2647
      %v2649 = vmul.f32 %v2503, 1.442695
      %v2650 = vpow.pop %v2649
      %v2651 = vmul.f32 %v2504, 1.442695
      %v2652 = vpow.pop %v2651
      %v2653 = vmul.f32 %v2505, 1.442695
      %v2654 = vpow.pop %v2653
      %v2655 = vmul.f32 %v2506, 1.442695
      %v2656 = vpow.pop %v2655
      %v2657 = vmul.f32 %v2507, 1.442695
      %v2658 = vpow.pop %v2657
      %v2659 = vmul.f32 %v2508, 1.442695
      %v2660 = vpow.pop %v2659
      %v2661 = vmul.f32 %v2509, 1.442695
      %v2662 = vpow.pop %v2661
      %v2663 = vmul.f32 %v2510, 1.442695
      %v2664 = vpow.pop %v2663
      %v2665 = vmul.f32 %v2511, 1.442695
      %v2666 = vpow.pop %v2665
      %v2667 = vmul.f32 %v2512, 1.442695
      %v2668 = vpow.pop %v2667
      %v2669 = vmul.f32 %v2513, 1.442695
      %v2670 = vpow.pop %v2669
      %v2671 = vmul.f32 %v2514, 1.442695
      %v2672 = vpow.pop %v2671
      %v2673 = vmul.f32 %v2515, 1.442695
      %v2674 = vpow.pop %v2673
      %v2675 = vmul.f32 %v2516, 1.442695
      %v2676 = vpow.pop %v2675
      %v2677 = vmul.f32 %v2517, 1.442695
      %v2678 = vpow.pop %v2677
      %v2679 = vmul.f32 %v2518, 1.442695
      %v2680 = vpow.pop %v2679
      %v2681 = vmul.f32 %v2519, 1.442695
      %v2682 = vpow.pop %v2681
      %v2683 = vmul.f32 %v2520, 1.442695
      %v2684 = vpow.pop %v2683
      %v2685 = vmul.f32 %v2521, 1.442695
      %v2686 = vpow.pop %v2685
      %v2687 = vmul.f32 %v2522, 1.442695
      %v2688 = vpow.pop %v2687
      %v2689 = vmul.f32 %v2523, 1.442695
      %v2690 = vpow.pop %v2689
      %v2691 = vmul.f32 %v2524, 1.442695
      %v2692 = vpow.pop %v2691
      %v2693 = vmul.f32 %v2525, 1.442695
      %v2694 = vpow.pop %v2693
      %v2695 = vmul.f32 %v2526, 1.442695
      %v2696 = vpow.pop %v2695
      %v2697 = vmul.f32 %v2527, 1.442695
      %v2698 = vpow.pop %v2697
      %v2699 = vmul.f32 %v2528, 1.442695
      %v2700 = vpow.pop %v2699
      %v2701 = vmul.f32 %v2529, 1.442695
      %v2702 = vpow.pop %v2701
      %v2703 = vmul.f32 %v2530, 1.442695
      %v2704 = vpow.pop %v2703
      %v2705 = vmul.f32 %v2531, 1.442695
      %v2706 = vpow.pop %v2705
      %v2707 = vmul.f32 %v2532, 1.442695
      %v2708 = vpow.pop %v2707
      %v2709 = vmul.f32 %v2533, 1.442695
      %v2710 = vpow.pop %v2709
      %v2711 = vmul.f32 %v2534, 1.442695
      %v2712 = vpow.pop %v2711
      %v2713 = vmul.f32 %v2535, 1.442695
      %v2714 = vpow.pop %v2713
      %v2715 = vmul.f32 %v2536, 1.442695
      %v2716 = vpow.pop %v2715
      %v2717 = vmul.f32 %v2537, 1.442695
      %v2718 = vpow.pop %v2717
      %v2719 = vmul.f32 %v2538, 1.442695
      %v2720 = vpow.pop %v2719
      %v2721 = vmul.f32 %v2539, 1.442695
      %v2722 = vpow.pop %v2721
      %v2723 = vmul.f32 %v2540, 1.442695
      %v2724 = vpow.pop %v2723
      %v2725 = vmul.f32 %v2541, 1.442695
      %v2726 = vpow.pop %v2725
      %v2727 = vmul.f32 %v2542, 1.442695
      %v2728 = vpow.pop %v2727
      %v2729 = vmul.f32 %v2543, 1.442695
      %v2730 = vpow.pop %v2729
      %v2731 = vmul.f32 %v2544, 1.442695
      %v2732 = vpow.pop %v2731
      %v2733 = vmul.f32 %v2545, 1.442695
      %v2734 = vpow.pop %v2733
      %v2735 = vmul.f32 %v2546, 1.442695
      %v2736 = vpow.pop %v2735
      %v2737 = vmul.f32 %v2547, 1.442695
      %v2738 = vpow.pop %v2737
      %v2739 = vmul.f32 %v2548, 1.442695
      %v2740 = vpow.pop %v2739
      %v2741 = vmul.f32 %v2549, 1.442695
      %v2742 = vpow.pop %v2741
      %v2743 = vmul.f32 %v2550, 1.442695
      %v2744 = vpow.pop %v2743
      %v2745 = vmul.f32 %v2551, 1.442695
      %v2746 = vpow.pop %v2745
      %v2747 = vmul.f32 %v2552, 1.442695
      %v2748 = vpow.pop %v2747
      %v2749 = vmul.f32 %v2553, 1.442695
      %v2750 = vpow.pop %v2749
      %v2751 = vmul.f32 %v2554, 1.442695
      %v2752 = vpow.pop %v2751
      %v2753 = vmul.f32 %v2555, 1.442695
      %v2754 = vpow.pop %v2753
      %v2755 = vmul.f32 %v2556, 1.442695
      %v2756 = vpow.pop %v2755
      %v2757 = vmul.f32 %v2557, 1.442695
      %v2758 = vpow.pop %v2757
      %v2759 = vmul.f32 %v2558, 1.442695
      %v2760 = vpow.pop %v2759
      %v2761 = vmul.f32 %v2559, 1.442695
      %v2762 = vpow.pop %v2761
      %v2763 = vmul.f32 %v2560, 1.442695
      %v2764 = vpow.pop %v2763
      %v2765 = vmul.f32 %v2561, 1.442695
      %v2766 = vpow.pop %v2765
      %v2767 = vmul.f32 %v2562, 1.442695
      %v2768 = vpow.pop %v2767
      %v2769 = vmul.f32 %v2563, 1.442695
      %v2770 = vpow.pop %v2769
      %v2771 = vmul.f32 %v2564, 1.442695
      %v2772 = vpow.pop %v2771
      %v2773 = vmul.f32 %v2565, 1.442695
      %v2774 = vpow.pop %v2773
      %v2775 = vmul.f32 %v2566, 1.442695
      %v2776 = vpow.pop %v2775
      %v2777 = vmul.f32 %v2567, 1.442695
      %v2778 = vpow.pop %v2777
      %v2779 = vmul.f32 %v2568, 1.442695
      %v2780 = vpow.pop %v2779
      %v2781 = vmul.f32 %v2569, 1.442695
      %v2782 = vpow.pop %v2781
      %v2783 = vmul.f32 %v2570, 1.442695
      %v2784 = vpow.pop %v2783
      %v2785 = vmul.f32 %v2571, 1.442695
      %v2786 = vpow.pop %v2785
      %v2787 = vmul.f32 %v2572, 1.442695
      %v2788 = vpow.pop %v2787
      %v2789 = vmul.f32 %v2573, 1.442695
      %v2790 = vpow.pop %v2789
      %v2791 = vmul.f32 %v2574, 1.442695
      %v2792 = vpow.pop %v2791
      %v2793 = vmul.f32 %v2575, 1.442695
      %v2794 = vpow.pop %v2793
      %v2795 = vmul.f32 %v2576, 1.442695
      %v2796 = vpow.pop %v2795
      %v2797 = vmul.f32 %v2577, 1.442695
      %v2798 = vpow.pop %v2797
      %v2799 = vmul.f32 %v2578, 1.442695
      %v2800 = vpow.pop %v2799
      %v2801 = vmul.f32 %v2579, 1.442695
      %v2802 = vpow.pop %v2801
      %v2803 = vmul.f32 %v2580, 1.442695
      %v2804 = vpow.pop %v2803
      %v2805 = vmul.f32 %v2581, 1.442695
      %v2806 = vpow.pop %v2805
      %v2807 = vmul.f32 %v2582, 1.442695
      %v2808 = vpow.pop %v2807
      %v2809 = vmul.f32 %v2583, 1.442695
      %v2810 = vpow.pop %v2809
      %v2811 = vmul.f32 %v2584, 1.442695
      %v2812 = vpow.pop %v2811
      %v2813 = vmul.f32 %v2585, 1.442695
      %v2814 = vpow.pop %v2813
      %v2815 = vmul.f32 %v2586, 1.442695
      %v2816 = vpow.pop %v2815
      %v2817 = vmul.f32 %v2587, 1.442695
      %v2818 = vpow.pop %v2817
      %v2819 = vmul.f32 %v2588, 1.442695
      %v2820 = vpow.pop %v2819
      %v2821 = vmul.f32 %v2589, 1.442695
      %v2822 = vpow.pop %v2821
      %v2823 = vmul.f32 %v2590, 1.442695
      %v2824 = vpow.pop %v2823
      %v2825 = vmul.f32 %v2591, 1.442695
      %v2826 = vpow.pop %v2825
      %v2827 = vmul.f32 %v2592, 1.442695
      %v2828 = vpow.pop %v2827
      %v2829 = vmul.f32 %v2593, 1.442695
      %v2830 = vpow.pop %v2829
      %v2831 = vmul.f32 %v2594, 1.442695
      %v2832 = vpow.pop %v2831
      %v2833 = vmul.f32 %v2595, 1.442695
      %v2834 = vpow.pop %v2833
      %v2835 = vmul.f32 %v2596, 1.442695
      %v2836 = vpow.pop %v2835
      %v2837 = vmul.f32 %v2597, 1.442695
      %v2838 = vpow.pop %v2837
      %v2839 = vmul.f32 %v2598, 1.442695
      %v2840 = vpow.pop %v2839
      %v2841 = vmul.f32 %v2599, 1.442695
      %v2842 = vpow.pop %v2841
      %v2843 = vmul.f32 %v2600, 1.442695
      %v2844 = vpow.pop %v2843
      %v2845 = vmul.f32 %v2601, 1.442695
      %v2846 = vpow.pop %v2845
      %v2847 = vmul.f32 %v2602, 1.442695
      %v2848 = vpow.pop %v2847
      %v2849 = vmul.f32 %v2603, 1.442695
      %v2850 = vpow.pop %v2849
      %v2851 = vmul.f32 %v2604, 1.442695
      %v2852 = vpow.pop %v2851
      %v2853 = vmul.f32 %v2605, 1.442695
      %v2854 = vpow.pop %v2853
      %v2855 = vmul.f32 %v2606, 1.442695
      %v2856 = vpow.pop %v2855
      %v2857 = vmul.f32 %v2607, 1.442695
      %v2858 = vpow.pop %v2857
      %v2859 = vmul.f32 %v2608, 1.442695
      %v2860 = vpow.pop %v2859
      %v2861 = vmul.f32 %v2609, 1.442695
      %v2862 = vpow.pop %v2861
      %v2863 = vmul.f32 %v2610, 1.442695
      %v2864 = vpow.pop %v2863
      %v2865 = vmul.f32 %v2611, 1.442695
      %v2866 = vpow.pop %v2865
      %v2867 = vmul.f32 %v2612, 1.442695
      %v2868 = vpow.pop %v2867
      %v2869 = vpack.c.bf16 %v2622, %v2614
      %v2870 = vpack.c.bf16 %v2624, %v2616
      %v2871 = vpack.c.bf16 %v2626, %v2618
      %v2872 = vpack.c.bf16 %v2628, %v2620
      %v2873 = vpack.c.bf16 %v2638, %v2630
      %v2874 = vpack.c.bf16 %v2640, %v2632
      %v2875 = vpack.c.bf16 %v2642, %v2634
      %v2876 = vpack.c.bf16 %v2644, %v2636
      %v2877 = vpack.c.bf16 %v2654, %v2646
      %v2878 = vpack.c.bf16 %v2656, %v2648
      %v2879 = vpack.c.bf16 %v2658, %v2650
      %v2880 = vpack.c.bf16 %v2660, %v2652
      %v2881 = vpack.c.bf16 %v2670, %v2662
      %v2882 = vpack.c.bf16 %v2672, %v2664
      %v2883 = vpack.c.bf16 %v2674, %v2666
      %v2884 = vpack.c.bf16 %v2676, %v2668
      %v2885 = vpack.c.bf16 %v2686, %v2678
      %v2886 = vpack.c.bf16 %v2688, %v2680
      %v2887 = vpack.c.bf16 %v2690, %v2682
      %v2888 = vpack.c.bf16 %v2692, %v2684
      %v2889 = vpack.c.bf16 %v2702, %v2694
      %v2890 = vpack.c.bf16 %v2704, %v2696
      %v2891 = vpack.c.bf16 %v2706, %v2698
      %v2892 = vpack.c.bf16 %v2708, %v2700
      %v2893 = vpack.c.bf16 %v2718, %v2710
      %v2894 = vpack.c.bf16 %v2720, %v2712
      %v2895 = vpack.c.bf16 %v2722, %v2714
      %v2896 = vpack.c.bf16 %v2724, %v2716
      %v2897 = vpack.c.bf16 %v2734, %v2726
      %v2898 = vpack.c.bf16 %v2736, %v2728
      %v2899 = vpack.c.bf16 %v2738, %v2730
      %v2900 = vpack.c.bf16 %v2740, %v2732
      %v2901 = vpack.c.bf16 %v2750, %v2742
      %v2902 = vpack.c.bf16 %v2752, %v2744
      %v2903 = vpack.c.bf16 %v2754, %v2746
      %v2904 = vpack.c.bf16 %v2756, %v2748
      %v2905 = vpack.c.bf16 %v2766, %v2758
      %v2906 = vpack.c.bf16 %v2768, %v2760
      %v2907 = vpack.c.bf16 %v2770, %v2762
      %v2908 = vpack.c.bf16 %v2772, %v2764
      %v2909 = vpack.c.bf16 %v2782, %v2774
      %v2910 = vpack.c.bf16 %v2784, %v2776
      %v2911 = vpack.c.bf16 %v2786, %v2778
      %v2912 = vpack.c.bf16 %v2788, %v2780
      %v2913 = vpack.c.bf16 %v2798, %v2790
      %v2914 = vpack.c.bf16 %v2800, %v2792
      %v2915 = vpack.c.bf16 %v2802, %v2794
      %v2916 = vpack.c.bf16 %v2804, %v2796
      %v2917 = vpack.c.bf16 %v2814, %v2806
      %v2918 = vpack.c.bf16 %v2816, %v2808
      %v2919 = vpack.c.bf16 %v2818, %v2810
      %v2920 = vpack.c.bf16 %v2820, %v2812
      %v2921 = vpack.c.bf16 %v2830, %v2822
      %v2922 = vpack.c.bf16 %v2832, %v2824
      %v2923 = vpack.c.bf16 %v2834, %v2826
      %v2924 = vpack.c.bf16 %v2836, %v2828
      %v2925 = vpack.c.bf16 %v2846, %v2838
      %v2926 = vpack.c.bf16 %v2848, %v2840
      %v2927 = vpack.c.bf16 %v2850, %v2842
      %v2928 = vpack.c.bf16 %v2852, %v2844
      %v2929 = vpack.c.bf16 %v2862, %v2854
      %v2930 = vpack.c.bf16 %v2864, %v2856
      %v2931 = vpack.c.bf16 %v2866, %v2858
      %v2932 = vpack.c.bf16 %v2868, %v2860
      %v2933 = vunpack.c.l.bf16 %v2869
      %v2934 = vunpack.c.l.bf16 %v2870
      %v2935 = vunpack.c.l.bf16 %v2871
      %v2936 = vunpack.c.l.bf16 %v2872
      %v2937 = vunpack.c.h.bf16 %v2869
      %v2938 = vunpack.c.h.bf16 %v2870
      %v2939 = vunpack.c.h.bf16 %v2871
      %v2940 = vunpack.c.h.bf16 %v2872
      %v2941 = vunpack.c.l.bf16 %v2873
      %v2942 = vunpack.c.l.bf16 %v2874
      %v2943 = vunpack.c.l.bf16 %v2875
      %v2944 = vunpack.c.l.bf16 %v2876
      %v2945 = vunpack.c.h.bf16 %v2873
      %v2946 = vunpack.c.h.bf16 %v2874
      %v2947 = vunpack.c.h.bf16 %v2875
      %v2948 = vunpack.c.h.bf16 %v2876
      %v2949 = vunpack.c.l.bf16 %v2877
      %v2950 = vunpack.c.l.bf16 %v2878
      %v2951 = vunpack.c.l.bf16 %v2879
      %v2952 = vunpack.c.l.bf16 %v2880
      %v2953 = vunpack.c.h.bf16 %v2877
      %v2954 = vunpack.c.h.bf16 %v2878
      %v2955 = vunpack.c.h.bf16 %v2879
      %v2956 = vunpack.c.h.bf16 %v2880
      %v2957 = vunpack.c.l.bf16 %v2881
      %v2958 = vunpack.c.l.bf16 %v2882
      %v2959 = vunpack.c.l.bf16 %v2883
      %v2960 = vunpack.c.l.bf16 %v2884
      %v2961 = vunpack.c.h.bf16 %v2881
      %v2962 = vunpack.c.h.bf16 %v2882
      %v2963 = vunpack.c.h.bf16 %v2883
      %v2964 = vunpack.c.h.bf16 %v2884
      %v2965 = vunpack.c.l.bf16 %v2885
      %v2966 = vunpack.c.l.bf16 %v2886
      %v2967 = vunpack.c.l.bf16 %v2887
      %v2968 = vunpack.c.l.bf16 %v2888
      %v2969 = vunpack.c.h.bf16 %v2885
      %v2970 = vunpack.c.h.bf16 %v2886
      %v2971 = vunpack.c.h.bf16 %v2887
      %v2972 = vunpack.c.h.bf16 %v2888
      %v2973 = vunpack.c.l.bf16 %v2889
      %v2974 = vunpack.c.l.bf16 %v2890
      %v2975 = vunpack.c.l.bf16 %v2891
      %v2976 = vunpack.c.l.bf16 %v2892
      %v2977 = vunpack.c.h.bf16 %v2889
      %v2978 = vunpack.c.h.bf16 %v2890
      %v2979 = vunpack.c.h.bf16 %v2891
      %v2980 = vunpack.c.h.bf16 %v2892
      %v2981 = vunpack.c.l.bf16 %v2893
      %v2982 = vunpack.c.l.bf16 %v2894
      %v2983 = vunpack.c.l.bf16 %v2895
      %v2984 = vunpack.c.l.bf16 %v2896
      %v2985 = vunpack.c.h.bf16 %v2893
      %v2986 = vunpack.c.h.bf16 %v2894
      %v2987 = vunpack.c.h.bf16 %v2895
      %v2988 = vunpack.c.h.bf16 %v2896
      %v2989 = vunpack.c.l.bf16 %v2897
      %v2990 = vunpack.c.l.bf16 %v2898
      %v2991 = vunpack.c.l.bf16 %v2899
      %v2992 = vunpack.c.l.bf16 %v2900
      %v2993 = vunpack.c.h.bf16 %v2897
      %v2994 = vunpack.c.h.bf16 %v2898
      %v2995 = vunpack.c.h.bf16 %v2899
      %v2996 = vunpack.c.h.bf16 %v2900
      %v2997 = vunpack.c.l.bf16 %v2901
      %v2998 = vunpack.c.l.bf16 %v2902
      %v2999 = vunpack.c.l.bf16 %v2903
      %v3000 = vunpack.c.l.bf16 %v2904
      %v3001 = vunpack.c.h.bf16 %v2901
      %v3002 = vunpack.c.h.bf16 %v2902
      %v3003 = vunpack.c.h.bf16 %v2903
      %v3004 = vunpack.c.h.bf16 %v2904
      %v3005 = vunpack.c.l.bf16 %v2905
      %v3006 = vunpack.c.l.bf16 %v2906
      %v3007 = vunpack.c.l.bf16 %v2907
      %v3008 = vunpack.c.l.bf16 %v2908
      %v3009 = vunpack.c.h.bf16 %v2905
      %v3010 = vunpack.c.h.bf16 %v2906
      %v3011 = vunpack.c.h.bf16 %v2907
      %v3012 = vunpack.c.h.bf16 %v2908
      %v3013 = vunpack.c.l.bf16 %v2909
      %v3014 = vunpack.c.l.bf16 %v2910
      %v3015 = vunpack.c.l.bf16 %v2911
      %v3016 = vunpack.c.l.bf16 %v2912
      %v3017 = vunpack.c.h.bf16 %v2909
      %v3018 = vunpack.c.h.bf16 %v2910
      %v3019 = vunpack.c.h.bf16 %v2911
      %v3020 = vunpack.c.h.bf16 %v2912
      %v3021 = vunpack.c.l.bf16 %v2913
      %v3022 = vunpack.c.l.bf16 %v2914
      %v3023 = vunpack.c.l.bf16 %v2915
      %v3024 = vunpack.c.l.bf16 %v2916
      %v3025 = vunpack.c.h.bf16 %v2913
      %v3026 = vunpack.c.h.bf16 %v2914
      %v3027 = vunpack.c.h.bf16 %v2915
      %v3028 = vunpack.c.h.bf16 %v2916
      %v3029 = vunpack.c.l.bf16 %v2917
      %v3030 = vunpack.c.l.bf16 %v2918
      %v3031 = vunpack.c.l.bf16 %v2919
      %v3032 = vunpack.c.l.bf16 %v2920
      %v3033 = vunpack.c.h.bf16 %v2917
      %v3034 = vunpack.c.h.bf16 %v2918
      %v3035 = vunpack.c.h.bf16 %v2919
      %v3036 = vunpack.c.h.bf16 %v2920
      %v3037 = vunpack.c.l.bf16 %v2921
      %v3038 = vunpack.c.l.bf16 %v2922
      %v3039 = vunpack.c.l.bf16 %v2923
      %v3040 = vunpack.c.l.bf16 %v2924
      %v3041 = vunpack.c.h.bf16 %v2921
      %v3042 = vunpack.c.h.bf16 %v2922
      %v3043 = vunpack.c.h.bf16 %v2923
      %v3044 = vunpack.c.h.bf16 %v2924
      %v3045 = vunpack.c.l.bf16 %v2925
      %v3046 = vunpack.c.l.bf16 %v2926
      %v3047 = vunpack.c.l.bf16 %v2927
      %v3048 = vunpack.c.l.bf16 %v2928
      %v3049 = vunpack.c.h.bf16 %v2925
      %v3050 = vunpack.c.h.bf16 %v2926
      %v3051 = vunpack.c.h.bf16 %v2927
      %v3052 = vunpack.c.h.bf16 %v2928
      %v3053 = vunpack.c.l.bf16 %v2929
      %v3054 = vunpack.c.l.bf16 %v2930
      %v3055 = vunpack.c.l.bf16 %v2931
      %v3056 = vunpack.c.l.bf16 %v2932
      %v3057 = vunpack.c.h.bf16 %v2929
      %v3058 = vunpack.c.h.bf16 %v2930
      %v3059 = vunpack.c.h.bf16 %v2931
      %v3060 = vunpack.c.h.bf16 %v2932
      %v3061 = vadd.f32 %v2933, %v2934
      %v3062 = vadd.f32 %v3061, %v2935
      %v3063 = vadd.f32 %v3062, %v2936
      %3064 = vadd.xlane.f32.xlu0 %v3063
      %v3065 = vpop.xlane.xlu0 %3064
      %v3066 = vadd.f32 %v2937, %v2938
      %v3067 = vadd.f32 %v3066, %v2939
      %v3068 = vadd.f32 %v3067, %v2940
      %3069 = vadd.xlane.f32.xlu0 %v3068
      %v3070 = vpop.xlane.xlu0 %3069
      %v3071 = vadd.f32 %v2941, %v2942
      %v3072 = vadd.f32 %v3071, %v2943
      %v3073 = vadd.f32 %v3072, %v2944
      %3074 = vadd.xlane.f32.xlu0 %v3073
      %v3075 = vpop.xlane.xlu0 %3074
      %v3076 = vadd.f32 %v2945, %v2946
      %v3077 = vadd.f32 %v3076, %v2947
      %v3078 = vadd.f32 %v3077, %v2948
      %3079 = vadd.xlane.f32.xlu0 %v3078
      %v3080 = vpop.xlane.xlu0 %3079
      %v3081 = vadd.f32 %v2949, %v2950
      %v3082 = vadd.f32 %v3081, %v2951
      %v3083 = vadd.f32 %v3082, %v2952
      %3084 = vadd.xlane.f32.xlu0 %v3083
      %v3085 = vpop.xlane.xlu0 %3084
      %v3086 = vadd.f32 %v2953, %v2954
      %v3087 = vadd.f32 %v3086, %v2955
      %v3088 = vadd.f32 %v3087, %v2956
      %3089 = vadd.xlane.f32.xlu0 %v3088
      %v3090 = vpop.xlane.xlu0 %3089
      %v3091 = vadd.f32 %v2957, %v2958
      %v3092 = vadd.f32 %v3091, %v2959
      %v3093 = vadd.f32 %v3092, %v2960
      %3094 = vadd.xlane.f32.xlu0 %v3093
      %v3095 = vpop.xlane.xlu0 %3094
      %v3096 = vadd.f32 %v2961, %v2962
      %v3097 = vadd.f32 %v3096, %v2963
      %v3098 = vadd.f32 %v3097, %v2964
      %3099 = vadd.xlane.f32.xlu0 %v3098
      %v3100 = vpop.xlane.xlu0 %3099
      %v3101 = vadd.f32 %v2965, %v2966
      %v3102 = vadd.f32 %v3101, %v2967
      %v3103 = vadd.f32 %v3102, %v2968
      %3104 = vadd.xlane.f32.xlu0 %v3103
      %v3105 = vpop.xlane.xlu0 %3104
      %v3106 = vadd.f32 %v2969, %v2970
      %v3107 = vadd.f32 %v3106, %v2971
      %v3108 = vadd.f32 %v3107, %v2972
      %3109 = vadd.xlane.f32.xlu0 %v3108
      %v3110 = vpop.xlane.xlu0 %3109
      %v3111 = vadd.f32 %v2973, %v2974
      %v3112 = vadd.f32 %v3111, %v2975
      %v3113 = vadd.f32 %v3112, %v2976
      %3114 = vadd.xlane.f32.xlu0 %v3113
      %v3115 = vpop.xlane.xlu0 %3114
      %v3116 = vadd.f32 %v2977, %v2978
      %v3117 = vadd.f32 %v3116, %v2979
      %v3118 = vadd.f32 %v3117, %v2980
      %3119 = vadd.xlane.f32.xlu0 %v3118
      %v3120 = vpop.xlane.xlu0 %3119
      %v3121 = vadd.f32 %v2981, %v2982
      %v3122 = vadd.f32 %v3121, %v2983
      %v3123 = vadd.f32 %v3122, %v2984
      %3124 = vadd.xlane.f32.xlu0 %v3123
      %v3125 = vpop.xlane.xlu0 %3124
      %v3126 = vadd.f32 %v2985, %v2986
      %v3127 = vadd.f32 %v3126, %v2987
      %v3128 = vadd.f32 %v3127, %v2988
      %3129 = vadd.xlane.f32.xlu0 %v3128
      %v3130 = vpop.xlane.xlu0 %3129
      %v3131 = vadd.f32 %v2989, %v2990
      %v3132 = vadd.f32 %v3131, %v2991
      %v3133 = vadd.f32 %v3132, %v2992
      %3134 = vadd.xlane.f32.xlu0 %v3133
      %v3135 = vpop.xlane.xlu0 %3134
      %v3136 = vadd.f32 %v2993, %v2994
      %v3137 = vadd.f32 %v3136, %v2995
      %v3138 = vadd.f32 %v3137, %v2996
      %3139 = vadd.xlane.f32.xlu0 %v3138
      %v3140 = vpop.xlane.xlu0 %3139
      %v3141 = vadd.f32 %v2997, %v2998
      %v3142 = vadd.f32 %v3141, %v2999
      %v3143 = vadd.f32 %v3142, %v3000
      %3144 = vadd.xlane.f32.xlu0 %v3143
      %v3145 = vpop.xlane.xlu0 %3144
      %v3146 = vadd.f32 %v3001, %v3002
      %v3147 = vadd.f32 %v3146, %v3003
      %v3148 = vadd.f32 %v3147, %v3004
      %3149 = vadd.xlane.f32.xlu0 %v3148
      %v3150 = vpop.xlane.xlu0 %3149
      %v3151 = vadd.f32 %v3005, %v3006
      %v3152 = vadd.f32 %v3151, %v3007
      %v3153 = vadd.f32 %v3152, %v3008
      %3154 = vadd.xlane.f32.xlu0 %v3153
      %v3155 = vpop.xlane.xlu0 %3154
      %v3156 = vadd.f32 %v3009, %v3010
      %v3157 = vadd.f32 %v3156, %v3011
      %v3158 = vadd.f32 %v3157, %v3012
      %3159 = vadd.xlane.f32.xlu0 %v3158
      %v3160 = vpop.xlane.xlu0 %3159
      %v3161 = vadd.f32 %v3013, %v3014
      %v3162 = vadd.f32 %v3161, %v3015
      %v3163 = vadd.f32 %v3162, %v3016
      %3164 = vadd.xlane.f32.xlu0 %v3163
      %v3165 = vpop.xlane.xlu0 %3164
      %v3166 = vadd.f32 %v3017, %v3018
      %v3167 = vadd.f32 %v3166, %v3019
      %v3168 = vadd.f32 %v3167, %v3020
      %3169 = vadd.xlane.f32.xlu0 %v3168
      %v3170 = vpop.xlane.xlu0 %3169
      %v3171 = vadd.f32 %v3021, %v3022
      %v3172 = vadd.f32 %v3171, %v3023
      %v3173 = vadd.f32 %v3172, %v3024
      %3174 = vadd.xlane.f32.xlu0 %v3173
      %v3175 = vpop.xlane.xlu0 %3174
      %v3176 = vadd.f32 %v3025, %v3026
      %v3177 = vadd.f32 %v3176, %v3027
      %v3178 = vadd.f32 %v3177, %v3028
      %3179 = vadd.xlane.f32.xlu0 %v3178
      %v3180 = vpop.xlane.xlu0 %3179
      %v3181 = vadd.f32 %v3029, %v3030
      %v3182 = vadd.f32 %v3181, %v3031
      %v3183 = vadd.f32 %v3182, %v3032
      %3184 = vadd.xlane.f32.xlu0 %v3183
      %v3185 = vpop.xlane.xlu0 %3184
      %v3186 = vadd.f32 %v3033, %v3034
      %v3187 = vadd.f32 %v3186, %v3035
      %v3188 = vadd.f32 %v3187, %v3036
      %3189 = vadd.xlane.f32.xlu0 %v3188
      %v3190 = vpop.xlane.xlu0 %3189
      %v3191 = vadd.f32 %v3037, %v3038
      %v3192 = vadd.f32 %v3191, %v3039
      %v3193 = vadd.f32 %v3192, %v3040
      %3194 = vadd.xlane.f32.xlu0 %v3193
      %v3195 = vpop.xlane.xlu0 %3194
      %v3196 = vadd.f32 %v3041, %v3042
      %v3197 = vadd.f32 %v3196, %v3043
      %v3198 = vadd.f32 %v3197, %v3044
      %3199 = vadd.xlane.f32.xlu0 %v3198
      %v3200 = vpop.xlane.xlu0 %3199
      %v3201 = vadd.f32 %v3045, %v3046
      %v3202 = vadd.f32 %v3201, %v3047
      %v3203 = vadd.f32 %v3202, %v3048
      %3204 = vadd.xlane.f32.xlu0 %v3203
      %v3205 = vpop.xlane.xlu0 %3204
      %v3206 = vadd.f32 %v3049, %v3050
      %v3207 = vadd.f32 %v3206, %v3051
      %v3208 = vadd.f32 %v3207, %v3052
      %3209 = vadd.xlane.f32.xlu0 %v3208
      %v3210 = vpop.xlane.xlu0 %3209
      %v3211 = vadd.f32 %v3053, %v3054
      %v3212 = vadd.f32 %v3211, %v3055
      %v3213 = vadd.f32 %v3212, %v3056
      %3214 = vadd.xlane.f32.xlu0 %v3213
      %v3215 = vpop.xlane.xlu0 %3214
      %v3216 = vadd.f32 %v3057, %v3058
      %v3217 = vadd.f32 %v3216, %v3059
      %v3218 = vadd.f32 %v3217, %v3060
      %3219 = vadd.xlane.f32.xlu0 %v3218
      %v3220 = vpop.xlane.xlu0 %3219
      %3221 = vmatpush.bf16.msra.mxu0 %v984
      %3222 = vmatpush.bf16.msra.mxu0 %v983
      %3223 = vmatpush.bf16.msra.mxu0 %v982
      %3224 = vmatpush.bf16.msra.mxu0 %v981
      %3225 = vmatpush.bf16.msra.mxu0 %v980
      %3226 = vmatpush.bf16.msra.mxu0 %v979
      %3227 = vmatpush.bf16.msra.mxu0 %v978
      %3228 = vmatpush.bf16.msra.mxu0 %v977
      %3229 = vmatmul.bf16.gmra.mxu0 %v2869
      %v3230 = vpop.f32.mrf.mxu0
      %v3231 = vadd.f32 0.0, %v3230
      %v3232 = vpop.f32.mrf.mxu0
      %v3233 = vadd.f32 0.0, %v3232
      %3234 = vmatmul.bf16.gmra.mxu0 %v2873
      %v3235 = vpop.f32.mrf.mxu0
      %v3236 = vadd.f32 0.0, %v3235
      %v3237 = vpop.f32.mrf.mxu0
      %v3238 = vadd.f32 0.0, %v3237
      %3239 = vmatmul.bf16.gmra.mxu0 %v2877
      %v3240 = vpop.f32.mrf.mxu0
      %v3241 = vadd.f32 0.0, %v3240
      %v3242 = vpop.f32.mrf.mxu0
      %v3243 = vadd.f32 0.0, %v3242
      %3244 = vmatmul.bf16.gmra.mxu0 %v2881
      %v3245 = vpop.f32.mrf.mxu0
      %v3246 = vadd.f32 0.0, %v3245
      %v3247 = vpop.f32.mrf.mxu0
      %v3248 = vadd.f32 0.0, %v3247
      %3249 = vmatmul.bf16.gmra.mxu0 %v2885
      %v3250 = vpop.f32.mrf.mxu0
      %v3251 = vadd.f32 0.0, %v3250
      %v3252 = vpop.f32.mrf.mxu0
      %v3253 = vadd.f32 0.0, %v3252
      %3254 = vmatmul.bf16.gmra.mxu0 %v2889
      %v3255 = vpop.f32.mrf.mxu0
      %v3256 = vadd.f32 0.0, %v3255
      %v3257 = vpop.f32.mrf.mxu0
      %v3258 = vadd.f32 0.0, %v3257
      %3259 = vmatmul.bf16.gmra.mxu0 %v2893
      %v3260 = vpop.f32.mrf.mxu0
      %v3261 = vadd.f32 0.0, %v3260
      %v3262 = vpop.f32.mrf.mxu0
      %v3263 = vadd.f32 0.0, %v3262
      %3264 = vmatmul.bf16.gmra.mxu0 %v2897
      %v3265 = vpop.f32.mrf.mxu0
      %v3266 = vadd.f32 0.0, %v3265
      %v3267 = vpop.f32.mrf.mxu0
      %v3268 = vadd.f32 0.0, %v3267
      %3269 = vmatmul.bf16.gmra.mxu0 %v2901
      %v3270 = vpop.f32.mrf.mxu0
      %v3271 = vadd.f32 0.0, %v3270
      %v3272 = vpop.f32.mrf.mxu0
      %v3273 = vadd.f32 0.0, %v3272
      %3274 = vmatmul.bf16.gmra.mxu0 %v2905
      %v3275 = vpop.f32.mrf.mxu0
      %v3276 = vadd.f32 0.0, %v3275
      %v3277 = vpop.f32.mrf.mxu0
      %v3278 = vadd.f32 0.0, %v3277
      %3279 = vmatmul.bf16.gmra.mxu0 %v2909
      %v3280 = vpop.f32.mrf.mxu0
      %v3281 = vadd.f32 0.0, %v3280
      %v3282 = vpop.f32.mrf.mxu0
      %v3283 = vadd.f32 0.0, %v3282
      %3284 = vmatmul.bf16.gmra.mxu0 %v2913
      %v3285 = vpop.f32.mrf.mxu0
      %v3286 = vadd.f32 0.0, %v3285
      %v3287 = vpop.f32.mrf.mxu0
      %v3288 = vadd.f32 0.0, %v3287
      %3289 = vmatmul.bf16.gmra.mxu0 %v2917
      %v3290 = vpop.f32.mrf.mxu0
      %v3291 = vadd.f32 0.0, %v3290
      %v3292 = vpop.f32.mrf.mxu0
      %v3293 = vadd.f32 0.0, %v3292
      %3294 = vmatmul.bf16.gmra.mxu0 %v2921
      %v3295 = vpop.f32.mrf.mxu0
      %v3296 = vadd.f32 0.0, %v3295
      %v3297 = vpop.f32.mrf.mxu0
      %v3298 = vadd.f32 0.0, %v3297
      %3299 = vmatmul.bf16.gmra.mxu0 %v2925
      %v3300 = vpop.f32.mrf.mxu0
      %v3301 = vadd.f32 0.0, %v3300
      %v3302 = vpop.f32.mrf.mxu0
      %v3303 = vadd.f32 0.0, %v3302
      %3304 = vmatmul.bf16.gmra.mxu0 %v2929
      %v3305 = vpop.f32.mrf.mxu0
      %v3306 = vadd.f32 0.0, %v3305
      %v3307 = vpop.f32.mrf.mxu0
      %v3308 = vadd.f32 0.0, %v3307
      %3309 = vdwg.mxu0
      %3310 = vmatpush.bf16.msra.mxu0 %v992
      %3311 = vmatpush.bf16.msra.mxu0 %v991
      %3312 = vmatpush.bf16.msra.mxu0 %v990
      %3313 = vmatpush.bf16.msra.mxu0 %v989
      %3314 = vmatpush.bf16.msra.mxu0 %v988
      %3315 = vmatpush.bf16.msra.mxu0 %v987
      %3316 = vmatpush.bf16.msra.mxu0 %v986
      %3317 = vmatpush.bf16.msra.mxu0 %v985
      %3318 = vmatmul.bf16.gmra.mxu0 %v2870
      %v3319 = vpop.f32.mrf.mxu0
      %v3320 = vadd.f32 %v3231, %v3319
      %v3321 = vpop.f32.mrf.mxu0
      %v3322 = vadd.f32 %v3233, %v3321
      %3323 = vmatmul.bf16.gmra.mxu0 %v2874
      %v3324 = vpop.f32.mrf.mxu0
      %v3325 = vadd.f32 %v3236, %v3324
      %v3326 = vpop.f32.mrf.mxu0
      %v3327 = vadd.f32 %v3238, %v3326
      %3328 = vmatmul.bf16.gmra.mxu0 %v2878
      %v3329 = vpop.f32.mrf.mxu0
      %v3330 = vadd.f32 %v3241, %v3329
      %v3331 = vpop.f32.mrf.mxu0
      %v3332 = vadd.f32 %v3243, %v3331
      %3333 = vmatmul.bf16.gmra.mxu0 %v2882
      %v3334 = vpop.f32.mrf.mxu0
      %v3335 = vadd.f32 %v3246, %v3334
      %v3336 = vpop.f32.mrf.mxu0
      %v3337 = vadd.f32 %v3248, %v3336
      %3338 = vmatmul.bf16.gmra.mxu0 %v2886
      %v3339 = vpop.f32.mrf.mxu0
      %v3340 = vadd.f32 %v3251, %v3339
      %v3341 = vpop.f32.mrf.mxu0
      %v3342 = vadd.f32 %v3253, %v3341
      %3343 = vmatmul.bf16.gmra.mxu0 %v2890
      %v3344 = vpop.f32.mrf.mxu0
      %v3345 = vadd.f32 %v3256, %v3344
      %v3346 = vpop.f32.mrf.mxu0
      %v3347 = vadd.f32 %v3258, %v3346
      %3348 = vmatmul.bf16.gmra.mxu0 %v2894
      %v3349 = vpop.f32.mrf.mxu0
      %v3350 = vadd.f32 %v3261, %v3349
      %v3351 = vpop.f32.mrf.mxu0
      %v3352 = vadd.f32 %v3263, %v3351
      %3353 = vmatmul.bf16.gmra.mxu0 %v2898
      %v3354 = vpop.f32.mrf.mxu0
      %v3355 = vadd.f32 %v3266, %v3354
      %v3356 = vpop.f32.mrf.mxu0
      %v3357 = vadd.f32 %v3268, %v3356
      %3358 = vmatmul.bf16.gmra.mxu0 %v2902
      %v3359 = vpop.f32.mrf.mxu0
      %v3360 = vadd.f32 %v3271, %v3359
      %v3361 = vpop.f32.mrf.mxu0
      %v3362 = vadd.f32 %v3273, %v3361
      %3363 = vmatmul.bf16.gmra.mxu0 %v2906
      %v3364 = vpop.f32.mrf.mxu0
      %v3365 = vadd.f32 %v3276, %v3364
      %v3366 = vpop.f32.mrf.mxu0
      %v3367 = vadd.f32 %v3278, %v3366
      %3368 = vmatmul.bf16.gmra.mxu0 %v2910
      %v3369 = vpop.f32.mrf.mxu0
      %v3370 = vadd.f32 %v3281, %v3369
      %v3371 = vpop.f32.mrf.mxu0
      %v3372 = vadd.f32 %v3283, %v3371
      %3373 = vmatmul.bf16.gmra.mxu0 %v2914
      %v3374 = vpop.f32.mrf.mxu0
      %v3375 = vadd.f32 %v3286, %v3374
      %v3376 = vpop.f32.mrf.mxu0
      %v3377 = vadd.f32 %v3288, %v3376
      %3378 = vmatmul.bf16.gmra.mxu0 %v2918
      %v3379 = vpop.f32.mrf.mxu0
      %v3380 = vadd.f32 %v3291, %v3379
      %v3381 = vpop.f32.mrf.mxu0
      %v3382 = vadd.f32 %v3293, %v3381
      %3383 = vmatmul.bf16.gmra.mxu0 %v2922
      %v3384 = vpop.f32.mrf.mxu0
      %v3385 = vadd.f32 %v3296, %v3384
      %v3386 = vpop.f32.mrf.mxu0
      %v3387 = vadd.f32 %v3298, %v3386
      %3388 = vmatmul.bf16.gmra.mxu0 %v2926
      %v3389 = vpop.f32.mrf.mxu0
      %v3390 = vadd.f32 %v3301, %v3389
      %v3391 = vpop.f32.mrf.mxu0
      %v3392 = vadd.f32 %v3303, %v3391
      %3393 = vmatmul.bf16.gmra.mxu0 %v2930
      %v3394 = vpop.f32.mrf.mxu0
      %v3395 = vadd.f32 %v3306, %v3394
      %v3396 = vpop.f32.mrf.mxu0
      %v3397 = vadd.f32 %v3308, %v3396
      %3398 = vdwg.mxu0
      %3399 = vmatpush.bf16.msra.mxu0 %v1000
      %3400 = vmatpush.bf16.msra.mxu0 %v999
      %3401 = vmatpush.bf16.msra.mxu0 %v998
      %3402 = vmatpush.bf16.msra.mxu0 %v997
      %3403 = vmatpush.bf16.msra.mxu0 %v996
      %3404 = vmatpush.bf16.msra.mxu0 %v995
      %3405 = vmatpush.bf16.msra.mxu0 %v994
      %3406 = vmatpush.bf16.msra.mxu0 %v993
      %3407 = vmatmul.bf16.gmra.mxu0 %v2871
      %v3408 = vpop.f32.mrf.mxu0
      %v3409 = vadd.f32 %v3320, %v3408
      %v3410 = vpop.f32.mrf.mxu0
      %v3411 = vadd.f32 %v3322, %v3410
      %3412 = vmatmul.bf16.gmra.mxu0 %v2875
      %v3413 = vpop.f32.mrf.mxu0
      %v3414 = vadd.f32 %v3325, %v3413
      %v3415 = vpop.f32.mrf.mxu0
      %v3416 = vadd.f32 %v3327, %v3415
      %3417 = vmatmul.bf16.gmra.mxu0 %v2879
      %v3418 = vpop.f32.mrf.mxu0
      %v3419 = vadd.f32 %v3330, %v3418
      %v3420 = vpop.f32.mrf.mxu0
      %v3421 = vadd.f32 %v3332, %v3420
      %3422 = vmatmul.bf16.gmra.mxu0 %v2883
      %v3423 = vpop.f32.mrf.mxu0
      %v3424 = vadd.f32 %v3335, %v3423
      %v3425 = vpop.f32.mrf.mxu0
      %v3426 = vadd.f32 %v3337, %v3425
      %3427 = vmatmul.bf16.gmra.mxu0 %v2887
      %v3428 = vpop.f32.mrf.mxu0
      %v3429 = vadd.f32 %v3340, %v3428
      %v3430 = vpop.f32.mrf.mxu0
      %v3431 = vadd.f32 %v3342, %v3430
      %3432 = vmatmul.bf16.gmra.mxu0 %v2891
      %v3433 = vpop.f32.mrf.mxu0
      %v3434 = vadd.f32 %v3345, %v3433
      %v3435 = vpop.f32.mrf.mxu0
      %v3436 = vadd.f32 %v3347, %v3435
      %3437 = vmatmul.bf16.gmra.mxu0 %v2895
      %v3438 = vpop.f32.mrf.mxu0
      %v3439 = vadd.f32 %v3350, %v3438
      %v3440 = vpop.f32.mrf.mxu0
      %v3441 = vadd.f32 %v3352, %v3440
      %3442 = vmatmul.bf16.gmra.mxu0 %v2899
      %v3443 = vpop.f32.mrf.mxu0
      %v3444 = vadd.f32 %v3355, %v3443
      %v3445 = vpop.f32.mrf.mxu0
      %v3446 = vadd.f32 %v3357, %v3445
      %3447 = vmatmul.bf16.gmra.mxu0 %v2903
      %v3448 = vpop.f32.mrf.mxu0
      %v3449 = vadd.f32 %v3360, %v3448
      %v3450 = vpop.f32.mrf.mxu0
      %v3451 = vadd.f32 %v3362, %v3450
      %3452 = vmatmul.bf16.gmra.mxu0 %v2907
      %v3453 = vpop.f32.mrf.mxu0
      %v3454 = vadd.f32 %v3365, %v3453
      %v3455 = vpop.f32.mrf.mxu0
      %v3456 = vadd.f32 %v3367, %v3455
      %3457 = vmatmul.bf16.gmra.mxu0 %v2911
      %v3458 = vpop.f32.mrf.mxu0
      %v3459 = vadd.f32 %v3370, %v3458
      %v3460 = vpop.f32.mrf.mxu0
      %v3461 = vadd.f32 %v3372, %v3460
      %3462 = vmatmul.bf16.gmra.mxu0 %v2915
      %v3463 = vpop.f32.mrf.mxu0
      %v3464 = vadd.f32 %v3375, %v3463
      %v3465 = vpop.f32.mrf.mxu0
      %v3466 = vadd.f32 %v3377, %v3465
      %3467 = vmatmul.bf16.gmra.mxu0 %v2919
      %v3468 = vpop.f32.mrf.mxu0
      %v3469 = vadd.f32 %v3380, %v3468
      %v3470 = vpop.f32.mrf.mxu0
      %v3471 = vadd.f32 %v3382, %v3470
      %3472 = vmatmul.bf16.gmra.mxu0 %v2923
      %v3473 = vpop.f32.mrf.mxu0
      %v3474 = vadd.f32 %v3385, %v3473
      %v3475 = vpop.f32.mrf.mxu0
      %v3476 = vadd.f32 %v3387, %v3475
      %3477 = vmatmul.bf16.gmra.mxu0 %v2927
      %v3478 = vpop.f32.mrf.mxu0
      %v3479 = vadd.f32 %v3390, %v3478
      %v3480 = vpop.f32.mrf.mxu0
      %v3481 = vadd.f32 %v3392, %v3480
      %3482 = vmatmul.bf16.gmra.mxu0 %v2931
      %v3483 = vpop.f32.mrf.mxu0
      %v3484 = vadd.f32 %v3395, %v3483
      %v3485 = vpop.f32.mrf.mxu0
      %v3486 = vadd.f32 %v3397, %v3485
      %3487 = vdwg.mxu0
      %3488 = vmatpush.bf16.msra.mxu0 %v1008
      %3489 = vmatpush.bf16.msra.mxu0 %v1007
      %3490 = vmatpush.bf16.msra.mxu0 %v1006
      %3491 = vmatpush.bf16.msra.mxu0 %v1005
      %3492 = vmatpush.bf16.msra.mxu0 %v1004
      %3493 = vmatpush.bf16.msra.mxu0 %v1003
      %3494 = vmatpush.bf16.msra.mxu0 %v1002
      %3495 = vmatpush.bf16.msra.mxu0 %v1001
      %3496 = vmatmul.bf16.gmra.mxu0 %v2872
      %v3497 = vpop.f32.mrf.mxu0
      %v3498 = vadd.f32 %v3409, %v3497
      %v3499 = vpop.f32.mrf.mxu0
      %v3500 = vadd.f32 %v3411, %v3499
      %3501 = vmatmul.bf16.gmra.mxu0 %v2876
      %v3502 = vpop.f32.mrf.mxu0
      %v3503 = vadd.f32 %v3414, %v3502
      %v3504 = vpop.f32.mrf.mxu0
      %v3505 = vadd.f32 %v3416, %v3504
      %3506 = vmatmul.bf16.gmra.mxu0 %v2880
      %v3507 = vpop.f32.mrf.mxu0
      %v3508 = vadd.f32 %v3419, %v3507
      %v3509 = vpop.f32.mrf.mxu0
      %v3510 = vadd.f32 %v3421, %v3509
      %3511 = vmatmul.bf16.gmra.mxu0 %v2884
      %v3512 = vpop.f32.mrf.mxu0
      %v3513 = vadd.f32 %v3424, %v3512
      %v3514 = vpop.f32.mrf.mxu0
      %v3515 = vadd.f32 %v3426, %v3514
      %3516 = vmatmul.bf16.gmra.mxu0 %v2888
      %v3517 = vpop.f32.mrf.mxu0
      %v3518 = vadd.f32 %v3429, %v3517
      %v3519 = vpop.f32.mrf.mxu0
      %v3520 = vadd.f32 %v3431, %v3519
      %3521 = vmatmul.bf16.gmra.mxu0 %v2892
      %v3522 = vpop.f32.mrf.mxu0
      %v3523 = vadd.f32 %v3434, %v3522
      %v3524 = vpop.f32.mrf.mxu0
      %v3525 = vadd.f32 %v3436, %v3524
      %3526 = vmatmul.bf16.gmra.mxu0 %v2896
      %v3527 = vpop.f32.mrf.mxu0
      %v3528 = vadd.f32 %v3439, %v3527
      %v3529 = vpop.f32.mrf.mxu0
      %v3530 = vadd.f32 %v3441, %v3529
      %3531 = vmatmul.bf16.gmra.mxu0 %v2900
      %v3532 = vpop.f32.mrf.mxu0
      %v3533 = vadd.f32 %v3444, %v3532
      %v3534 = vpop.f32.mrf.mxu0
      %v3535 = vadd.f32 %v3446, %v3534
      %3536 = vmatmul.bf16.gmra.mxu0 %v2904
      %v3537 = vpop.f32.mrf.mxu0
      %v3538 = vadd.f32 %v3449, %v3537
      %v3539 = vpop.f32.mrf.mxu0
      %v3540 = vadd.f32 %v3451, %v3539
      %3541 = vmatmul.bf16.gmra.mxu0 %v2908
      %v3542 = vpop.f32.mrf.mxu0
      %v3543 = vadd.f32 %v3454, %v3542
      %v3544 = vpop.f32.mrf.mxu0
      %v3545 = vadd.f32 %v3456, %v3544
      %3546 = vmatmul.bf16.gmra.mxu0 %v2912
      %v3547 = vpop.f32.mrf.mxu0
      %v3548 = vadd.f32 %v3459, %v3547
      %v3549 = vpop.f32.mrf.mxu0
      %v3550 = vadd.f32 %v3461, %v3549
      %3551 = vmatmul.bf16.gmra.mxu0 %v2916
      %v3552 = vpop.f32.mrf.mxu0
      %v3553 = vadd.f32 %v3464, %v3552
      %v3554 = vpop.f32.mrf.mxu0
      %v3555 = vadd.f32 %v3466, %v3554
      %3556 = vmatmul.bf16.gmra.mxu0 %v2920
      %v3557 = vpop.f32.mrf.mxu0
      %v3558 = vadd.f32 %v3469, %v3557
      %v3559 = vpop.f32.mrf.mxu0
      %v3560 = vadd.f32 %v3471, %v3559
      %3561 = vmatmul.bf16.gmra.mxu0 %v2924
      %v3562 = vpop.f32.mrf.mxu0
      %v3563 = vadd.f32 %v3474, %v3562
      %v3564 = vpop.f32.mrf.mxu0
      %v3565 = vadd.f32 %v3476, %v3564
      %3566 = vmatmul.bf16.gmra.mxu0 %v2928
      %v3567 = vpop.f32.mrf.mxu0
      %v3568 = vadd.f32 %v3479, %v3567
      %v3569 = vpop.f32.mrf.mxu0
      %v3570 = vadd.f32 %v3481, %v3569
      %3571 = vmatmul.bf16.gmra.mxu0 %v2932
      %v3572 = vpop.f32.mrf.mxu0
      %v3573 = vadd.f32 %v3484, %v3572
      %v3574 = vpop.f32.mrf.mxu0
      %v3575 = vadd.f32 %v3486, %v3574
      %3576 = vdwg.mxu0
      %v3577 = vrcp.pop %v3065
      %v3578 = vrcp.pop %v3070
      %v3579 = vrcp.pop %v3075
      %v3580 = vrcp.pop %v3080
      %v3581 = vrcp.pop %v3085
      %v3582 = vrcp.pop %v3090
      %v3583 = vrcp.pop %v3095
      %v3584 = vrcp.pop %v3100
      %v3585 = vrcp.pop %v3105
      %v3586 = vrcp.pop %v3110
      %v3587 = vrcp.pop %v3115
      %v3588 = vrcp.pop %v3120
      %v3589 = vrcp.pop %v3125
      %v3590 = vrcp.pop %v3130
      %v3591 = vrcp.pop %v3135
      %v3592 = vrcp.pop %v3140
      %v3593 = vrcp.pop %v3145
      %v3594 = vrcp.pop %v3150
      %v3595 = vrcp.pop %v3155
      %v3596 = vrcp.pop %v3160
      %v3597 = vrcp.pop %v3165
      %v3598 = vrcp.pop %v3170
      %v3599 = vrcp.pop %v3175
      %v3600 = vrcp.pop %v3180
      %v3601 = vrcp.pop %v3185
      %v3602 = vrcp.pop %v3190
      %v3603 = vrcp.pop %v3195
      %v3604 = vrcp.pop %v3200
      %v3605 = vrcp.pop %v3205
      %v3606 = vrcp.pop %v3210
      %v3607 = vrcp.pop %v3215
      %v3608 = vrcp.pop %v3220
      %v3609 = vmul.f32 %v3498, %v3577
      %v3610 = vmul.f32 %v3500, %v3578
      %v3611 = vmul.f32 %v3503, %v3579
      %v3612 = vmul.f32 %v3505, %v3580
      %v3613 = vmul.f32 %v3508, %v3581
      %v3614 = vmul.f32 %v3510, %v3582
      %v3615 = vmul.f32 %v3513, %v3583
      %v3616 = vmul.f32 %v3515, %v3584
      %v3617 = vmul.f32 %v3518, %v3585
      %v3618 = vmul.f32 %v3520, %v3586
      %v3619 = vmul.f32 %v3523, %v3587
      %v3620 = vmul.f32 %v3525, %v3588
      %v3621 = vmul.f32 %v3528, %v3589
      %v3622 = vmul.f32 %v3530, %v3590
      %v3623 = vmul.f32 %v3533, %v3591
      %v3624 = vmul.f32 %v3535, %v3592
      %v3625 = vmul.f32 %v3538, %v3593
      %v3626 = vmul.f32 %v3540, %v3594
      %v3627 = vmul.f32 %v3543, %v3595
      %v3628 = vmul.f32 %v3545, %v3596
      %v3629 = vmul.f32 %v3548, %v3597
      %v3630 = vmul.f32 %v3550, %v3598
      %v3631 = vmul.f32 %v3553, %v3599
      %v3632 = vmul.f32 %v3555, %v3600
      %v3633 = vmul.f32 %v3558, %v3601
      %v3634 = vmul.f32 %v3560, %v3602
      %v3635 = vmul.f32 %v3563, %v3603
      %v3636 = vmul.f32 %v3565, %v3604
      %v3637 = vmul.f32 %v3568, %v3605
      %v3638 = vmul.f32 %v3570, %v3606
      %v3639 = vmul.f32 %v3573, %v3607
      %v3640 = vmul.f32 %v3575, %v3608
      %v3641 = vld [vmem:[%s4] sm:$0x1]
      %v3643 = vperm.slane %v3641, 0
      %v3645 = vadd.f32 %v3609, %v3643
      %v3646 = vadd.f32 %v3610, %v3643
      %v3647 = vadd.f32 %v3611, %v3643
      %v3648 = vadd.f32 %v3612, %v3643
      %v3649 = vadd.f32 %v3613, %v3643
      %v3650 = vadd.f32 %v3614, %v3643
      %v3651 = vadd.f32 %v3615, %v3643
      %v3652 = vadd.f32 %v3616, %v3643
      %v3653 = vadd.f32 %v3617, %v3643
      %v3654 = vadd.f32 %v3618, %v3643
      %v3655 = vadd.f32 %v3619, %v3643
      %v3656 = vadd.f32 %v3620, %v3643
      %v3657 = vadd.f32 %v3621, %v3643
      %v3658 = vadd.f32 %v3622, %v3643
      %v3659 = vadd.f32 %v3623, %v3643
      %v3660 = vadd.f32 %v3624, %v3643
      %v3661 = vadd.f32 %v3625, %v3643
      %v3662 = vadd.f32 %v3626, %v3643
      %v3663 = vadd.f32 %v3627, %v3643
      %v3664 = vadd.f32 %v3628, %v3643
      %v3665 = vadd.f32 %v3629, %v3643
      %v3666 = vadd.f32 %v3630, %v3643
      %v3667 = vadd.f32 %v3631, %v3643
      %v3668 = vadd.f32 %v3632, %v3643
      %v3669 = vadd.f32 %v3633, %v3643
      %v3670 = vadd.f32 %v3634, %v3643
      %v3671 = vadd.f32 %v3635, %v3643
      %v3672 = vadd.f32 %v3636, %v3643
      %v3673 = vadd.f32 %v3637, %v3643
      %v3674 = vadd.f32 %v3638, %v3643
      %v3675 = vadd.f32 %v3639, %v3643
      %v3676 = vadd.f32 %v3640, %v3643
      %v3677 = vmax.f32 %v3645, 0.0
      %v3678 = vmax.f32 %v3646, 0.0
      %v3679 = vmax.f32 %v3647, 0.0
      %v3680 = vmax.f32 %v3648, 0.0
      %v3681 = vmax.f32 %v3649, 0.0
      %v3682 = vmax.f32 %v3650, 0.0
      %v3683 = vmax.f32 %v3651, 0.0
      %v3684 = vmax.f32 %v3652, 0.0
      %v3685 = vmax.f32 %v3653, 0.0
      %v3686 = vmax.f32 %v3654, 0.0
      %v3687 = vmax.f32 %v3655, 0.0
      %v3688 = vmax.f32 %v3656, 0.0
      %v3689 = vmax.f32 %v3657, 0.0
      %v3690 = vmax.f32 %v3658, 0.0
      %v3691 = vmax.f32 %v3659, 0.0
      %v3692 = vmax.f32 %v3660, 0.0
      %v3693 = vmax.f32 %v3661, 0.0
      %v3694 = vmax.f32 %v3662, 0.0
      %v3695 = vmax.f32 %v3663, 0.0
      %v3696 = vmax.f32 %v3664, 0.0
      %v3697 = vmax.f32 %v3665, 0.0
      %v3698 = vmax.f32 %v3666, 0.0
      %v3699 = vmax.f32 %v3667, 0.0
      %v3700 = vmax.f32 %v3668, 0.0
      %v3701 = vmax.f32 %v3669, 0.0
      %v3702 = vmax.f32 %v3670, 0.0
      %v3703 = vmax.f32 %v3671, 0.0
      %v3704 = vmax.f32 %v3672, 0.0
      %v3705 = vmax.f32 %v3673, 0.0
      %v3706 = vmax.f32 %v3674, 0.0
      %v3707 = vmax.f32 %v3675, 0.0
      %v3708 = vmax.f32 %v3676, 0.0
      %v3709 = vpack.c.bf16 %v3677, %v3677
      %v3710 = vpack.c.bf16 %v3678, %v3678
      %v3711 = vpack.c.bf16 %v3679, %v3679
      %v3712 = vpack.c.bf16 %v3680, %v3680
      %v3713 = vpack.c.bf16 %v3681, %v3681
      %v3714 = vpack.c.bf16 %v3682, %v3682
      %v3715 = vpack.c.bf16 %v3683, %v3683
      %v3716 = vpack.c.bf16 %v3684, %v3684
      %v3717 = vpack.c.bf16 %v3685, %v3685
      %v3718 = vpack.c.bf16 %v3686, %v3686
      %v3719 = vpack.c.bf16 %v3687, %v3687
      %v3720 = vpack.c.bf16 %v3688, %v3688
      %v3721 = vpack.c.bf16 %v3689, %v3689
      %v3722 = vpack.c.bf16 %v3690, %v3690
      %v3723 = vpack.c.bf16 %v3691, %v3691
      %v3724 = vpack.c.bf16 %v3692, %v3692
      %v3725 = vpack.c.bf16 %v3693, %v3693
      %v3726 = vpack.c.bf16 %v3694, %v3694
      %v3727 = vpack.c.bf16 %v3695, %v3695
      %v3728 = vpack.c.bf16 %v3696, %v3696
      %v3729 = vpack.c.bf16 %v3697, %v3697
      %v3730 = vpack.c.bf16 %v3698, %v3698
      %v3731 = vpack.c.bf16 %v3699, %v3699
      %v3732 = vpack.c.bf16 %v3700, %v3700
      %v3733 = vpack.c.bf16 %v3701, %v3701
      %v3734 = vpack.c.bf16 %v3702, %v3702
      %v3735 = vpack.c.bf16 %v3703, %v3703
      %v3736 = vpack.c.bf16 %v3704, %v3704
      %v3737 = vpack.c.bf16 %v3705, %v3705
      %v3738 = vpack.c.bf16 %v3706, %v3706
      %v3739 = vpack.c.bf16 %v3707, %v3707
      %v3740 = vpack.c.bf16 %v3708, %v3708
      %3741 = vst [vmem:[%s251] sm:$0xf] %v3709
      %3742 = vst [vmem:[%s251 + $0x4] sm:$0xf] %v3710
      %3743 = vst [vmem:[%s251 + $0x8] sm:$0xf] %v3711
      %3744 = vst [vmem:[%s251 + $0xc] sm:$0xf] %v3712
      %3745 = vst [vmem:[%s251 + $0x10] sm:$0xf] %v3713
      %3746 = vst [vmem:[%s251 + $0x14] sm:$0xf] %v3714
      %3747 = vst [vmem:[%s251 + $0x18] sm:$0xf] %v3715
      %3748 = vst [vmem:[%s251 + $0x1c] sm:$0xf] %v3716
      %3749 = vst [vmem:[%s251 + $0x20] sm:$0xf] %v3717
      %3750 = vst [vmem:[%s251 + $0x24] sm:$0xf] %v3718
      %3751 = vst [vmem:[%s251 + $0x28] sm:$0xf] %v3719
      %3752 = vst [vmem:[%s251 + $0x2c] sm:$0xf] %v3720
      %3753 = vst [vmem:[%s251 + $0x30] sm:$0xf] %v3721
      %3754 = vst [vmem:[%s251 + $0x34] sm:$0xf] %v3722
      %3755 = vst [vmem:[%s251 + $0x38] sm:$0xf] %v3723
      %3756 = vst [vmem:[%s251 + $0x3c] sm:$0xf] %v3724
      %3757 = vst [vmem:[%s251 + $0x40] sm:$0xf] %v3725
      %3758 = vst [vmem:[%s251 + $0x44] sm:$0xf] %v3726
      %3759 = vst [vmem:[%s251 + $0x48] sm:$0xf] %v3727
      %3760 = vst [vmem:[%s251 + $0x4c] sm:$0xf] %v3728
      %3761 = vst [vmem:[%s251 + $0x50] sm:$0xf] %v3729
      %3762 = vst [vmem:[%s251 + $0x54] sm:$0xf] %v3730
      %3763 = vst [vmem:[%s251 + $0x58] sm:$0xf] %v3731
      %3764 = vst [vmem:[%s251 + $0x5c] sm:$0xf] %v3732
      %3765 = vst [vmem:[%s251 + $0x60] sm:$0xf] %v3733
      %3766 = vst [vmem:[%s251 + $0x64] sm:$0xf] %v3734
      %3767 = vst [vmem:[%s251 + $0x68] sm:$0xf] %v3735
      %3768 = vst [vmem:[%s251 + $0x6c] sm:$0xf] %v3736
      %3769 = vst [vmem:[%s251 + $0x70] sm:$0xf] %v3737
      %3770 = vst [vmem:[%s251 + $0x74] sm:$0xf] %v3738
      %3771 = vst [vmem:[%s251 + $0x78] sm:$0xf] %v3739
      %3772 = vst [vmem:[%s251 + $0x7c] sm:$0xf] %v3740
      %s3773 = smul.u32 32, %s16
      %p3774 = scmp.lt.s32.totalorder %s3773, 63
      %s3775 = scalar_select %p3774, %s3773, 63
      %s3776 = smul.addr %s3775, 4
      %s3777 = scalar_lea.vmem %s5, %s3776
      // Predicated region
      $region41: #{gat_forward.2} parent=39 // pred_check
        %p3778 = pneg %p149
      $region42: #{gat_forward.2} parent=39 // pred_check_branch
        %3780 = sbr.rel (%p3778) target = $region44
      $region43: #{gat_forward.2} parent=39 // pred_region
        %s3781 = smul.u32 32, %s16
      $region44: #{gat_forward.2} parent=39 // pred_fallthru
        _
    $region40: #{gat_forward.2} parent=5 // pred_fallthru
      _
    %p3782 = scmp.le.s32.totalorder 2, %s11
    // Predicated region
    $region45: #{gat_forward.2} parent=5 // pred_check
      %p3783 = pneg %p3782
    $region46: #{gat_forward.2} parent=5 // pred_check_branch
      %3785 = sbr.rel (%p3783) target = $region48
    $region47: #{gat_forward.2} parent=5 // pred_region
      %s3786 = ssub.s32 %s11, 2
      // Predicated region
      $region49: #{gat_forward.2} parent=47 // pred_check
        %p3787 = pneg %p155
      $region50: #{gat_forward.2} parent=47 // pred_check_branch
        %3789 = sbr.rel (%p3787) target = $region52
      $region51: #{gat_forward.2} parent=47 // pred_region
        %s3790 = smul.u32 32, %s17
        %p3791 = scmp.lt.s32.totalorder %s3790, 63
        %s3792 = scalar_select %p3791, %s3790, 63
        %s3793 = smul.addr %s3792, 4
        %s3794 = scalar_lea.vmem %s5, %s3793
      $region52: #{gat_forward.2} parent=47 // pred_fallthru
        _
    $region48: #{gat_forward.2} parent=5 // pred_fallthru
      _
  $region6: #{gat_forward.2} parent=0 // loop_footer
    %s15 = sadd.s32 1, %s11
  $region7: #{gat_forward.2} parent=0 // loop_footer_branch
    %10 = sbr.rel target = $region3
  $region8: #{gat_forward.2} parent=0 // loop_exit
    _

// kernel: gat_forward.3
$region0: #{gat_forward.3}
  #allocation0 [shape = 'u32[]', space=smem, size = 0x4, offset = 0x4, fixed_abs, tag = 'smem constant byte address 0x4 - core index']
  #allocation1 [shape = 'u32[72,128]{1,0:T(1,128)}', space=vmem, size = 0x9000, scoped, tag = 'internal scratch']
  %s0 = inlined_call_operand.vmem [shape: bf16[512,128], index: 0, kind: input, shape index: {}, may-alias: {0,1}]
  %s1 = inlined_call_operand.vmem [shape: bf16[512,128], index: 1, kind: input, shape index: {}, may-alias: {0,1}]
  %s2 = inlined_call_operand.vmem [shape: bf16[128,128], index: 2, kind: input, shape index: {}]
  %s3 = inlined_call_operand.vmem [shape: s8[512,512], index: 3, kind: input, shape index: {}]
  %s4 = inlined_call_operand.vmem [shape: f32[1,128], index: 4, kind: input, shape index: {}]
  %s5 = inlined_call_operand.vmem [shape: f32[512,128], index: 5, kind: output, shape index: {}]
  %s6 = sld [smem:[#allocation0]]
  $region53: #{gat_forward.3} parent=0
    _
  %s8 = ssub.s32 1, %s6
  %s9 = scalar_select 0, %s8, %s6
  loop: start=0, step=1, limit=4
  $region2: #{gat_forward.3} parent=0 // loop_pre_header
    _
  $region3: #{gat_forward.3} parent=0 // loop_header
    %s11 = sphi 0, %s15
    %p12 = scmp.ge.s32.totalorder %s11, 4
    %s21 = sphi 0, %s23
    %s24 = sphi 0, %s21
    %s25 = sphi 0, %s24
    %s41 = sphi 0, %s25
    %s45 = sphi 0, %s45
    %s47 = sphi 0, %s45
    %s48 = sphi 0, %s47
    %s62 = sphi 0, %s48
    %s66 = sphi 0, %s66
    %s68 = sphi 0, %s66
    %s69 = sphi 0, %s68
    %s83 = sphi 0, %s69
    %s89 = sphi 0, %s91
    %s92 = sphi 0, %s89
    %s93 = sphi 0, %s92
    %s109 = sphi 0, %s93
    %s113 = sphi 0, %s113
    %s115 = sphi 0, %s113
    %s116 = sphi 0, %s115
    %s130 = sphi 0, %s116
    %s136 = sphi 0, %s138
    %s139 = sphi 0, %s136
    %s140 = sphi 0, %s139
    %s156 = sphi 0, %s140
  $region4: #{gat_forward.3} parent=0 // loop_header_branch
    %14 = sbr.rel (%p12) target = $region8
  $region5: #{gat_forward.3} parent=0 // loop_body
    %s16 = ssub.s32 %s11, 1
    %s17 = ssub.s32 %s11, 2
    %s18 = sadd.s32 %s11, 1
    %s19 = ssub.s32 %s11, %s18
    %p20 = scmp.eq.s32.totalorder %s19, 0
    %s22 = sadd.s32 %s21, 1
    %s23 = scalar_select %p20, %s21, %s22
    %p26 = pneg %p20
    %p27 = scmp.eq.s32.totalorder %s11, 1
    %p28 = por %p26, %p27
    %p29 = scmp.ne.s32.totalorder %s21, %s24
    %p30 = scmp.eq.s32.totalorder %s11, 0
    %p31 = por %p29, %p30
    %p32 = scmp.ne.s32.totalorder %s21, %s24
    %p33 = scmp.eq.s32.totalorder %s16, 1
    %p34 = por %p32, %p33
    %p35 = scmp.ne.s32.totalorder %s24, %s25
    %p36 = scmp.eq.s32.totalorder %s16, 0
    %p37 = por %p35, %p36
    %p38 = scmp.ne.s32.totalorder %s24, %s25
    %p39 = scmp.eq.s32.totalorder %s17, 1
    %p40 = por %p38, %p39
    %p42 = scmp.ne.s32.totalorder %s25, %s41
    %p43 = scmp.eq.s32.totalorder %s17, 0
    %p44 = por %p42, %p43
    %s46 = sadd.s32 %s45, 1
    %p49 = scmp.eq.s32.totalorder %s11, 1
    %p50 = scmp.ne.s32.totalorder %s45, %s47
    %p51 = scmp.eq.s32.totalorder %s11, 0
    %p52 = por %p50, %p51
    %p53 = scmp.ne.s32.totalorder %s45, %s47
    %p54 = scmp.eq.s32.totalorder %s16, 1
    %p55 = por %p53, %p54
    %p56 = scmp.ne.s32.totalorder %s47, %s48
    %p57 = scmp.eq.s32.totalorder %s16, 0
    %p58 = por %p56, %p57
    %p59 = scmp.ne.s32.totalorder %s47, %s48
    %p60 = scmp.eq.s32.totalorder %s17, 1
    %p61 = por %p59, %p60
    %p63 = scmp.ne.s32.totalorder %s48, %s62
    %p64 = scmp.eq.s32.totalorder %s17, 0
    %p65 = por %p63, %p64
    %s67 = sadd.s32 %s66, 1
    %p70 = scmp.eq.s32.totalorder %s11, 1
    %p71 = scmp.ne.s32.totalorder %s66, %s68
    %p72 = scmp.eq.s32.totalorder %s11, 0
    %p73 = por %p71, %p72
    %p74 = scmp.ne.s32.totalorder %s66, %s68
    %p75 = scmp.eq.s32.totalorder %s16, 1
    %p76 = por %p74, %p75
    %p77 = scmp.ne.s32.totalorder %s68, %s69
    %p78 = scmp.eq.s32.totalorder %s16, 0
    %p79 = por %p77, %p78
    %p80 = scmp.ne.s32.totalorder %s68, %s69
    %p81 = scmp.eq.s32.totalorder %s17, 1
    %p82 = por %p80, %p81
    %p84 = scmp.ne.s32.totalorder %s69, %s83
    %p85 = scmp.eq.s32.totalorder %s17, 0
    %p86 = por %p84, %p85
    %s87 = ssub.s32 %s11, %s18
    %p88 = scmp.eq.s32.totalorder %s87, 0
    %s90 = sadd.s32 %s89, 1
    %s91 = scalar_select %p88, %s89, %s90
    %p94 = pneg %p88
    %p95 = scmp.eq.s32.totalorder %s11, 1
    %p96 = por %p94, %p95
    %p97 = scmp.ne.s32.totalorder %s89, %s92
    %p98 = scmp.eq.s32.totalorder %s11, 0
    %p99 = por %p97, %p98
    %p100 = scmp.ne.s32.totalorder %s89, %s92
    %p101 = scmp.eq.s32.totalorder %s16, 1
    %p102 = por %p100, %p101
    %p103 = scmp.ne.s32.totalorder %s92, %s93
    %p104 = scmp.eq.s32.totalorder %s16, 0
    %p105 = por %p103, %p104
    %p106 = scmp.ne.s32.totalorder %s92, %s93
    %p107 = scmp.eq.s32.totalorder %s17, 1
    %p108 = por %p106, %p107
    %p110 = scmp.ne.s32.totalorder %s93, %s109
    %p111 = scmp.eq.s32.totalorder %s17, 0
    %p112 = por %p110, %p111
    %s114 = sadd.s32 %s113, 1
    %p117 = scmp.eq.s32.totalorder %s11, 1
    %p118 = scmp.ne.s32.totalorder %s113, %s115
    %p119 = scmp.eq.s32.totalorder %s11, 0
    %p120 = por %p118, %p119
    %p121 = scmp.ne.s32.totalorder %s113, %s115
    %p122 = scmp.eq.s32.totalorder %s16, 1
    %p123 = por %p121, %p122
    %p124 = scmp.ne.s32.totalorder %s115, %s116
    %p125 = scmp.eq.s32.totalorder %s16, 0
    %p126 = por %p124, %p125
    %p127 = scmp.ne.s32.totalorder %s115, %s116
    %p128 = scmp.eq.s32.totalorder %s17, 1
    %p129 = por %p127, %p128
    %p131 = scmp.ne.s32.totalorder %s116, %s130
    %p132 = scmp.eq.s32.totalorder %s17, 0
    %p133 = por %p131, %p132
    %s134 = ssub.s32 %s11, %s18
    %p135 = scmp.eq.s32.totalorder %s134, 0
    %s137 = sadd.s32 %s136, 1
    %s138 = scalar_select %p135, %s136, %s137
    %p141 = pneg %p135
    %p142 = scmp.eq.s32.totalorder %s11, 1
    %p143 = por %p141, %p142
    %p144 = scmp.ne.s32.totalorder %s136, %s139
    %p145 = scmp.eq.s32.totalorder %s11, 0
    %p146 = por %p144, %p145
    %p147 = scmp.ne.s32.totalorder %s136, %s139
    %p148 = scmp.eq.s32.totalorder %s16, 1
    %p149 = por %p147, %p148
    %p150 = scmp.ne.s32.totalorder %s139, %s140
    %p151 = scmp.eq.s32.totalorder %s16, 0
    %p152 = por %p150, %p151
    %p153 = scmp.ne.s32.totalorder %s139, %s140
    %p154 = scmp.eq.s32.totalorder %s17, 1
    %p155 = por %p153, %p154
    %p157 = scmp.ne.s32.totalorder %s140, %s156
    %p158 = scmp.eq.s32.totalorder %s17, 0
    %p159 = por %p157, %p158
    %p160 = scmp.le.s32.totalorder 1, %s11
    %p161 = scmp.lt.s32.totalorder %s11, 3
    %p162 = pnand %p160, %p161
    %p163 = pneg %p162
    // Predicated region
    $region9: #{gat_forward.3} parent=5 // pred_check
      _
    $region10: #{gat_forward.3} parent=5 // pred_check_branch
      %165 = sbr.rel (%p162) target = $region12
    $region11: #{gat_forward.3} parent=5 // pred_region
      %s166 = ssub.s32 %s11, 1
      // Predicated region
      $region13: #{gat_forward.3} parent=11 // pred_check
        %p167 = pneg %p58
      $region14: #{gat_forward.3} parent=11 // pred_check_branch
        %169 = sbr.rel (%p167) target = $region16
      $region15: #{gat_forward.3} parent=11 // pred_region
        _
      $region16: #{gat_forward.3} parent=11 // pred_fallthru
        _
      // Predicated region
      $region17: #{gat_forward.3} parent=11 // pred_check
        %p170 = pneg %p79
      $region18: #{gat_forward.3} parent=11 // pred_check_branch
        %172 = sbr.rel (%p170) target = $region20
      $region19: #{gat_forward.3} parent=11 // pred_region
        _
      $region20: #{gat_forward.3} parent=11 // pred_fallthru
        _
      // Predicated region
      $region21: #{gat_forward.3} parent=11 // pred_check
        %p173 = pneg %p126
      $region22: #{gat_forward.3} parent=11 // pred_check_branch
        %175 = sbr.rel (%p173) target = $region24
      $region23: #{gat_forward.3} parent=11 // pred_region
        _
      $region24: #{gat_forward.3} parent=11 // pred_fallthru
        _
    $region12: #{gat_forward.3} parent=5 // pred_fallthru
      _
    %p176 = scmp.lt.s32.totalorder %s11, 2
    // Predicated region
    $region25: #{gat_forward.3} parent=5 // pred_check
      %p177 = pneg %p176
    $region26: #{gat_forward.3} parent=5 // pred_check_branch
      %179 = sbr.rel (%p177) target = $region28
    $region27: #{gat_forward.3} parent=5 // pred_region
      // Predicated region
      $region29: #{gat_forward.3} parent=27 // pred_check
        %p180 = pneg %p31
      $region30: #{gat_forward.3} parent=27 // pred_check_branch
        %182 = sbr.rel (%p180) target = $region32
      $region31: #{gat_forward.3} parent=27 // pred_region
        %s183 = smul.u32 32, %s11
        %p184 = scmp.lt.s32.totalorder %s183, 63
        %s185 = scalar_select %p184, %s183, 63
        %s186 = smul.addr %s185, 4
        %s187 = scalar_lea.vmem %s0, %s186
        %s188 = smul.u32 32, %s11
      $region32: #{gat_forward.3} parent=27 // pred_fallthru
        _
      // Predicated region
      $region33: #{gat_forward.3} parent=27 // pred_check
        %p189 = pneg %p99
      $region34: #{gat_forward.3} parent=27 // pred_check_branch
        %191 = sbr.rel (%p189) target = $region36
      $region35: #{gat_forward.3} parent=27 // pred_region
        %s192 = smul.u32 8, %s11
        %p193 = scmp.lt.s32.totalorder %s192, 15
        %s194 = scalar_select %p193, %s192, 15
        %s195 = smul.addr %s194, 4
        %s196 = smul.addr %s195, 8
        %s197 = scalar_lea.vmem %s3, %s196
        %s198 = smul.u32 8, %s11
      $region36: #{gat_forward.3} parent=27 // pred_fallthru
        _
    $region28: #{gat_forward.3} parent=5 // pred_fallthru
      _
    %p199 = scmp.le.s32.totalorder 1, %s11
    %p200 = scmp.lt.s32.totalorder %s11, 3
    %p201 = pnand %p199, %p200
    %p202 = pneg %p201
    // Predicated region
    $region37: #{gat_forward.3} parent=5 // pred_check
      _
    $region38: #{gat_forward.3} parent=5 // pred_check_branch
      %204 = sbr.rel (%p201) target = $region40
    $region39: #{gat_forward.3} parent=5 // pred_region
      %s205 = ssub.s32 %s11, 1
      %s206 = smul.u32 32, %s16
      %p207 = scmp.lt.s32.totalorder %s206, 63
      %s208 = scalar_select %p207, %s206, 63
      %s209 = smul.addr %s208, 4
      %s210 = scalar_lea.vmem %s0, %s209
      %p211 = pneg %p37
      %p212 = pneg %p34
      %p213 = pneg %p58
      %p214 = pneg %p55
      %p215 = pneg %p79
      %p216 = pneg %p76
      %s217 = smul.u32 8, %s16
      %p218 = scmp.lt.s32.totalorder %s217, 15
      %s219 = scalar_select %p218, %s217, 15
      %s220 = smul.addr %s219, 4
      %s221 = smul.addr %s220, 8
      %s222 = scalar_lea.vmem %s3, %s221
      %p223 = pneg %p105
      %p224 = pneg %p102
      %p225 = pneg %p126
      %p226 = pneg %p123
      %p227 = pneg %p152
      %p228 = pneg %p149
      %s229 = smul.u32 32, %s16
      %p230 = scmp.lt.s32.totalorder %s229, 63
      %s231 = scalar_select %p230, %s229, 63
      %s232 = smul.addr %s231, 8
      %s233 = scalar_lea.vmem %s5, %s232
      %s234 = smul.u32 32, %s16
      %p235 = scmp.lt.s32.totalorder %s234, 63
      %s236 = scalar_select %p235, %s234, 63
      %s237 = smul.addr %s236, 4
      %s238 = scalar_lea.vmem %s0, %s237
      %s239 = smul.u32 32, %s16
      %s240 = smul.u32 8, %s16
      %p241 = scmp.lt.s32.totalorder %s240, 15
      %s242 = scalar_select %p241, %s240, 15
      %s243 = smul.addr %s242, 4
      %s244 = smul.addr %s243, 8
      %s245 = scalar_lea.vmem %s3, %s244
      %s246 = smul.u32 8, %s16
      %s247 = smul.u32 32, %s16
      %p248 = scmp.lt.s32.totalorder %s247, 63
      %s249 = scalar_select %p248, %s247, 63
      %s250 = smul.addr %s249, 8
      %s251 = scalar_lea.vmem %s5, %s250
      %s252 = smul.u32 32, %s16
      %v255 = vld [vmem:[%s2] sm:$0xf]
      %v256 = vld [vmem:[%s2 + $0x4] sm:$0xf]
      %v257 = vld [vmem:[%s2 + $0x8] sm:$0xf]
      %v258 = vld [vmem:[%s2 + $0xc] sm:$0xf]
      %v259 = vld [vmem:[%s2 + $0x10] sm:$0xf]
      %v260 = vld [vmem:[%s2 + $0x14] sm:$0xf]
      %v261 = vld [vmem:[%s2 + $0x18] sm:$0xf]
      %v262 = vld [vmem:[%s2 + $0x1c] sm:$0xf]
      %v263 = vld [vmem:[%s2 + $0x20] sm:$0xf]
      %v264 = vld [vmem:[%s2 + $0x24] sm:$0xf]
      %v265 = vld [vmem:[%s2 + $0x28] sm:$0xf]
      %v266 = vld [vmem:[%s2 + $0x2c] sm:$0xf]
      %v267 = vld [vmem:[%s2 + $0x30] sm:$0xf]
      %v268 = vld [vmem:[%s2 + $0x34] sm:$0xf]
      %v269 = vld [vmem:[%s2 + $0x38] sm:$0xf]
      %v270 = vld [vmem:[%s2 + $0x3c] sm:$0xf]
      %v271 = vld [vmem:[%s238] sm:$0xf]
      %v272 = vld [vmem:[%s238 + $0x4] sm:$0xf]
      %v273 = vld [vmem:[%s238 + $0x8] sm:$0xf]
      %v274 = vld [vmem:[%s238 + $0xc] sm:$0xf]
      %v275 = vld [vmem:[%s238 + $0x10] sm:$0xf]
      %v276 = vld [vmem:[%s238 + $0x14] sm:$0xf]
      %v277 = vld [vmem:[%s238 + $0x18] sm:$0xf]
      %v278 = vld [vmem:[%s238 + $0x1c] sm:$0xf]
      %v279 = vld [vmem:[%s238 + $0x20] sm:$0xf]
      %v280 = vld [vmem:[%s238 + $0x24] sm:$0xf]
      %v281 = vld [vmem:[%s238 + $0x28] sm:$0xf]
      %v282 = vld [vmem:[%s238 + $0x2c] sm:$0xf]
      %v283 = vld [vmem:[%s238 + $0x30] sm:$0xf]
      %v284 = vld [vmem:[%s238 + $0x34] sm:$0xf]
      %v285 = vld [vmem:[%s238 + $0x38] sm:$0xf]
      %v286 = vld [vmem:[%s238 + $0x3c] sm:$0xf]
      %v287 = vld [vmem:[%s238 + $0x40] sm:$0xf]
      %v288 = vld [vmem:[%s238 + $0x44] sm:$0xf]
      %v289 = vld [vmem:[%s238 + $0x48] sm:$0xf]
      %v290 = vld [vmem:[%s238 + $0x4c] sm:$0xf]
      %v291 = vld [vmem:[%s238 + $0x50] sm:$0xf]
      %v292 = vld [vmem:[%s238 + $0x54] sm:$0xf]
      %v293 = vld [vmem:[%s238 + $0x58] sm:$0xf]
      %v294 = vld [vmem:[%s238 + $0x5c] sm:$0xf]
      %v295 = vld [vmem:[%s238 + $0x60] sm:$0xf]
      %v296 = vld [vmem:[%s238 + $0x64] sm:$0xf]
      %v297 = vld [vmem:[%s238 + $0x68] sm:$0xf]
      %v298 = vld [vmem:[%s238 + $0x6c] sm:$0xf]
      %v299 = vld [vmem:[%s238 + $0x70] sm:$0xf]
      %v300 = vld [vmem:[%s238 + $0x74] sm:$0xf]
      %v301 = vld [vmem:[%s238 + $0x78] sm:$0xf]
      %v302 = vld [vmem:[%s238 + $0x7c] sm:$0xf]
      %v335 = vunpack.c.l.b16 %v271
      %v336 = vunpack.c.l.b16 %v272
      %v337 = vunpack.c.l.b16 %v273
      %v338 = vunpack.c.l.b16 %v274
      %v339 = vunpack.c.l.b16 %v275
      %v340 = vunpack.c.l.b16 %v276
      %v341 = vunpack.c.l.b16 %v277
      %v342 = vunpack.c.l.b16 %v278
      %v343 = vunpack.c.l.b16 %v279
      %v344 = vunpack.c.l.b16 %v280
      %v345 = vunpack.c.l.b16 %v281
      %v346 = vunpack.c.l.b16 %v282
      %v347 = vunpack.c.l.b16 %v283
      %v348 = vunpack.c.l.b16 %v284
      %v349 = vunpack.c.l.b16 %v285
      %v350 = vunpack.c.l.b16 %v286
      %v351 = vunpack.c.l.b16 %v287
      %v352 = vunpack.c.l.b16 %v288
      %v353 = vunpack.c.l.b16 %v289
      %v354 = vunpack.c.l.b16 %v290
      %v355 = vunpack.c.l.b16 %v291
      %v356 = vunpack.c.l.b16 %v292
      %v357 = vunpack.c.l.b16 %v293
      %v358 = vunpack.c.l.b16 %v294
      %v359 = vunpack.c.l.b16 %v295
      %v360 = vunpack.c.l.b16 %v296
      %v361 = vunpack.c.l.b16 %v297
      %v362 = vunpack.c.l.b16 %v298
      %v363 = vunpack.c.l.b16 %v299
      %v364 = vunpack.c.l.b16 %v300
      %v365 = vunpack.c.l.b16 %v301
      %v366 = vunpack.c.l.b16 %v302
      %v367 = vpack.c.b16 %v336, %v335
      %v368 = vpack.c.b16 %v338, %v337
      %v369 = vpack.c.b16 %v340, %v339
      %v370 = vpack.c.b16 %v342, %v341
      %v371 = vpack.c.b16 %v344, %v343
      %v372 = vpack.c.b16 %v346, %v345
      %v373 = vpack.c.b16 %v348, %v347
      %v374 = vpack.c.b16 %v350, %v349
      %v375 = vpack.c.b16 %v352, %v351
      %v376 = vpack.c.b16 %v354, %v353
      %v377 = vpack.c.b16 %v356, %v355
      %v378 = vpack.c.b16 %v358, %v357
      %v379 = vpack.c.b16 %v360, %v359
      %v380 = vpack.c.b16 %v362, %v361
      %v381 = vpack.c.b16 %v364, %v363
      %v382 = vpack.c.b16 %v366, %v365
      %v415 = vunpack.c.l.b16 %v255
      %v416 = vunpack.c.l.b16 %v256
      %v417 = vunpack.c.l.b16 %v257
      %v418 = vunpack.c.l.b16 %v258
      %v419 = vunpack.c.l.b16 %v259
      %v420 = vunpack.c.l.b16 %v260
      %v421 = vunpack.c.l.b16 %v261
      %v422 = vunpack.c.l.b16 %v262
      %v423 = vunpack.c.l.b16 %v263
      %v424 = vunpack.c.l.b16 %v264
      %v425 = vunpack.c.l.b16 %v265
      %v426 = vunpack.c.l.b16 %v266
      %v427 = vunpack.c.l.b16 %v267
      %v428 = vunpack.c.l.b16 %v268
      %v429 = vunpack.c.l.b16 %v269
      %v430 = vunpack.c.l.b16 %v270
      %v431 = vpack.c.b16 %v416, %v415
      %v432 = vpack.c.b16 %v418, %v417
      %v433 = vpack.c.b16 %v420, %v419
      %v434 = vpack.c.b16 %v422, %v421
      %v435 = vpack.c.b16 %v424, %v423
      %v436 = vpack.c.b16 %v426, %v425
      %v437 = vpack.c.b16 %v428, %v427
      %v438 = vpack.c.b16 %v430, %v429
      %447 = vmatpush.bf16.msra.mxu0 %v438
      %448 = vmatpush.bf16.msra.mxu0 %v437
      %449 = vmatpush.bf16.msra.mxu0 %v436
      %450 = vmatpush.bf16.msra.mxu0 %v435
      %451 = vmatpush.bf16.msra.mxu0 %v434
      %452 = vmatpush.bf16.msra.mxu0 %v433
      %453 = vmatpush.bf16.msra.mxu0 %v432
      %454 = vmatpush.bf16.msra.mxu0 %v431
      %455 = vmatmul.bf16.gmra.mxu0 %v367
      %v456 = vpop.f32.mrf.mxu0
      %v457 = vadd.f32 0.0, %v456
      %v458 = vpop.f32.mrf.mxu0
      %v459 = vadd.f32 0.0, %v458
      %460 = vmatmul.bf16.gmra.mxu0 %v368
      %v461 = vpop.f32.mrf.mxu0
      %v462 = vadd.f32 0.0, %v461
      %v463 = vpop.f32.mrf.mxu0
      %v464 = vadd.f32 0.0, %v463
      %465 = vmatmul.bf16.gmra.mxu0 %v369
      %v466 = vpop.f32.mrf.mxu0
      %v467 = vadd.f32 0.0, %v466
      %v468 = vpop.f32.mrf.mxu0
      %v469 = vadd.f32 0.0, %v468
      %470 = vmatmul.bf16.gmra.mxu0 %v370
      %v471 = vpop.f32.mrf.mxu0
      %v472 = vadd.f32 0.0, %v471
      %v473 = vpop.f32.mrf.mxu0
      %v474 = vadd.f32 0.0, %v473
      %475 = vmatmul.bf16.gmra.mxu0 %v371
      %v476 = vpop.f32.mrf.mxu0
      %v477 = vadd.f32 0.0, %v476
      %v478 = vpop.f32.mrf.mxu0
      %v479 = vadd.f32 0.0, %v478
      %480 = vmatmul.bf16.gmra.mxu0 %v372
      %v481 = vpop.f32.mrf.mxu0
      %v482 = vadd.f32 0.0, %v481
      %v483 = vpop.f32.mrf.mxu0
      %v484 = vadd.f32 0.0, %v483
      %485 = vmatmul.bf16.gmra.mxu0 %v373
      %v486 = vpop.f32.mrf.mxu0
      %v487 = vadd.f32 0.0, %v486
      %v488 = vpop.f32.mrf.mxu0
      %v489 = vadd.f32 0.0, %v488
      %490 = vmatmul.bf16.gmra.mxu0 %v374
      %v491 = vpop.f32.mrf.mxu0
      %v492 = vadd.f32 0.0, %v491
      %v493 = vpop.f32.mrf.mxu0
      %v494 = vadd.f32 0.0, %v493
      %495 = vmatmul.bf16.gmra.mxu0 %v375
      %v496 = vpop.f32.mrf.mxu0
      %v497 = vadd.f32 0.0, %v496
      %v498 = vpop.f32.mrf.mxu0
      %v499 = vadd.f32 0.0, %v498
      %500 = vmatmul.bf16.gmra.mxu0 %v376
      %v501 = vpop.f32.mrf.mxu0
      %v502 = vadd.f32 0.0, %v501
      %v503 = vpop.f32.mrf.mxu0
      %v504 = vadd.f32 0.0, %v503
      %505 = vmatmul.bf16.gmra.mxu0 %v377
      %v506 = vpop.f32.mrf.mxu0
      %v507 = vadd.f32 0.0, %v506
      %v508 = vpop.f32.mrf.mxu0
      %v509 = vadd.f32 0.0, %v508
      %510 = vmatmul.bf16.gmra.mxu0 %v378
      %v511 = vpop.f32.mrf.mxu0
      %v512 = vadd.f32 0.0, %v511
      %v513 = vpop.f32.mrf.mxu0
      %v514 = vadd.f32 0.0, %v513
      %515 = vmatmul.bf16.gmra.mxu0 %v379
      %v516 = vpop.f32.mrf.mxu0
      %v517 = vadd.f32 0.0, %v516
      %v518 = vpop.f32.mrf.mxu0
      %v519 = vadd.f32 0.0, %v518
      %520 = vmatmul.bf16.gmra.mxu0 %v380
      %v521 = vpop.f32.mrf.mxu0
      %v522 = vadd.f32 0.0, %v521
      %v523 = vpop.f32.mrf.mxu0
      %v524 = vadd.f32 0.0, %v523
      %525 = vmatmul.bf16.gmra.mxu0 %v381
      %v526 = vpop.f32.mrf.mxu0
      %v527 = vadd.f32 0.0, %v526
      %v528 = vpop.f32.mrf.mxu0
      %v529 = vadd.f32 0.0, %v528
      %530 = vmatmul.bf16.gmra.mxu0 %v382
      %v531 = vpop.f32.mrf.mxu0
      %v532 = vadd.f32 0.0, %v531
      %v533 = vpop.f32.mrf.mxu0
      %v534 = vadd.f32 0.0, %v533
      %535 = vdwg.mxu0
      %v536 = vpack.c.bf16 %v459, %v457
      %v537 = vpack.c.bf16 %v464, %v462
      %v538 = vpack.c.bf16 %v469, %v467
      %v539 = vpack.c.bf16 %v474, %v472
      %v540 = vpack.c.bf16 %v479, %v477
      %v541 = vpack.c.bf16 %v484, %v482
      %v542 = vpack.c.bf16 %v489, %v487
      %v543 = vpack.c.bf16 %v494, %v492
      %v544 = vpack.c.bf16 %v499, %v497
      %v545 = vpack.c.bf16 %v504, %v502
      %v546 = vpack.c.bf16 %v509, %v507
      %v547 = vpack.c.bf16 %v514, %v512
      %v548 = vpack.c.bf16 %v519, %v517
      %v549 = vpack.c.bf16 %v524, %v522
      %v550 = vpack.c.bf16 %v529, %v527
      %v551 = vpack.c.bf16 %v534, %v532
      %v552 = vld [vmem:[%s1] sm:$0xf]
      %v553 = vld [vmem:[%s1 + $0x4] sm:$0xf]
      %v554 = vld [vmem:[%s1 + $0x8] sm:$0xf]
      %v555 = vld [vmem:[%s1 + $0xc] sm:$0xf]
      %v556 = vld [vmem:[%s1 + $0x10] sm:$0xf]
      %v557 = vld [vmem:[%s1 + $0x14] sm:$0xf]
      %v558 = vld [vmem:[%s1 + $0x18] sm:$0xf]
      %v559 = vld [vmem:[%s1 + $0x1c] sm:$0xf]
      %v560 = vld [vmem:[%s1 + $0x20] sm:$0xf]
      %v561 = vld [vmem:[%s1 + $0x24] sm:$0xf]
      %v562 = vld [vmem:[%s1 + $0x28] sm:$0xf]
      %v563 = vld [vmem:[%s1 + $0x2c] sm:$0xf]
      %v564 = vld [vmem:[%s1 + $0x30] sm:$0xf]
      %v565 = vld [vmem:[%s1 + $0x34] sm:$0xf]
      %v566 = vld [vmem:[%s1 + $0x38] sm:$0xf]
      %v567 = vld [vmem:[%s1 + $0x3c] sm:$0xf]
      %v568 = vld [vmem:[%s1 + $0x40] sm:$0xf]
      %v569 = vld [vmem:[%s1 + $0x44] sm:$0xf]
      %v570 = vld [vmem:[%s1 + $0x48] sm:$0xf]
      %v571 = vld [vmem:[%s1 + $0x4c] sm:$0xf]
      %v572 = vld [vmem:[%s1 + $0x50] sm:$0xf]
      %v573 = vld [vmem:[%s1 + $0x54] sm:$0xf]
      %v574 = vld [vmem:[%s1 + $0x58] sm:$0xf]
      %v575 = vld [vmem:[%s1 + $0x5c] sm:$0xf]
      %v576 = vld [vmem:[%s1 + $0x60] sm:$0xf]
      %v577 = vld [vmem:[%s1 + $0x64] sm:$0xf]
      %v578 = vld [vmem:[%s1 + $0x68] sm:$0xf]
      %v579 = vld [vmem:[%s1 + $0x6c] sm:$0xf]
      %v580 = vld [vmem:[%s1 + $0x70] sm:$0xf]
      %v581 = vld [vmem:[%s1 + $0x74] sm:$0xf]
      %v582 = vld [vmem:[%s1 + $0x78] sm:$0xf]
      %v583 = vld [vmem:[%s1 + $0x7c] sm:$0xf]
      %v584 = vld [vmem:[%s1 + $0x80] sm:$0xf]
      %v585 = vld [vmem:[%s1 + $0x84] sm:$0xf]
      %v586 = vld [vmem:[%s1 + $0x88] sm:$0xf]
      %v587 = vld [vmem:[%s1 + $0x8c] sm:$0xf]
      %v588 = vld [vmem:[%s1 + $0x90] sm:$0xf]
      %v589 = vld [vmem:[%s1 + $0x94] sm:$0xf]
      %v590 = vld [vmem:[%s1 + $0x98] sm:$0xf]
      %v591 = vld [vmem:[%s1 + $0x9c] sm:$0xf]
      %v592 = vld [vmem:[%s1 + $0xa0] sm:$0xf]
      %v593 = vld [vmem:[%s1 + $0xa4] sm:$0xf]
      %v594 = vld [vmem:[%s1 + $0xa8] sm:$0xf]
      %v595 = vld [vmem:[%s1 + $0xac] sm:$0xf]
      %v596 = vld [vmem:[%s1 + $0xb0] sm:$0xf]
      %v597 = vld [vmem:[%s1 + $0xb4] sm:$0xf]
      %v598 = vld [vmem:[%s1 + $0xb8] sm:$0xf]
      %v599 = vld [vmem:[%s1 + $0xbc] sm:$0xf]
      %v600 = vld [vmem:[%s1 + $0xc0] sm:$0xf]
      %v601 = vld [vmem:[%s1 + $0xc4] sm:$0xf]
      %v602 = vld [vmem:[%s1 + $0xc8] sm:$0xf]
      %v603 = vld [vmem:[%s1 + $0xcc] sm:$0xf]
      %v604 = vld [vmem:[%s1 + $0xd0] sm:$0xf]
      %v605 = vld [vmem:[%s1 + $0xd4] sm:$0xf]
      %v606 = vld [vmem:[%s1 + $0xd8] sm:$0xf]
      %v607 = vld [vmem:[%s1 + $0xdc] sm:$0xf]
      %v608 = vld [vmem:[%s1 + $0xe0] sm:$0xf]
      %v609 = vld [vmem:[%s1 + $0xe4] sm:$0xf]
      %v610 = vld [vmem:[%s1 + $0xe8] sm:$0xf]
      %v611 = vld [vmem:[%s1 + $0xec] sm:$0xf]
      %v612 = vld [vmem:[%s1 + $0xf0] sm:$0xf]
      %v613 = vld [vmem:[%s1 + $0xf4] sm:$0xf]
      %v614 = vld [vmem:[%s1 + $0xf8] sm:$0xf]
      %v615 = vld [vmem:[%s1 + $0xfc] sm:$0xf]
      %v680 = vunpack.c.l.b16 %v552
      %v681 = vunpack.c.l.b16 %v553
      %v682 = vunpack.c.l.b16 %v554
      %v683 = vunpack.c.l.b16 %v555
      %v684 = vunpack.c.l.b16 %v556
      %v685 = vunpack.c.l.b16 %v557
      %v686 = vunpack.c.l.b16 %v558
      %v687 = vunpack.c.l.b16 %v559
      %v688 = vunpack.c.l.b16 %v560
      %v689 = vunpack.c.l.b16 %v561
      %v690 = vunpack.c.l.b16 %v562
      %v691 = vunpack.c.l.b16 %v563
      %v692 = vunpack.c.l.b16 %v564
      %v693 = vunpack.c.l.b16 %v565
      %v694 = vunpack.c.l.b16 %v566
      %v695 = vunpack.c.l.b16 %v567
      %v696 = vunpack.c.l.b16 %v568
      %v697 = vunpack.c.l.b16 %v569
      %v698 = vunpack.c.l.b16 %v570
      %v699 = vunpack.c.l.b16 %v571
      %v700 = vunpack.c.l.b16 %v572
      %v701 = vunpack.c.l.b16 %v573
      %v702 = vunpack.c.l.b16 %v574
      %v703 = vunpack.c.l.b16 %v575
      %v704 = vunpack.c.l.b16 %v576
      %v705 = vunpack.c.l.b16 %v577
      %v706 = vunpack.c.l.b16 %v578
      %v707 = vunpack.c.l.b16 %v579
      %v708 = vunpack.c.l.b16 %v580
      %v709 = vunpack.c.l.b16 %v581
      %v710 = vunpack.c.l.b16 %v582
      %v711 = vunpack.c.l.b16 %v583
      %v712 = vunpack.c.l.b16 %v584
      %v713 = vunpack.c.l.b16 %v585
      %v714 = vunpack.c.l.b16 %v586
      %v715 = vunpack.c.l.b16 %v587
      %v716 = vunpack.c.l.b16 %v588
      %v717 = vunpack.c.l.b16 %v589
      %v718 = vunpack.c.l.b16 %v590
      %v719 = vunpack.c.l.b16 %v591
      %v720 = vunpack.c.l.b16 %v592
      %v721 = vunpack.c.l.b16 %v593
      %v722 = vunpack.c.l.b16 %v594
      %v723 = vunpack.c.l.b16 %v595
      %v724 = vunpack.c.l.b16 %v596
      %v725 = vunpack.c.l.b16 %v597
      %v726 = vunpack.c.l.b16 %v598
      %v727 = vunpack.c.l.b16 %v599
      %v728 = vunpack.c.l.b16 %v600
      %v729 = vunpack.c.l.b16 %v601
      %v730 = vunpack.c.l.b16 %v602
      %v731 = vunpack.c.l.b16 %v603
      %v732 = vunpack.c.l.b16 %v604
      %v733 = vunpack.c.l.b16 %v605
      %v734 = vunpack.c.l.b16 %v606
      %v735 = vunpack.c.l.b16 %v607
      %v736 = vunpack.c.l.b16 %v608
      %v737 = vunpack.c.l.b16 %v609
      %v738 = vunpack.c.l.b16 %v610
      %v739 = vunpack.c.l.b16 %v611
      %v740 = vunpack.c.l.b16 %v612
      %v741 = vunpack.c.l.b16 %v613
      %v742 = vunpack.c.l.b16 %v614
      %v743 = vunpack.c.l.b16 %v615
      %v744 = vpack.c.b16 %v681, %v680
      %v745 = vpack.c.b16 %v683, %v682
      %v746 = vpack.c.b16 %v685, %v684
      %v747 = vpack.c.b16 %v687, %v686
      %v748 = vpack.c.b16 %v689, %v688
      %v749 = vpack.c.b16 %v691, %v690
      %v750 = vpack.c.b16 %v693, %v692
      %v751 = vpack.c.b16 %v695, %v694
      %v752 = vpack.c.b16 %v697, %v696
      %v753 = vpack.c.b16 %v699, %v698
      %v754 = vpack.c.b16 %v701, %v700
      %v755 = vpack.c.b16 %v703, %v702
      %v756 = vpack.c.b16 %v705, %v704
      %v757 = vpack.c.b16 %v707, %v706
      %v758 = vpack.c.b16 %v709, %v708
      %v759 = vpack.c.b16 %v711, %v710
      %v760 = vpack.c.b16 %v713, %v712
      %v761 = vpack.c.b16 %v715, %v714
      %v762 = vpack.c.b16 %v717, %v716
      %v763 = vpack.c.b16 %v719, %v718
      %v764 = vpack.c.b16 %v721, %v720
      %v765 = vpack.c.b16 %v723, %v722
      %v766 = vpack.c.b16 %v725, %v724
      %v767 = vpack.c.b16 %v727, %v726
      %v768 = vpack.c.b16 %v729, %v728
      %v769 = vpack.c.b16 %v731, %v730
      %v770 = vpack.c.b16 %v733, %v732
      %v771 = vpack.c.b16 %v735, %v734
      %v772 = vpack.c.b16 %v737, %v736
      %v773 = vpack.c.b16 %v739, %v738
      %v774 = vpack.c.b16 %v741, %v740
      %v775 = vpack.c.b16 %v743, %v742
      %808 = vmatpush.bf16.msra.mxu0 %v438
      %809 = vmatpush.bf16.msra.mxu0 %v437
      %810 = vmatpush.bf16.msra.mxu0 %v436
      %811 = vmatpush.bf16.msra.mxu0 %v435
      %812 = vmatpush.bf16.msra.mxu0 %v434
      %813 = vmatpush.bf16.msra.mxu0 %v433
      %814 = vmatpush.bf16.msra.mxu0 %v432
      %815 = vmatpush.bf16.msra.mxu0 %v431
      %816 = vmatmul.bf16.gmra.mxu0 %v744
      %v817 = vpop.f32.mrf.mxu0
      %v818 = vadd.f32 0.0, %v817
      %v819 = vpop.f32.mrf.mxu0
      %v820 = vadd.f32 0.0, %v819
      %821 = vmatmul.bf16.gmra.mxu0 %v745
      %v822 = vpop.f32.mrf.mxu0
      %v823 = vadd.f32 0.0, %v822
      %v824 = vpop.f32.mrf.mxu0
      %v825 = vadd.f32 0.0, %v824
      %826 = vmatmul.bf16.gmra.mxu0 %v746
      %v827 = vpop.f32.mrf.mxu0
      %v828 = vadd.f32 0.0, %v827
      %v829 = vpop.f32.mrf.mxu0
      %v830 = vadd.f32 0.0, %v829
      %831 = vmatmul.bf16.gmra.mxu0 %v747
      %v832 = vpop.f32.mrf.mxu0
      %v833 = vadd.f32 0.0, %v832
      %v834 = vpop.f32.mrf.mxu0
      %v835 = vadd.f32 0.0, %v834
      %836 = vmatmul.bf16.gmra.mxu0 %v748
      %v837 = vpop.f32.mrf.mxu0
      %v838 = vadd.f32 0.0, %v837
      %v839 = vpop.f32.mrf.mxu0
      %v840 = vadd.f32 0.0, %v839
      %841 = vmatmul.bf16.gmra.mxu0 %v749
      %v842 = vpop.f32.mrf.mxu0
      %v843 = vadd.f32 0.0, %v842
      %v844 = vpop.f32.mrf.mxu0
      %v845 = vadd.f32 0.0, %v844
      %846 = vmatmul.bf16.gmra.mxu0 %v750
      %v847 = vpop.f32.mrf.mxu0
      %v848 = vadd.f32 0.0, %v847
      %v849 = vpop.f32.mrf.mxu0
      %v850 = vadd.f32 0.0, %v849
      %851 = vmatmul.bf16.gmra.mxu0 %v751
      %v852 = vpop.f32.mrf.mxu0
      %v853 = vadd.f32 0.0, %v852
      %v854 = vpop.f32.mrf.mxu0
      %v855 = vadd.f32 0.0, %v854
      %856 = vmatmul.bf16.gmra.mxu0 %v752
      %v857 = vpop.f32.mrf.mxu0
      %v858 = vadd.f32 0.0, %v857
      %v859 = vpop.f32.mrf.mxu0
      %v860 = vadd.f32 0.0, %v859
      %861 = vmatmul.bf16.gmra.mxu0 %v753
      %v862 = vpop.f32.mrf.mxu0
      %v863 = vadd.f32 0.0, %v862
      %v864 = vpop.f32.mrf.mxu0
      %v865 = vadd.f32 0.0, %v864
      %866 = vmatmul.bf16.gmra.mxu0 %v754
      %v867 = vpop.f32.mrf.mxu0
      %v868 = vadd.f32 0.0, %v867
      %v869 = vpop.f32.mrf.mxu0
      %v870 = vadd.f32 0.0, %v869
      %871 = vmatmul.bf16.gmra.mxu0 %v755
      %v872 = vpop.f32.mrf.mxu0
      %v873 = vadd.f32 0.0, %v872
      %v874 = vpop.f32.mrf.mxu0
      %v875 = vadd.f32 0.0, %v874
      %876 = vmatmul.bf16.gmra.mxu0 %v756
      %v877 = vpop.f32.mrf.mxu0
      %v878 = vadd.f32 0.0, %v877
      %v879 = vpop.f32.mrf.mxu0
      %v880 = vadd.f32 0.0, %v879
      %881 = vmatmul.bf16.gmra.mxu0 %v757
      %v882 = vpop.f32.mrf.mxu0
      %v883 = vadd.f32 0.0, %v882
      %v884 = vpop.f32.mrf.mxu0
      %v885 = vadd.f32 0.0, %v884
      %886 = vmatmul.bf16.gmra.mxu0 %v758
      %v887 = vpop.f32.mrf.mxu0
      %v888 = vadd.f32 0.0, %v887
      %v889 = vpop.f32.mrf.mxu0
      %v890 = vadd.f32 0.0, %v889
      %891 = vmatmul.bf16.gmra.mxu0 %v759
      %v892 = vpop.f32.mrf.mxu0
      %v893 = vadd.f32 0.0, %v892
      %v894 = vpop.f32.mrf.mxu0
      %v895 = vadd.f32 0.0, %v894
      %896 = vmatmul.bf16.gmra.mxu0 %v760
      %v897 = vpop.f32.mrf.mxu0
      %v898 = vadd.f32 0.0, %v897
      %v899 = vpop.f32.mrf.mxu0
      %v900 = vadd.f32 0.0, %v899
      %901 = vmatmul.bf16.gmra.mxu0 %v761
      %v902 = vpop.f32.mrf.mxu0
      %v903 = vadd.f32 0.0, %v902
      %v904 = vpop.f32.mrf.mxu0
      %v905 = vadd.f32 0.0, %v904
      %906 = vmatmul.bf16.gmra.mxu0 %v762
      %v907 = vpop.f32.mrf.mxu0
      %v908 = vadd.f32 0.0, %v907
      %v909 = vpop.f32.mrf.mxu0
      %v910 = vadd.f32 0.0, %v909
      %911 = vmatmul.bf16.gmra.mxu0 %v763
      %v912 = vpop.f32.mrf.mxu0
      %v913 = vadd.f32 0.0, %v912
      %v914 = vpop.f32.mrf.mxu0
      %v915 = vadd.f32 0.0, %v914
      %916 = vmatmul.bf16.gmra.mxu0 %v764
      %v917 = vpop.f32.mrf.mxu0
      %v918 = vadd.f32 0.0, %v917
      %v919 = vpop.f32.mrf.mxu0
      %v920 = vadd.f32 0.0, %v919
      %921 = vmatmul.bf16.gmra.mxu0 %v765
      %v922 = vpop.f32.mrf.mxu0
      %v923 = vadd.f32 0.0, %v922
      %v924 = vpop.f32.mrf.mxu0
      %v925 = vadd.f32 0.0, %v924
      %926 = vmatmul.bf16.gmra.mxu0 %v766
      %v927 = vpop.f32.mrf.mxu0
      %v928 = vadd.f32 0.0, %v927
      %v929 = vpop.f32.mrf.mxu0
      %v930 = vadd.f32 0.0, %v929
      %931 = vmatmul.bf16.gmra.mxu0 %v767
      %v932 = vpop.f32.mrf.mxu0
      %v933 = vadd.f32 0.0, %v932
      %v934 = vpop.f32.mrf.mxu0
      %v935 = vadd.f32 0.0, %v934
      %936 = vmatmul.bf16.gmra.mxu0 %v768
      %v937 = vpop.f32.mrf.mxu0
      %v938 = vadd.f32 0.0, %v937
      %v939 = vpop.f32.mrf.mxu0
      %v940 = vadd.f32 0.0, %v939
      %941 = vmatmul.bf16.gmra.mxu0 %v769
      %v942 = vpop.f32.mrf.mxu0
      %v943 = vadd.f32 0.0, %v942
      %v944 = vpop.f32.mrf.mxu0
      %v945 = vadd.f32 0.0, %v944
      %946 = vmatmul.bf16.gmra.mxu0 %v770
      %v947 = vpop.f32.mrf.mxu0
      %v948 = vadd.f32 0.0, %v947
      %v949 = vpop.f32.mrf.mxu0
      %v950 = vadd.f32 0.0, %v949
      %951 = vmatmul.bf16.gmra.mxu0 %v771
      %v952 = vpop.f32.mrf.mxu0
      %v953 = vadd.f32 0.0, %v952
      %v954 = vpop.f32.mrf.mxu0
      %v955 = vadd.f32 0.0, %v954
      %956 = vmatmul.bf16.gmra.mxu0 %v772
      %v957 = vpop.f32.mrf.mxu0
      %v958 = vadd.f32 0.0, %v957
      %v959 = vpop.f32.mrf.mxu0
      %v960 = vadd.f32 0.0, %v959
      %961 = vmatmul.bf16.gmra.mxu0 %v773
      %v962 = vpop.f32.mrf.mxu0
      %v963 = vadd.f32 0.0, %v962
      %v964 = vpop.f32.mrf.mxu0
      %v965 = vadd.f32 0.0, %v964
      %966 = vmatmul.bf16.gmra.mxu0 %v774
      %v967 = vpop.f32.mrf.mxu0
      %v968 = vadd.f32 0.0, %v967
      %v969 = vpop.f32.mrf.mxu0
      %v970 = vadd.f32 0.0, %v969
      %971 = vmatmul.bf16.gmra.mxu0 %v775
      %v972 = vpop.f32.mrf.mxu0
      %v973 = vadd.f32 0.0, %v972
      %v974 = vpop.f32.mrf.mxu0
      %v975 = vadd.f32 0.0, %v974
      %976 = vdwg.mxu0
      %v977 = vpack.c.bf16 %v820, %v818
      %v978 = vpack.c.bf16 %v825, %v823
      %v979 = vpack.c.bf16 %v830, %v828
      %v980 = vpack.c.bf16 %v835, %v833
      %v981 = vpack.c.bf16 %v840, %v838
      %v982 = vpack.c.bf16 %v845, %v843
      %v983 = vpack.c.bf16 %v850, %v848
      %v984 = vpack.c.bf16 %v855, %v853
      %v985 = vpack.c.bf16 %v860, %v858
      %v986 = vpack.c.bf16 %v865, %v863
      %v987 = vpack.c.bf16 %v870, %v868
      %v988 = vpack.c.bf16 %v875, %v873
      %v989 = vpack.c.bf16 %v880, %v878
      %v990 = vpack.c.bf16 %v885, %v883
      %v991 = vpack.c.bf16 %v890, %v888
      %v992 = vpack.c.bf16 %v895, %v893
      %v993 = vpack.c.bf16 %v900, %v898
      %v994 = vpack.c.bf16 %v905, %v903
      %v995 = vpack.c.bf16 %v910, %v908
      %v996 = vpack.c.bf16 %v915, %v913
      %v997 = vpack.c.bf16 %v920, %v918
      %v998 = vpack.c.bf16 %v925, %v923
      %v999 = vpack.c.bf16 %v930, %v928
      %v1000 = vpack.c.bf16 %v935, %v933
      %v1001 = vpack.c.bf16 %v940, %v938
      %v1002 = vpack.c.bf16 %v945, %v943
      %v1003 = vpack.c.bf16 %v950, %v948
      %v1004 = vpack.c.bf16 %v955, %v953
      %v1005 = vpack.c.bf16 %v960, %v958
      %v1006 = vpack.c.bf16 %v965, %v963
      %v1007 = vpack.c.bf16 %v970, %v968
      %v1008 = vpack.c.bf16 %v975, %v973
      %1009 = vmatpush.bf16.xpose.msra.mxu0 %v984
      %1010 = vmatpush.bf16.xpose.msra.mxu0 %v983
      %1011 = vmatpush.bf16.xpose.msra.mxu0 %v982
      %1012 = vmatpush.bf16.xpose.msra.mxu0 %v981
      %1013 = vmatpush.bf16.xpose.msra.mxu0 %v980
      %1014 = vmatpush.bf16.xpose.msra.mxu0 %v979
      %1015 = vmatpush.bf16.xpose.msra.mxu0 %v978
      %1016 = vmatpush.bf16.xpose.msra.mxu0 %v977
      %1017 = vmatmul.bf16.gmra.mxu0 %v536
      %v1018 = vpop.f32.mrf.mxu0
      %v1019 = vadd.f32 0.0, %v1018
      %v1020 = vpop.f32.mrf.mxu0
      %v1021 = vadd.f32 0.0, %v1020
      %1022 = vmatmul.bf16.gmra.mxu0 %v537
      %v1023 = vpop.f32.mrf.mxu0
      %v1024 = vadd.f32 0.0, %v1023
      %v1025 = vpop.f32.mrf.mxu0
      %v1026 = vadd.f32 0.0, %v1025
      %1027 = vmatmul.bf16.gmra.mxu0 %v538
      %v1028 = vpop.f32.mrf.mxu0
      %v1029 = vadd.f32 0.0, %v1028
      %v1030 = vpop.f32.mrf.mxu0
      %v1031 = vadd.f32 0.0, %v1030
      %1032 = vmatmul.bf16.gmra.mxu0 %v539
      %v1033 = vpop.f32.mrf.mxu0
      %v1034 = vadd.f32 0.0, %v1033
      %v1035 = vpop.f32.mrf.mxu0
      %v1036 = vadd.f32 0.0, %v1035
      %1037 = vmatmul.bf16.gmra.mxu0 %v540
      %v1038 = vpop.f32.mrf.mxu0
      %v1039 = vadd.f32 0.0, %v1038
      %v1040 = vpop.f32.mrf.mxu0
      %v1041 = vadd.f32 0.0, %v1040
      %1042 = vmatmul.bf16.gmra.mxu0 %v541
      %v1043 = vpop.f32.mrf.mxu0
      %v1044 = vadd.f32 0.0, %v1043
      %v1045 = vpop.f32.mrf.mxu0
      %v1046 = vadd.f32 0.0, %v1045
      %1047 = vmatmul.bf16.gmra.mxu0 %v542
      %v1048 = vpop.f32.mrf.mxu0
      %v1049 = vadd.f32 0.0, %v1048
      %v1050 = vpop.f32.mrf.mxu0
      %v1051 = vadd.f32 0.0, %v1050
      %1052 = vmatmul.bf16.gmra.mxu0 %v543
      %v1053 = vpop.f32.mrf.mxu0
      %v1054 = vadd.f32 0.0, %v1053
      %v1055 = vpop.f32.mrf.mxu0
      %v1056 = vadd.f32 0.0, %v1055
      %1057 = vmatmul.bf16.gmra.mxu0 %v544
      %v1058 = vpop.f32.mrf.mxu0
      %v1059 = vadd.f32 0.0, %v1058
      %v1060 = vpop.f32.mrf.mxu0
      %v1061 = vadd.f32 0.0, %v1060
      %1062 = vmatmul.bf16.gmra.mxu0 %v545
      %v1063 = vpop.f32.mrf.mxu0
      %v1064 = vadd.f32 0.0, %v1063
      %v1065 = vpop.f32.mrf.mxu0
      %v1066 = vadd.f32 0.0, %v1065
      %1067 = vmatmul.bf16.gmra.mxu0 %v546
      %v1068 = vpop.f32.mrf.mxu0
      %v1069 = vadd.f32 0.0, %v1068
      %v1070 = vpop.f32.mrf.mxu0
      %v1071 = vadd.f32 0.0, %v1070
      %1072 = vmatmul.bf16.gmra.mxu0 %v547
      %v1073 = vpop.f32.mrf.mxu0
      %v1074 = vadd.f32 0.0, %v1073
      %v1075 = vpop.f32.mrf.mxu0
      %v1076 = vadd.f32 0.0, %v1075
      %1077 = vmatmul.bf16.gmra.mxu0 %v548
      %v1078 = vpop.f32.mrf.mxu0
      %v1079 = vadd.f32 0.0, %v1078
      %v1080 = vpop.f32.mrf.mxu0
      %v1081 = vadd.f32 0.0, %v1080
      %1082 = vmatmul.bf16.gmra.mxu0 %v549
      %v1083 = vpop.f32.mrf.mxu0
      %v1084 = vadd.f32 0.0, %v1083
      %v1085 = vpop.f32.mrf.mxu0
      %v1086 = vadd.f32 0.0, %v1085
      %1087 = vmatmul.bf16.gmra.mxu0 %v550
      %v1088 = vpop.f32.mrf.mxu0
      %v1089 = vadd.f32 0.0, %v1088
      %v1090 = vpop.f32.mrf.mxu0
      %v1091 = vadd.f32 0.0, %v1090
      %1092 = vmatmul.bf16.gmra.mxu0 %v551
      %v1093 = vpop.f32.mrf.mxu0
      %v1094 = vadd.f32 0.0, %v1093
      %v1095 = vpop.f32.mrf.mxu0
      %v1096 = vadd.f32 0.0, %v1095
      %1097 = vdwg.mxu0
      %1098 = vmatpush.bf16.xpose.msra.mxu0 %v992
      %1099 = vmatpush.bf16.xpose.msra.mxu0 %v991
      %1100 = vmatpush.bf16.xpose.msra.mxu0 %v990
      %1101 = vmatpush.bf16.xpose.msra.mxu0 %v989
      %1102 = vmatpush.bf16.xpose.msra.mxu0 %v988
      %1103 = vmatpush.bf16.xpose.msra.mxu0 %v987
      %1104 = vmatpush.bf16.xpose.msra.mxu0 %v986
      %1105 = vmatpush.bf16.xpose.msra.mxu0 %v985
      %1106 = vmatmul.bf16.gmra.mxu0 %v536
      %v1107 = vpop.f32.mrf.mxu0
      %v1108 = vadd.f32 0.0, %v1107
      %v1109 = vpop.f32.mrf.mxu0
      %v1110 = vadd.f32 0.0, %v1109
      %1111 = vmatmul.bf16.gmra.mxu0 %v537
      %v1112 = vpop.f32.mrf.mxu0
      %v1113 = vadd.f32 0.0, %v1112
      %v1114 = vpop.f32.mrf.mxu0
      %v1115 = vadd.f32 0.0, %v1114
      %1116 = vmatmul.bf16.gmra.mxu0 %v538
      %v1117 = vpop.f32.mrf.mxu0
      %v1118 = vadd.f32 0.0, %v1117
      %v1119 = vpop.f32.mrf.mxu0
      %v1120 = vadd.f32 0.0, %v1119
      %1121 = vmatmul.bf16.gmra.mxu0 %v539
      %v1122 = vpop.f32.mrf.mxu0
      %v1123 = vadd.f32 0.0, %v1122
      %v1124 = vpop.f32.mrf.mxu0
      %v1125 = vadd.f32 0.0, %v1124
      %1126 = vmatmul.bf16.gmra.mxu0 %v540
      %v1127 = vpop.f32.mrf.mxu0
      %v1128 = vadd.f32 0.0, %v1127
      %v1129 = vpop.f32.mrf.mxu0
      %v1130 = vadd.f32 0.0, %v1129
      %1131 = vmatmul.bf16.gmra.mxu0 %v541
      %v1132 = vpop.f32.mrf.mxu0
      %v1133 = vadd.f32 0.0, %v1132
      %v1134 = vpop.f32.mrf.mxu0
      %v1135 = vadd.f32 0.0, %v1134
      %1136 = vmatmul.bf16.gmra.mxu0 %v542
      %v1137 = vpop.f32.mrf.mxu0
      %v1138 = vadd.f32 0.0, %v1137
      %v1139 = vpop.f32.mrf.mxu0
      %v1140 = vadd.f32 0.0, %v1139
      %1141 = vmatmul.bf16.gmra.mxu0 %v543
      %v1142 = vpop.f32.mrf.mxu0
      %v1143 = vadd.f32 0.0, %v1142
      %v1144 = vpop.f32.mrf.mxu0
      %v1145 = vadd.f32 0.0, %v1144
      %1146 = vmatmul.bf16.gmra.mxu0 %v544
      %v1147 = vpop.f32.mrf.mxu0
      %v1148 = vadd.f32 0.0, %v1147
      %v1149 = vpop.f32.mrf.mxu0
      %v1150 = vadd.f32 0.0, %v1149
      %1151 = vmatmul.bf16.gmra.mxu0 %v545
      %v1152 = vpop.f32.mrf.mxu0
      %v1153 = vadd.f32 0.0, %v1152
      %v1154 = vpop.f32.mrf.mxu0
      %v1155 = vadd.f32 0.0, %v1154
      %1156 = vmatmul.bf16.gmra.mxu0 %v546
      %v1157 = vpop.f32.mrf.mxu0
      %v1158 = vadd.f32 0.0, %v1157
      %v1159 = vpop.f32.mrf.mxu0
      %v1160 = vadd.f32 0.0, %v1159
      %1161 = vmatmul.bf16.gmra.mxu0 %v547
      %v1162 = vpop.f32.mrf.mxu0
      %v1163 = vadd.f32 0.0, %v1162
      %v1164 = vpop.f32.mrf.mxu0
      %v1165 = vadd.f32 0.0, %v1164
      %1166 = vmatmul.bf16.gmra.mxu0 %v548
      %v1167 = vpop.f32.mrf.mxu0
      %v1168 = vadd.f32 0.0, %v1167
      %v1169 = vpop.f32.mrf.mxu0
      %v1170 = vadd.f32 0.0, %v1169
      %1171 = vmatmul.bf16.gmra.mxu0 %v549
      %v1172 = vpop.f32.mrf.mxu0
      %v1173 = vadd.f32 0.0, %v1172
      %v1174 = vpop.f32.mrf.mxu0
      %v1175 = vadd.f32 0.0, %v1174
      %1176 = vmatmul.bf16.gmra.mxu0 %v550
      %v1177 = vpop.f32.mrf.mxu0
      %v1178 = vadd.f32 0.0, %v1177
      %v1179 = vpop.f32.mrf.mxu0
      %v1180 = vadd.f32 0.0, %v1179
      %1181 = vmatmul.bf16.gmra.mxu0 %v551
      %v1182 = vpop.f32.mrf.mxu0
      %v1183 = vadd.f32 0.0, %v1182
      %v1184 = vpop.f32.mrf.mxu0
      %v1185 = vadd.f32 0.0, %v1184
      %1186 = vdwg.mxu0
      %1187 = vmatpush.bf16.xpose.msra.mxu0 %v1000
      %1188 = vmatpush.bf16.xpose.msra.mxu0 %v999
      %1189 = vmatpush.bf16.xpose.msra.mxu0 %v998
      %1190 = vmatpush.bf16.xpose.msra.mxu0 %v997
      %1191 = vmatpush.bf16.xpose.msra.mxu0 %v996
      %1192 = vmatpush.bf16.xpose.msra.mxu0 %v995
      %1193 = vmatpush.bf16.xpose.msra.mxu0 %v994
      %1194 = vmatpush.bf16.xpose.msra.mxu0 %v993
      %1195 = vmatmul.bf16.gmra.mxu0 %v536
      %v1196 = vpop.f32.mrf.mxu0
      %v1197 = vadd.f32 0.0, %v1196
      %v1198 = vpop.f32.mrf.mxu0
      %v1199 = vadd.f32 0.0, %v1198
      %1200 = vmatmul.bf16.gmra.mxu0 %v537
      %v1201 = vpop.f32.mrf.mxu0
      %v1202 = vadd.f32 0.0, %v1201
      %v1203 = vpop.f32.mrf.mxu0
      %v1204 = vadd.f32 0.0, %v1203
      %1205 = vmatmul.bf16.gmra.mxu0 %v538
      %v1206 = vpop.f32.mrf.mxu0
      %v1207 = vadd.f32 0.0, %v1206
      %v1208 = vpop.f32.mrf.mxu0
      %v1209 = vadd.f32 0.0, %v1208
      %1210 = vmatmul.bf16.gmra.mxu0 %v539
      %v1211 = vpop.f32.mrf.mxu0
      %v1212 = vadd.f32 0.0, %v1211
      %v1213 = vpop.f32.mrf.mxu0
      %v1214 = vadd.f32 0.0, %v1213
      %1215 = vmatmul.bf16.gmra.mxu0 %v540
      %v1216 = vpop.f32.mrf.mxu0
      %v1217 = vadd.f32 0.0, %v1216
      %v1218 = vpop.f32.mrf.mxu0
      %v1219 = vadd.f32 0.0, %v1218
      %1220 = vmatmul.bf16.gmra.mxu0 %v541
      %v1221 = vpop.f32.mrf.mxu0
      %v1222 = vadd.f32 0.0, %v1221
      %v1223 = vpop.f32.mrf.mxu0
      %v1224 = vadd.f32 0.0, %v1223
      %1225 = vmatmul.bf16.gmra.mxu0 %v542
      %v1226 = vpop.f32.mrf.mxu0
      %v1227 = vadd.f32 0.0, %v1226
      %v1228 = vpop.f32.mrf.mxu0
      %v1229 = vadd.f32 0.0, %v1228
      %1230 = vmatmul.bf16.gmra.mxu0 %v543
      %v1231 = vpop.f32.mrf.mxu0
      %v1232 = vadd.f32 0.0, %v1231
      %v1233 = vpop.f32.mrf.mxu0
      %v1234 = vadd.f32 0.0, %v1233
      %1235 = vmatmul.bf16.gmra.mxu0 %v544
      %v1236 = vpop.f32.mrf.mxu0
      %v1237 = vadd.f32 0.0, %v1236
      %v1238 = vpop.f32.mrf.mxu0
      %v1239 = vadd.f32 0.0, %v1238
      %1240 = vmatmul.bf16.gmra.mxu0 %v545
      %v1241 = vpop.f32.mrf.mxu0
      %v1242 = vadd.f32 0.0, %v1241
      %v1243 = vpop.f32.mrf.mxu0
      %v1244 = vadd.f32 0.0, %v1243
      %1245 = vmatmul.bf16.gmra.mxu0 %v546
      %v1246 = vpop.f32.mrf.mxu0
      %v1247 = vadd.f32 0.0, %v1246
      %v1248 = vpop.f32.mrf.mxu0
      %v1249 = vadd.f32 0.0, %v1248
      %1250 = vmatmul.bf16.gmra.mxu0 %v547
      %v1251 = vpop.f32.mrf.mxu0
      %v1252 = vadd.f32 0.0, %v1251
      %v1253 = vpop.f32.mrf.mxu0
      %v1254 = vadd.f32 0.0, %v1253
      %1255 = vmatmul.bf16.gmra.mxu0 %v548
      %v1256 = vpop.f32.mrf.mxu0
      %v1257 = vadd.f32 0.0, %v1256
      %v1258 = vpop.f32.mrf.mxu0
      %v1259 = vadd.f32 0.0, %v1258
      %1260 = vmatmul.bf16.gmra.mxu0 %v549
      %v1261 = vpop.f32.mrf.mxu0
      %v1262 = vadd.f32 0.0, %v1261
      %v1263 = vpop.f32.mrf.mxu0
      %v1264 = vadd.f32 0.0, %v1263
      %1265 = vmatmul.bf16.gmra.mxu0 %v550
      %v1266 = vpop.f32.mrf.mxu0
      %v1267 = vadd.f32 0.0, %v1266
      %v1268 = vpop.f32.mrf.mxu0
      %v1269 = vadd.f32 0.0, %v1268
      %1270 = vmatmul.bf16.gmra.mxu0 %v551
      %v1271 = vpop.f32.mrf.mxu0
      %v1272 = vadd.f32 0.0, %v1271
      %v1273 = vpop.f32.mrf.mxu0
      %v1274 = vadd.f32 0.0, %v1273
      %1275 = vdwg.mxu0
      %1276 = vmatpush.bf16.xpose.msra.mxu0 %v1008
      %1277 = vmatpush.bf16.xpose.msra.mxu0 %v1007
      %1278 = vmatpush.bf16.xpose.msra.mxu0 %v1006
      %1279 = vmatpush.bf16.xpose.msra.mxu0 %v1005
      %1280 = vmatpush.bf16.xpose.msra.mxu0 %v1004
      %1281 = vmatpush.bf16.xpose.msra.mxu0 %v1003
      %1282 = vmatpush.bf16.xpose.msra.mxu0 %v1002
      %1283 = vmatpush.bf16.xpose.msra.mxu0 %v1001
      %1284 = vmatmul.bf16.gmra.mxu0 %v536
      %v1285 = vpop.f32.mrf.mxu0
      %v1286 = vadd.f32 0.0, %v1285
      %v1287 = vpop.f32.mrf.mxu0
      %v1288 = vadd.f32 0.0, %v1287
      %1289 = vmatmul.bf16.gmra.mxu0 %v537
      %v1290 = vpop.f32.mrf.mxu0
      %v1291 = vadd.f32 0.0, %v1290
      %v1292 = vpop.f32.mrf.mxu0
      %v1293 = vadd.f32 0.0, %v1292
      %1294 = vmatmul.bf16.gmra.mxu0 %v538
      %v1295 = vpop.f32.mrf.mxu0
      %v1296 = vadd.f32 0.0, %v1295
      %v1297 = vpop.f32.mrf.mxu0
      %v1298 = vadd.f32 0.0, %v1297
      %1299 = vmatmul.bf16.gmra.mxu0 %v539
      %v1300 = vpop.f32.mrf.mxu0
      %v1301 = vadd.f32 0.0, %v1300
      %v1302 = vpop.f32.mrf.mxu0
      %v1303 = vadd.f32 0.0, %v1302
      %1304 = vmatmul.bf16.gmra.mxu0 %v540
      %v1305 = vpop.f32.mrf.mxu0
      %v1306 = vadd.f32 0.0, %v1305
      %v1307 = vpop.f32.mrf.mxu0
      %v1308 = vadd.f32 0.0, %v1307
      %1309 = vmatmul.bf16.gmra.mxu0 %v541
      %v1310 = vpop.f32.mrf.mxu0
      %v1311 = vadd.f32 0.0, %v1310
      %v1312 = vpop.f32.mrf.mxu0
      %v1313 = vadd.f32 0.0, %v1312
      %1314 = vmatmul.bf16.gmra.mxu0 %v542
      %v1315 = vpop.f32.mrf.mxu0
      %v1316 = vadd.f32 0.0, %v1315
      %v1317 = vpop.f32.mrf.mxu0
      %v1318 = vadd.f32 0.0, %v1317
      %1319 = vmatmul.bf16.gmra.mxu0 %v543
      %v1320 = vpop.f32.mrf.mxu0
      %v1321 = vadd.f32 0.0, %v1320
      %v1322 = vpop.f32.mrf.mxu0
      %v1323 = vadd.f32 0.0, %v1322
      %1324 = vmatmul.bf16.gmra.mxu0 %v544
      %v1325 = vpop.f32.mrf.mxu0
      %v1326 = vadd.f32 0.0, %v1325
      %v1327 = vpop.f32.mrf.mxu0
      %v1328 = vadd.f32 0.0, %v1327
      %1329 = vmatmul.bf16.gmra.mxu0 %v545
      %v1330 = vpop.f32.mrf.mxu0
      %v1331 = vadd.f32 0.0, %v1330
      %v1332 = vpop.f32.mrf.mxu0
      %v1333 = vadd.f32 0.0, %v1332
      %1334 = vmatmul.bf16.gmra.mxu0 %v546
      %v1335 = vpop.f32.mrf.mxu0
      %v1336 = vadd.f32 0.0, %v1335
      %v1337 = vpop.f32.mrf.mxu0
      %v1338 = vadd.f32 0.0, %v1337
      %1339 = vmatmul.bf16.gmra.mxu0 %v547
      %v1340 = vpop.f32.mrf.mxu0
      %v1341 = vadd.f32 0.0, %v1340
      %v1342 = vpop.f32.mrf.mxu0
      %v1343 = vadd.f32 0.0, %v1342
      %1344 = vmatmul.bf16.gmra.mxu0 %v548
      %v1345 = vpop.f32.mrf.mxu0
      %v1346 = vadd.f32 0.0, %v1345
      %v1347 = vpop.f32.mrf.mxu0
      %v1348 = vadd.f32 0.0, %v1347
      %1349 = vmatmul.bf16.gmra.mxu0 %v549
      %v1350 = vpop.f32.mrf.mxu0
      %v1351 = vadd.f32 0.0, %v1350
      %v1352 = vpop.f32.mrf.mxu0
      %v1353 = vadd.f32 0.0, %v1352
      %1354 = vmatmul.bf16.gmra.mxu0 %v550
      %v1355 = vpop.f32.mrf.mxu0
      %v1356 = vadd.f32 0.0, %v1355
      %v1357 = vpop.f32.mrf.mxu0
      %v1358 = vadd.f32 0.0, %v1357
      %1359 = vmatmul.bf16.gmra.mxu0 %v551
      %v1360 = vpop.f32.mrf.mxu0
      %v1361 = vadd.f32 0.0, %v1360
      %v1362 = vpop.f32.mrf.mxu0
      %v1363 = vadd.f32 0.0, %v1362
      %1364 = vdwg.mxu0
      %v1365 = vld [vmem:[%s245] sm:$0xff]
      %v1366 = vld [vmem:[%s245 + $0x8] sm:$0xff]
      %v1367 = vld [vmem:[%s245 + $0x10] sm:$0xff]
      %v1368 = vld [vmem:[%s245 + $0x18] sm:$0xff]
      %v1369 = vld [vmem:[%s245 + $0x20] sm:$0xff]
      %v1370 = vld [vmem:[%s245 + $0x28] sm:$0xff]
      %v1371 = vld [vmem:[%s245 + $0x30] sm:$0xff]
      %v1372 = vld [vmem:[%s245 + $0x38] sm:$0xff]
      %v1373 = vld [vmem:[%s245 + $0x40] sm:$0xff]
      %v1374 = vld [vmem:[%s245 + $0x48] sm:$0xff]
      %v1375 = vld [vmem:[%s245 + $0x50] sm:$0xff]
      %v1376 = vld [vmem:[%s245 + $0x58] sm:$0xff]
      %v1377 = vld [vmem:[%s245 + $0x60] sm:$0xff]
      %v1378 = vld [vmem:[%s245 + $0x68] sm:$0xff]
      %v1379 = vld [vmem:[%s245 + $0x70] sm:$0xff]
      %v1380 = vld [vmem:[%s245 + $0x78] sm:$0xff]
      %v1381 = vld [vmem:[%s245 + $0x80] sm:$0xff]
      %v1382 = vld [vmem:[%s245 + $0x88] sm:$0xff]
      %v1383 = vld [vmem:[%s245 + $0x90] sm:$0xff]
      %v1384 = vld [vmem:[%s245 + $0x98] sm:$0xff]
      %v1385 = vld [vmem:[%s245 + $0xa0] sm:$0xff]
      %v1386 = vld [vmem:[%s245 + $0xa8] sm:$0xff]
      %v1387 = vld [vmem:[%s245 + $0xb0] sm:$0xff]
      %v1388 = vld [vmem:[%s245 + $0xb8] sm:$0xff]
      %v1389 = vld [vmem:[%s245 + $0xc0] sm:$0xff]
      %v1390 = vld [vmem:[%s245 + $0xc8] sm:$0xff]
      %v1391 = vld [vmem:[%s245 + $0xd0] sm:$0xff]
      %v1392 = vld [vmem:[%s245 + $0xd8] sm:$0xff]
      %v1393 = vld [vmem:[%s245 + $0xe0] sm:$0xff]
      %v1394 = vld [vmem:[%s245 + $0xe8] sm:$0xff]
      %v1395 = vld [vmem:[%s245 + $0xf0] sm:$0xff]
      %v1396 = vld [vmem:[%s245 + $0xf8] sm:$0xff]
      %vm1397 = vnez %v1365
      %vm1398 = vnez %v1366
      %vm1399 = vnez %v1367
      %vm1400 = vnez %v1368
      %vm1401 = vnez %v1369
      %vm1402 = vnez %v1370
      %vm1403 = vnez %v1371
      %vm1404 = vnez %v1372
      %vm1405 = vnez %v1373
      %vm1406 = vnez %v1374
      %vm1407 = vnez %v1375
      %vm1408 = vnez %v1376
      %vm1409 = vnez %v1377
      %vm1410 = vnez %v1378
      %vm1411 = vnez %v1379
      %vm1412 = vnez %v1380
      %vm1413 = vnez %v1381
      %vm1414 = vnez %v1382
      %vm1415 = vnez %v1383
      %vm1416 = vnez %v1384
      %vm1417 = vnez %v1385
      %vm1418 = vnez %v1386
      %vm1419 = vnez %v1387
      %vm1420 = vnez %v1388
      %vm1421 = vnez %v1389
      %vm1422 = vnez %v1390
      %vm1423 = vnez %v1391
      %vm1424 = vnez %v1392
      %vm1425 = vnez %v1393
      %vm1426 = vnez %v1394
      %vm1427 = vnez %v1395
      %vm1428 = vnez %v1396
      %v1429 = vsel %vm1397, 16843009, 0
      %v1430 = vsel %vm1398, 16843009, 0
      %v1431 = vsel %vm1399, 16843009, 0
      %v1432 = vsel %vm1400, 16843009, 0
      %v1433 = vsel %vm1401, 16843009, 0
      %v1434 = vsel %vm1402, 16843009, 0
      %v1435 = vsel %vm1403, 16843009, 0
      %v1436 = vsel %vm1404, 16843009, 0
      %v1437 = vsel %vm1405, 16843009, 0
      %v1438 = vsel %vm1406, 16843009, 0
      %v1439 = vsel %vm1407, 16843009, 0
      %v1440 = vsel %vm1408, 16843009, 0
      %v1441 = vsel %vm1409, 16843009, 0
      %v1442 = vsel %vm1410, 16843009, 0
      %v1443 = vsel %vm1411, 16843009, 0
      %v1444 = vsel %vm1412, 16843009, 0
      %v1445 = vsel %vm1413, 16843009, 0
      %v1446 = vsel %vm1414, 16843009, 0
      %v1447 = vsel %vm1415, 16843009, 0
      %v1448 = vsel %vm1416, 16843009, 0
      %v1449 = vsel %vm1417, 16843009, 0
      %v1450 = vsel %vm1418, 16843009, 0
      %v1451 = vsel %vm1419, 16843009, 0
      %v1452 = vsel %vm1420, 16843009, 0
      %v1453 = vsel %vm1421, 16843009, 0
      %v1454 = vsel %vm1422, 16843009, 0
      %v1455 = vsel %vm1423, 16843009, 0
      %v1456 = vsel %vm1424, 16843009, 0
      %v1457 = vsel %vm1425, 16843009, 0
      %v1458 = vsel %vm1426, 16843009, 0
      %v1459 = vsel %vm1427, 16843009, 0
      %v1460 = vsel %vm1428, 16843009, 0
      %v1461 = vunpack.c.0.s8 %v1429
      %v1462 = vunpack.c.0.s8 %v1430
      %v1463 = vunpack.c.0.s8 %v1431
      %v1464 = vunpack.c.0.s8 %v1432
      %v1465 = vunpack.c.1.s8 %v1429
      %v1466 = vunpack.c.1.s8 %v1430
      %v1467 = vunpack.c.1.s8 %v1431
      %v1468 = vunpack.c.1.s8 %v1432
      %v1469 = vunpack.c.2.s8 %v1429
      %v1470 = vunpack.c.2.s8 %v1430
      %v1471 = vunpack.c.2.s8 %v1431
      %v1472 = vunpack.c.2.s8 %v1432
      %v1473 = vunpack.c.3.s8 %v1429
      %v1474 = vunpack.c.3.s8 %v1430
      %v1475 = vunpack.c.3.s8 %v1431
      %v1476 = vunpack.c.3.s8 %v1432
      %v1477 = vunpack.c.0.s8 %v1433
      %v1478 = vunpack.c.0.s8 %v1434
      %v1479 = vunpack.c.0.s8 %v1435
      %v1480 = vunpack.c.0.s8 %v1436
      %v1481 = vunpack.c.1.s8 %v1433
      %v1482 = vunpack.c.1.s8 %v1434
      %v1483 = vunpack.c.1.s8 %v1435
      %v1484 = vunpack.c.1.s8 %v1436
      %v1485 = vunpack.c.2.s8 %v1433
      %v1486 = vunpack.c.2.s8 %v1434
      %v1487 = vunpack.c.2.s8 %v1435
      %v1488 = vunpack.c.2.s8 %v1436
      %v1489 = vunpack.c.3.s8 %v1433
      %v1490 = vunpack.c.3.s8 %v1434
      %v1491 = vunpack.c.3.s8 %v1435
      %v1492 = vunpack.c.3.s8 %v1436
      %v1493 = vunpack.c.0.s8 %v1437
      %v1494 = vunpack.c.0.s8 %v1438
      %v1495 = vunpack.c.0.s8 %v1439
      %v1496 = vunpack.c.0.s8 %v1440
      %v1497 = vunpack.c.1.s8 %v1437
      %v1498 = vunpack.c.1.s8 %v1438
      %v1499 = vunpack.c.1.s8 %v1439
      %v1500 = vunpack.c.1.s8 %v1440
      %v1501 = vunpack.c.2.s8 %v1437
      %v1502 = vunpack.c.2.s8 %v1438
      %v1503 = vunpack.c.2.s8 %v1439
      %v1504 = vunpack.c.2.s8 %v1440
      %v1505 = vunpack.c.3.s8 %v1437
      %v1506 = vunpack.c.3.s8 %v1438
      %v1507 = vunpack.c.3.s8 %v1439
      %v1508 = vunpack.c.3.s8 %v1440
      %v1509 = vunpack.c.0.s8 %v1441
      %v1510 = vunpack.c.0.s8 %v1442
      %v1511 = vunpack.c.0.s8 %v1443
      %v1512 = vunpack.c.0.s8 %v1444
      %v1513 = vunpack.c.1.s8 %v1441
      %v1514 = vunpack.c.1.s8 %v1442
      %v1515 = vunpack.c.1.s8 %v1443
      %v1516 = vunpack.c.1.s8 %v1444
      %v1517 = vunpack.c.2.s8 %v1441
      %v1518 = vunpack.c.2.s8 %v1442
      %v1519 = vunpack.c.2.s8 %v1443
      %v1520 = vunpack.c.2.s8 %v1444
      %v1521 = vunpack.c.3.s8 %v1441
      %v1522 = vunpack.c.3.s8 %v1442
      %v1523 = vunpack.c.3.s8 %v1443
      %v1524 = vunpack.c.3.s8 %v1444
      %v1525 = vunpack.c.0.s8 %v1445
      %v1526 = vunpack.c.0.s8 %v1446
      %v1527 = vunpack.c.0.s8 %v1447
      %v1528 = vunpack.c.0.s8 %v1448
      %v1529 = vunpack.c.1.s8 %v1445
      %v1530 = vunpack.c.1.s8 %v1446
      %v1531 = vunpack.c.1.s8 %v1447
      %v1532 = vunpack.c.1.s8 %v1448
      %v1533 = vunpack.c.2.s8 %v1445
      %v1534 = vunpack.c.2.s8 %v1446
      %v1535 = vunpack.c.2.s8 %v1447
      %v1536 = vunpack.c.2.s8 %v1448
      %v1537 = vunpack.c.3.s8 %v1445
      %v1538 = vunpack.c.3.s8 %v1446
      %v1539 = vunpack.c.3.s8 %v1447
      %v1540 = vunpack.c.3.s8 %v1448
      %v1541 = vunpack.c.0.s8 %v1449
      %v1542 = vunpack.c.0.s8 %v1450
      %v1543 = vunpack.c.0.s8 %v1451
      %v1544 = vunpack.c.0.s8 %v1452
      %v1545 = vunpack.c.1.s8 %v1449
      %v1546 = vunpack.c.1.s8 %v1450
      %v1547 = vunpack.c.1.s8 %v1451
      %v1548 = vunpack.c.1.s8 %v1452
      %v1549 = vunpack.c.2.s8 %v1449
      %v1550 = vunpack.c.2.s8 %v1450
      %v1551 = vunpack.c.2.s8 %v1451
      %v1552 = vunpack.c.2.s8 %v1452
      %v1553 = vunpack.c.3.s8 %v1449
      %v1554 = vunpack.c.3.s8 %v1450
      %v1555 = vunpack.c.3.s8 %v1451
      %v1556 = vunpack.c.3.s8 %v1452
      %v1557 = vunpack.c.0.s8 %v1453
      %v1558 = vunpack.c.0.s8 %v1454
      %v1559 = vunpack.c.0.s8 %v1455
      %v1560 = vunpack.c.0.s8 %v1456
      %v1561 = vunpack.c.1.s8 %v1453
      %v1562 = vunpack.c.1.s8 %v1454
      %v1563 = vunpack.c.1.s8 %v1455
      %v1564 = vunpack.c.1.s8 %v1456
      %v1565 = vunpack.c.2.s8 %v1453
      %v1566 = vunpack.c.2.s8 %v1454
      %v1567 = vunpack.c.2.s8 %v1455
      %v1568 = vunpack.c.2.s8 %v1456
      %v1569 = vunpack.c.3.s8 %v1453
      %v1570 = vunpack.c.3.s8 %v1454
      %v1571 = vunpack.c.3.s8 %v1455
      %v1572 = vunpack.c.3.s8 %v1456
      %v1573 = vunpack.c.0.s8 %v1457
      %v1574 = vunpack.c.0.s8 %v1458
      %v1575 = vunpack.c.0.s8 %v1459
      %v1576 = vunpack.c.0.s8 %v1460
      %v1577 = vunpack.c.1.s8 %v1457
      %v1578 = vunpack.c.1.s8 %v1458
      %v1579 = vunpack.c.1.s8 %v1459
      %v1580 = vunpack.c.1.s8 %v1460
      %v1581 = vunpack.c.2.s8 %v1457
      %v1582 = vunpack.c.2.s8 %v1458
      %v1583 = vunpack.c.2.s8 %v1459
      %v1584 = vunpack.c.2.s8 %v1460
      %v1585 = vunpack.c.3.s8 %v1457
      %v1586 = vunpack.c.3.s8 %v1458
      %v1587 = vunpack.c.3.s8 %v1459
      %v1588 = vunpack.c.3.s8 %v1460
      %v1589 = vpack.c.b16 %v1462, %v1461
      %v1590 = vpack.c.b16 %v1464, %v1463
      %v1591 = vpack.c.b8 %v1590, %v1589
      %v1592 = vpack.c.b16 %v1466, %v1465
      %v1593 = vpack.c.b16 %v1468, %v1467
      %v1594 = vpack.c.b8 %v1593, %v1592
      %v1595 = vpack.c.b16 %v1470, %v1469
      %v1596 = vpack.c.b16 %v1472, %v1471
      %v1597 = vpack.c.b8 %v1596, %v1595
      %v1598 = vpack.c.b16 %v1474, %v1473
      %v1599 = vpack.c.b16 %v1476, %v1475
      %v1600 = vpack.c.b8 %v1599, %v1598
      %v1601 = vpack.c.b16 %v1478, %v1477
      %v1602 = vpack.c.b16 %v1480, %v1479
      %v1603 = vpack.c.b8 %v1602, %v1601
      %v1604 = vpack.c.b16 %v1482, %v1481
      %v1605 = vpack.c.b16 %v1484, %v1483
      %v1606 = vpack.c.b8 %v1605, %v1604
      %v1607 = vpack.c.b16 %v1486, %v1485
      %v1608 = vpack.c.b16 %v1488, %v1487
      %v1609 = vpack.c.b8 %v1608, %v1607
      %v1610 = vpack.c.b16 %v1490, %v1489
      %v1611 = vpack.c.b16 %v1492, %v1491
      %v1612 = vpack.c.b8 %v1611, %v1610
      %v1613 = vpack.c.b16 %v1494, %v1493
      %v1614 = vpack.c.b16 %v1496, %v1495
      %v1615 = vpack.c.b8 %v1614, %v1613
      %v1616 = vpack.c.b16 %v1498, %v1497
      %v1617 = vpack.c.b16 %v1500, %v1499
      %v1618 = vpack.c.b8 %v1617, %v1616
      %v1619 = vpack.c.b16 %v1502, %v1501
      %v1620 = vpack.c.b16 %v1504, %v1503
      %v1621 = vpack.c.b8 %v1620, %v1619
      %v1622 = vpack.c.b16 %v1506, %v1505
      %v1623 = vpack.c.b16 %v1508, %v1507
      %v1624 = vpack.c.b8 %v1623, %v1622
      %v1625 = vpack.c.b16 %v1510, %v1509
      %v1626 = vpack.c.b16 %v1512, %v1511
      %v1627 = vpack.c.b8 %v1626, %v1625
      %v1628 = vpack.c.b16 %v1514, %v1513
      %v1629 = vpack.c.b16 %v1516, %v1515
      %v1630 = vpack.c.b8 %v1629, %v1628
      %v1631 = vpack.c.b16 %v1518, %v1517
      %v1632 = vpack.c.b16 %v1520, %v1519
      %v1633 = vpack.c.b8 %v1632, %v1631
      %v1634 = vpack.c.b16 %v1522, %v1521
      %v1635 = vpack.c.b16 %v1524, %v1523
      %v1636 = vpack.c.b8 %v1635, %v1634
      %v1637 = vpack.c.b16 %v1526, %v1525
      %v1638 = vpack.c.b16 %v1528, %v1527
      %v1639 = vpack.c.b8 %v1638, %v1637
      %v1640 = vpack.c.b16 %v1530, %v1529
      %v1641 = vpack.c.b16 %v1532, %v1531
      %v1642 = vpack.c.b8 %v1641, %v1640
      %v1643 = vpack.c.b16 %v1534, %v1533
      %v1644 = vpack.c.b16 %v1536, %v1535
      %v1645 = vpack.c.b8 %v1644, %v1643
      %v1646 = vpack.c.b16 %v1538, %v1537
      %v1647 = vpack.c.b16 %v1540, %v1539
      %v1648 = vpack.c.b8 %v1647, %v1646
      %v1649 = vpack.c.b16 %v1542, %v1541
      %v1650 = vpack.c.b16 %v1544, %v1543
      %v1651 = vpack.c.b8 %v1650, %v1649
      %v1652 = vpack.c.b16 %v1546, %v1545
      %v1653 = vpack.c.b16 %v1548, %v1547
      %v1654 = vpack.c.b8 %v1653, %v1652
      %v1655 = vpack.c.b16 %v1550, %v1549
      %v1656 = vpack.c.b16 %v1552, %v1551
      %v1657 = vpack.c.b8 %v1656, %v1655
      %v1658 = vpack.c.b16 %v1554, %v1553
      %v1659 = vpack.c.b16 %v1556, %v1555
      %v1660 = vpack.c.b8 %v1659, %v1658
      %v1661 = vpack.c.b16 %v1558, %v1557
      %v1662 = vpack.c.b16 %v1560, %v1559
      %v1663 = vpack.c.b8 %v1662, %v1661
      %v1664 = vpack.c.b16 %v1562, %v1561
      %v1665 = vpack.c.b16 %v1564, %v1563
      %v1666 = vpack.c.b8 %v1665, %v1664
      %v1667 = vpack.c.b16 %v1566, %v1565
      %v1668 = vpack.c.b16 %v1568, %v1567
      %v1669 = vpack.c.b8 %v1668, %v1667
      %v1670 = vpack.c.b16 %v1570, %v1569
      %v1671 = vpack.c.b16 %v1572, %v1571
      %v1672 = vpack.c.b8 %v1671, %v1670
      %v1673 = vpack.c.b16 %v1574, %v1573
      %v1674 = vpack.c.b16 %v1576, %v1575
      %v1675 = vpack.c.b8 %v1674, %v1673
      %v1676 = vpack.c.b16 %v1578, %v1577
      %v1677 = vpack.c.b16 %v1580, %v1579
      %v1678 = vpack.c.b8 %v1677, %v1676
      %v1679 = vpack.c.b16 %v1582, %v1581
      %v1680 = vpack.c.b16 %v1584, %v1583
      %v1681 = vpack.c.b8 %v1680, %v1679
      %v1682 = vpack.c.b16 %v1586, %v1585
      %v1683 = vpack.c.b16 %v1588, %v1587
      %v1684 = vpack.c.b8 %v1683, %v1682
      %vm1685 = vnez %v1591
      %vm1686 = vnez %v1594
      %vm1687 = vnez %v1597
      %vm1688 = vnez %v1600
      %vm1689 = vnez %v1603
      %vm1690 = vnez %v1606
      %vm1691 = vnez %v1609
      %vm1692 = vnez %v1612
      %vm1693 = vnez %v1615
      %vm1694 = vnez %v1618
      %vm1695 = vnez %v1621
      %vm1696 = vnez %v1624
      %vm1697 = vnez %v1627
      %vm1698 = vnez %v1630
      %vm1699 = vnez %v1633
      %vm1700 = vnez %v1636
      %vm1701 = vnez %v1639
      %vm1702 = vnez %v1642
      %vm1703 = vnez %v1645
      %vm1704 = vnez %v1648
      %vm1705 = vnez %v1651
      %vm1706 = vnez %v1654
      %vm1707 = vnez %v1657
      %vm1708 = vnez %v1660
      %vm1709 = vnez %v1663
      %vm1710 = vnez %v1666
      %vm1711 = vnez %v1669
      %vm1712 = vnez %v1672
      %vm1713 = vnez %v1675
      %vm1714 = vnez %v1678
      %vm1715 = vnez %v1681
      %vm1716 = vnez %v1684
      %v1717 = vsel %vm1685, 16843009, 0
      %v1718 = vsel %vm1686, 16843009, 0
      %v1719 = vsel %vm1687, 16843009, 0
      %v1720 = vsel %vm1688, 16843009, 0
      %v1721 = vsel %vm1689, 16843009, 0
      %v1722 = vsel %vm1690, 16843009, 0
      %v1723 = vsel %vm1691, 16843009, 0
      %v1724 = vsel %vm1692, 16843009, 0
      %v1725 = vsel %vm1693, 16843009, 0
      %v1726 = vsel %vm1694, 16843009, 0
      %v1727 = vsel %vm1695, 16843009, 0
      %v1728 = vsel %vm1696, 16843009, 0
      %v1729 = vsel %vm1697, 16843009, 0
      %v1730 = vsel %vm1698, 16843009, 0
      %v1731 = vsel %vm1699, 16843009, 0
      %v1732 = vsel %vm1700, 16843009, 0
      %v1733 = vsel %vm1701, 16843009, 0
      %v1734 = vsel %vm1702, 16843009, 0
      %v1735 = vsel %vm1703, 16843009, 0
      %v1736 = vsel %vm1704, 16843009, 0
      %v1737 = vsel %vm1705, 16843009, 0
      %v1738 = vsel %vm1706, 16843009, 0
      %v1739 = vsel %vm1707, 16843009, 0
      %v1740 = vsel %vm1708, 16843009, 0
      %v1741 = vsel %vm1709, 16843009, 0
      %v1742 = vsel %vm1710, 16843009, 0
      %v1743 = vsel %vm1711, 16843009, 0
      %v1744 = vsel %vm1712, 16843009, 0
      %v1745 = vsel %vm1713, 16843009, 0
      %v1746 = vsel %vm1714, 16843009, 0
      %v1747 = vsel %vm1715, 16843009, 0
      %v1748 = vsel %vm1716, 16843009, 0
      %v1749 = vunpack.c.0.s8 %v1717
      %v1750 = vunpack.c.1.s8 %v1717
      %v1751 = vunpack.c.2.s8 %v1717
      %v1752 = vunpack.c.3.s8 %v1717
      %v1753 = vunpack.c.0.s8 %v1718
      %v1754 = vunpack.c.1.s8 %v1718
      %v1755 = vunpack.c.2.s8 %v1718
      %v1756 = vunpack.c.3.s8 %v1718
      %v1757 = vunpack.c.0.s8 %v1719
      %v1758 = vunpack.c.1.s8 %v1719
      %v1759 = vunpack.c.2.s8 %v1719
      %v1760 = vunpack.c.3.s8 %v1719
      %v1761 = vunpack.c.0.s8 %v1720
      %v1762 = vunpack.c.1.s8 %v1720
      %v1763 = vunpack.c.2.s8 %v1720
      %v1764 = vunpack.c.3.s8 %v1720
      %v1765 = vunpack.c.0.s8 %v1721
      %v1766 = vunpack.c.1.s8 %v1721
      %v1767 = vunpack.c.2.s8 %v1721
      %v1768 = vunpack.c.3.s8 %v1721
      %v1769 = vunpack.c.0.s8 %v1722
      %v1770 = vunpack.c.1.s8 %v1722
      %v1771 = vunpack.c.2.s8 %v1722
      %v1772 = vunpack.c.3.s8 %v1722
      %v1773 = vunpack.c.0.s8 %v1723
      %v1774 = vunpack.c.1.s8 %v1723
      %v1775 = vunpack.c.2.s8 %v1723
      %v1776 = vunpack.c.3.s8 %v1723
      %v1777 = vunpack.c.0.s8 %v1724
      %v1778 = vunpack.c.1.s8 %v1724
      %v1779 = vunpack.c.2.s8 %v1724
      %v1780 = vunpack.c.3.s8 %v1724
      %v1781 = vunpack.c.0.s8 %v1725
      %v1782 = vunpack.c.1.s8 %v1725
      %v1783 = vunpack.c.2.s8 %v1725
      %v1784 = vunpack.c.3.s8 %v1725
      %v1785 = vunpack.c.0.s8 %v1726
      %v1786 = vunpack.c.1.s8 %v1726
      %v1787 = vunpack.c.2.s8 %v1726
      %v1788 = vunpack.c.3.s8 %v1726
      %v1789 = vunpack.c.0.s8 %v1727
      %v1790 = vunpack.c.1.s8 %v1727
      %v1791 = vunpack.c.2.s8 %v1727
      %v1792 = vunpack.c.3.s8 %v1727
      %v1793 = vunpack.c.0.s8 %v1728
      %v1794 = vunpack.c.1.s8 %v1728
      %v1795 = vunpack.c.2.s8 %v1728
      %v1796 = vunpack.c.3.s8 %v1728
      %v1797 = vunpack.c.0.s8 %v1729
      %v1798 = vunpack.c.1.s8 %v1729
      %v1799 = vunpack.c.2.s8 %v1729
      %v1800 = vunpack.c.3.s8 %v1729
      %v1801 = vunpack.c.0.s8 %v1730
      %v1802 = vunpack.c.1.s8 %v1730
      %v1803 = vunpack.c.2.s8 %v1730
      %v1804 = vunpack.c.3.s8 %v1730
      %v1805 = vunpack.c.0.s8 %v1731
      %v1806 = vunpack.c.1.s8 %v1731
      %v1807 = vunpack.c.2.s8 %v1731
      %v1808 = vunpack.c.3.s8 %v1731
      %v1809 = vunpack.c.0.s8 %v1732
      %v1810 = vunpack.c.1.s8 %v1732
      %v1811 = vunpack.c.2.s8 %v1732
      %v1812 = vunpack.c.3.s8 %v1732
      %v1813 = vunpack.c.0.s8 %v1733
      %v1814 = vunpack.c.1.s8 %v1733
      %v1815 = vunpack.c.2.s8 %v1733
      %v1816 = vunpack.c.3.s8 %v1733
      %v1817 = vunpack.c.0.s8 %v1734
      %v1818 = vunpack.c.1.s8 %v1734
      %v1819 = vunpack.c.2.s8 %v1734
      %v1820 = vunpack.c.3.s8 %v1734
      %v1821 = vunpack.c.0.s8 %v1735
      %v1822 = vunpack.c.1.s8 %v1735
      %v1823 = vunpack.c.2.s8 %v1735
      %v1824 = vunpack.c.3.s8 %v1735
      %v1825 = vunpack.c.0.s8 %v1736
      %v1826 = vunpack.c.1.s8 %v1736
      %v1827 = vunpack.c.2.s8 %v1736
      %v1828 = vunpack.c.3.s8 %v1736
      %v1829 = vunpack.c.0.s8 %v1737
      %v1830 = vunpack.c.1.s8 %v1737
      %v1831 = vunpack.c.2.s8 %v1737
      %v1832 = vunpack.c.3.s8 %v1737
      %v1833 = vunpack.c.0.s8 %v1738
      %v1834 = vunpack.c.1.s8 %v1738
      %v1835 = vunpack.c.2.s8 %v1738
      %v1836 = vunpack.c.3.s8 %v1738
      %v1837 = vunpack.c.0.s8 %v1739
      %v1838 = vunpack.c.1.s8 %v1739
      %v1839 = vunpack.c.2.s8 %v1739
      %v1840 = vunpack.c.3.s8 %v1739
      %v1841 = vunpack.c.0.s8 %v1740
      %v1842 = vunpack.c.1.s8 %v1740
      %v1843 = vunpack.c.2.s8 %v1740
      %v1844 = vunpack.c.3.s8 %v1740
      %v1845 = vunpack.c.0.s8 %v1741
      %v1846 = vunpack.c.1.s8 %v1741
      %v1847 = vunpack.c.2.s8 %v1741
      %v1848 = vunpack.c.3.s8 %v1741
      %v1849 = vunpack.c.0.s8 %v1742
      %v1850 = vunpack.c.1.s8 %v1742
      %v1851 = vunpack.c.2.s8 %v1742
      %v1852 = vunpack.c.3.s8 %v1742
      %v1853 = vunpack.c.0.s8 %v1743
      %v1854 = vunpack.c.1.s8 %v1743
      %v1855 = vunpack.c.2.s8 %v1743
      %v1856 = vunpack.c.3.s8 %v1743
      %v1857 = vunpack.c.0.s8 %v1744
      %v1858 = vunpack.c.1.s8 %v1744
      %v1859 = vunpack.c.2.s8 %v1744
      %v1860 = vunpack.c.3.s8 %v1744
      %v1861 = vunpack.c.0.s8 %v1745
      %v1862 = vunpack.c.1.s8 %v1745
      %v1863 = vunpack.c.2.s8 %v1745
      %v1864 = vunpack.c.3.s8 %v1745
      %v1865 = vunpack.c.0.s8 %v1746
      %v1866 = vunpack.c.1.s8 %v1746
      %v1867 = vunpack.c.2.s8 %v1746
      %v1868 = vunpack.c.3.s8 %v1746
      %v1869 = vunpack.c.0.s8 %v1747
      %v1870 = vunpack.c.1.s8 %v1747
      %v1871 = vunpack.c.2.s8 %v1747
      %v1872 = vunpack.c.3.s8 %v1747
      %v1873 = vunpack.c.0.s8 %v1748
      %v1874 = vunpack.c.1.s8 %v1748
      %v1875 = vunpack.c.2.s8 %v1748
      %v1876 = vunpack.c.3.s8 %v1748
      %vm1877 = vcmp.ne.s32.totalorder %v1749, 0
      %vm1878 = vcmp.ne.s32.totalorder %v1750, 0
      %vm1879 = vcmp.ne.s32.totalorder %v1751, 0
      %vm1880 = vcmp.ne.s32.totalorder %v1752, 0
      %vm1881 = vcmp.ne.s32.totalorder %v1753, 0
      %vm1882 = vcmp.ne.s32.totalorder %v1754, 0
      %vm1883 = vcmp.ne.s32.totalorder %v1755, 0
      %vm1884 = vcmp.ne.s32.totalorder %v1756, 0
      %vm1885 = vcmp.ne.s32.totalorder %v1757, 0
      %vm1886 = vcmp.ne.s32.totalorder %v1758, 0
      %vm1887 = vcmp.ne.s32.totalorder %v1759, 0
      %vm1888 = vcmp.ne.s32.totalorder %v1760, 0
      %vm1889 = vcmp.ne.s32.totalorder %v1761, 0
      %vm1890 = vcmp.ne.s32.totalorder %v1762, 0
      %vm1891 = vcmp.ne.s32.totalorder %v1763, 0
      %vm1892 = vcmp.ne.s32.totalorder %v1764, 0
      %vm1893 = vcmp.ne.s32.totalorder %v1765, 0
      %vm1894 = vcmp.ne.s32.totalorder %v1766, 0
      %vm1895 = vcmp.ne.s32.totalorder %v1767, 0
      %vm1896 = vcmp.ne.s32.totalorder %v1768, 0
      %vm1897 = vcmp.ne.s32.totalorder %v1769, 0
      %vm1898 = vcmp.ne.s32.totalorder %v1770, 0
      %vm1899 = vcmp.ne.s32.totalorder %v1771, 0
      %vm1900 = vcmp.ne.s32.totalorder %v1772, 0
      %vm1901 = vcmp.ne.s32.totalorder %v1773, 0
      %vm1902 = vcmp.ne.s32.totalorder %v1774, 0
      %vm1903 = vcmp.ne.s32.totalorder %v1775, 0
      %vm1904 = vcmp.ne.s32.totalorder %v1776, 0
      %vm1905 = vcmp.ne.s32.totalorder %v1777, 0
      %vm1906 = vcmp.ne.s32.totalorder %v1778, 0
      %vm1907 = vcmp.ne.s32.totalorder %v1779, 0
      %vm1908 = vcmp.ne.s32.totalorder %v1780, 0
      %vm1909 = vcmp.ne.s32.totalorder %v1781, 0
      %vm1910 = vcmp.ne.s32.totalorder %v1782, 0
      %vm1911 = vcmp.ne.s32.totalorder %v1783, 0
      %vm1912 = vcmp.ne.s32.totalorder %v1784, 0
      %vm1913 = vcmp.ne.s32.totalorder %v1785, 0
      %vm1914 = vcmp.ne.s32.totalorder %v1786, 0
      %vm1915 = vcmp.ne.s32.totalorder %v1787, 0
      %vm1916 = vcmp.ne.s32.totalorder %v1788, 0
      %vm1917 = vcmp.ne.s32.totalorder %v1789, 0
      %vm1918 = vcmp.ne.s32.totalorder %v1790, 0
      %vm1919 = vcmp.ne.s32.totalorder %v1791, 0
      %vm1920 = vcmp.ne.s32.totalorder %v1792, 0
      %vm1921 = vcmp.ne.s32.totalorder %v1793, 0
      %vm1922 = vcmp.ne.s32.totalorder %v1794, 0
      %vm1923 = vcmp.ne.s32.totalorder %v1795, 0
      %vm1924 = vcmp.ne.s32.totalorder %v1796, 0
      %vm1925 = vcmp.ne.s32.totalorder %v1797, 0
      %vm1926 = vcmp.ne.s32.totalorder %v1798, 0
      %vm1927 = vcmp.ne.s32.totalorder %v1799, 0
      %vm1928 = vcmp.ne.s32.totalorder %v1800, 0
      %vm1929 = vcmp.ne.s32.totalorder %v1801, 0
      %vm1930 = vcmp.ne.s32.totalorder %v1802, 0
      %vm1931 = vcmp.ne.s32.totalorder %v1803, 0
      %vm1932 = vcmp.ne.s32.totalorder %v1804, 0
      %vm1933 = vcmp.ne.s32.totalorder %v1805, 0
      %vm1934 = vcmp.ne.s32.totalorder %v1806, 0
      %vm1935 = vcmp.ne.s32.totalorder %v1807, 0
      %vm1936 = vcmp.ne.s32.totalorder %v1808, 0
      %vm1937 = vcmp.ne.s32.totalorder %v1809, 0
      %vm1938 = vcmp.ne.s32.totalorder %v1810, 0
      %vm1939 = vcmp.ne.s32.totalorder %v1811, 0
      %vm1940 = vcmp.ne.s32.totalorder %v1812, 0
      %vm1941 = vcmp.ne.s32.totalorder %v1813, 0
      %vm1942 = vcmp.ne.s32.totalorder %v1814, 0
      %vm1943 = vcmp.ne.s32.totalorder %v1815, 0
      %vm1944 = vcmp.ne.s32.totalorder %v1816, 0
      %vm1945 = vcmp.ne.s32.totalorder %v1817, 0
      %vm1946 = vcmp.ne.s32.totalorder %v1818, 0
      %vm1947 = vcmp.ne.s32.totalorder %v1819, 0
      %vm1948 = vcmp.ne.s32.totalorder %v1820, 0
      %vm1949 = vcmp.ne.s32.totalorder %v1821, 0
      %vm1950 = vcmp.ne.s32.totalorder %v1822, 0
      %vm1951 = vcmp.ne.s32.totalorder %v1823, 0
      %vm1952 = vcmp.ne.s32.totalorder %v1824, 0
      %vm1953 = vcmp.ne.s32.totalorder %v1825, 0
      %vm1954 = vcmp.ne.s32.totalorder %v1826, 0
      %vm1955 = vcmp.ne.s32.totalorder %v1827, 0
      %vm1956 = vcmp.ne.s32.totalorder %v1828, 0
      %vm1957 = vcmp.ne.s32.totalorder %v1829, 0
      %vm1958 = vcmp.ne.s32.totalorder %v1830, 0
      %vm1959 = vcmp.ne.s32.totalorder %v1831, 0
      %vm1960 = vcmp.ne.s32.totalorder %v1832, 0
      %vm1961 = vcmp.ne.s32.totalorder %v1833, 0
      %vm1962 = vcmp.ne.s32.totalorder %v1834, 0
      %vm1963 = vcmp.ne.s32.totalorder %v1835, 0
      %vm1964 = vcmp.ne.s32.totalorder %v1836, 0
      %vm1965 = vcmp.ne.s32.totalorder %v1837, 0
      %vm1966 = vcmp.ne.s32.totalorder %v1838, 0
      %vm1967 = vcmp.ne.s32.totalorder %v1839, 0
      %vm1968 = vcmp.ne.s32.totalorder %v1840, 0
      %vm1969 = vcmp.ne.s32.totalorder %v1841, 0
      %vm1970 = vcmp.ne.s32.totalorder %v1842, 0
      %vm1971 = vcmp.ne.s32.totalorder %v1843, 0
      %vm1972 = vcmp.ne.s32.totalorder %v1844, 0
      %vm1973 = vcmp.ne.s32.totalorder %v1845, 0
      %vm1974 = vcmp.ne.s32.totalorder %v1846, 0
      %vm1975 = vcmp.ne.s32.totalorder %v1847, 0
      %vm1976 = vcmp.ne.s32.totalorder %v1848, 0
      %vm1977 = vcmp.ne.s32.totalorder %v1849, 0
      %vm1978 = vcmp.ne.s32.totalorder %v1850, 0
      %vm1979 = vcmp.ne.s32.totalorder %v1851, 0
      %vm1980 = vcmp.ne.s32.totalorder %v1852, 0
      %vm1981 = vcmp.ne.s32.totalorder %v1853, 0
      %vm1982 = vcmp.ne.s32.totalorder %v1854, 0
      %vm1983 = vcmp.ne.s32.totalorder %v1855, 0
      %vm1984 = vcmp.ne.s32.totalorder %v1856, 0
      %vm1985 = vcmp.ne.s32.totalorder %v1857, 0
      %vm1986 = vcmp.ne.s32.totalorder %v1858, 0
      %vm1987 = vcmp.ne.s32.totalorder %v1859, 0
      %vm1988 = vcmp.ne.s32.totalorder %v1860, 0
      %vm1989 = vcmp.ne.s32.totalorder %v1861, 0
      %vm1990 = vcmp.ne.s32.totalorder %v1862, 0
      %vm1991 = vcmp.ne.s32.totalorder %v1863, 0
      %vm1992 = vcmp.ne.s32.totalorder %v1864, 0
      %vm1993 = vcmp.ne.s32.totalorder %v1865, 0
      %vm1994 = vcmp.ne.s32.totalorder %v1866, 0
      %vm1995 = vcmp.ne.s32.totalorder %v1867, 0
      %vm1996 = vcmp.ne.s32.totalorder %v1868, 0
      %vm1997 = vcmp.ne.s32.totalorder %v1869, 0
      %vm1998 = vcmp.ne.s32.totalorder %v1870, 0
      %vm1999 = vcmp.ne.s32.totalorder %v1871, 0
      %vm2000 = vcmp.ne.s32.totalorder %v1872, 0
      %vm2001 = vcmp.ne.s32.totalorder %v1873, 0
      %vm2002 = vcmp.ne.s32.totalorder %v1874, 0
      %vm2003 = vcmp.ne.s32.totalorder %v1875, 0
      %vm2004 = vcmp.ne.s32.totalorder %v1876, 0
      %v2005 = vsel %vm1877, %v1019, -9e+15
      %v2006 = vsel %vm1878, %v1108, -9e+15
      %v2007 = vsel %vm1879, %v1197, -9e+15
      %v2008 = vsel %vm1880, %v1286, -9e+15
      %v2009 = vsel %vm1881, %v1021, -9e+15
      %v2010 = vsel %vm1882, %v1110, -9e+15
      %v2011 = vsel %vm1883, %v1199, -9e+15
      %v2012 = vsel %vm1884, %v1288, -9e+15
      %v2013 = vsel %vm1885, %v1024, -9e+15
      %v2014 = vsel %vm1886, %v1113, -9e+15
      %v2015 = vsel %vm1887, %v1202, -9e+15
      %v2016 = vsel %vm1888, %v1291, -9e+15
      %v2017 = vsel %vm1889, %v1026, -9e+15
      %v2018 = vsel %vm1890, %v1115, -9e+15
      %v2019 = vsel %vm1891, %v1204, -9e+15
      %v2020 = vsel %vm1892, %v1293, -9e+15
      %v2021 = vsel %vm1893, %v1029, -9e+15
      %v2022 = vsel %vm1894, %v1118, -9e+15
      %v2023 = vsel %vm1895, %v1207, -9e+15
      %v2024 = vsel %vm1896, %v1296, -9e+15
      %v2025 = vsel %vm1897, %v1031, -9e+15
      %v2026 = vsel %vm1898, %v1120, -9e+15
      %v2027 = vsel %vm1899, %v1209, -9e+15
      %v2028 = vsel %vm1900, %v1298, -9e+15
      %v2029 = vsel %vm1901, %v1034, -9e+15
      %v2030 = vsel %vm1902, %v1123, -9e+15
      %v2031 = vsel %vm1903, %v1212, -9e+15
      %v2032 = vsel %vm1904, %v1301, -9e+15
      %v2033 = vsel %vm1905, %v1036, -9e+15
      %v2034 = vsel %vm1906, %v1125, -9e+15
      %v2035 = vsel %vm1907, %v1214, -9e+15
      %v2036 = vsel %vm1908, %v1303, -9e+15
      %v2037 = vsel %vm1909, %v1039, -9e+15
      %v2038 = vsel %vm1910, %v1128, -9e+15
      %v2039 = vsel %vm1911, %v1217, -9e+15
      %v2040 = vsel %vm1912, %v1306, -9e+15
      %v2041 = vsel %vm1913, %v1041, -9e+15
      %v2042 = vsel %vm1914, %v1130, -9e+15
      %v2043 = vsel %vm1915, %v1219, -9e+15
      %v2044 = vsel %vm1916, %v1308, -9e+15
      %v2045 = vsel %vm1917, %v1044, -9e+15
      %v2046 = vsel %vm1918, %v1133, -9e+15
      %v2047 = vsel %vm1919, %v1222, -9e+15
      %v2048 = vsel %vm1920, %v1311, -9e+15
      %v2049 = vsel %vm1921, %v1046, -9e+15
      %v2050 = vsel %vm1922, %v1135, -9e+15
      %v2051 = vsel %vm1923, %v1224, -9e+15
      %v2052 = vsel %vm1924, %v1313, -9e+15
      %v2053 = vsel %vm1925, %v1049, -9e+15
      %v2054 = vsel %vm1926, %v1138, -9e+15
      %v2055 = vsel %vm1927, %v1227, -9e+15
      %v2056 = vsel %vm1928, %v1316, -9e+15
      %v2057 = vsel %vm1929, %v1051, -9e+15
      %v2058 = vsel %vm1930, %v1140, -9e+15
      %v2059 = vsel %vm1931, %v1229, -9e+15
      %v2060 = vsel %vm1932, %v1318, -9e+15
      %v2061 = vsel %vm1933, %v1054, -9e+15
      %v2062 = vsel %vm1934, %v1143, -9e+15
      %v2063 = vsel %vm1935, %v1232, -9e+15
      %v2064 = vsel %vm1936, %v1321, -9e+15
      %v2065 = vsel %vm1937, %v1056, -9e+15
      %v2066 = vsel %vm1938, %v1145, -9e+15
      %v2067 = vsel %vm1939, %v1234, -9e+15
      %v2068 = vsel %vm1940, %v1323, -9e+15
      %v2069 = vsel %vm1941, %v1059, -9e+15
      %v2070 = vsel %vm1942, %v1148, -9e+15
      %v2071 = vsel %vm1943, %v1237, -9e+15
      %v2072 = vsel %vm1944, %v1326, -9e+15
      %v2073 = vsel %vm1945, %v1061, -9e+15
      %v2074 = vsel %vm1946, %v1150, -9e+15
      %v2075 = vsel %vm1947, %v1239, -9e+15
      %v2076 = vsel %vm1948, %v1328, -9e+15
      %v2077 = vsel %vm1949, %v1064, -9e+15
      %v2078 = vsel %vm1950, %v1153, -9e+15
      %v2079 = vsel %vm1951, %v1242, -9e+15
      %v2080 = vsel %vm1952, %v1331, -9e+15
      %v2081 = vsel %vm1953, %v1066, -9e+15
      %v2082 = vsel %vm1954, %v1155, -9e+15
      %v2083 = vsel %vm1955, %v1244, -9e+15
      %v2084 = vsel %vm1956, %v1333, -9e+15
      %v2085 = vsel %vm1957, %v1069, -9e+15
      %v2086 = vsel %vm1958, %v1158, -9e+15
      %v2087 = vsel %vm1959, %v1247, -9e+15
      %v2088 = vsel %vm1960, %v1336, -9e+15
      %v2089 = vsel %vm1961, %v1071, -9e+15
      %v2090 = vsel %vm1962, %v1160, -9e+15
      %v2091 = vsel %vm1963, %v1249, -9e+15
      %v2092 = vsel %vm1964, %v1338, -9e+15
      %v2093 = vsel %vm1965, %v1074, -9e+15
      %v2094 = vsel %vm1966, %v1163, -9e+15
      %v2095 = vsel %vm1967, %v1252, -9e+15
      %v2096 = vsel %vm1968, %v1341, -9e+15
      %v2097 = vsel %vm1969, %v1076, -9e+15
      %v2098 = vsel %vm1970, %v1165, -9e+15
      %v2099 = vsel %vm1971, %v1254, -9e+15
      %v2100 = vsel %vm1972, %v1343, -9e+15
      %v2101 = vsel %vm1973, %v1079, -9e+15
      %v2102 = vsel %vm1974, %v1168, -9e+15
      %v2103 = vsel %vm1975, %v1257, -9e+15
      %v2104 = vsel %vm1976, %v1346, -9e+15
      %v2105 = vsel %vm1977, %v1081, -9e+15
      %v2106 = vsel %vm1978, %v1170, -9e+15
      %v2107 = vsel %vm1979, %v1259, -9e+15
      %v2108 = vsel %vm1980, %v1348, -9e+15
      %v2109 = vsel %vm1981, %v1084, -9e+15
      %v2110 = vsel %vm1982, %v1173, -9e+15
      %v2111 = vsel %vm1983, %v1262, -9e+15
      %v2112 = vsel %vm1984, %v1351, -9e+15
      %v2113 = vsel %vm1985, %v1086, -9e+15
      %v2114 = vsel %vm1986, %v1175, -9e+15
      %v2115 = vsel %vm1987, %v1264, -9e+15
      %v2116 = vsel %vm1988, %v1353, -9e+15
      %v2117 = vsel %vm1989, %v1089, -9e+15
      %v2118 = vsel %vm1990, %v1178, -9e+15
      %v2119 = vsel %vm1991, %v1267, -9e+15
      %v2120 = vsel %vm1992, %v1356, -9e+15
      %v2121 = vsel %vm1993, %v1091, -9e+15
      %v2122 = vsel %vm1994, %v1180, -9e+15
      %v2123 = vsel %vm1995, %v1269, -9e+15
      %v2124 = vsel %vm1996, %v1358, -9e+15
      %v2125 = vsel %vm1997, %v1094, -9e+15
      %v2126 = vsel %vm1998, %v1183, -9e+15
      %v2127 = vsel %vm1999, %v1272, -9e+15
      %v2128 = vsel %vm2000, %v1361, -9e+15
      %v2129 = vsel %vm2001, %v1096, -9e+15
      %v2130 = vsel %vm2002, %v1185, -9e+15
      %v2131 = vsel %vm2003, %v1274, -9e+15
      %v2132 = vsel %vm2004, %v1363, -9e+15
      %v2133 = vmax.f32 %v2005, %v2006
      %v2134 = vmax.f32 %v2133, %v2007
      %v2135 = vmax.f32 %v2134, %v2008
      %2136 = vmax.xlane.f32.xlu0 %v2135
      %v2137 = vpop.xlane.xlu0 %2136
      %v2138 = vmax.f32 %v2009, %v2010
      %v2139 = vmax.f32 %v2138, %v2011
      %v2140 = vmax.f32 %v2139, %v2012
      %2141 = vmax.xlane.f32.xlu0 %v2140
      %v2142 = vpop.xlane.xlu0 %2141
      %v2143 = vmax.f32 %v2013, %v2014
      %v2144 = vmax.f32 %v2143, %v2015
      %v2145 = vmax.f32 %v2144, %v2016
      %2146 = vmax.xlane.f32.xlu0 %v2145
      %v2147 = vpop.xlane.xlu0 %2146
      %v2148 = vmax.f32 %v2017, %v2018
      %v2149 = vmax.f32 %v2148, %v2019
      %v2150 = vmax.f32 %v2149, %v2020
      %2151 = vmax.xlane.f32.xlu0 %v2150
      %v2152 = vpop.xlane.xlu0 %2151
      %v2153 = vmax.f32 %v2021, %v2022
      %v2154 = vmax.f32 %v2153, %v2023
      %v2155 = vmax.f32 %v2154, %v2024
      %2156 = vmax.xlane.f32.xlu0 %v2155
      %v2157 = vpop.xlane.xlu0 %2156
      %v2158 = vmax.f32 %v2025, %v2026
      %v2159 = vmax.f32 %v2158, %v2027
      %v2160 = vmax.f32 %v2159, %v2028
      %2161 = vmax.xlane.f32.xlu0 %v2160
      %v2162 = vpop.xlane.xlu0 %2161
      %v2163 = vmax.f32 %v2029, %v2030
      %v2164 = vmax.f32 %v2163, %v2031
      %v2165 = vmax.f32 %v2164, %v2032
      %2166 = vmax.xlane.f32.xlu0 %v2165
      %v2167 = vpop.xlane.xlu0 %2166
      %v2168 = vmax.f32 %v2033, %v2034
      %v2169 = vmax.f32 %v2168, %v2035
      %v2170 = vmax.f32 %v2169, %v2036
      %2171 = vmax.xlane.f32.xlu0 %v2170
      %v2172 = vpop.xlane.xlu0 %2171
      %v2173 = vmax.f32 %v2037, %v2038
      %v2174 = vmax.f32 %v2173, %v2039
      %v2175 = vmax.f32 %v2174, %v2040
      %2176 = vmax.xlane.f32.xlu0 %v2175
      %v2177 = vpop.xlane.xlu0 %2176
      %v2178 = vmax.f32 %v2041, %v2042
      %v2179 = vmax.f32 %v2178, %v2043
      %v2180 = vmax.f32 %v2179, %v2044
      %2181 = vmax.xlane.f32.xlu0 %v2180
      %v2182 = vpop.xlane.xlu0 %2181
      %v2183 = vmax.f32 %v2045, %v2046
      %v2184 = vmax.f32 %v2183, %v2047
      %v2185 = vmax.f32 %v2184, %v2048
      %2186 = vmax.xlane.f32.xlu0 %v2185
      %v2187 = vpop.xlane.xlu0 %2186
      %v2188 = vmax.f32 %v2049, %v2050
      %v2189 = vmax.f32 %v2188, %v2051
      %v2190 = vmax.f32 %v2189, %v2052
      %2191 = vmax.xlane.f32.xlu0 %v2190
      %v2192 = vpop.xlane.xlu0 %2191
      %v2193 = vmax.f32 %v2053, %v2054
      %v2194 = vmax.f32 %v2193, %v2055
      %v2195 = vmax.f32 %v2194, %v2056
      %2196 = vmax.xlane.f32.xlu0 %v2195
      %v2197 = vpop.xlane.xlu0 %2196
      %v2198 = vmax.f32 %v2057, %v2058
      %v2199 = vmax.f32 %v2198, %v2059
      %v2200 = vmax.f32 %v2199, %v2060
      %2201 = vmax.xlane.f32.xlu0 %v2200
      %v2202 = vpop.xlane.xlu0 %2201
      %v2203 = vmax.f32 %v2061, %v2062
      %v2204 = vmax.f32 %v2203, %v2063
      %v2205 = vmax.f32 %v2204, %v2064
      %2206 = vmax.xlane.f32.xlu0 %v2205
      %v2207 = vpop.xlane.xlu0 %2206
      %v2208 = vmax.f32 %v2065, %v2066
      %v2209 = vmax.f32 %v2208, %v2067
      %v2210 = vmax.f32 %v2209, %v2068
      %2211 = vmax.xlane.f32.xlu0 %v2210
      %v2212 = vpop.xlane.xlu0 %2211
      %v2213 = vmax.f32 %v2069, %v2070
      %v2214 = vmax.f32 %v2213, %v2071
      %v2215 = vmax.f32 %v2214, %v2072
      %2216 = vmax.xlane.f32.xlu0 %v2215
      %v2217 = vpop.xlane.xlu0 %2216
      %v2218 = vmax.f32 %v2073, %v2074
      %v2219 = vmax.f32 %v2218, %v2075
      %v2220 = vmax.f32 %v2219, %v2076
      %2221 = vmax.xlane.f32.xlu0 %v2220
      %v2222 = vpop.xlane.xlu0 %2221
      %v2223 = vmax.f32 %v2077, %v2078
      %v2224 = vmax.f32 %v2223, %v2079
      %v2225 = vmax.f32 %v2224, %v2080
      %2226 = vmax.xlane.f32.xlu0 %v2225
      %v2227 = vpop.xlane.xlu0 %2226
      %v2228 = vmax.f32 %v2081, %v2082
      %v2229 = vmax.f32 %v2228, %v2083
      %v2230 = vmax.f32 %v2229, %v2084
      %2231 = vmax.xlane.f32.xlu0 %v2230
      %v2232 = vpop.xlane.xlu0 %2231
      %v2233 = vmax.f32 %v2085, %v2086
      %v2234 = vmax.f32 %v2233, %v2087
      %v2235 = vmax.f32 %v2234, %v2088
      %2236 = vmax.xlane.f32.xlu0 %v2235
      %v2237 = vpop.xlane.xlu0 %2236
      %v2238 = vmax.f32 %v2089, %v2090
      %v2239 = vmax.f32 %v2238, %v2091
      %v2240 = vmax.f32 %v2239, %v2092
      %2241 = vmax.xlane.f32.xlu0 %v2240
      %v2242 = vpop.xlane.xlu0 %2241
      %v2243 = vmax.f32 %v2093, %v2094
      %v2244 = vmax.f32 %v2243, %v2095
      %v2245 = vmax.f32 %v2244, %v2096
      %2246 = vmax.xlane.f32.xlu0 %v2245
      %v2247 = vpop.xlane.xlu0 %2246
      %v2248 = vmax.f32 %v2097, %v2098
      %v2249 = vmax.f32 %v2248, %v2099
      %v2250 = vmax.f32 %v2249, %v2100
      %2251 = vmax.xlane.f32.xlu0 %v2250
      %v2252 = vpop.xlane.xlu0 %2251
      %v2253 = vmax.f32 %v2101, %v2102
      %v2254 = vmax.f32 %v2253, %v2103
      %v2255 = vmax.f32 %v2254, %v2104
      %2256 = vmax.xlane.f32.xlu0 %v2255
      %v2257 = vpop.xlane.xlu0 %2256
      %v2258 = vmax.f32 %v2105, %v2106
      %v2259 = vmax.f32 %v2258, %v2107
      %v2260 = vmax.f32 %v2259, %v2108
      %2261 = vmax.xlane.f32.xlu0 %v2260
      %v2262 = vpop.xlane.xlu0 %2261
      %v2263 = vmax.f32 %v2109, %v2110
      %v2264 = vmax.f32 %v2263, %v2111
      %v2265 = vmax.f32 %v2264, %v2112
      %2266 = vmax.xlane.f32.xlu0 %v2265
      %v2267 = vpop.xlane.xlu0 %2266
      %v2268 = vmax.f32 %v2113, %v2114
      %v2269 = vmax.f32 %v2268, %v2115
      %v2270 = vmax.f32 %v2269, %v2116
      %2271 = vmax.xlane.f32.xlu0 %v2270
      %v2272 = vpop.xlane.xlu0 %2271
      %v2273 = vmax.f32 %v2117, %v2118
      %v2274 = vmax.f32 %v2273, %v2119
      %v2275 = vmax.f32 %v2274, %v2120
      %2276 = vmax.xlane.f32.xlu0 %v2275
      %v2277 = vpop.xlane.xlu0 %2276
      %v2278 = vmax.f32 %v2121, %v2122
      %v2279 = vmax.f32 %v2278, %v2123
      %v2280 = vmax.f32 %v2279, %v2124
      %2281 = vmax.xlane.f32.xlu0 %v2280
      %v2282 = vpop.xlane.xlu0 %2281
      %v2283 = vmax.f32 %v2125, %v2126
      %v2284 = vmax.f32 %v2283, %v2127
      %v2285 = vmax.f32 %v2284, %v2128
      %2286 = vmax.xlane.f32.xlu0 %v2285
      %v2287 = vpop.xlane.xlu0 %2286
      %v2288 = vmax.f32 %v2129, %v2130
      %v2289 = vmax.f32 %v2288, %v2131
      %v2290 = vmax.f32 %v2289, %v2132
      %2291 = vmax.xlane.f32.xlu0 %v2290
      %v2292 = vpop.xlane.xlu0 %2291
      %v2293 = vsub.f32 %v2005, %v2137
      %v2294 = vsub.f32 %v2006, %v2137
      %v2295 = vsub.f32 %v2007, %v2137
      %v2296 = vsub.f32 %v2008, %v2137
      %v2297 = vsub.f32 %v2009, %v2142
      %v2298 = vsub.f32 %v2010, %v2142
      %v2299 = vsub.f32 %v2011, %v2142
      %v2300 = vsub.f32 %v2012, %v2142
      %v2301 = vsub.f32 %v2013, %v2147
      %v2302 = vsub.f32 %v2014, %v2147
      %v2303 = vsub.f32 %v2015, %v2147
      %v2304 = vsub.f32 %v2016, %v2147
      %v2305 = vsub.f32 %v2017, %v2152
      %v2306 = vsub.f32 %v2018, %v2152
      %v2307 = vsub.f32 %v2019, %v2152
      %v2308 = vsub.f32 %v2020, %v2152
      %v2309 = vsub.f32 %v2021, %v2157
      %v2310 = vsub.f32 %v2022, %v2157
      %v2311 = vsub.f32 %v2023, %v2157
      %v2312 = vsub.f32 %v2024, %v2157
      %v2313 = vsub.f32 %v2025, %v2162
      %v2314 = vsub.f32 %v2026, %v2162
      %v2315 = vsub.f32 %v2027, %v2162
      %v2316 = vsub.f32 %v2028, %v2162
      %v2317 = vsub.f32 %v2029, %v2167
      %v2318 = vsub.f32 %v2030, %v2167
      %v2319 = vsub.f32 %v2031, %v2167
      %v2320 = vsub.f32 %v2032, %v2167
      %v2321 = vsub.f32 %v2033, %v2172
      %v2322 = vsub.f32 %v2034, %v2172
      %v2323 = vsub.f32 %v2035, %v2172
      %v2324 = vsub.f32 %v2036, %v2172
      %v2325 = vsub.f32 %v2037, %v2177
      %v2326 = vsub.f32 %v2038, %v2177
      %v2327 = vsub.f32 %v2039, %v2177
      %v2328 = vsub.f32 %v2040, %v2177
      %v2329 = vsub.f32 %v2041, %v2182
      %v2330 = vsub.f32 %v2042, %v2182
      %v2331 = vsub.f32 %v2043, %v2182
      %v2332 = vsub.f32 %v2044, %v2182
      %v2333 = vsub.f32 %v2045, %v2187
      %v2334 = vsub.f32 %v2046, %v2187
      %v2335 = vsub.f32 %v2047, %v2187
      %v2336 = vsub.f32 %v2048, %v2187
      %v2337 = vsub.f32 %v2049, %v2192
      %v2338 = vsub.f32 %v2050, %v2192
      %v2339 = vsub.f32 %v2051, %v2192
      %v2340 = vsub.f32 %v2052, %v2192
      %v2341 = vsub.f32 %v2053, %v2197
      %v2342 = vsub.f32 %v2054, %v2197
      %v2343 = vsub.f32 %v2055, %v2197
      %v2344 = vsub.f32 %v2056, %v2197
      %v2345 = vsub.f32 %v2057, %v2202
      %v2346 = vsub.f32 %v2058, %v2202
      %v2347 = vsub.f32 %v2059, %v2202
      %v2348 = vsub.f32 %v2060, %v2202
      %v2349 = vsub.f32 %v2061, %v2207
      %v2350 = vsub.f32 %v2062, %v2207
      %v2351 = vsub.f32 %v2063, %v2207
      %v2352 = vsub.f32 %v2064, %v2207
      %v2353 = vsub.f32 %v2065, %v2212
      %v2354 = vsub.f32 %v2066, %v2212
      %v2355 = vsub.f32 %v2067, %v2212
      %v2356 = vsub.f32 %v2068, %v2212
      %v2357 = vsub.f32 %v2069, %v2217
      %v2358 = vsub.f32 %v2070, %v2217
      %v2359 = vsub.f32 %v2071, %v2217
      %v2360 = vsub.f32 %v2072, %v2217
      %v2361 = vsub.f32 %v2073, %v2222
      %v2362 = vsub.f32 %v2074, %v2222
      %v2363 = vsub.f32 %v2075, %v2222
      %v2364 = vsub.f32 %v2076, %v2222
      %v2365 = vsub.f32 %v2077, %v2227
      %v2366 = vsub.f32 %v2078, %v2227
      %v2367 = vsub.f32 %v2079, %v2227
      %v2368 = vsub.f32 %v2080, %v2227
      %v2369 = vsub.f32 %v2081, %v2232
      %v2370 = vsub.f32 %v2082, %v2232
      %v2371 = vsub.f32 %v2083, %v2232
      %v2372 = vsub.f32 %v2084, %v2232
      %v2373 = vsub.f32 %v2085, %v2237
      %v2374 = vsub.f32 %v2086, %v2237
      %v2375 = vsub.f32 %v2087, %v2237
      %v2376 = vsub.f32 %v2088, %v2237
      %v2377 = vsub.f32 %v2089, %v2242
      %v2378 = vsub.f32 %v2090, %v2242
      %v2379 = vsub.f32 %v2091, %v2242
      %v2380 = vsub.f32 %v2092, %v2242
      %v2381 = vsub.f32 %v2093, %v2247
      %v2382 = vsub.f32 %v2094, %v2247
      %v2383 = vsub.f32 %v2095, %v2247
      %v2384 = vsub.f32 %v2096, %v2247
      %v2385 = vsub.f32 %v2097, %v2252
      %v2386 = vsub.f32 %v2098, %v2252
      %v2387 = vsub.f32 %v2099, %v2252
      %v2388 = vsub.f32 %v2100, %v2252
      %v2389 = vsub.f32 %v2101, %v2257
      %v2390 = vsub.f32 %v2102, %v2257
      %v2391 = vsub.f32 %v2103, %v2257
      %v2392 = vsub.f32 %v2104, %v2257
      %v2393 = vsub.f32 %v2105, %v2262
      %v2394 = vsub.f32 %v2106, %v2262
      %v2395 = vsub.f32 %v2107, %v2262
      %v2396 = vsub.f32 %v2108, %v2262
      %v2397 = vsub.f32 %v2109, %v2267
      %v2398 = vsub.f32 %v2110, %v2267
      %v2399 = vsub.f32 %v2111, %v2267
      %v2400 = vsub.f32 %v2112, %v2267
      %v2401 = vsub.f32 %v2113, %v2272
      %v2402 = vsub.f32 %v2114, %v2272
      %v2403 = vsub.f32 %v2115, %v2272
      %v2404 = vsub.f32 %v2116, %v2272
      %v2405 = vsub.f32 %v2117, %v2277
      %v2406 = vsub.f32 %v2118, %v2277
      %v2407 = vsub.f32 %v2119, %v2277
      %v2408 = vsub.f32 %v2120, %v2277
      %v2409 = vsub.f32 %v2121, %v2282
      %v2410 = vsub.f32 %v2122, %v2282
      %v2411 = vsub.f32 %v2123, %v2282
      %v2412 = vsub.f32 %v2124, %v2282
      %v2413 = vsub.f32 %v2125, %v2287
      %v2414 = vsub.f32 %v2126, %v2287
      %v2415 = vsub.f32 %v2127, %v2287
      %v2416 = vsub.f32 %v2128, %v2287
      %v2417 = vsub.f32 %v2129, %v2292
      %v2418 = vsub.f32 %v2130, %v2292
      %v2419 = vsub.f32 %v2131, %v2292
      %v2420 = vsub.f32 %v2132, %v2292
      %v2421 = vpack.c.bf16 %v2297, %v2293
      %v2422 = vpack.c.bf16 %v2298, %v2294
      %v2423 = vpack.c.bf16 %v2299, %v2295
      %v2424 = vpack.c.bf16 %v2300, %v2296
      %v2425 = vpack.c.bf16 %v2305, %v2301
      %v2426 = vpack.c.bf16 %v2306, %v2302
      %v2427 = vpack.c.bf16 %v2307, %v2303
      %v2428 = vpack.c.bf16 %v2308, %v2304
      %v2429 = vpack.c.bf16 %v2313, %v2309
      %v2430 = vpack.c.bf16 %v2314, %v2310
      %v2431 = vpack.c.bf16 %v2315, %v2311
      %v2432 = vpack.c.bf16 %v2316, %v2312
      %v2433 = vpack.c.bf16 %v2321, %v2317
      %v2434 = vpack.c.bf16 %v2322, %v2318
      %v2435 = vpack.c.bf16 %v2323, %v2319
      %v2436 = vpack.c.bf16 %v2324, %v2320
      %v2437 = vpack.c.bf16 %v2329, %v2325
      %v2438 = vpack.c.bf16 %v2330, %v2326
      %v2439 = vpack.c.bf16 %v2331, %v2327
      %v2440 = vpack.c.bf16 %v2332, %v2328
      %v2441 = vpack.c.bf16 %v2337, %v2333
      %v2442 = vpack.c.bf16 %v2338, %v2334
      %v2443 = vpack.c.bf16 %v2339, %v2335
      %v2444 = vpack.c.bf16 %v2340, %v2336
      %v2445 = vpack.c.bf16 %v2345, %v2341
      %v2446 = vpack.c.bf16 %v2346, %v2342
      %v2447 = vpack.c.bf16 %v2347, %v2343
      %v2448 = vpack.c.bf16 %v2348, %v2344
      %v2449 = vpack.c.bf16 %v2353, %v2349
      %v2450 = vpack.c.bf16 %v2354, %v2350
      %v2451 = vpack.c.bf16 %v2355, %v2351
      %v2452 = vpack.c.bf16 %v2356, %v2352
      %v2453 = vpack.c.bf16 %v2361, %v2357
      %v2454 = vpack.c.bf16 %v2362, %v2358
      %v2455 = vpack.c.bf16 %v2363, %v2359
      %v2456 = vpack.c.bf16 %v2364, %v2360
      %v2457 = vpack.c.bf16 %v2369, %v2365
      %v2458 = vpack.c.bf16 %v2370, %v2366
      %v2459 = vpack.c.bf16 %v2371, %v2367
      %v2460 = vpack.c.bf16 %v2372, %v2368
      %v2461 = vpack.c.bf16 %v2377, %v2373
      %v2462 = vpack.c.bf16 %v2378, %v2374
      %v2463 = vpack.c.bf16 %v2379, %v2375
      %v2464 = vpack.c.bf16 %v2380, %v2376
      %v2465 = vpack.c.bf16 %v2385, %v2381
      %v2466 = vpack.c.bf16 %v2386, %v2382
      %v2467 = vpack.c.bf16 %v2387, %v2383
      %v2468 = vpack.c.bf16 %v2388, %v2384
      %v2469 = vpack.c.bf16 %v2393, %v2389
      %v2470 = vpack.c.bf16 %v2394, %v2390
      %v2471 = vpack.c.bf16 %v2395, %v2391
      %v2472 = vpack.c.bf16 %v2396, %v2392
      %v2473 = vpack.c.bf16 %v2401, %v2397
      %v2474 = vpack.c.bf16 %v2402, %v2398
      %v2475 = vpack.c.bf16 %v2403, %v2399
      %v2476 = vpack.c.bf16 %v2404, %v2400
      %v2477 = vpack.c.bf16 %v2409, %v2405
      %v2478 = vpack.c.bf16 %v2410, %v2406
      %v2479 = vpack.c.bf16 %v2411, %v2407
      %v2480 = vpack.c.bf16 %v2412, %v2408
      %v2481 = vpack.c.bf16 %v2417, %v2413
      %v2482 = vpack.c.bf16 %v2418, %v2414
      %v2483 = vpack.c.bf16 %v2419, %v2415
      %v2484 = vpack.c.bf16 %v2420, %v2416
      %v2485 = vunpack.c.l.bf16 %v2421
      %v2486 = vunpack.c.l.bf16 %v2422
      %v2487 = vunpack.c.l.bf16 %v2423
      %v2488 = vunpack.c.l.bf16 %v2424
      %v2489 = vunpack.c.h.bf16 %v2421
      %v2490 = vunpack.c.h.bf16 %v2422
      %v2491 = vunpack.c.h.bf16 %v2423
      %v2492 = vunpack.c.h.bf16 %v2424
      %v2493 = vunpack.c.l.bf16 %v2425
      %v2494 = vunpack.c.l.bf16 %v2426
      %v2495 = vunpack.c.l.bf16 %v2427
      %v2496 = vunpack.c.l.bf16 %v2428
      %v2497 = vunpack.c.h.bf16 %v2425
      %v2498 = vunpack.c.h.bf16 %v2426
      %v2499 = vunpack.c.h.bf16 %v2427
      %v2500 = vunpack.c.h.bf16 %v2428
      %v2501 = vunpack.c.l.bf16 %v2429
      %v2502 = vunpack.c.l.bf16 %v2430
      %v2503 = vunpack.c.l.bf16 %v2431
      %v2504 = vunpack.c.l.bf16 %v2432
      %v2505 = vunpack.c.h.bf16 %v2429
      %v2506 = vunpack.c.h.bf16 %v2430
      %v2507 = vunpack.c.h.bf16 %v2431
      %v2508 = vunpack.c.h.bf16 %v2432
      %v2509 = vunpack.c.l.bf16 %v2433
      %v2510 = vunpack.c.l.bf16 %v2434
      %v2511 = vunpack.c.l.bf16 %v2435
      %v2512 = vunpack.c.l.bf16 %v2436
      %v2513 = vunpack.c.h.bf16 %v2433
      %v2514 = vunpack.c.h.bf16 %v2434
      %v2515 = vunpack.c.h.bf16 %v2435
      %v2516 = vunpack.c.h.bf16 %v2436
      %v2517 = vunpack.c.l.bf16 %v2437
      %v2518 = vunpack.c.l.bf16 %v2438
      %v2519 = vunpack.c.l.bf16 %v2439
      %v2520 = vunpack.c.l.bf16 %v2440
      %v2521 = vunpack.c.h.bf16 %v2437
      %v2522 = vunpack.c.h.bf16 %v2438
      %v2523 = vunpack.c.h.bf16 %v2439
      %v2524 = vunpack.c.h.bf16 %v2440
      %v2525 = vunpack.c.l.bf16 %v2441
      %v2526 = vunpack.c.l.bf16 %v2442
      %v2527 = vunpack.c.l.bf16 %v2443
      %v2528 = vunpack.c.l.bf16 %v2444
      %v2529 = vunpack.c.h.bf16 %v2441
      %v2530 = vunpack.c.h.bf16 %v2442
      %v2531 = vunpack.c.h.bf16 %v2443
      %v2532 = vunpack.c.h.bf16 %v2444
      %v2533 = vunpack.c.l.bf16 %v2445
      %v2534 = vunpack.c.l.bf16 %v2446
      %v2535 = vunpack.c.l.bf16 %v2447
      %v2536 = vunpack.c.l.bf16 %v2448
      %v2537 = vunpack.c.h.bf16 %v2445
      %v2538 = vunpack.c.h.bf16 %v2446
      %v2539 = vunpack.c.h.bf16 %v2447
      %v2540 = vunpack.c.h.bf16 %v2448
      %v2541 = vunpack.c.l.bf16 %v2449
      %v2542 = vunpack.c.l.bf16 %v2450
      %v2543 = vunpack.c.l.bf16 %v2451
      %v2544 = vunpack.c.l.bf16 %v2452
      %v2545 = vunpack.c.h.bf16 %v2449
      %v2546 = vunpack.c.h.bf16 %v2450
      %v2547 = vunpack.c.h.bf16 %v2451
      %v2548 = vunpack.c.h.bf16 %v2452
      %v2549 = vunpack.c.l.bf16 %v2453
      %v2550 = vunpack.c.l.bf16 %v2454
      %v2551 = vunpack.c.l.bf16 %v2455
      %v2552 = vunpack.c.l.bf16 %v2456
      %v2553 = vunpack.c.h.bf16 %v2453
      %v2554 = vunpack.c.h.bf16 %v2454
      %v2555 = vunpack.c.h.bf16 %v2455
      %v2556 = vunpack.c.h.bf16 %v2456
      %v2557 = vunpack.c.l.bf16 %v2457
      %v2558 = vunpack.c.l.bf16 %v2458
      %v2559 = vunpack.c.l.bf16 %v2459
      %v2560 = vunpack.c.l.bf16 %v2460
      %v2561 = vunpack.c.h.bf16 %v2457
      %v2562 = vunpack.c.h.bf16 %v2458
      %v2563 = vunpack.c.h.bf16 %v2459
      %v2564 = vunpack.c.h.bf16 %v2460
      %v2565 = vunpack.c.l.bf16 %v2461
      %v2566 = vunpack.c.l.bf16 %v2462
      %v2567 = vunpack.c.l.bf16 %v2463
      %v2568 = vunpack.c.l.bf16 %v2464
      %v2569 = vunpack.c.h.bf16 %v2461
      %v2570 = vunpack.c.h.bf16 %v2462
      %v2571 = vunpack.c.h.bf16 %v2463
      %v2572 = vunpack.c.h.bf16 %v2464
      %v2573 = vunpack.c.l.bf16 %v2465
      %v2574 = vunpack.c.l.bf16 %v2466
      %v2575 = vunpack.c.l.bf16 %v2467
      %v2576 = vunpack.c.l.bf16 %v2468
      %v2577 = vunpack.c.h.bf16 %v2465
      %v2578 = vunpack.c.h.bf16 %v2466
      %v2579 = vunpack.c.h.bf16 %v2467
      %v2580 = vunpack.c.h.bf16 %v2468
      %v2581 = vunpack.c.l.bf16 %v2469
      %v2582 = vunpack.c.l.bf16 %v2470
      %v2583 = vunpack.c.l.bf16 %v2471
      %v2584 = vunpack.c.l.bf16 %v2472
      %v2585 = vunpack.c.h.bf16 %v2469
      %v2586 = vunpack.c.h.bf16 %v2470
      %v2587 = vunpack.c.h.bf16 %v2471
      %v2588 = vunpack.c.h.bf16 %v2472
      %v2589 = vunpack.c.l.bf16 %v2473
      %v2590 = vunpack.c.l.bf16 %v2474
      %v2591 = vunpack.c.l.bf16 %v2475
      %v2592 = vunpack.c.l.bf16 %v2476
      %v2593 = vunpack.c.h.bf16 %v2473
      %v2594 = vunpack.c.h.bf16 %v2474
      %v2595 = vunpack.c.h.bf16 %v2475
      %v2596 = vunpack.c.h.bf16 %v2476
      %v2597 = vunpack.c.l.bf16 %v2477
      %v2598 = vunpack.c.l.bf16 %v2478
      %v2599 = vunpack.c.l.bf16 %v2479
      %v2600 = vunpack.c.l.bf16 %v2480
      %v2601 = vunpack.c.h.bf16 %v2477
      %v2602 = vunpack.c.h.bf16 %v2478
      %v2603 = vunpack.c.h.bf16 %v2479
      %v2604 = vunpack.c.h.bf16 %v2480
      %v2605 = vunpack.c.l.bf16 %v2481
      %v2606 = vunpack.c.l.bf16 %v2482
      %v2607 = vunpack.c.l.bf16 %v2483
      %v2608 = vunpack.c.l.bf16 %v2484
      %v2609 = vunpack.c.h.bf16 %v2481
      %v2610 = vunpack.c.h.bf16 %v2482
      %v2611 = vunpack.c.h.bf16 %v2483
      %v2612 = vunpack.c.h.bf16 %v2484
      %v2613 = vmul.f32 %v2485, 1.442695
      %v2614 = vpow.pop %v2613
      %v2615 = vmul.f32 %v2486, 1.442695
      %v2616 = vpow.pop %v2615
      %v2617 = vmul.f32 %v2487, 1.442695
      %v2618 = vpow.pop %v2617
      %v2619 = vmul.f32 %v2488, 1.442695
      %v2620 = vpow.pop %v2619
      %v2621 = vmul.f32 %v2489, 1.442695
      %v2622 = vpow.pop %v2621
      %v2623 = vmul.f32 %v2490, 1.442695
      %v2624 = vpow.pop %v2623
      %v2625 = vmul.f32 %v2491, 1.442695
      %v2626 = vpow.pop %v2625
      %v2627 = vmul.f32 %v2492, 1.442695
      %v2628 = vpow.pop %v2627
      %v2629 = vmul.f32 %v2493, 1.442695
      %v2630 = vpow.pop %v2629
      %v2631 = vmul.f32 %v2494, 1.442695
      %v2632 = vpow.pop %v2631
      %v2633 = vmul.f32 %v2495, 1.442695
      %v2634 = vpow.pop %v2633
      %v2635 = vmul.f32 %v2496, 1.442695
      %v2636 = vpow.pop %v2635
      %v2637 = vmul.f32 %v2497, 1.442695
      %v2638 = vpow.pop %v2637
      %v2639 = vmul.f32 %v2498, 1.442695
      %v2640 = vpow.pop %v2639
      %v2641 = vmul.f32 %v2499, 1.442695
      %v2642 = vpow.pop %v2641
      %v2643 = vmul.f32 %v2500, 1.442695
      %v2644 = vpow.pop %v2643
      %v2645 = vmul.f32 %v2501, 1.442695
      %v2646 = vpow.pop %v2645
      %v2647 = vmul.f32 %v2502, 1.442695
      %v2648 = vpow.pop %v2647
      %v2649 = vmul.f32 %v2503, 1.442695
      %v2650 = vpow.pop %v2649
      %v2651 = vmul.f32 %v2504, 1.442695
      %v2652 = vpow.pop %v2651
      %v2653 = vmul.f32 %v2505, 1.442695
      %v2654 = vpow.pop %v2653
      %v2655 = vmul.f32 %v2506, 1.442695
      %v2656 = vpow.pop %v2655
      %v2657 = vmul.f32 %v2507, 1.442695
      %v2658 = vpow.pop %v2657
      %v2659 = vmul.f32 %v2508, 1.442695
      %v2660 = vpow.pop %v2659
      %v2661 = vmul.f32 %v2509, 1.442695
      %v2662 = vpow.pop %v2661
      %v2663 = vmul.f32 %v2510, 1.442695
      %v2664 = vpow.pop %v2663
      %v2665 = vmul.f32 %v2511, 1.442695
      %v2666 = vpow.pop %v2665
      %v2667 = vmul.f32 %v2512, 1.442695
      %v2668 = vpow.pop %v2667
      %v2669 = vmul.f32 %v2513, 1.442695
      %v2670 = vpow.pop %v2669
      %v2671 = vmul.f32 %v2514, 1.442695
      %v2672 = vpow.pop %v2671
      %v2673 = vmul.f32 %v2515, 1.442695
      %v2674 = vpow.pop %v2673
      %v2675 = vmul.f32 %v2516, 1.442695
      %v2676 = vpow.pop %v2675
      %v2677 = vmul.f32 %v2517, 1.442695
      %v2678 = vpow.pop %v2677
      %v2679 = vmul.f32 %v2518, 1.442695
      %v2680 = vpow.pop %v2679
      %v2681 = vmul.f32 %v2519, 1.442695
      %v2682 = vpow.pop %v2681
      %v2683 = vmul.f32 %v2520, 1.442695
      %v2684 = vpow.pop %v2683
      %v2685 = vmul.f32 %v2521, 1.442695
      %v2686 = vpow.pop %v2685
      %v2687 = vmul.f32 %v2522, 1.442695
      %v2688 = vpow.pop %v2687
      %v2689 = vmul.f32 %v2523, 1.442695
      %v2690 = vpow.pop %v2689
      %v2691 = vmul.f32 %v2524, 1.442695
      %v2692 = vpow.pop %v2691
      %v2693 = vmul.f32 %v2525, 1.442695
      %v2694 = vpow.pop %v2693
      %v2695 = vmul.f32 %v2526, 1.442695
      %v2696 = vpow.pop %v2695
      %v2697 = vmul.f32 %v2527, 1.442695
      %v2698 = vpow.pop %v2697
      %v2699 = vmul.f32 %v2528, 1.442695
      %v2700 = vpow.pop %v2699
      %v2701 = vmul.f32 %v2529, 1.442695
      %v2702 = vpow.pop %v2701
      %v2703 = vmul.f32 %v2530, 1.442695
      %v2704 = vpow.pop %v2703
      %v2705 = vmul.f32 %v2531, 1.442695
      %v2706 = vpow.pop %v2705
      %v2707 = vmul.f32 %v2532, 1.442695
      %v2708 = vpow.pop %v2707
      %v2709 = vmul.f32 %v2533, 1.442695
      %v2710 = vpow.pop %v2709
      %v2711 = vmul.f32 %v2534, 1.442695
      %v2712 = vpow.pop %v2711
      %v2713 = vmul.f32 %v2535, 1.442695
      %v2714 = vpow.pop %v2713
      %v2715 = vmul.f32 %v2536, 1.442695
      %v2716 = vpow.pop %v2715
      %v2717 = vmul.f32 %v2537, 1.442695
      %v2718 = vpow.pop %v2717
      %v2719 = vmul.f32 %v2538, 1.442695
      %v2720 = vpow.pop %v2719
      %v2721 = vmul.f32 %v2539, 1.442695
      %v2722 = vpow.pop %v2721
      %v2723 = vmul.f32 %v2540, 1.442695
      %v2724 = vpow.pop %v2723
      %v2725 = vmul.f32 %v2541, 1.442695
      %v2726 = vpow.pop %v2725
      %v2727 = vmul.f32 %v2542, 1.442695
      %v2728 = vpow.pop %v2727
      %v2729 = vmul.f32 %v2543, 1.442695
      %v2730 = vpow.pop %v2729
      %v2731 = vmul.f32 %v2544, 1.442695
      %v2732 = vpow.pop %v2731
      %v2733 = vmul.f32 %v2545, 1.442695
      %v2734 = vpow.pop %v2733
      %v2735 = vmul.f32 %v2546, 1.442695
      %v2736 = vpow.pop %v2735
      %v2737 = vmul.f32 %v2547, 1.442695
      %v2738 = vpow.pop %v2737
      %v2739 = vmul.f32 %v2548, 1.442695
      %v2740 = vpow.pop %v2739
      %v2741 = vmul.f32 %v2549, 1.442695
      %v2742 = vpow.pop %v2741
      %v2743 = vmul.f32 %v2550, 1.442695
      %v2744 = vpow.pop %v2743
      %v2745 = vmul.f32 %v2551, 1.442695
      %v2746 = vpow.pop %v2745
      %v2747 = vmul.f32 %v2552, 1.442695
      %v2748 = vpow.pop %v2747
      %v2749 = vmul.f32 %v2553, 1.442695
      %v2750 = vpow.pop %v2749
      %v2751 = vmul.f32 %v2554, 1.442695
      %v2752 = vpow.pop %v2751
      %v2753 = vmul.f32 %v2555, 1.442695
      %v2754 = vpow.pop %v2753
      %v2755 = vmul.f32 %v2556, 1.442695
      %v2756 = vpow.pop %v2755
      %v2757 = vmul.f32 %v2557, 1.442695
      %v2758 = vpow.pop %v2757
      %v2759 = vmul.f32 %v2558, 1.442695
      %v2760 = vpow.pop %v2759
      %v2761 = vmul.f32 %v2559, 1.442695
      %v2762 = vpow.pop %v2761
      %v2763 = vmul.f32 %v2560, 1.442695
      %v2764 = vpow.pop %v2763
      %v2765 = vmul.f32 %v2561, 1.442695
      %v2766 = vpow.pop %v2765
      %v2767 = vmul.f32 %v2562, 1.442695
      %v2768 = vpow.pop %v2767
      %v2769 = vmul.f32 %v2563, 1.442695
      %v2770 = vpow.pop %v2769
      %v2771 = vmul.f32 %v2564, 1.442695
      %v2772 = vpow.pop %v2771
      %v2773 = vmul.f32 %v2565, 1.442695
      %v2774 = vpow.pop %v2773
      %v2775 = vmul.f32 %v2566, 1.442695
      %v2776 = vpow.pop %v2775
      %v2777 = vmul.f32 %v2567, 1.442695
      %v2778 = vpow.pop %v2777
      %v2779 = vmul.f32 %v2568, 1.442695
      %v2780 = vpow.pop %v2779
      %v2781 = vmul.f32 %v2569, 1.442695
      %v2782 = vpow.pop %v2781
      %v2783 = vmul.f32 %v2570, 1.442695
      %v2784 = vpow.pop %v2783
      %v2785 = vmul.f32 %v2571, 1.442695
      %v2786 = vpow.pop %v2785
      %v2787 = vmul.f32 %v2572, 1.442695
      %v2788 = vpow.pop %v2787
      %v2789 = vmul.f32 %v2573, 1.442695
      %v2790 = vpow.pop %v2789
      %v2791 = vmul.f32 %v2574, 1.442695
      %v2792 = vpow.pop %v2791
      %v2793 = vmul.f32 %v2575, 1.442695
      %v2794 = vpow.pop %v2793
      %v2795 = vmul.f32 %v2576, 1.442695
      %v2796 = vpow.pop %v2795
      %v2797 = vmul.f32 %v2577, 1.442695
      %v2798 = vpow.pop %v2797
      %v2799 = vmul.f32 %v2578, 1.442695
      %v2800 = vpow.pop %v2799
      %v2801 = vmul.f32 %v2579, 1.442695
      %v2802 = vpow.pop %v2801
      %v2803 = vmul.f32 %v2580, 1.442695
      %v2804 = vpow.pop %v2803
      %v2805 = vmul.f32 %v2581, 1.442695
      %v2806 = vpow.pop %v2805
      %v2807 = vmul.f32 %v2582, 1.442695
      %v2808 = vpow.pop %v2807
      %v2809 = vmul.f32 %v2583, 1.442695
      %v2810 = vpow.pop %v2809
      %v2811 = vmul.f32 %v2584, 1.442695
      %v2812 = vpow.pop %v2811
      %v2813 = vmul.f32 %v2585, 1.442695
      %v2814 = vpow.pop %v2813
      %v2815 = vmul.f32 %v2586, 1.442695
      %v2816 = vpow.pop %v2815
      %v2817 = vmul.f32 %v2587, 1.442695
      %v2818 = vpow.pop %v2817
      %v2819 = vmul.f32 %v2588, 1.442695
      %v2820 = vpow.pop %v2819
      %v2821 = vmul.f32 %v2589, 1.442695
      %v2822 = vpow.pop %v2821
      %v2823 = vmul.f32 %v2590, 1.442695
      %v2824 = vpow.pop %v2823
      %v2825 = vmul.f32 %v2591, 1.442695
      %v2826 = vpow.pop %v2825
      %v2827 = vmul.f32 %v2592, 1.442695
      %v2828 = vpow.pop %v2827
      %v2829 = vmul.f32 %v2593, 1.442695
      %v2830 = vpow.pop %v2829
      %v2831 = vmul.f32 %v2594, 1.442695
      %v2832 = vpow.pop %v2831
      %v2833 = vmul.f32 %v2595, 1.442695
      %v2834 = vpow.pop %v2833
      %v2835 = vmul.f32 %v2596, 1.442695
      %v2836 = vpow.pop %v2835
      %v2837 = vmul.f32 %v2597, 1.442695
      %v2838 = vpow.pop %v2837
      %v2839 = vmul.f32 %v2598, 1.442695
      %v2840 = vpow.pop %v2839
      %v2841 = vmul.f32 %v2599, 1.442695
      %v2842 = vpow.pop %v2841
      %v2843 = vmul.f32 %v2600, 1.442695
      %v2844 = vpow.pop %v2843
      %v2845 = vmul.f32 %v2601, 1.442695
      %v2846 = vpow.pop %v2845
      %v2847 = vmul.f32 %v2602, 1.442695
      %v2848 = vpow.pop %v2847
      %v2849 = vmul.f32 %v2603, 1.442695
      %v2850 = vpow.pop %v2849
      %v2851 = vmul.f32 %v2604, 1.442695
      %v2852 = vpow.pop %v2851
      %v2853 = vmul.f32 %v2605, 1.442695
      %v2854 = vpow.pop %v2853
      %v2855 = vmul.f32 %v2606, 1.442695
      %v2856 = vpow.pop %v2855
      %v2857 = vmul.f32 %v2607, 1.442695
      %v2858 = vpow.pop %v2857
      %v2859 = vmul.f32 %v2608, 1.442695
      %v2860 = vpow.pop %v2859
      %v2861 = vmul.f32 %v2609, 1.442695
      %v2862 = vpow.pop %v2861
      %v2863 = vmul.f32 %v2610, 1.442695
      %v2864 = vpow.pop %v2863
      %v2865 = vmul.f32 %v2611, 1.442695
      %v2866 = vpow.pop %v2865
      %v2867 = vmul.f32 %v2612, 1.442695
      %v2868 = vpow.pop %v2867
      %v2869 = vpack.c.bf16 %v2622, %v2614
      %v2870 = vpack.c.bf16 %v2624, %v2616
      %v2871 = vpack.c.bf16 %v2626, %v2618
      %v2872 = vpack.c.bf16 %v2628, %v2620
      %v2873 = vpack.c.bf16 %v2638, %v2630
      %v2874 = vpack.c.bf16 %v2640, %v2632
      %v2875 = vpack.c.bf16 %v2642, %v2634
      %v2876 = vpack.c.bf16 %v2644, %v2636
      %v2877 = vpack.c.bf16 %v2654, %v2646
      %v2878 = vpack.c.bf16 %v2656, %v2648
      %v2879 = vpack.c.bf16 %v2658, %v2650
      %v2880 = vpack.c.bf16 %v2660, %v2652
      %v2881 = vpack.c.bf16 %v2670, %v2662
      %v2882 = vpack.c.bf16 %v2672, %v2664
      %v2883 = vpack.c.bf16 %v2674, %v2666
      %v2884 = vpack.c.bf16 %v2676, %v2668
      %v2885 = vpack.c.bf16 %v2686, %v2678
      %v2886 = vpack.c.bf16 %v2688, %v2680
      %v2887 = vpack.c.bf16 %v2690, %v2682
      %v2888 = vpack.c.bf16 %v2692, %v2684
      %v2889 = vpack.c.bf16 %v2702, %v2694
      %v2890 = vpack.c.bf16 %v2704, %v2696
      %v2891 = vpack.c.bf16 %v2706, %v2698
      %v2892 = vpack.c.bf16 %v2708, %v2700
      %v2893 = vpack.c.bf16 %v2718, %v2710
      %v2894 = vpack.c.bf16 %v2720, %v2712
      %v2895 = vpack.c.bf16 %v2722, %v2714
      %v2896 = vpack.c.bf16 %v2724, %v2716
      %v2897 = vpack.c.bf16 %v2734, %v2726
      %v2898 = vpack.c.bf16 %v2736, %v2728
      %v2899 = vpack.c.bf16 %v2738, %v2730
      %v2900 = vpack.c.bf16 %v2740, %v2732
      %v2901 = vpack.c.bf16 %v2750, %v2742
      %v2902 = vpack.c.bf16 %v2752, %v2744
      %v2903 = vpack.c.bf16 %v2754, %v2746
      %v2904 = vpack.c.bf16 %v2756, %v2748
      %v2905 = vpack.c.bf16 %v2766, %v2758
      %v2906 = vpack.c.bf16 %v2768, %v2760
      %v2907 = vpack.c.bf16 %v2770, %v2762
      %v2908 = vpack.c.bf16 %v2772, %v2764
      %v2909 = vpack.c.bf16 %v2782, %v2774
      %v2910 = vpack.c.bf16 %v2784, %v2776
      %v2911 = vpack.c.bf16 %v2786, %v2778
      %v2912 = vpack.c.bf16 %v2788, %v2780
      %v2913 = vpack.c.bf16 %v2798, %v2790
      %v2914 = vpack.c.bf16 %v2800, %v2792
      %v2915 = vpack.c.bf16 %v2802, %v2794
      %v2916 = vpack.c.bf16 %v2804, %v2796
      %v2917 = vpack.c.bf16 %v2814, %v2806
      %v2918 = vpack.c.bf16 %v2816, %v2808
      %v2919 = vpack.c.bf16 %v2818, %v2810
      %v2920 = vpack.c.bf16 %v2820, %v2812
      %v2921 = vpack.c.bf16 %v2830, %v2822
      %v2922 = vpack.c.bf16 %v2832, %v2824
      %v2923 = vpack.c.bf16 %v2834, %v2826
      %v2924 = vpack.c.bf16 %v2836, %v2828
      %v2925 = vpack.c.bf16 %v2846, %v2838
      %v2926 = vpack.c.bf16 %v2848, %v2840
      %v2927 = vpack.c.bf16 %v2850, %v2842
      %v2928 = vpack.c.bf16 %v2852, %v2844
      %v2929 = vpack.c.bf16 %v2862, %v2854
      %v2930 = vpack.c.bf16 %v2864, %v2856
      %v2931 = vpack.c.bf16 %v2866, %v2858
      %v2932 = vpack.c.bf16 %v2868, %v2860
      %v2933 = vunpack.c.l.bf16 %v2869
      %v2934 = vunpack.c.l.bf16 %v2870
      %v2935 = vunpack.c.l.bf16 %v2871
      %v2936 = vunpack.c.l.bf16 %v2872
      %v2937 = vunpack.c.h.bf16 %v2869
      %v2938 = vunpack.c.h.bf16 %v2870
      %v2939 = vunpack.c.h.bf16 %v2871
      %v2940 = vunpack.c.h.bf16 %v2872
      %v2941 = vunpack.c.l.bf16 %v2873
      %v2942 = vunpack.c.l.bf16 %v2874
      %v2943 = vunpack.c.l.bf16 %v2875
      %v2944 = vunpack.c.l.bf16 %v2876
      %v2945 = vunpack.c.h.bf16 %v2873
      %v2946 = vunpack.c.h.bf16 %v2874
      %v2947 = vunpack.c.h.bf16 %v2875
      %v2948 = vunpack.c.h.bf16 %v2876
      %v2949 = vunpack.c.l.bf16 %v2877
      %v2950 = vunpack.c.l.bf16 %v2878
      %v2951 = vunpack.c.l.bf16 %v2879
      %v2952 = vunpack.c.l.bf16 %v2880
      %v2953 = vunpack.c.h.bf16 %v2877
      %v2954 = vunpack.c.h.bf16 %v2878
      %v2955 = vunpack.c.h.bf16 %v2879
      %v2956 = vunpack.c.h.bf16 %v2880
      %v2957 = vunpack.c.l.bf16 %v2881
      %v2958 = vunpack.c.l.bf16 %v2882
      %v2959 = vunpack.c.l.bf16 %v2883
      %v2960 = vunpack.c.l.bf16 %v2884
      %v2961 = vunpack.c.h.bf16 %v2881
      %v2962 = vunpack.c.h.bf16 %v2882
      %v2963 = vunpack.c.h.bf16 %v2883
      %v2964 = vunpack.c.h.bf16 %v2884
      %v2965 = vunpack.c.l.bf16 %v2885
      %v2966 = vunpack.c.l.bf16 %v2886
      %v2967 = vunpack.c.l.bf16 %v2887
      %v2968 = vunpack.c.l.bf16 %v2888
      %v2969 = vunpack.c.h.bf16 %v2885
      %v2970 = vunpack.c.h.bf16 %v2886
      %v2971 = vunpack.c.h.bf16 %v2887
      %v2972 = vunpack.c.h.bf16 %v2888
      %v2973 = vunpack.c.l.bf16 %v2889
      %v2974 = vunpack.c.l.bf16 %v2890
      %v2975 = vunpack.c.l.bf16 %v2891
      %v2976 = vunpack.c.l.bf16 %v2892
      %v2977 = vunpack.c.h.bf16 %v2889
      %v2978 = vunpack.c.h.bf16 %v2890
      %v2979 = vunpack.c.h.bf16 %v2891
      %v2980 = vunpack.c.h.bf16 %v2892
      %v2981 = vunpack.c.l.bf16 %v2893
      %v2982 = vunpack.c.l.bf16 %v2894
      %v2983 = vunpack.c.l.bf16 %v2895
      %v2984 = vunpack.c.l.bf16 %v2896
      %v2985 = vunpack.c.h.bf16 %v2893
      %v2986 = vunpack.c.h.bf16 %v2894
      %v2987 = vunpack.c.h.bf16 %v2895
      %v2988 = vunpack.c.h.bf16 %v2896
      %v2989 = vunpack.c.l.bf16 %v2897
      %v2990 = vunpack.c.l.bf16 %v2898
      %v2991 = vunpack.c.l.bf16 %v2899
      %v2992 = vunpack.c.l.bf16 %v2900
      %v2993 = vunpack.c.h.bf16 %v2897
      %v2994 = vunpack.c.h.bf16 %v2898
      %v2995 = vunpack.c.h.bf16 %v2899
      %v2996 = vunpack.c.h.bf16 %v2900
      %v2997 = vunpack.c.l.bf16 %v2901
      %v2998 = vunpack.c.l.bf16 %v2902
      %v2999 = vunpack.c.l.bf16 %v2903
      %v3000 = vunpack.c.l.bf16 %v2904
      %v3001 = vunpack.c.h.bf16 %v2901
      %v3002 = vunpack.c.h.bf16 %v2902
      %v3003 = vunpack.c.h.bf16 %v2903
      %v3004 = vunpack.c.h.bf16 %v2904
      %v3005 = vunpack.c.l.bf16 %v2905
      %v3006 = vunpack.c.l.bf16 %v2906
      %v3007 = vunpack.c.l.bf16 %v2907
      %v3008 = vunpack.c.l.bf16 %v2908
      %v3009 = vunpack.c.h.bf16 %v2905
      %v3010 = vunpack.c.h.bf16 %v2906
      %v3011 = vunpack.c.h.bf16 %v2907
      %v3012 = vunpack.c.h.bf16 %v2908
      %v3013 = vunpack.c.l.bf16 %v2909
      %v3014 = vunpack.c.l.bf16 %v2910
      %v3015 = vunpack.c.l.bf16 %v2911
      %v3016 = vunpack.c.l.bf16 %v2912
      %v3017 = vunpack.c.h.bf16 %v2909
      %v3018 = vunpack.c.h.bf16 %v2910
      %v3019 = vunpack.c.h.bf16 %v2911
      %v3020 = vunpack.c.h.bf16 %v2912
      %v3021 = vunpack.c.l.bf16 %v2913
      %v3022 = vunpack.c.l.bf16 %v2914
      %v3023 = vunpack.c.l.bf16 %v2915
      %v3024 = vunpack.c.l.bf16 %v2916
      %v3025 = vunpack.c.h.bf16 %v2913
      %v3026 = vunpack.c.h.bf16 %v2914
      %v3027 = vunpack.c.h.bf16 %v2915
      %v3028 = vunpack.c.h.bf16 %v2916
      %v3029 = vunpack.c.l.bf16 %v2917
      %v3030 = vunpack.c.l.bf16 %v2918
      %v3031 = vunpack.c.l.bf16 %v2919
      %v3032 = vunpack.c.l.bf16 %v2920
      %v3033 = vunpack.c.h.bf16 %v2917
      %v3034 = vunpack.c.h.bf16 %v2918
      %v3035 = vunpack.c.h.bf16 %v2919
      %v3036 = vunpack.c.h.bf16 %v2920
      %v3037 = vunpack.c.l.bf16 %v2921
      %v3038 = vunpack.c.l.bf16 %v2922
      %v3039 = vunpack.c.l.bf16 %v2923
      %v3040 = vunpack.c.l.bf16 %v2924
      %v3041 = vunpack.c.h.bf16 %v2921
      %v3042 = vunpack.c.h.bf16 %v2922
      %v3043 = vunpack.c.h.bf16 %v2923
      %v3044 = vunpack.c.h.bf16 %v2924
      %v3045 = vunpack.c.l.bf16 %v2925
      %v3046 = vunpack.c.l.bf16 %v2926
      %v3047 = vunpack.c.l.bf16 %v2927
      %v3048 = vunpack.c.l.bf16 %v2928
      %v3049 = vunpack.c.h.bf16 %v2925
      %v3050 = vunpack.c.h.bf16 %v2926
      %v3051 = vunpack.c.h.bf16 %v2927
      %v3052 = vunpack.c.h.bf16 %v2928
      %v3053 = vunpack.c.l.bf16 %v2929
      %v3054 = vunpack.c.l.bf16 %v2930
      %v3055 = vunpack.c.l.bf16 %v2931
      %v3056 = vunpack.c.l.bf16 %v2932
      %v3057 = vunpack.c.h.bf16 %v2929
      %v3058 = vunpack.c.h.bf16 %v2930
      %v3059 = vunpack.c.h.bf16 %v2931
      %v3060 = vunpack.c.h.bf16 %v2932
      %v3061 = vadd.f32 %v2933, %v2934
      %v3062 = vadd.f32 %v3061, %v2935
      %v3063 = vadd.f32 %v3062, %v2936
      %3064 = vadd.xlane.f32.xlu0 %v3063
      %v3065 = vpop.xlane.xlu0 %3064
      %v3066 = vadd.f32 %v2937, %v2938
      %v3067 = vadd.f32 %v3066, %v2939
      %v3068 = vadd.f32 %v3067, %v2940
      %3069 = vadd.xlane.f32.xlu0 %v3068
      %v3070 = vpop.xlane.xlu0 %3069
      %v3071 = vadd.f32 %v2941, %v2942
      %v3072 = vadd.f32 %v3071, %v2943
      %v3073 = vadd.f32 %v3072, %v2944
      %3074 = vadd.xlane.f32.xlu0 %v3073
      %v3075 = vpop.xlane.xlu0 %3074
      %v3076 = vadd.f32 %v2945, %v2946
      %v3077 = vadd.f32 %v3076, %v2947
      %v3078 = vadd.f32 %v3077, %v2948
      %3079 = vadd.xlane.f32.xlu0 %v3078
      %v3080 = vpop.xlane.xlu0 %3079
      %v3081 = vadd.f32 %v2949, %v2950
      %v3082 = vadd.f32 %v3081, %v2951
      %v3083 = vadd.f32 %v3082, %v2952
      %3084 = vadd.xlane.f32.xlu0 %v3083
      %v3085 = vpop.xlane.xlu0 %3084
      %v3086 = vadd.f32 %v2953, %v2954
      %v3087 = vadd.f32 %v3086, %v2955
      %v3088 = vadd.f32 %v3087, %v2956
      %3089 = vadd.xlane.f32.xlu0 %v3088
      %v3090 = vpop.xlane.xlu0 %3089
      %v3091 = vadd.f32 %v2957, %v2958
      %v3092 = vadd.f32 %v3091, %v2959
      %v3093 = vadd.f32 %v3092, %v2960
      %3094 = vadd.xlane.f32.xlu0 %v3093
      %v3095 = vpop.xlane.xlu0 %3094
      %v3096 = vadd.f32 %v2961, %v2962
      %v3097 = vadd.f32 %v3096, %v2963
      %v3098 = vadd.f32 %v3097, %v2964
      %3099 = vadd.xlane.f32.xlu0 %v3098
      %v3100 = vpop.xlane.xlu0 %3099
      %v3101 = vadd.f32 %v2965, %v2966
      %v3102 = vadd.f32 %v3101, %v2967
      %v3103 = vadd.f32 %v3102, %v2968
      %3104 = vadd.xlane.f32.xlu0 %v3103
      %v3105 = vpop.xlane.xlu0 %3104
      %v3106 = vadd.f32 %v2969, %v2970
      %v3107 = vadd.f32 %v3106, %v2971
      %v3108 = vadd.f32 %v3107, %v2972
      %3109 = vadd.xlane.f32.xlu0 %v3108
      %v3110 = vpop.xlane.xlu0 %3109
      %v3111 = vadd.f32 %v2973, %v2974
      %v3112 = vadd.f32 %v3111, %v2975
      %v3113 = vadd.f32 %v3112, %v2976
      %3114 = vadd.xlane.f32.xlu0 %v3113
      %v3115 = vpop.xlane.xlu0 %3114
      %v3116 = vadd.f32 %v2977, %v2978
      %v3117 = vadd.f32 %v3116, %v2979
      %v3118 = vadd.f32 %v3117, %v2980
      %3119 = vadd.xlane.f32.xlu0 %v3118
      %v3120 = vpop.xlane.xlu0 %3119
      %v3121 = vadd.f32 %v2981, %v2982
      %v3122 = vadd.f32 %v3121, %v2983
      %v3123 = vadd.f32 %v3122, %v2984
      %3124 = vadd.xlane.f32.xlu0 %v3123
      %v3125 = vpop.xlane.xlu0 %3124
      %v3126 = vadd.f32 %v2985, %v2986
      %v3127 = vadd.f32 %v3126, %v2987
      %v3128 = vadd.f32 %v3127, %v2988
      %3129 = vadd.xlane.f32.xlu0 %v3128
      %v3130 = vpop.xlane.xlu0 %3129
      %v3131 = vadd.f32 %v2989, %v2990
      %v3132 = vadd.f32 %v3131, %v2991
      %v3133 = vadd.f32 %v3132, %v2992
      %3134 = vadd.xlane.f32.xlu0 %v3133
      %v3135 = vpop.xlane.xlu0 %3134
      %v3136 = vadd.f32 %v2993, %v2994
      %v3137 = vadd.f32 %v3136, %v2995
      %v3138 = vadd.f32 %v3137, %v2996
      %3139 = vadd.xlane.f32.xlu0 %v3138
      %v3140 = vpop.xlane.xlu0 %3139
      %v3141 = vadd.f32 %v2997, %v2998
      %v3142 = vadd.f32 %v3141, %v2999
      %v3143 = vadd.f32 %v3142, %v3000
      %3144 = vadd.xlane.f32.xlu0 %v3143
      %v3145 = vpop.xlane.xlu0 %3144
      %v3146 = vadd.f32 %v3001, %v3002
      %v3147 = vadd.f32 %v3146, %v3003
      %v3148 = vadd.f32 %v3147, %v3004
      %3149 = vadd.xlane.f32.xlu0 %v3148
      %v3150 = vpop.xlane.xlu0 %3149
      %v3151 = vadd.f32 %v3005, %v3006
      %v3152 = vadd.f32 %v3151, %v3007
      %v3153 = vadd.f32 %v3152, %v3008
      %3154 = vadd.xlane.f32.xlu0 %v3153
      %v3155 = vpop.xlane.xlu0 %3154
      %v3156 = vadd.f32 %v3009, %v3010
      %v3157 = vadd.f32 %v3156, %v3011
      %v3158 = vadd.f32 %v3157, %v3012
      %3159 = vadd.xlane.f32.xlu0 %v3158
      %v3160 = vpop.xlane.xlu0 %3159
      %v3161 = vadd.f32 %v3013, %v3014
      %v3162 = vadd.f32 %v3161, %v3015
      %v3163 = vadd.f32 %v3162, %v3016
      %3164 = vadd.xlane.f32.xlu0 %v3163
      %v3165 = vpop.xlane.xlu0 %3164
      %v3166 = vadd.f32 %v3017, %v3018
      %v3167 = vadd.f32 %v3166, %v3019
      %v3168 = vadd.f32 %v3167, %v3020
      %3169 = vadd.xlane.f32.xlu0 %v3168
      %v3170 = vpop.xlane.xlu0 %3169
      %v3171 = vadd.f32 %v3021, %v3022
      %v3172 = vadd.f32 %v3171, %v3023
      %v3173 = vadd.f32 %v3172, %v3024
      %3174 = vadd.xlane.f32.xlu0 %v3173
      %v3175 = vpop.xlane.xlu0 %3174
      %v3176 = vadd.f32 %v3025, %v3026
      %v3177 = vadd.f32 %v3176, %v3027
      %v3178 = vadd.f32 %v3177, %v3028
      %3179 = vadd.xlane.f32.xlu0 %v3178
      %v3180 = vpop.xlane.xlu0 %3179
      %v3181 = vadd.f32 %v3029, %v3030
      %v3182 = vadd.f32 %v3181, %v3031
      %v3183 = vadd.f32 %v3182, %v3032
      %3184 = vadd.xlane.f32.xlu0 %v3183
      %v3185 = vpop.xlane.xlu0 %3184
      %v3186 = vadd.f32 %v3033, %v3034
      %v3187 = vadd.f32 %v3186, %v3035
      %v3188 = vadd.f32 %v3187, %v3036
      %3189 = vadd.xlane.f32.xlu0 %v3188
      %v3190 = vpop.xlane.xlu0 %3189
      %v3191 = vadd.f32 %v3037, %v3038
      %v3192 = vadd.f32 %v3191, %v3039
      %v3193 = vadd.f32 %v3192, %v3040
      %3194 = vadd.xlane.f32.xlu0 %v3193
      %v3195 = vpop.xlane.xlu0 %3194
      %v3196 = vadd.f32 %v3041, %v3042
      %v3197 = vadd.f32 %v3196, %v3043
      %v3198 = vadd.f32 %v3197, %v3044
      %3199 = vadd.xlane.f32.xlu0 %v3198
      %v3200 = vpop.xlane.xlu0 %3199
      %v3201 = vadd.f32 %v3045, %v3046
      %v3202 = vadd.f32 %v3201, %v3047
      %v3203 = vadd.f32 %v3202, %v3048
      %3204 = vadd.xlane.f32.xlu0 %v3203
      %v3205 = vpop.xlane.xlu0 %3204
      %v3206 = vadd.f32 %v3049, %v3050
      %v3207 = vadd.f32 %v3206, %v3051
      %v3208 = vadd.f32 %v3207, %v3052
      %3209 = vadd.xlane.f32.xlu0 %v3208
      %v3210 = vpop.xlane.xlu0 %3209
      %v3211 = vadd.f32 %v3053, %v3054
      %v3212 = vadd.f32 %v3211, %v3055
      %v3213 = vadd.f32 %v3212, %v3056
      %3214 = vadd.xlane.f32.xlu0 %v3213
      %v3215 = vpop.xlane.xlu0 %3214
      %v3216 = vadd.f32 %v3057, %v3058
      %v3217 = vadd.f32 %v3216, %v3059
      %v3218 = vadd.f32 %v3217, %v3060
      %3219 = vadd.xlane.f32.xlu0 %v3218
      %v3220 = vpop.xlane.xlu0 %3219
      %3221 = vmatpush.bf16.msra.mxu0 %v984
      %3222 = vmatpush.bf16.msra.mxu0 %v983
      %3223 = vmatpush.bf16.msra.mxu0 %v982
      %3224 = vmatpush.bf16.msra.mxu0 %v981
      %3225 = vmatpush.bf16.msra.mxu0 %v980
      %3226 = vmatpush.bf16.msra.mxu0 %v979
      %3227 = vmatpush.bf16.msra.mxu0 %v978
      %3228 = vmatpush.bf16.msra.mxu0 %v977
      %3229 = vmatmul.bf16.gmra.mxu0 %v2869
      %v3230 = vpop.f32.mrf.mxu0
      %v3231 = vadd.f32 0.0, %v3230
      %v3232 = vpop.f32.mrf.mxu0
      %v3233 = vadd.f32 0.0, %v3232
      %3234 = vmatmul.bf16.gmra.mxu0 %v2873
      %v3235 = vpop.f32.mrf.mxu0
      %v3236 = vadd.f32 0.0, %v3235
      %v3237 = vpop.f32.mrf.mxu0
      %v3238 = vadd.f32 0.0, %v3237
      %3239 = vmatmul.bf16.gmra.mxu0 %v2877
      %v3240 = vpop.f32.mrf.mxu0
      %v3241 = vadd.f32 0.0, %v3240
      %v3242 = vpop.f32.mrf.mxu0
      %v3243 = vadd.f32 0.0, %v3242
      %3244 = vmatmul.bf16.gmra.mxu0 %v2881
      %v3245 = vpop.f32.mrf.mxu0
      %v3246 = vadd.f32 0.0, %v3245
      %v3247 = vpop.f32.mrf.mxu0
      %v3248 = vadd.f32 0.0, %v3247
      %3249 = vmatmul.bf16.gmra.mxu0 %v2885
      %v3250 = vpop.f32.mrf.mxu0
      %v3251 = vadd.f32 0.0, %v3250
      %v3252 = vpop.f32.mrf.mxu0
      %v3253 = vadd.f32 0.0, %v3252
      %3254 = vmatmul.bf16.gmra.mxu0 %v2889
      %v3255 = vpop.f32.mrf.mxu0
      %v3256 = vadd.f32 0.0, %v3255
      %v3257 = vpop.f32.mrf.mxu0
      %v3258 = vadd.f32 0.0, %v3257
      %3259 = vmatmul.bf16.gmra.mxu0 %v2893
      %v3260 = vpop.f32.mrf.mxu0
      %v3261 = vadd.f32 0.0, %v3260
      %v3262 = vpop.f32.mrf.mxu0
      %v3263 = vadd.f32 0.0, %v3262
      %3264 = vmatmul.bf16.gmra.mxu0 %v2897
      %v3265 = vpop.f32.mrf.mxu0
      %v3266 = vadd.f32 0.0, %v3265
      %v3267 = vpop.f32.mrf.mxu0
      %v3268 = vadd.f32 0.0, %v3267
      %3269 = vmatmul.bf16.gmra.mxu0 %v2901
      %v3270 = vpop.f32.mrf.mxu0
      %v3271 = vadd.f32 0.0, %v3270
      %v3272 = vpop.f32.mrf.mxu0
      %v3273 = vadd.f32 0.0, %v3272
      %3274 = vmatmul.bf16.gmra.mxu0 %v2905
      %v3275 = vpop.f32.mrf.mxu0
      %v3276 = vadd.f32 0.0, %v3275
      %v3277 = vpop.f32.mrf.mxu0
      %v3278 = vadd.f32 0.0, %v3277
      %3279 = vmatmul.bf16.gmra.mxu0 %v2909
      %v3280 = vpop.f32.mrf.mxu0
      %v3281 = vadd.f32 0.0, %v3280
      %v3282 = vpop.f32.mrf.mxu0
      %v3283 = vadd.f32 0.0, %v3282
      %3284 = vmatmul.bf16.gmra.mxu0 %v2913
      %v3285 = vpop.f32.mrf.mxu0
      %v3286 = vadd.f32 0.0, %v3285
      %v3287 = vpop.f32.mrf.mxu0
      %v3288 = vadd.f32 0.0, %v3287
      %3289 = vmatmul.bf16.gmra.mxu0 %v2917
      %v3290 = vpop.f32.mrf.mxu0
      %v3291 = vadd.f32 0.0, %v3290
      %v3292 = vpop.f32.mrf.mxu0
      %v3293 = vadd.f32 0.0, %v3292
      %3294 = vmatmul.bf16.gmra.mxu0 %v2921
      %v3295 = vpop.f32.mrf.mxu0
      %v3296 = vadd.f32 0.0, %v3295
      %v3297 = vpop.f32.mrf.mxu0
      %v3298 = vadd.f32 0.0, %v3297
      %3299 = vmatmul.bf16.gmra.mxu0 %v2925
      %v3300 = vpop.f32.mrf.mxu0
      %v3301 = vadd.f32 0.0, %v3300
      %v3302 = vpop.f32.mrf.mxu0
      %v3303 = vadd.f32 0.0, %v3302
      %3304 = vmatmul.bf16.gmra.mxu0 %v2929
      %v3305 = vpop.f32.mrf.mxu0
      %v3306 = vadd.f32 0.0, %v3305
      %v3307 = vpop.f32.mrf.mxu0
      %v3308 = vadd.f32 0.0, %v3307
      %3309 = vdwg.mxu0
      %3310 = vmatpush.bf16.msra.mxu0 %v992
      %3311 = vmatpush.bf16.msra.mxu0 %v991
      %3312 = vmatpush.bf16.msra.mxu0 %v990
      %3313 = vmatpush.bf16.msra.mxu0 %v989
      %3314 = vmatpush.bf16.msra.mxu0 %v988
      %3315 = vmatpush.bf16.msra.mxu0 %v987
      %3316 = vmatpush.bf16.msra.mxu0 %v986
      %3317 = vmatpush.bf16.msra.mxu0 %v985
      %3318 = vmatmul.bf16.gmra.mxu0 %v2870
      %v3319 = vpop.f32.mrf.mxu0
      %v3320 = vadd.f32 %v3231, %v3319
      %v3321 = vpop.f32.mrf.mxu0
      %v3322 = vadd.f32 %v3233, %v3321
      %3323 = vmatmul.bf16.gmra.mxu0 %v2874
      %v3324 = vpop.f32.mrf.mxu0
      %v3325 = vadd.f32 %v3236, %v3324
      %v3326 = vpop.f32.mrf.mxu0
      %v3327 = vadd.f32 %v3238, %v3326
      %3328 = vmatmul.bf16.gmra.mxu0 %v2878
      %v3329 = vpop.f32.mrf.mxu0
      %v3330 = vadd.f32 %v3241, %v3329
      %v3331 = vpop.f32.mrf.mxu0
      %v3332 = vadd.f32 %v3243, %v3331
      %3333 = vmatmul.bf16.gmra.mxu0 %v2882
      %v3334 = vpop.f32.mrf.mxu0
      %v3335 = vadd.f32 %v3246, %v3334
      %v3336 = vpop.f32.mrf.mxu0
      %v3337 = vadd.f32 %v3248, %v3336
      %3338 = vmatmul.bf16.gmra.mxu0 %v2886
      %v3339 = vpop.f32.mrf.mxu0
      %v3340 = vadd.f32 %v3251, %v3339
      %v3341 = vpop.f32.mrf.mxu0
      %v3342 = vadd.f32 %v3253, %v3341
      %3343 = vmatmul.bf16.gmra.mxu0 %v2890
      %v3344 = vpop.f32.mrf.mxu0
      %v3345 = vadd.f32 %v3256, %v3344
      %v3346 = vpop.f32.mrf.mxu0
      %v3347 = vadd.f32 %v3258, %v3346
      %3348 = vmatmul.bf16.gmra.mxu0 %v2894
      %v3349 = vpop.f32.mrf.mxu0
      %v3350 = vadd.f32 %v3261, %v3349
      %v3351 = vpop.f32.mrf.mxu0
      %v3352 = vadd.f32 %v3263, %v3351
      %3353 = vmatmul.bf16.gmra.mxu0 %v2898
      %v3354 = vpop.f32.mrf.mxu0
      %v3355 = vadd.f32 %v3266, %v3354
      %v3356 = vpop.f32.mrf.mxu0
      %v3357 = vadd.f32 %v3268, %v3356
      %3358 = vmatmul.bf16.gmra.mxu0 %v2902
      %v3359 = vpop.f32.mrf.mxu0
      %v3360 = vadd.f32 %v3271, %v3359
      %v3361 = vpop.f32.mrf.mxu0
      %v3362 = vadd.f32 %v3273, %v3361
      %3363 = vmatmul.bf16.gmra.mxu0 %v2906
      %v3364 = vpop.f32.mrf.mxu0
      %v3365 = vadd.f32 %v3276, %v3364
      %v3366 = vpop.f32.mrf.mxu0
      %v3367 = vadd.f32 %v3278, %v3366
      %3368 = vmatmul.bf16.gmra.mxu0 %v2910
      %v3369 = vpop.f32.mrf.mxu0
      %v3370 = vadd.f32 %v3281, %v3369
      %v3371 = vpop.f32.mrf.mxu0
      %v3372 = vadd.f32 %v3283, %v3371
      %3373 = vmatmul.bf16.gmra.mxu0 %v2914
      %v3374 = vpop.f32.mrf.mxu0
      %v3375 = vadd.f32 %v3286, %v3374
      %v3376 = vpop.f32.mrf.mxu0
      %v3377 = vadd.f32 %v3288, %v3376
      %3378 = vmatmul.bf16.gmra.mxu0 %v2918
      %v3379 = vpop.f32.mrf.mxu0
      %v3380 = vadd.f32 %v3291, %v3379
      %v3381 = vpop.f32.mrf.mxu0
      %v3382 = vadd.f32 %v3293, %v3381
      %3383 = vmatmul.bf16.gmra.mxu0 %v2922
      %v3384 = vpop.f32.mrf.mxu0
      %v3385 = vadd.f32 %v3296, %v3384
      %v3386 = vpop.f32.mrf.mxu0
      %v3387 = vadd.f32 %v3298, %v3386
      %3388 = vmatmul.bf16.gmra.mxu0 %v2926
      %v3389 = vpop.f32.mrf.mxu0
      %v3390 = vadd.f32 %v3301, %v3389
      %v3391 = vpop.f32.mrf.mxu0
      %v3392 = vadd.f32 %v3303, %v3391
      %3393 = vmatmul.bf16.gmra.mxu0 %v2930
      %v3394 = vpop.f32.mrf.mxu0
      %v3395 = vadd.f32 %v3306, %v3394
      %v3396 = vpop.f32.mrf.mxu0
      %v3397 = vadd.f32 %v3308, %v3396
      %3398 = vdwg.mxu0
      %3399 = vmatpush.bf16.msra.mxu0 %v1000
      %3400 = vmatpush.bf16.msra.mxu0 %v999
      %3401 = vmatpush.bf16.msra.mxu0 %v998
      %3402 = vmatpush.bf16.msra.mxu0 %v997
      %3403 = vmatpush.bf16.msra.mxu0 %v996
      %3404 = vmatpush.bf16.msra.mxu0 %v995
      %3405 = vmatpush.bf16.msra.mxu0 %v994
      %3406 = vmatpush.bf16.msra.mxu0 %v993
      %3407 = vmatmul.bf16.gmra.mxu0 %v2871
      %v3408 = vpop.f32.mrf.mxu0
      %v3409 = vadd.f32 %v3320, %v3408
      %v3410 = vpop.f32.mrf.mxu0
      %v3411 = vadd.f32 %v3322, %v3410
      %3412 = vmatmul.bf16.gmra.mxu0 %v2875
      %v3413 = vpop.f32.mrf.mxu0
      %v3414 = vadd.f32 %v3325, %v3413
      %v3415 = vpop.f32.mrf.mxu0
      %v3416 = vadd.f32 %v3327, %v3415
      %3417 = vmatmul.bf16.gmra.mxu0 %v2879
      %v3418 = vpop.f32.mrf.mxu0
      %v3419 = vadd.f32 %v3330, %v3418
      %v3420 = vpop.f32.mrf.mxu0
      %v3421 = vadd.f32 %v3332, %v3420
      %3422 = vmatmul.bf16.gmra.mxu0 %v2883
      %v3423 = vpop.f32.mrf.mxu0
      %v3424 = vadd.f32 %v3335, %v3423
      %v3425 = vpop.f32.mrf.mxu0
      %v3426 = vadd.f32 %v3337, %v3425
      %3427 = vmatmul.bf16.gmra.mxu0 %v2887
      %v3428 = vpop.f32.mrf.mxu0
      %v3429 = vadd.f32 %v3340, %v3428
      %v3430 = vpop.f32.mrf.mxu0
      %v3431 = vadd.f32 %v3342, %v3430
      %3432 = vmatmul.bf16.gmra.mxu0 %v2891
      %v3433 = vpop.f32.mrf.mxu0
      %v3434 = vadd.f32 %v3345, %v3433
      %v3435 = vpop.f32.mrf.mxu0
      %v3436 = vadd.f32 %v3347, %v3435
      %3437 = vmatmul.bf16.gmra.mxu0 %v2895
      %v3438 = vpop.f32.mrf.mxu0
      %v3439 = vadd.f32 %v3350, %v3438
      %v3440 = vpop.f32.mrf.mxu0
      %v3441 = vadd.f32 %v3352, %v3440
      %3442 = vmatmul.bf16.gmra.mxu0 %v2899
      %v3443 = vpop.f32.mrf.mxu0
      %v3444 = vadd.f32 %v3355, %v3443
      %v3445 = vpop.f32.mrf.mxu0
      %v3446 = vadd.f32 %v3357, %v3445
      %3447 = vmatmul.bf16.gmra.mxu0 %v2903
      %v3448 = vpop.f32.mrf.mxu0
      %v3449 = vadd.f32 %v3360, %v3448
      %v3450 = vpop.f32.mrf.mxu0
      %v3451 = vadd.f32 %v3362, %v3450
      %3452 = vmatmul.bf16.gmra.mxu0 %v2907
      %v3453 = vpop.f32.mrf.mxu0
      %v3454 = vadd.f32 %v3365, %v3453
      %v3455 = vpop.f32.mrf.mxu0
      %v3456 = vadd.f32 %v3367, %v3455
      %3457 = vmatmul.bf16.gmra.mxu0 %v2911
      %v3458 = vpop.f32.mrf.mxu0
      %v3459 = vadd.f32 %v3370, %v3458
      %v3460 = vpop.f32.mrf.mxu0
      %v3461 = vadd.f32 %v3372, %v3460
      %3462 = vmatmul.bf16.gmra.mxu0 %v2915
      %v3463 = vpop.f32.mrf.mxu0
      %v3464 = vadd.f32 %v3375, %v3463
      %v3465 = vpop.f32.mrf.mxu0
      %v3466 = vadd.f32 %v3377, %v3465
      %3467 = vmatmul.bf16.gmra.mxu0 %v2919
      %v3468 = vpop.f32.mrf.mxu0
      %v3469 = vadd.f32 %v3380, %v3468
      %v3470 = vpop.f32.mrf.mxu0
      %v3471 = vadd.f32 %v3382, %v3470
      %3472 = vmatmul.bf16.gmra.mxu0 %v2923
      %v3473 = vpop.f32.mrf.mxu0
      %v3474 = vadd.f32 %v3385, %v3473
      %v3475 = vpop.f32.mrf.mxu0
      %v3476 = vadd.f32 %v3387, %v3475
      %3477 = vmatmul.bf16.gmra.mxu0 %v2927
      %v3478 = vpop.f32.mrf.mxu0
      %v3479 = vadd.f32 %v3390, %v3478
      %v3480 = vpop.f32.mrf.mxu0
      %v3481 = vadd.f32 %v3392, %v3480
      %3482 = vmatmul.bf16.gmra.mxu0 %v2931
      %v3483 = vpop.f32.mrf.mxu0
      %v3484 = vadd.f32 %v3395, %v3483
      %v3485 = vpop.f32.mrf.mxu0
      %v3486 = vadd.f32 %v3397, %v3485
      %3487 = vdwg.mxu0
      %3488 = vmatpush.bf16.msra.mxu0 %v1008
      %3489 = vmatpush.bf16.msra.mxu0 %v1007
      %3490 = vmatpush.bf16.msra.mxu0 %v1006
      %3491 = vmatpush.bf16.msra.mxu0 %v1005
      %3492 = vmatpush.bf16.msra.mxu0 %v1004
      %3493 = vmatpush.bf16.msra.mxu0 %v1003
      %3494 = vmatpush.bf16.msra.mxu0 %v1002
      %3495 = vmatpush.bf16.msra.mxu0 %v1001
      %3496 = vmatmul.bf16.gmra.mxu0 %v2872
      %v3497 = vpop.f32.mrf.mxu0
      %v3498 = vadd.f32 %v3409, %v3497
      %v3499 = vpop.f32.mrf.mxu0
      %v3500 = vadd.f32 %v3411, %v3499
      %3501 = vmatmul.bf16.gmra.mxu0 %v2876
      %v3502 = vpop.f32.mrf.mxu0
      %v3503 = vadd.f32 %v3414, %v3502
      %v3504 = vpop.f32.mrf.mxu0
      %v3505 = vadd.f32 %v3416, %v3504
      %3506 = vmatmul.bf16.gmra.mxu0 %v2880
      %v3507 = vpop.f32.mrf.mxu0
      %v3508 = vadd.f32 %v3419, %v3507
      %v3509 = vpop.f32.mrf.mxu0
      %v3510 = vadd.f32 %v3421, %v3509
      %3511 = vmatmul.bf16.gmra.mxu0 %v2884
      %v3512 = vpop.f32.mrf.mxu0
      %v3513 = vadd.f32 %v3424, %v3512
      %v3514 = vpop.f32.mrf.mxu0
      %v3515 = vadd.f32 %v3426, %v3514
      %3516 = vmatmul.bf16.gmra.mxu0 %v2888
      %v3517 = vpop.f32.mrf.mxu0
      %v3518 = vadd.f32 %v3429, %v3517
      %v3519 = vpop.f32.mrf.mxu0
      %v3520 = vadd.f32 %v3431, %v3519
      %3521 = vmatmul.bf16.gmra.mxu0 %v2892
      %v3522 = vpop.f32.mrf.mxu0
      %v3523 = vadd.f32 %v3434, %v3522
      %v3524 = vpop.f32.mrf.mxu0
      %v3525 = vadd.f32 %v3436, %v3524
      %3526 = vmatmul.bf16.gmra.mxu0 %v2896
      %v3527 = vpop.f32.mrf.mxu0
      %v3528 = vadd.f32 %v3439, %v3527
      %v3529 = vpop.f32.mrf.mxu0
      %v3530 = vadd.f32 %v3441, %v3529
      %3531 = vmatmul.bf16.gmra.mxu0 %v2900
      %v3532 = vpop.f32.mrf.mxu0
      %v3533 = vadd.f32 %v3444, %v3532
      %v3534 = vpop.f32.mrf.mxu0
      %v3535 = vadd.f32 %v3446, %v3534
      %3536 = vmatmul.bf16.gmra.mxu0 %v2904
      %v3537 = vpop.f32.mrf.mxu0
      %v3538 = vadd.f32 %v3449, %v3537
      %v3539 = vpop.f32.mrf.mxu0
      %v3540 = vadd.f32 %v3451, %v3539
      %3541 = vmatmul.bf16.gmra.mxu0 %v2908
      %v3542 = vpop.f32.mrf.mxu0
      %v3543 = vadd.f32 %v3454, %v3542
      %v3544 = vpop.f32.mrf.mxu0
      %v3545 = vadd.f32 %v3456, %v3544
      %3546 = vmatmul.bf16.gmra.mxu0 %v2912
      %v3547 = vpop.f32.mrf.mxu0
      %v3548 = vadd.f32 %v3459, %v3547
      %v3549 = vpop.f32.mrf.mxu0
      %v3550 = vadd.f32 %v3461, %v3549
      %3551 = vmatmul.bf16.gmra.mxu0 %v2916
      %v3552 = vpop.f32.mrf.mxu0
      %v3553 = vadd.f32 %v3464, %v3552
      %v3554 = vpop.f32.mrf.mxu0
      %v3555 = vadd.f32 %v3466, %v3554
      %3556 = vmatmul.bf16.gmra.mxu0 %v2920
      %v3557 = vpop.f32.mrf.mxu0
      %v3558 = vadd.f32 %v3469, %v3557
      %v3559 = vpop.f32.mrf.mxu0
      %v3560 = vadd.f32 %v3471, %v3559
      %3561 = vmatmul.bf16.gmra.mxu0 %v2924
      %v3562 = vpop.f32.mrf.mxu0
      %v3563 = vadd.f32 %v3474, %v3562
      %v3564 = vpop.f32.mrf.mxu0
      %v3565 = vadd.f32 %v3476, %v3564
      %3566 = vmatmul.bf16.gmra.mxu0 %v2928
      %v3567 = vpop.f32.mrf.mxu0
      %v3568 = vadd.f32 %v3479, %v3567
      %v3569 = vpop.f32.mrf.mxu0
      %v3570 = vadd.f32 %v3481, %v3569
      %3571 = vmatmul.bf16.gmra.mxu0 %v2932
      %v3572 = vpop.f32.mrf.mxu0
      %v3573 = vadd.f32 %v3484, %v3572
      %v3574 = vpop.f32.mrf.mxu0
      %v3575 = vadd.f32 %v3486, %v3574
      %3576 = vdwg.mxu0
      %v3577 = vrcp.pop %v3065
      %v3578 = vmul.f32 %v3065, %v3577
      %v3579 = vsub.f32 1.0, %v3578
      %v3580 = vmul.f32 %v3577, %v3579
      %v3581 = vadd.f32 %v3577, %v3580
      %vm3582 = vweird.f32 %v3065
      %vm3583 = vweird.f32 %v3577
      %vm3584 = vmor %vm3582, %vm3583
      %v3585 = vsel %vm3584, %v3577, %v3581
      %v3586 = vand.u32 2147483647, %v3065
      %vm3587 = vcmp.eq.f32.partialorder %v3586, 8.507059e+37
      %v3588 = vand.u32 %v3065, 2147483648
      %v3589 = vor.u32 1.1754944e-38, %v3588
      %v3590 = vsel %vm3587, %v3589, %v3585
      %v3591 = vmul.f32 %v3498, %v3590
      %v3592 = vrcp.pop %v3070
      %v3593 = vmul.f32 %v3070, %v3592
      %v3594 = vsub.f32 1.0, %v3593
      %v3595 = vmul.f32 %v3592, %v3594
      %v3596 = vadd.f32 %v3592, %v3595
      %vm3597 = vweird.f32 %v3070
      %vm3598 = vweird.f32 %v3592
      %vm3599 = vmor %vm3597, %vm3598
      %v3600 = vsel %vm3599, %v3592, %v3596
      %v3601 = vand.u32 2147483647, %v3070
      %vm3602 = vcmp.eq.f32.partialorder %v3601, 8.507059e+37
      %v3603 = vand.u32 %v3070, 2147483648
      %v3604 = vor.u32 1.1754944e-38, %v3603
      %v3605 = vsel %vm3602, %v3604, %v3600
      %v3606 = vmul.f32 %v3500, %v3605
      %v3607 = vrcp.pop %v3075
      %v3608 = vmul.f32 %v3075, %v3607
      %v3609 = vsub.f32 1.0, %v3608
      %v3610 = vmul.f32 %v3607, %v3609
      %v3611 = vadd.f32 %v3607, %v3610
      %vm3612 = vweird.f32 %v3075
      %vm3613 = vweird.f32 %v3607
      %vm3614 = vmor %vm3612, %vm3613
      %v3615 = vsel %vm3614, %v3607, %v3611
      %v3616 = vand.u32 2147483647, %v3075
      %vm3617 = vcmp.eq.f32.partialorder %v3616, 8.507059e+37
      %v3618 = vand.u32 %v3075, 2147483648
      %v3619 = vor.u32 1.1754944e-38, %v3618
      %v3620 = vsel %vm3617, %v3619, %v3615
      %v3621 = vmul.f32 %v3503, %v3620
      %v3622 = vrcp.pop %v3080
      %v3623 = vmul.f32 %v3080, %v3622
      %v3624 = vsub.f32 1.0, %v3623
      %v3625 = vmul.f32 %v3622, %v3624
      %v3626 = vadd.f32 %v3622, %v3625
      %vm3627 = vweird.f32 %v3080
      %vm3628 = vweird.f32 %v3622
      %vm3629 = vmor %vm3627, %vm3628
      %v3630 = vsel %vm3629, %v3622, %v3626
      %v3631 = vand.u32 2147483647, %v3080
      %vm3632 = vcmp.eq.f32.partialorder %v3631, 8.507059e+37
      %v3633 = vand.u32 %v3080, 2147483648
      %v3634 = vor.u32 1.1754944e-38, %v3633
      %v3635 = vsel %vm3632, %v3634, %v3630
      %v3636 = vmul.f32 %v3505, %v3635
      %v3637 = vrcp.pop %v3085
      %v3638 = vmul.f32 %v3085, %v3637
      %v3639 = vsub.f32 1.0, %v3638
      %v3640 = vmul.f32 %v3637, %v3639
      %v3641 = vadd.f32 %v3637, %v3640
      %vm3642 = vweird.f32 %v3085
      %vm3643 = vweird.f32 %v3637
      %vm3644 = vmor %vm3642, %vm3643
      %v3645 = vsel %vm3644, %v3637, %v3641
      %v3646 = vand.u32 2147483647, %v3085
      %vm3647 = vcmp.eq.f32.partialorder %v3646, 8.507059e+37
      %v3648 = vand.u32 %v3085, 2147483648
      %v3649 = vor.u32 1.1754944e-38, %v3648
      %v3650 = vsel %vm3647, %v3649, %v3645
      %v3651 = vmul.f32 %v3508, %v3650
      %v3652 = vrcp.pop %v3090
      %v3653 = vmul.f32 %v3090, %v3652
      %v3654 = vsub.f32 1.0, %v3653
      %v3655 = vmul.f32 %v3652, %v3654
      %v3656 = vadd.f32 %v3652, %v3655
      %vm3657 = vweird.f32 %v3090
      %vm3658 = vweird.f32 %v3652
      %vm3659 = vmor %vm3657, %vm3658
      %v3660 = vsel %vm3659, %v3652, %v3656
      %v3661 = vand.u32 2147483647, %v3090
      %vm3662 = vcmp.eq.f32.partialorder %v3661, 8.507059e+37
      %v3663 = vand.u32 %v3090, 2147483648
      %v3664 = vor.u32 1.1754944e-38, %v3663
      %v3665 = vsel %vm3662, %v3664, %v3660
      %v3666 = vmul.f32 %v3510, %v3665
      %v3667 = vrcp.pop %v3095
      %v3668 = vmul.f32 %v3095, %v3667
      %v3669 = vsub.f32 1.0, %v3668
      %v3670 = vmul.f32 %v3667, %v3669
      %v3671 = vadd.f32 %v3667, %v3670
      %vm3672 = vweird.f32 %v3095
      %vm3673 = vweird.f32 %v3667
      %vm3674 = vmor %vm3672, %vm3673
      %v3675 = vsel %vm3674, %v3667, %v3671
      %v3676 = vand.u32 2147483647, %v3095
      %vm3677 = vcmp.eq.f32.partialorder %v3676, 8.507059e+37
      %v3678 = vand.u32 %v3095, 2147483648
      %v3679 = vor.u32 1.1754944e-38, %v3678
      %v3680 = vsel %vm3677, %v3679, %v3675
      %v3681 = vmul.f32 %v3513, %v3680
      %v3682 = vrcp.pop %v3100
      %v3683 = vmul.f32 %v3100, %v3682
      %v3684 = vsub.f32 1.0, %v3683
      %v3685 = vmul.f32 %v3682, %v3684
      %v3686 = vadd.f32 %v3682, %v3685
      %vm3687 = vweird.f32 %v3100
      %vm3688 = vweird.f32 %v3682
      %vm3689 = vmor %vm3687, %vm3688
      %v3690 = vsel %vm3689, %v3682, %v3686
      %v3691 = vand.u32 2147483647, %v3100
      %vm3692 = vcmp.eq.f32.partialorder %v3691, 8.507059e+37
      %v3693 = vand.u32 %v3100, 2147483648
      %v3694 = vor.u32 1.1754944e-38, %v3693
      %v3695 = vsel %vm3692, %v3694, %v3690
      %v3696 = vmul.f32 %v3515, %v3695
      %v3697 = vrcp.pop %v3105
      %v3698 = vmul.f32 %v3105, %v3697
      %v3699 = vsub.f32 1.0, %v3698
      %v3700 = vmul.f32 %v3697, %v3699
      %v3701 = vadd.f32 %v3697, %v3700
      %vm3702 = vweird.f32 %v3105
      %vm3703 = vweird.f32 %v3697
      %vm3704 = vmor %vm3702, %vm3703
      %v3705 = vsel %vm3704, %v3697, %v3701
      %v3706 = vand.u32 2147483647, %v3105
      %vm3707 = vcmp.eq.f32.partialorder %v3706, 8.507059e+37
      %v3708 = vand.u32 %v3105, 2147483648
      %v3709 = vor.u32 1.1754944e-38, %v3708
      %v3710 = vsel %vm3707, %v3709, %v3705
      %v3711 = vmul.f32 %v3518, %v3710
      %v3712 = vrcp.pop %v3110
      %v3713 = vmul.f32 %v3110, %v3712
      %v3714 = vsub.f32 1.0, %v3713
      %v3715 = vmul.f32 %v3712, %v3714
      %v3716 = vadd.f32 %v3712, %v3715
      %vm3717 = vweird.f32 %v3110
      %vm3718 = vweird.f32 %v3712
      %vm3719 = vmor %vm3717, %vm3718
      %v3720 = vsel %vm3719, %v3712, %v3716
      %v3721 = vand.u32 2147483647, %v3110
      %vm3722 = vcmp.eq.f32.partialorder %v3721, 8.507059e+37
      %v3723 = vand.u32 %v3110, 2147483648
      %v3724 = vor.u32 1.1754944e-38, %v3723
      %v3725 = vsel %vm3722, %v3724, %v3720
      %v3726 = vmul.f32 %v3520, %v3725
      %v3727 = vrcp.pop %v3115
      %v3728 = vmul.f32 %v3115, %v3727
      %v3729 = vsub.f32 1.0, %v3728
      %v3730 = vmul.f32 %v3727, %v3729
      %v3731 = vadd.f32 %v3727, %v3730
      %vm3732 = vweird.f32 %v3115
      %vm3733 = vweird.f32 %v3727
      %vm3734 = vmor %vm3732, %vm3733
      %v3735 = vsel %vm3734, %v3727, %v3731
      %v3736 = vand.u32 2147483647, %v3115
      %vm3737 = vcmp.eq.f32.partialorder %v3736, 8.507059e+37
      %v3738 = vand.u32 %v3115, 2147483648
      %v3739 = vor.u32 1.1754944e-38, %v3738
      %v3740 = vsel %vm3737, %v3739, %v3735
      %v3741 = vmul.f32 %v3523, %v3740
      %v3742 = vrcp.pop %v3120
      %v3743 = vmul.f32 %v3120, %v3742
      %v3744 = vsub.f32 1.0, %v3743
      %v3745 = vmul.f32 %v3742, %v3744
      %v3746 = vadd.f32 %v3742, %v3745
      %vm3747 = vweird.f32 %v3120
      %vm3748 = vweird.f32 %v3742
      %vm3749 = vmor %vm3747, %vm3748
      %v3750 = vsel %vm3749, %v3742, %v3746
      %v3751 = vand.u32 2147483647, %v3120
      %vm3752 = vcmp.eq.f32.partialorder %v3751, 8.507059e+37
      %v3753 = vand.u32 %v3120, 2147483648
      %v3754 = vor.u32 1.1754944e-38, %v3753
      %v3755 = vsel %vm3752, %v3754, %v3750
      %v3756 = vmul.f32 %v3525, %v3755
      %v3757 = vrcp.pop %v3125
      %v3758 = vmul.f32 %v3125, %v3757
      %v3759 = vsub.f32 1.0, %v3758
      %v3760 = vmul.f32 %v3757, %v3759
      %v3761 = vadd.f32 %v3757, %v3760
      %vm3762 = vweird.f32 %v3125
      %vm3763 = vweird.f32 %v3757
      %vm3764 = vmor %vm3762, %vm3763
      %v3765 = vsel %vm3764, %v3757, %v3761
      %v3766 = vand.u32 2147483647, %v3125
      %vm3767 = vcmp.eq.f32.partialorder %v3766, 8.507059e+37
      %v3768 = vand.u32 %v3125, 2147483648
      %v3769 = vor.u32 1.1754944e-38, %v3768
      %v3770 = vsel %vm3767, %v3769, %v3765
      %v3771 = vmul.f32 %v3528, %v3770
      %v3772 = vrcp.pop %v3130
      %v3773 = vmul.f32 %v3130, %v3772
      %v3774 = vsub.f32 1.0, %v3773
      %v3775 = vmul.f32 %v3772, %v3774
      %v3776 = vadd.f32 %v3772, %v3775
      %vm3777 = vweird.f32 %v3130
      %vm3778 = vweird.f32 %v3772
      %vm3779 = vmor %vm3777, %vm3778
      %v3780 = vsel %vm3779, %v3772, %v3776
      %v3781 = vand.u32 2147483647, %v3130
      %vm3782 = vcmp.eq.f32.partialorder %v3781, 8.507059e+37
      %v3783 = vand.u32 %v3130, 2147483648
      %v3784 = vor.u32 1.1754944e-38, %v3783
      %v3785 = vsel %vm3782, %v3784, %v3780
      %v3786 = vmul.f32 %v3530, %v3785
      %v3787 = vrcp.pop %v3135
      %v3788 = vmul.f32 %v3135, %v3787
      %v3789 = vsub.f32 1.0, %v3788
      %v3790 = vmul.f32 %v3787, %v3789
      %v3791 = vadd.f32 %v3787, %v3790
      %vm3792 = vweird.f32 %v3135
      %vm3793 = vweird.f32 %v3787
      %vm3794 = vmor %vm3792, %vm3793
      %v3795 = vsel %vm3794, %v3787, %v3791
      %v3796 = vand.u32 2147483647, %v3135
      %vm3797 = vcmp.eq.f32.partialorder %v3796, 8.507059e+37
      %v3798 = vand.u32 %v3135, 2147483648
      %v3799 = vor.u32 1.1754944e-38, %v3798
      %v3800 = vsel %vm3797, %v3799, %v3795
      %v3801 = vmul.f32 %v3533, %v3800
      %v3802 = vrcp.pop %v3140
      %v3803 = vmul.f32 %v3140, %v3802
      %v3804 = vsub.f32 1.0, %v3803
      %v3805 = vmul.f32 %v3802, %v3804
      %v3806 = vadd.f32 %v3802, %v3805
      %vm3807 = vweird.f32 %v3140
      %vm3808 = vweird.f32 %v3802
      %vm3809 = vmor %vm3807, %vm3808
      %v3810 = vsel %vm3809, %v3802, %v3806
      %v3811 = vand.u32 2147483647, %v3140
      %vm3812 = vcmp.eq.f32.partialorder %v3811, 8.507059e+37
      %v3813 = vand.u32 %v3140, 2147483648
      %v3814 = vor.u32 1.1754944e-38, %v3813
      %v3815 = vsel %vm3812, %v3814, %v3810
      %v3816 = vmul.f32 %v3535, %v3815
      %v3817 = vrcp.pop %v3145
      %v3818 = vmul.f32 %v3145, %v3817
      %v3819 = vsub.f32 1.0, %v3818
      %v3820 = vmul.f32 %v3817, %v3819
      %v3821 = vadd.f32 %v3817, %v3820
      %vm3822 = vweird.f32 %v3145
      %vm3823 = vweird.f32 %v3817
      %vm3824 = vmor %vm3822, %vm3823
      %v3825 = vsel %vm3824, %v3817, %v3821
      %v3826 = vand.u32 2147483647, %v3145
      %vm3827 = vcmp.eq.f32.partialorder %v3826, 8.507059e+37
      %v3828 = vand.u32 %v3145, 2147483648
      %v3829 = vor.u32 1.1754944e-38, %v3828
      %v3830 = vsel %vm3827, %v3829, %v3825
      %v3831 = vmul.f32 %v3538, %v3830
      %v3832 = vrcp.pop %v3150
      %v3833 = vmul.f32 %v3150, %v3832
      %v3834 = vsub.f32 1.0, %v3833
      %v3835 = vmul.f32 %v3832, %v3834
      %v3836 = vadd.f32 %v3832, %v3835
      %vm3837 = vweird.f32 %v3150
      %vm3838 = vweird.f32 %v3832
      %vm3839 = vmor %vm3837, %vm3838
      %v3840 = vsel %vm3839, %v3832, %v3836
      %v3841 = vand.u32 2147483647, %v3150
      %vm3842 = vcmp.eq.f32.partialorder %v3841, 8.507059e+37
      %v3843 = vand.u32 %v3150, 2147483648
      %v3844 = vor.u32 1.1754944e-38, %v3843
      %v3845 = vsel %vm3842, %v3844, %v3840
      %v3846 = vmul.f32 %v3540, %v3845
      %v3847 = vrcp.pop %v3155
      %v3848 = vmul.f32 %v3155, %v3847
      %v3849 = vsub.f32 1.0, %v3848
      %v3850 = vmul.f32 %v3847, %v3849
      %v3851 = vadd.f32 %v3847, %v3850
      %vm3852 = vweird.f32 %v3155
      %vm3853 = vweird.f32 %v3847
      %vm3854 = vmor %vm3852, %vm3853
      %v3855 = vsel %vm3854, %v3847, %v3851
      %v3856 = vand.u32 2147483647, %v3155
      %vm3857 = vcmp.eq.f32.partialorder %v3856, 8.507059e+37
      %v3858 = vand.u32 %v3155, 2147483648
      %v3859 = vor.u32 1.1754944e-38, %v3858
      %v3860 = vsel %vm3857, %v3859, %v3855
      %v3861 = vmul.f32 %v3543, %v3860
      %v3862 = vrcp.pop %v3160
      %v3863 = vmul.f32 %v3160, %v3862
      %v3864 = vsub.f32 1.0, %v3863
      %v3865 = vmul.f32 %v3862, %v3864
      %v3866 = vadd.f32 %v3862, %v3865
      %vm3867 = vweird.f32 %v3160
      %vm3868 = vweird.f32 %v3862
      %vm3869 = vmor %vm3867, %vm3868
      %v3870 = vsel %vm3869, %v3862, %v3866
      %v3871 = vand.u32 2147483647, %v3160
      %vm3872 = vcmp.eq.f32.partialorder %v3871, 8.507059e+37
      %v3873 = vand.u32 %v3160, 2147483648
      %v3874 = vor.u32 1.1754944e-38, %v3873
      %v3875 = vsel %vm3872, %v3874, %v3870
      %v3876 = vmul.f32 %v3545, %v3875
      %v3877 = vrcp.pop %v3165
      %v3878 = vmul.f32 %v3165, %v3877
      %v3879 = vsub.f32 1.0, %v3878
      %v3880 = vmul.f32 %v3877, %v3879
      %v3881 = vadd.f32 %v3877, %v3880
      %vm3882 = vweird.f32 %v3165
      %vm3883 = vweird.f32 %v3877
      %vm3884 = vmor %vm3882, %vm3883
      %v3885 = vsel %vm3884, %v3877, %v3881
      %v3886 = vand.u32 2147483647, %v3165
      %vm3887 = vcmp.eq.f32.partialorder %v3886, 8.507059e+37
      %v3888 = vand.u32 %v3165, 2147483648
      %v3889 = vor.u32 1.1754944e-38, %v3888
      %v3890 = vsel %vm3887, %v3889, %v3885
      %v3891 = vmul.f32 %v3548, %v3890
      %v3892 = vrcp.pop %v3170
      %v3893 = vmul.f32 %v3170, %v3892
      %v3894 = vsub.f32 1.0, %v3893
      %v3895 = vmul.f32 %v3892, %v3894
      %v3896 = vadd.f32 %v3892, %v3895
      %vm3897 = vweird.f32 %v3170
      %vm3898 = vweird.f32 %v3892
      %vm3899 = vmor %vm3897, %vm3898
      %v3900 = vsel %vm3899, %v3892, %v3896
      %v3901 = vand.u32 2147483647, %v3170
      %vm3902 = vcmp.eq.f32.partialorder %v3901, 8.507059e+37
      %v3903 = vand.u32 %v3170, 2147483648
      %v3904 = vor.u32 1.1754944e-38, %v3903
      %v3905 = vsel %vm3902, %v3904, %v3900
      %v3906 = vmul.f32 %v3550, %v3905
      %v3907 = vrcp.pop %v3175
      %v3908 = vmul.f32 %v3175, %v3907
      %v3909 = vsub.f32 1.0, %v3908
      %v3910 = vmul.f32 %v3907, %v3909
      %v3911 = vadd.f32 %v3907, %v3910
      %vm3912 = vweird.f32 %v3175
      %vm3913 = vweird.f32 %v3907
      %vm3914 = vmor %vm3912, %vm3913
      %v3915 = vsel %vm3914, %v3907, %v3911
      %v3916 = vand.u32 2147483647, %v3175
      %vm3917 = vcmp.eq.f32.partialorder %v3916, 8.507059e+37
      %v3918 = vand.u32 %v3175, 2147483648
      %v3919 = vor.u32 1.1754944e-38, %v3918
      %v3920 = vsel %vm3917, %v3919, %v3915
      %v3921 = vmul.f32 %v3553, %v3920
      %v3922 = vrcp.pop %v3180
      %v3923 = vmul.f32 %v3180, %v3922
      %v3924 = vsub.f32 1.0, %v3923
      %v3925 = vmul.f32 %v3922, %v3924
      %v3926 = vadd.f32 %v3922, %v3925
      %vm3927 = vweird.f32 %v3180
      %vm3928 = vweird.f32 %v3922
      %vm3929 = vmor %vm3927, %vm3928
      %v3930 = vsel %vm3929, %v3922, %v3926
      %v3931 = vand.u32 2147483647, %v3180
      %vm3932 = vcmp.eq.f32.partialorder %v3931, 8.507059e+37
      %v3933 = vand.u32 %v3180, 2147483648
      %v3934 = vor.u32 1.1754944e-38, %v3933
      %v3935 = vsel %vm3932, %v3934, %v3930
      %v3936 = vmul.f32 %v3555, %v3935
      %v3937 = vrcp.pop %v3185
      %v3938 = vmul.f32 %v3185, %v3937
      %v3939 = vsub.f32 1.0, %v3938
      %v3940 = vmul.f32 %v3937, %v3939
      %v3941 = vadd.f32 %v3937, %v3940
      %vm3942 = vweird.f32 %v3185
      %vm3943 = vweird.f32 %v3937
      %vm3944 = vmor %vm3942, %vm3943
      %v3945 = vsel %vm3944, %v3937, %v3941
      %v3946 = vand.u32 2147483647, %v3185
      %vm3947 = vcmp.eq.f32.partialorder %v3946, 8.507059e+37
      %v3948 = vand.u32 %v3185, 2147483648
      %v3949 = vor.u32 1.1754944e-38, %v3948
      %v3950 = vsel %vm3947, %v3949, %v3945
      %v3951 = vmul.f32 %v3558, %v3950
      %v3952 = vrcp.pop %v3190
      %v3953 = vmul.f32 %v3190, %v3952
      %v3954 = vsub.f32 1.0, %v3953
      %v3955 = vmul.f32 %v3952, %v3954
      %v3956 = vadd.f32 %v3952, %v3955
      %vm3957 = vweird.f32 %v3190
      %vm3958 = vweird.f32 %v3952
      %vm3959 = vmor %vm3957, %vm3958
      %v3960 = vsel %vm3959, %v3952, %v3956
      %v3961 = vand.u32 2147483647, %v3190
      %vm3962 = vcmp.eq.f32.partialorder %v3961, 8.507059e+37
      %v3963 = vand.u32 %v3190, 2147483648
      %v3964 = vor.u32 1.1754944e-38, %v3963
      %v3965 = vsel %vm3962, %v3964, %v3960
      %v3966 = vmul.f32 %v3560, %v3965
      %v3967 = vrcp.pop %v3195
      %v3968 = vmul.f32 %v3195, %v3967
      %v3969 = vsub.f32 1.0, %v3968
      %v3970 = vmul.f32 %v3967, %v3969
      %v3971 = vadd.f32 %v3967, %v3970
      %vm3972 = vweird.f32 %v3195
      %vm3973 = vweird.f32 %v3967
      %vm3974 = vmor %vm3972, %vm3973
      %v3975 = vsel %vm3974, %v3967, %v3971
      %v3976 = vand.u32 2147483647, %v3195
      %vm3977 = vcmp.eq.f32.partialorder %v3976, 8.507059e+37
      %v3978 = vand.u32 %v3195, 2147483648
      %v3979 = vor.u32 1.1754944e-38, %v3978
      %v3980 = vsel %vm3977, %v3979, %v3975
      %v3981 = vmul.f32 %v3563, %v3980
      %v3982 = vrcp.pop %v3200
      %v3983 = vmul.f32 %v3200, %v3982
      %v3984 = vsub.f32 1.0, %v3983
      %v3985 = vmul.f32 %v3982, %v3984
      %v3986 = vadd.f32 %v3982, %v3985
      %vm3987 = vweird.f32 %v3200
      %vm3988 = vweird.f32 %v3982
      %vm3989 = vmor %vm3987, %vm3988
      %v3990 = vsel %vm3989, %v3982, %v3986
      %v3991 = vand.u32 2147483647, %v3200
      %vm3992 = vcmp.eq.f32.partialorder %v3991, 8.507059e+37
      %v3993 = vand.u32 %v3200, 2147483648
      %v3994 = vor.u32 1.1754944e-38, %v3993
      %v3995 = vsel %vm3992, %v3994, %v3990
      %v3996 = vmul.f32 %v3565, %v3995
      %v3997 = vrcp.pop %v3205
      %v3998 = vmul.f32 %v3205, %v3997
      %v3999 = vsub.f32 1.0, %v3998
      %v4000 = vmul.f32 %v3997, %v3999
      %v4001 = vadd.f32 %v3997, %v4000
      %vm4002 = vweird.f32 %v3205
      %vm4003 = vweird.f32 %v3997
      %vm4004 = vmor %vm4002, %vm4003
      %v4005 = vsel %vm4004, %v3997, %v4001
      %v4006 = vand.u32 2147483647, %v3205
      %vm4007 = vcmp.eq.f32.partialorder %v4006, 8.507059e+37
      %v4008 = vand.u32 %v3205, 2147483648
      %v4009 = vor.u32 1.1754944e-38, %v4008
      %v4010 = vsel %vm4007, %v4009, %v4005
      %v4011 = vmul.f32 %v3568, %v4010
      %v4012 = vrcp.pop %v3210
      %v4013 = vmul.f32 %v3210, %v4012
      %v4014 = vsub.f32 1.0, %v4013
      %v4015 = vmul.f32 %v4012, %v4014
      %v4016 = vadd.f32 %v4012, %v4015
      %vm4017 = vweird.f32 %v3210
      %vm4018 = vweird.f32 %v4012
      %vm4019 = vmor %vm4017, %vm4018
      %v4020 = vsel %vm4019, %v4012, %v4016
      %v4021 = vand.u32 2147483647, %v3210
      %vm4022 = vcmp.eq.f32.partialorder %v4021, 8.507059e+37
      %v4023 = vand.u32 %v3210, 2147483648
      %v4024 = vor.u32 1.1754944e-38, %v4023
      %v4025 = vsel %vm4022, %v4024, %v4020
      %v4026 = vmul.f32 %v3570, %v4025
      %v4027 = vrcp.pop %v3215
      %v4028 = vmul.f32 %v3215, %v4027
      %v4029 = vsub.f32 1.0, %v4028
      %v4030 = vmul.f32 %v4027, %v4029
      %v4031 = vadd.f32 %v4027, %v4030
      %vm4032 = vweird.f32 %v3215
      %vm4033 = vweird.f32 %v4027
      %vm4034 = vmor %vm4032, %vm4033
      %v4035 = vsel %vm4034, %v4027, %v4031
      %v4036 = vand.u32 2147483647, %v3215
      %vm4037 = vcmp.eq.f32.partialorder %v4036, 8.507059e+37
      %v4038 = vand.u32 %v3215, 2147483648
      %v4039 = vor.u32 1.1754944e-38, %v4038
      %v4040 = vsel %vm4037, %v4039, %v4035
      %v4041 = vmul.f32 %v3573, %v4040
      %v4042 = vrcp.pop %v3220
      %v4043 = vmul.f32 %v3220, %v4042
      %v4044 = vsub.f32 1.0, %v4043
      %v4045 = vmul.f32 %v4042, %v4044
      %v4046 = vadd.f32 %v4042, %v4045
      %vm4047 = vweird.f32 %v3220
      %vm4048 = vweird.f32 %v4042
      %vm4049 = vmor %vm4047, %vm4048
      %v4050 = vsel %vm4049, %v4042, %v4046
      %v4051 = vand.u32 2147483647, %v3220
      %vm4052 = vcmp.eq.f32.partialorder %v4051, 8.507059e+37
      %v4053 = vand.u32 %v3220, 2147483648
      %v4054 = vor.u32 1.1754944e-38, %v4053
      %v4055 = vsel %vm4052, %v4054, %v4050
      %v4056 = vmul.f32 %v3575, %v4055
      %v4057 = vld [vmem:[%s4] sm:$0x1]
      %v4059 = vperm.slane %v4057, 0
      %v4061 = vadd.f32 %v3591, %v4059
      %v4062 = vadd.f32 %v3606, %v4059
      %v4063 = vadd.f32 %v3621, %v4059
      %v4064 = vadd.f32 %v3636, %v4059
      %v4065 = vadd.f32 %v3651, %v4059
      %v4066 = vadd.f32 %v3666, %v4059
      %v4067 = vadd.f32 %v3681, %v4059
      %v4068 = vadd.f32 %v3696, %v4059
      %v4069 = vadd.f32 %v3711, %v4059
      %v4070 = vadd.f32 %v3726, %v4059
      %v4071 = vadd.f32 %v3741, %v4059
      %v4072 = vadd.f32 %v3756, %v4059
      %v4073 = vadd.f32 %v3771, %v4059
      %v4074 = vadd.f32 %v3786, %v4059
      %v4075 = vadd.f32 %v3801, %v4059
      %v4076 = vadd.f32 %v3816, %v4059
      %v4077 = vadd.f32 %v3831, %v4059
      %v4078 = vadd.f32 %v3846, %v4059
      %v4079 = vadd.f32 %v3861, %v4059
      %v4080 = vadd.f32 %v3876, %v4059
      %v4081 = vadd.f32 %v3891, %v4059
      %v4082 = vadd.f32 %v3906, %v4059
      %v4083 = vadd.f32 %v3921, %v4059
      %v4084 = vadd.f32 %v3936, %v4059
      %v4085 = vadd.f32 %v3951, %v4059
      %v4086 = vadd.f32 %v3966, %v4059
      %v4087 = vadd.f32 %v3981, %v4059
      %v4088 = vadd.f32 %v3996, %v4059
      %v4089 = vadd.f32 %v4011, %v4059
      %v4090 = vadd.f32 %v4026, %v4059
      %v4091 = vadd.f32 %v4041, %v4059
      %v4092 = vadd.f32 %v4056, %v4059
      %v4093 = vlaneseq
      %v4094 = vand.u32 %v4093, 127
      %vm4095 = vcmp.lt.s32.totalorder %v4094, 8
      %v4096 = vsel %vm4095, %v4061, -9e+15
      %v4097 = vsel %vm4095, %v4062, -9e+15
      %v4098 = vsel %vm4095, %v4063, -9e+15
      %v4099 = vsel %vm4095, %v4064, -9e+15
      %v4100 = vsel %vm4095, %v4065, -9e+15
      %v4101 = vsel %vm4095, %v4066, -9e+15
      %v4102 = vsel %vm4095, %v4067, -9e+15
      %v4103 = vsel %vm4095, %v4068, -9e+15
      %v4104 = vsel %vm4095, %v4069, -9e+15
      %v4105 = vsel %vm4095, %v4070, -9e+15
      %v4106 = vsel %vm4095, %v4071, -9e+15
      %v4107 = vsel %vm4095, %v4072, -9e+15
      %v4108 = vsel %vm4095, %v4073, -9e+15
      %v4109 = vsel %vm4095, %v4074, -9e+15
      %v4110 = vsel %vm4095, %v4075, -9e+15
      %v4111 = vsel %vm4095, %v4076, -9e+15
      %v4112 = vsel %vm4095, %v4077, -9e+15
      %v4113 = vsel %vm4095, %v4078, -9e+15
      %v4114 = vsel %vm4095, %v4079, -9e+15
      %v4115 = vsel %vm4095, %v4080, -9e+15
      %v4116 = vsel %vm4095, %v4081, -9e+15
      %v4117 = vsel %vm4095, %v4082, -9e+15
      %v4118 = vsel %vm4095, %v4083, -9e+15
      %v4119 = vsel %vm4095, %v4084, -9e+15
      %v4120 = vsel %vm4095, %v4085, -9e+15
      %v4121 = vsel %vm4095, %v4086, -9e+15
      %v4122 = vsel %vm4095, %v4087, -9e+15
      %v4123 = vsel %vm4095, %v4088, -9e+15
      %v4124 = vsel %vm4095, %v4089, -9e+15
      %v4125 = vsel %vm4095, %v4090, -9e+15
      %v4126 = vsel %vm4095, %v4091, -9e+15
      %v4127 = vsel %vm4095, %v4092, -9e+15
      %4128 = vmax.xlane.f32.xlu0 %v4096
      %v4129 = vpop.xlane.xlu0 %4128
      %4130 = vmax.xlane.f32.xlu0 %v4097
      %v4131 = vpop.xlane.xlu0 %4130
      %4132 = vmax.xlane.f32.xlu0 %v4098
      %v4133 = vpop.xlane.xlu0 %4132
      %4134 = vmax.xlane.f32.xlu0 %v4099
      %v4135 = vpop.xlane.xlu0 %4134
      %4136 = vmax.xlane.f32.xlu0 %v4100
      %v4137 = vpop.xlane.xlu0 %4136
      %4138 = vmax.xlane.f32.xlu0 %v4101
      %v4139 = vpop.xlane.xlu0 %4138
      %4140 = vmax.xlane.f32.xlu0 %v4102
      %v4141 = vpop.xlane.xlu0 %4140
      %4142 = vmax.xlane.f32.xlu0 %v4103
      %v4143 = vpop.xlane.xlu0 %4142
      %4144 = vmax.xlane.f32.xlu0 %v4104
      %v4145 = vpop.xlane.xlu0 %4144
      %4146 = vmax.xlane.f32.xlu0 %v4105
      %v4147 = vpop.xlane.xlu0 %4146
      %4148 = vmax.xlane.f32.xlu0 %v4106
      %v4149 = vpop.xlane.xlu0 %4148
      %4150 = vmax.xlane.f32.xlu0 %v4107
      %v4151 = vpop.xlane.xlu0 %4150
      %4152 = vmax.xlane.f32.xlu0 %v4108
      %v4153 = vpop.xlane.xlu0 %4152
      %4154 = vmax.xlane.f32.xlu0 %v4109
      %v4155 = vpop.xlane.xlu0 %4154
      %4156 = vmax.xlane.f32.xlu0 %v4110
      %v4157 = vpop.xlane.xlu0 %4156
      %4158 = vmax.xlane.f32.xlu0 %v4111
      %v4159 = vpop.xlane.xlu0 %4158
      %4160 = vmax.xlane.f32.xlu0 %v4112
      %v4161 = vpop.xlane.xlu0 %4160
      %4162 = vmax.xlane.f32.xlu0 %v4113
      %v4163 = vpop.xlane.xlu0 %4162
      %4164 = vmax.xlane.f32.xlu0 %v4114
      %v4165 = vpop.xlane.xlu0 %4164
      %4166 = vmax.xlane.f32.xlu0 %v4115
      %v4167 = vpop.xlane.xlu0 %4166
      %4168 = vmax.xlane.f32.xlu0 %v4116
      %v4169 = vpop.xlane.xlu0 %4168
      %4170 = vmax.xlane.f32.xlu0 %v4117
      %v4171 = vpop.xlane.xlu0 %4170
      %4172 = vmax.xlane.f32.xlu0 %v4118
      %v4173 = vpop.xlane.xlu0 %4172
      %4174 = vmax.xlane.f32.xlu0 %v4119
      %v4175 = vpop.xlane.xlu0 %4174
      %4176 = vmax.xlane.f32.xlu0 %v4120
      %v4177 = vpop.xlane.xlu0 %4176
      %4178 = vmax.xlane.f32.xlu0 %v4121
      %v4179 = vpop.xlane.xlu0 %4178
      %4180 = vmax.xlane.f32.xlu0 %v4122
      %v4181 = vpop.xlane.xlu0 %4180
      %4182 = vmax.xlane.f32.xlu0 %v4123
      %v4183 = vpop.xlane.xlu0 %4182
      %4184 = vmax.xlane.f32.xlu0 %v4124
      %v4185 = vpop.xlane.xlu0 %4184
      %4186 = vmax.xlane.f32.xlu0 %v4125
      %v4187 = vpop.xlane.xlu0 %4186
      %4188 = vmax.xlane.f32.xlu0 %v4126
      %v4189 = vpop.xlane.xlu0 %4188
      %4190 = vmax.xlane.f32.xlu0 %v4127
      %v4191 = vpop.xlane.xlu0 %4190
      %v4192 = vsub.f32 %v4096, %v4129
      %v4193 = vsub.f32 %v4097, %v4131
      %v4194 = vsub.f32 %v4098, %v4133
      %v4195 = vsub.f32 %v4099, %v4135
      %v4196 = vsub.f32 %v4100, %v4137
      %v4197 = vsub.f32 %v4101, %v4139
      %v4198 = vsub.f32 %v4102, %v4141
      %v4199 = vsub.f32 %v4103, %v4143
      %v4200 = vsub.f32 %v4104, %v4145
      %v4201 = vsub.f32 %v4105, %v4147
      %v4202 = vsub.f32 %v4106, %v4149
      %v4203 = vsub.f32 %v4107, %v4151
      %v4204 = vsub.f32 %v4108, %v4153
      %v4205 = vsub.f32 %v4109, %v4155
      %v4206 = vsub.f32 %v4110, %v4157
      %v4207 = vsub.f32 %v4111, %v4159
      %v4208 = vsub.f32 %v4112, %v4161
      %v4209 = vsub.f32 %v4113, %v4163
      %v4210 = vsub.f32 %v4114, %v4165
      %v4211 = vsub.f32 %v4115, %v4167
      %v4212 = vsub.f32 %v4116, %v4169
      %v4213 = vsub.f32 %v4117, %v4171
      %v4214 = vsub.f32 %v4118, %v4173
      %v4215 = vsub.f32 %v4119, %v4175
      %v4216 = vsub.f32 %v4120, %v4177
      %v4217 = vsub.f32 %v4121, %v4179
      %v4218 = vsub.f32 %v4122, %v4181
      %v4219 = vsub.f32 %v4123, %v4183
      %v4220 = vsub.f32 %v4124, %v4185
      %v4221 = vsub.f32 %v4125, %v4187
      %v4222 = vsub.f32 %v4126, %v4189
      %v4223 = vsub.f32 %v4127, %v4191
      %v4224 = vmul.f32 %v4192, 1.442695
      %v4225 = vpow.pop %v4224
      %v4226 = vmul.f32 %v4193, 1.442695
      %v4227 = vpow.pop %v4226
      %v4228 = vmul.f32 %v4194, 1.442695
      %v4229 = vpow.pop %v4228
      %v4230 = vmul.f32 %v4195, 1.442695
      %v4231 = vpow.pop %v4230
      %v4232 = vmul.f32 %v4196, 1.442695
      %v4233 = vpow.pop %v4232
      %v4234 = vmul.f32 %v4197, 1.442695
      %v4235 = vpow.pop %v4234
      %v4236 = vmul.f32 %v4198, 1.442695
      %v4237 = vpow.pop %v4236
      %v4238 = vmul.f32 %v4199, 1.442695
      %v4239 = vpow.pop %v4238
      %v4240 = vmul.f32 %v4200, 1.442695
      %v4241 = vpow.pop %v4240
      %v4242 = vmul.f32 %v4201, 1.442695
      %v4243 = vpow.pop %v4242
      %v4244 = vmul.f32 %v4202, 1.442695
      %v4245 = vpow.pop %v4244
      %v4246 = vmul.f32 %v4203, 1.442695
      %v4247 = vpow.pop %v4246
      %v4248 = vmul.f32 %v4204, 1.442695
      %v4249 = vpow.pop %v4248
      %v4250 = vmul.f32 %v4205, 1.442695
      %v4251 = vpow.pop %v4250
      %v4252 = vmul.f32 %v4206, 1.442695
      %v4253 = vpow.pop %v4252
      %v4254 = vmul.f32 %v4207, 1.442695
      %v4255 = vpow.pop %v4254
      %v4256 = vmul.f32 %v4208, 1.442695
      %v4257 = vpow.pop %v4256
      %v4258 = vmul.f32 %v4209, 1.442695
      %v4259 = vpow.pop %v4258
      %v4260 = vmul.f32 %v4210, 1.442695
      %v4261 = vpow.pop %v4260
      %v4262 = vmul.f32 %v4211, 1.442695
      %v4263 = vpow.pop %v4262
      %v4264 = vmul.f32 %v4212, 1.442695
      %v4265 = vpow.pop %v4264
      %v4266 = vmul.f32 %v4213, 1.442695
      %v4267 = vpow.pop %v4266
      %v4268 = vmul.f32 %v4214, 1.442695
      %v4269 = vpow.pop %v4268
      %v4270 = vmul.f32 %v4215, 1.442695
      %v4271 = vpow.pop %v4270
      %v4272 = vmul.f32 %v4216, 1.442695
      %v4273 = vpow.pop %v4272
      %v4274 = vmul.f32 %v4217, 1.442695
      %v4275 = vpow.pop %v4274
      %v4276 = vmul.f32 %v4218, 1.442695
      %v4277 = vpow.pop %v4276
      %v4278 = vmul.f32 %v4219, 1.442695
      %v4279 = vpow.pop %v4278
      %v4280 = vmul.f32 %v4220, 1.442695
      %v4281 = vpow.pop %v4280
      %v4282 = vmul.f32 %v4221, 1.442695
      %v4283 = vpow.pop %v4282
      %v4284 = vmul.f32 %v4222, 1.442695
      %v4285 = vpow.pop %v4284
      %v4286 = vmul.f32 %v4223, 1.442695
      %v4287 = vpow.pop %v4286
      %4288 = vadd.xlane.f32.xlu0 %v4225
      %v4289 = vpop.xlane.xlu0 %4288
      %4290 = vadd.xlane.f32.xlu0 %v4227
      %v4291 = vpop.xlane.xlu0 %4290
      %4292 = vadd.xlane.f32.xlu0 %v4229
      %v4293 = vpop.xlane.xlu0 %4292
      %4294 = vadd.xlane.f32.xlu0 %v4231
      %v4295 = vpop.xlane.xlu0 %4294
      %4296 = vadd.xlane.f32.xlu0 %v4233
      %v4297 = vpop.xlane.xlu0 %4296
      %4298 = vadd.xlane.f32.xlu0 %v4235
      %v4299 = vpop.xlane.xlu0 %4298
      %4300 = vadd.xlane.f32.xlu0 %v4237
      %v4301 = vpop.xlane.xlu0 %4300
      %4302 = vadd.xlane.f32.xlu0 %v4239
      %v4303 = vpop.xlane.xlu0 %4302
      %4304 = vadd.xlane.f32.xlu0 %v4241
      %v4305 = vpop.xlane.xlu0 %4304
      %4306 = vadd.xlane.f32.xlu0 %v4243
      %v4307 = vpop.xlane.xlu0 %4306
      %4308 = vadd.xlane.f32.xlu0 %v4245
      %v4309 = vpop.xlane.xlu0 %4308
      %4310 = vadd.xlane.f32.xlu0 %v4247
      %v4311 = vpop.xlane.xlu0 %4310
      %4312 = vadd.xlane.f32.xlu0 %v4249
      %v4313 = vpop.xlane.xlu0 %4312
      %4314 = vadd.xlane.f32.xlu0 %v4251
      %v4315 = vpop.xlane.xlu0 %4314
      %4316 = vadd.xlane.f32.xlu0 %v4253
      %v4317 = vpop.xlane.xlu0 %4316
      %4318 = vadd.xlane.f32.xlu0 %v4255
      %v4319 = vpop.xlane.xlu0 %4318
      %4320 = vadd.xlane.f32.xlu0 %v4257
      %v4321 = vpop.xlane.xlu0 %4320
      %4322 = vadd.xlane.f32.xlu0 %v4259
      %v4323 = vpop.xlane.xlu0 %4322
      %4324 = vadd.xlane.f32.xlu0 %v4261
      %v4325 = vpop.xlane.xlu0 %4324
      %4326 = vadd.xlane.f32.xlu0 %v4263
      %v4327 = vpop.xlane.xlu0 %4326
      %4328 = vadd.xlane.f32.xlu0 %v4265
      %v4329 = vpop.xlane.xlu0 %4328
      %4330 = vadd.xlane.f32.xlu0 %v4267
      %v4331 = vpop.xlane.xlu0 %4330
      %4332 = vadd.xlane.f32.xlu0 %v4269
      %v4333 = vpop.xlane.xlu0 %4332
      %4334 = vadd.xlane.f32.xlu0 %v4271
      %v4335 = vpop.xlane.xlu0 %4334
      %4336 = vadd.xlane.f32.xlu0 %v4273
      %v4337 = vpop.xlane.xlu0 %4336
      %4338 = vadd.xlane.f32.xlu0 %v4275
      %v4339 = vpop.xlane.xlu0 %4338
      %4340 = vadd.xlane.f32.xlu0 %v4277
      %v4341 = vpop.xlane.xlu0 %4340
      %4342 = vadd.xlane.f32.xlu0 %v4279
      %v4343 = vpop.xlane.xlu0 %4342
      %4344 = vadd.xlane.f32.xlu0 %v4281
      %v4345 = vpop.xlane.xlu0 %4344
      %4346 = vadd.xlane.f32.xlu0 %v4283
      %v4347 = vpop.xlane.xlu0 %4346
      %4348 = vadd.xlane.f32.xlu0 %v4285
      %v4349 = vpop.xlane.xlu0 %4348
      %4350 = vadd.xlane.f32.xlu0 %v4287
      %v4351 = vpop.xlane.xlu0 %4350
      %v4352 = vlog2.pop %v4289
      %v4353 = vmul.f32 %v4352, 0.6931472
      %v4354 = vlog2.pop %v4291
      %v4355 = vmul.f32 %v4354, 0.6931472
      %v4356 = vlog2.pop %v4293
      %v4357 = vmul.f32 %v4356, 0.6931472
      %v4358 = vlog2.pop %v4295
      %v4359 = vmul.f32 %v4358, 0.6931472
      %v4360 = vlog2.pop %v4297
      %v4361 = vmul.f32 %v4360, 0.6931472
      %v4362 = vlog2.pop %v4299
      %v4363 = vmul.f32 %v4362, 0.6931472
      %v4364 = vlog2.pop %v4301
      %v4365 = vmul.f32 %v4364, 0.6931472
      %v4366 = vlog2.pop %v4303
      %v4367 = vmul.f32 %v4366, 0.6931472
      %v4368 = vlog2.pop %v4305
      %v4369 = vmul.f32 %v4368, 0.6931472
      %v4370 = vlog2.pop %v4307
      %v4371 = vmul.f32 %v4370, 0.6931472
      %v4372 = vlog2.pop %v4309
      %v4373 = vmul.f32 %v4372, 0.6931472
      %v4374 = vlog2.pop %v4311
      %v4375 = vmul.f32 %v4374, 0.6931472
      %v4376 = vlog2.pop %v4313
      %v4377 = vmul.f32 %v4376, 0.6931472
      %v4378 = vlog2.pop %v4315
      %v4379 = vmul.f32 %v4378, 0.6931472
      %v4380 = vlog2.pop %v4317
      %v4381 = vmul.f32 %v4380, 0.6931472
      %v4382 = vlog2.pop %v4319
      %v4383 = vmul.f32 %v4382, 0.6931472
      %v4384 = vlog2.pop %v4321
      %v4385 = vmul.f32 %v4384, 0.6931472
      %v4386 = vlog2.pop %v4323
      %v4387 = vmul.f32 %v4386, 0.6931472
      %v4388 = vlog2.pop %v4325
      %v4389 = vmul.f32 %v4388, 0.6931472
      %v4390 = vlog2.pop %v4327
      %v4391 = vmul.f32 %v4390, 0.6931472
      %v4392 = vlog2.pop %v4329
      %v4393 = vmul.f32 %v4392, 0.6931472
      %v4394 = vlog2.pop %v4331
      %v4395 = vmul.f32 %v4394, 0.6931472
      %v4396 = vlog2.pop %v4333
      %v4397 = vmul.f32 %v4396, 0.6931472
      %v4398 = vlog2.pop %v4335
      %v4399 = vmul.f32 %v4398, 0.6931472
      %v4400 = vlog2.pop %v4337
      %v4401 = vmul.f32 %v4400, 0.6931472
      %v4402 = vlog2.pop %v4339
      %v4403 = vmul.f32 %v4402, 0.6931472
      %v4404 = vlog2.pop %v4341
      %v4405 = vmul.f32 %v4404, 0.6931472
      %v4406 = vlog2.pop %v4343
      %v4407 = vmul.f32 %v4406, 0.6931472
      %v4408 = vlog2.pop %v4345
      %v4409 = vmul.f32 %v4408, 0.6931472
      %v4410 = vlog2.pop %v4347
      %v4411 = vmul.f32 %v4410, 0.6931472
      %v4412 = vlog2.pop %v4349
      %v4413 = vmul.f32 %v4412, 0.6931472
      %v4414 = vlog2.pop %v4351
      %v4415 = vmul.f32 %v4414, 0.6931472
      %v4416 = vsub.f32 %v4192, %v4353
      %v4417 = vsub.f32 %v4193, %v4355
      %v4418 = vsub.f32 %v4194, %v4357
      %v4419 = vsub.f32 %v4195, %v4359
      %v4420 = vsub.f32 %v4196, %v4361
      %v4421 = vsub.f32 %v4197, %v4363
      %v4422 = vsub.f32 %v4198, %v4365
      %v4423 = vsub.f32 %v4199, %v4367
      %v4424 = vsub.f32 %v4200, %v4369
      %v4425 = vsub.f32 %v4201, %v4371
      %v4426 = vsub.f32 %v4202, %v4373
      %v4427 = vsub.f32 %v4203, %v4375
      %v4428 = vsub.f32 %v4204, %v4377
      %v4429 = vsub.f32 %v4205, %v4379
      %v4430 = vsub.f32 %v4206, %v4381
      %v4431 = vsub.f32 %v4207, %v4383
      %v4432 = vsub.f32 %v4208, %v4385
      %v4433 = vsub.f32 %v4209, %v4387
      %v4434 = vsub.f32 %v4210, %v4389
      %v4435 = vsub.f32 %v4211, %v4391
      %v4436 = vsub.f32 %v4212, %v4393
      %v4437 = vsub.f32 %v4213, %v4395
      %v4438 = vsub.f32 %v4214, %v4397
      %v4439 = vsub.f32 %v4215, %v4399
      %v4440 = vsub.f32 %v4216, %v4401
      %v4441 = vsub.f32 %v4217, %v4403
      %v4442 = vsub.f32 %v4218, %v4405
      %v4443 = vsub.f32 %v4219, %v4407
      %v4444 = vsub.f32 %v4220, %v4409
      %v4445 = vsub.f32 %v4221, %v4411
      %v4446 = vsub.f32 %v4222, %v4413
      %v4447 = vsub.f32 %v4223, %v4415
      %4448 = vst [vmem:[%s251] sm:$0xff] %v4416
      %4449 = vst [vmem:[%s251 + $0x8] sm:$0xff] %v4417
      %4450 = vst [vmem:[%s251 + $0x10] sm:$0xff] %v4418
      %4451 = vst [vmem:[%s251 + $0x18] sm:$0xff] %v4419
      %4452 = vst [vmem:[%s251 + $0x20] sm:$0xff] %v4420
      %4453 = vst [vmem:[%s251 + $0x28] sm:$0xff] %v4421
      %4454 = vst [vmem:[%s251 + $0x30] sm:$0xff] %v4422
      %4455 = vst [vmem:[%s251 + $0x38] sm:$0xff] %v4423
      %4456 = vst [vmem:[%s251 + $0x40] sm:$0xff] %v4424
      %4457 = vst [vmem:[%s251 + $0x48] sm:$0xff] %v4425
      %4458 = vst [vmem:[%s251 + $0x50] sm:$0xff] %v4426
      %4459 = vst [vmem:[%s251 + $0x58] sm:$0xff] %v4427
      %4460 = vst [vmem:[%s251 + $0x60] sm:$0xff] %v4428
      %4461 = vst [vmem:[%s251 + $0x68] sm:$0xff] %v4429
      %4462 = vst [vmem:[%s251 + $0x70] sm:$0xff] %v4430
      %4463 = vst [vmem:[%s251 + $0x78] sm:$0xff] %v4431
      %4464 = vst [vmem:[%s251 + $0x80] sm:$0xff] %v4432
      %4465 = vst [vmem:[%s251 + $0x88] sm:$0xff] %v4433
      %4466 = vst [vmem:[%s251 + $0x90] sm:$0xff] %v4434
      %4467 = vst [vmem:[%s251 + $0x98] sm:$0xff] %v4435
      %4468 = vst [vmem:[%s251 + $0xa0] sm:$0xff] %v4436
      %4469 = vst [vmem:[%s251 + $0xa8] sm:$0xff] %v4437
      %4470 = vst [vmem:[%s251 + $0xb0] sm:$0xff] %v4438
      %4471 = vst [vmem:[%s251 + $0xb8] sm:$0xff] %v4439
      %4472 = vst [vmem:[%s251 + $0xc0] sm:$0xff] %v4440
      %4473 = vst [vmem:[%s251 + $0xc8] sm:$0xff] %v4441
      %4474 = vst [vmem:[%s251 + $0xd0] sm:$0xff] %v4442
      %4475 = vst [vmem:[%s251 + $0xd8] sm:$0xff] %v4443
      %4476 = vst [vmem:[%s251 + $0xe0] sm:$0xff] %v4444
      %4477 = vst [vmem:[%s251 + $0xe8] sm:$0xff] %v4445
      %4478 = vst [vmem:[%s251 + $0xf0] sm:$0xff] %v4446
      %4479 = vst [vmem:[%s251 + $0xf8] sm:$0xff] %v4447
      %s4480 = smul.u32 32, %s16
      %p4481 = scmp.lt.s32.totalorder %s4480, 63
      %s4482 = scalar_select %p4481, %s4480, 63
      %s4483 = smul.addr %s4482, 8
      %s4484 = scalar_lea.vmem %s5, %s4483
      // Predicated region
      $region41: #{gat_forward.3} parent=39 // pred_check
        %p4485 = pneg %p149
      $region42: #{gat_forward.3} parent=39 // pred_check_branch
        %4487 = sbr.rel (%p4485) target = $region44
      $region43: #{gat_forward.3} parent=39 // pred_region
        %s4488 = smul.u32 32, %s16
      $region44: #{gat_forward.3} parent=39 // pred_fallthru
        _
    $region40: #{gat_forward.3} parent=5 // pred_fallthru
      _
    %p4489 = scmp.le.s32.totalorder 2, %s11
    // Predicated region
    $region45: #{gat_forward.3} parent=5 // pred_check
      %p4490 = pneg %p4489
    $region46: #{gat_forward.3} parent=5 // pred_check_branch
      %4492 = sbr.rel (%p4490) target = $region48
    $region47: #{gat_forward.3} parent=5 // pred_region
      %s4493 = ssub.s32 %s11, 2
      // Predicated region
      $region49: #{gat_forward.3} parent=47 // pred_check
        %p4494 = pneg %p155
      $region50: #{gat_forward.3} parent=47 // pred_check_branch
        %4496 = sbr.rel (%p4494) target = $region52
      $region51: #{gat_forward.3} parent=47 // pred_region
        %s4497 = smul.u32 32, %s17
        %p4498 = scmp.lt.s32.totalorder %s4497, 63
        %s4499 = scalar_select %p4498, %s4497, 63
        %s4500 = smul.addr %s4499, 8
        %s4501 = scalar_lea.vmem %s5, %s4500
      $region52: #{gat_forward.3} parent=47 // pred_fallthru
        _
    $region48: #{gat_forward.3} parent=5 // pred_fallthru
      _
  $region6: #{gat_forward.3} parent=0 // loop_footer
    %s15 = sadd.s32 1, %s11
  $region7: #{gat_forward.3} parent=0 // loop_footer_branch
    %10 = sbr.rel target = $region3
  $region8: #{gat_forward.3} parent=0 // loop_exit
    _

</llo_original>
